<compile_context>
chip_gen: v6e
topology: v6e:2x2x1
jax: 0.10.0
libtpu: 0.0.40
codegen_flags: <defaults>
</compile_context>

<pallas_src>
import functools

import jax
import jax.numpy as jnp
from jax import lax
from jax.experimental import pallas as pl
from jax.experimental.pallas import tpu as pltpu


def _basic_block_kernel(xpad_ref, xres_ref, w1_ref, s1_ref, b1_ref,
                        w2_ref, s2_ref, b2_ref, o_ref,
                        h1pad_ref, *, H, W, Cp, Pp, TH):
    # xpad_ref : (1, H+2, W, Cp) bf16  row-halo'd (rows 0 / H+1 zero), channel-padded
    # xres_ref : (1, H, W, Cp)   f32   residual window
    # w1_ref   : (9, Cp, Pp)     bf16  conv1 weights, tap-major (kh*3+kw, ci, co)
    # w2_ref   : (9, Pp, Pp)     bf16  conv2 weights
    # s*/b*    : (1, Pp)         f32   folded BN scale / bias
    # o_ref    : (1, H, W, Pp)   f32   output tile
    # h1pad_ref: (H+2, W, Pp)    bf16  row-halo'd conv2 input (BN1+ReLU applied)
    BLK = TH * W
    n_blk = H // TH

    # Columns whose shifted tap contribution wrapped around (i.e. would have
    # read the conv's zero W-padding).  Computed once, reused for every tap /
    # row block / conv.
    w_idx = lax.broadcasted_iota(jnp.int32, (TH, W, Pp), 1).reshape(BLK, Pp)
    mask_w_first = w_idx == 0          # kw == 0 tap reads input column w-1
    mask_w_last = w_idx == (W - 1)     # kw == 2 tap reads input column w+1

    def conv3x3_rows(load_rows, w_ref, h0):
        """f32 (BLK, Pp) conv output for output rows [h0, h0+TH). Register acc."""
        acc = None
        for kh in range(3):
            rows = load_rows(h0 + kh)                       # one clean bf16 load
            for kw in range(3):
                part = jnp.dot(rows, w_ref[kh * 3 + kw],
                               preferred_element_type=jnp.float32)
                # Shift the tap contribution along W on the matmul OUTPUT
                # (XLU roll + mask) instead of loading a shifted input window.
                if kw == 0:
                    part = jnp.where(mask_w_first, 0.0, pltpu.roll(part, 1, 0))
                elif kw == 2:
                    part = jnp.where(mask_w_last, 0.0,
                                     pltpu.roll(part, BLK - 1, 0))
                acc = part if acc is None else acc + part
        return acc

    # Zero the 1-row top/bottom halo of the conv2 intermediate (full-width).
    zrow = jnp.zeros((1, W, Pp), jnp.bfloat16)
    h1pad_ref[0:1, :, :] = zrow
    h1pad_ref[H + 1:H + 2, :, :] = zrow

    # ---- conv1 -> bn1 -> relu -> bf16 h1pad, one fused store per row block ----
    s1, b1 = s1_ref[0], b1_ref[0]
    load_x = lambda r: xpad_ref[0, r:r + TH, :, :].reshape(BLK, Cp)
    for blk in range(n_blk):
        h0 = blk * TH
        acc = conv3x3_rows(load_x, w1_ref, h0)
        h1 = jnp.maximum(acc * s1 + b1, 0.0)                    # f32 math
        h1pad_ref[1 + h0:1 + h0 + TH, :, :] = (
            h1.reshape(TH, W, Pp).astype(jnp.bfloat16))         # single bf16 store

    # ---- conv2 -> bn2 -> +residual -> relu, one fused store per row block ----
    s2, b2 = s2_ref[0], b2_ref[0]
    load_h1 = lambda r: h1pad_ref[r:r + TH, :, :].reshape(BLK, Pp)
    for blk in range(n_blk):
        h0 = blk * TH
        acc = conv3x3_rows(load_h1, w2_ref, h0)
        out2 = (acc * s2 + b2).reshape(TH, W, Pp)
        res = xres_ref[0, h0:h0 + TH, :, :]
        o_ref[0:1, h0:h0 + TH, :, :] = jnp.maximum(out2 + res, 0.0).reshape(
            1, TH, W, Pp).astype(o_ref.dtype)


def basic_block_pallas(x_nchw, params):
    """x_nchw: (N, C, H, W) float32. Returns (N, C, H, W) float32."""
    w1, g1, be1, m1, v1, w2, g2, be2, m2, v2 = params
    eps = 1e-5
    s1 = g1 / jnp.sqrt(v1 + eps)
    b1 = be1 - m1 * s1
    s2 = g2 / jnp.sqrt(v2 + eps)
    b2 = be2 - m2 * s2

    N, C, H, W = x_nchw.shape
    P = w1.shape[0]
    assert C == P, "downsample is None => inplanes must equal planes"

    LANE = 128
    Cp = ((C + LANE - 1) // LANE) * LANE     # lane-dense (padded) channel counts
    Pp = ((P + LANE - 1) // LANE) * LANE
    assert Cp == Pp

    TH = 8 if H % 8 == 0 else H              # output rows per register-accumulated block
    assert H % TH == 0

    # Layout glue: NCHW -> NHWC, channel-pad to the lane width.  The conv input
    # carries only a 1-row top/bottom halo (no W padding) and is pre-cast to
    # bf16 once (halves activation DMA + in-kernel load bytes).
    # TODO(synk): real ResNet widths (>=64 ch) fill the 128 lanes; for tiny C,
    #             pack spatial positions into lanes instead of zero-padding.
    x_nhwc = jnp.transpose(x_nchw, (0, 2, 3, 1))
    x_cpad = jnp.pad(x_nhwc, ((0, 0), (0, 0), (0, 0), (0, Cp - C)))
    xres = x_cpad                                                    # f32 residual
    xpad = jnp.pad(x_cpad, ((0, 0), (1, 1), (0, 0), (0, 0))).astype(jnp.bfloat16)

    # PyTorch conv weight (O, I, 3, 3) -> tap-major (9, I_pad, O_pad), bf16.
    def pack_w(w, ci_pad, co_pad):
        co, ci = w.shape[0], w.shape[1]
        wt = jnp.transpose(w, (2, 3, 1, 0)).reshape(9, ci, co)
        wt = jnp.pad(wt, ((0, 0), (0, ci_pad - ci), (0, co_pad - co)))
        return wt.astype(jnp.bfloat16)

    w1_t = pack_w(w1, Cp, Pp)
    w2_t = pack_w(w2, Pp, Pp)

    def pack_v(v, n):   # padded channels get scale=0 / bias=0 -> stay zero
        return jnp.pad(v, (0, n - v.shape[0])).reshape(1, n).astype(jnp.float32)

    s1v, b1v = pack_v(s1, Pp), pack_v(b1, Pp)
    s2v, b2v = pack_v(s2, Pp), pack_v(b2, Pp)

    kernel = functools.partial(_basic_block_kernel,
                               H=H, W=W, Cp=Cp, Pp=Pp, TH=TH)

    flops = N * 2 * (2 * H * W * 9 * Cp * Pp)
    bytes_accessed = (N * (H + 2) * W * Cp * 2             # xpad (bf16)
                      + N * H * W * Cp * 4                 # residual (f32)
                      + 9 * Cp * Pp * 2 + 9 * Pp * Pp * 2  # weights (bf16)
                      + 4 * Pp * 4                         # BN scale / bias
                      + N * H * W * Pp * 4)                # output

    out_nhwc = pl.pallas_call(
        kernel,
        out_shape=jax.ShapeDtypeStruct((N, H, W, Pp), jnp.float32),
        grid_spec=pltpu.PrefetchScalarGridSpec(
            num_scalar_prefetch=0,
            grid=(N,),
            in_specs=[
                pl.BlockSpec((1, H + 2, W, Cp), lambda n: (n, 0, 0, 0)),  # xpad
                pl.BlockSpec((1, H, W, Cp), lambda n: (n, 0, 0, 0)),      # residual
                pl.BlockSpec((9, Cp, Pp), lambda n: (0, 0, 0)),           # w1
                pl.BlockSpec((1, Pp), lambda n: (0, 0)),                  # s1
                pl.BlockSpec((1, Pp), lambda n: (0, 0)),                  # b1
                pl.BlockSpec((9, Pp, Pp), lambda n: (0, 0, 0)),           # w2
                pl.BlockSpec((1, Pp), lambda n: (0, 0)),                  # s2
                pl.BlockSpec((1, Pp), lambda n: (0, 0)),                  # b2
            ],
            out_specs=pl.BlockSpec((1, H, W, Pp), lambda n: (n, 0, 0, 0)),
            scratch_shapes=[
                pltpu.VMEM((H + 2, W, Pp), jnp.bfloat16),   # bf16 conv2 input
            ],
        ),
        compiler_params=pltpu.CompilerParams(
            dimension_semantics=("parallel",),
            vmem_limit_bytes=32 * 1024 * 1024),
        cost_estimate=pl.CostEstimate(flops=flops, transcendentals=0,
                                      bytes_accessed=bytes_accessed),
    )(xpad, xres, w1_t, s1v, b1v, w2_t, s2v, b2v)

    out = out_nhwc[:, :, :, :P]                 # drop channel padding
    return jnp.transpose(out, (0, 3, 1, 2))     # back to NCHW


def basic_block_ref(x_nchw, params, conv_dtype=jnp.float32):
    """Pure-JAX reference (eval-mode BN).

    conv_dtype=float32  -> exact semantics of the original PyTorch module.
    conv_dtype=bfloat16 -> matches the kernel's matmul numerics (bf16 operands,
                           f32 accumulation, f32 elementwise/residual).
    """
    w1, g1, be1, m1, v1, w2, g2, be2, m2, v2 = params
    eps = 1e-5

    def conv(x, w):  # x: NCHW, w: OIHW
        return lax.conv_general_dilated(
            x.astype(conv_dtype), w.astype(conv_dtype),
            window_strides=(1, 1), padding=((1, 1), (1, 1)),
            dimension_numbers=("NCHW", "OIHW", "NCHW"),
            preferred_element_type=jnp.float32)

    def bn(x, g, b, m, v):
        s = g / jnp.sqrt(v + eps)
        return x * s.reshape(1, -1, 1, 1) + (b - m * s).reshape(1, -1, 1, 1)

    out = jnp.maximum(bn(conv(x_nchw, w1), g1, be1, m1, v1), 0.0)
    out = bn(conv(out, w2), g2, be2, m2, v2)
    return jnp.maximum(out + x_nchw, 0.0)


if __name__ == "__main__":
    N, C, H, W = 2, 8, 16, 16          # inplanes == planes, stride=1, downsample=None
    P = C

    key = jax.random.PRNGKey(0)
    keys = jax.random.split(key, 11)
    x = jax.random.normal(keys[0], (N, C, H, W), jnp.float32)

    w1 = jax.random.normal(keys[1], (P, C, 3, 3), jnp.float32) * 0.1
    g1 = 1.0 + 0.1 * jax.random.normal(keys[2], (P,), jnp.float32)
    be1 = 0.1 * jax.random.normal(keys[3], (P,), jnp.float32)
    m1 = 0.1 * jax.random.normal(keys[4], (P,), jnp.float32)
    v1 = jnp.abs(jax.random.normal(keys[5], (P,), jnp.float32)) + 0.5

    w2 = jax.random.normal(keys[6], (P, P, 3, 3), jnp.float32) * 0.1
    g2 = 1.0 + 0.1 * jax.random.normal(keys[7], (P,), jnp.float32)
    be2 = 0.1 * jax.random.normal(keys[8], (P,), jnp.float32)
    m2 = 0.1 * jax.random.normal(keys[9], (P,), jnp.float32)
    v2 = jnp.abs(jax.random.normal(keys[10], (P,), jnp.float32)) + 0.5

    params = (w1, g1, be1, m1, v1, w2, g2, be2, m2, v2)

    out = jax.block_until_ready(basic_block_pallas(x, params))
    assert out.shape == (N, C, H, W)

    # Tight check against a reference matching the kernel's matmul numerics
    # (bf16 operands, f32 accumulation) ...
    ref_bf16 = basic_block_ref(x, params, conv_dtype=jnp.bfloat16)
    err_bf16 = float(jnp.max(jnp.abs(out - ref_bf16)))
    assert jnp.allclose(out, ref_bf16, atol=5e-3, rtol=5e-3), err_bf16

    # ... and a looser sanity check against exact f32 module semantics.
    ref_f32 = basic_block_ref(x, params, conv_dtype=jnp.float32)
    err_f32 = float(jnp.max(jnp.abs(out - ref_f32)))
    assert jnp.allclose(out, ref_f32, atol=1e-1, rtol=1e-1), err_f32

    print("KERNEL_OK")
</pallas_src>

<mosaic_0001>
module attributes {stable_mosaic.version = 11 : i64} {
  func.func @_basic_block_kernel(%arg0: i32, %arg1: memref<1x18x16x128xbf16, #tpu.memory_space<vmem>>, %arg2: memref<1x16x16x128xf32, #tpu.memory_space<vmem>>, %arg3: memref<9x128x128xbf16, #tpu.memory_space<vmem>>, %arg4: memref<1x128xf32, #tpu.memory_space<vmem>>, %arg5: memref<1x128xf32, #tpu.memory_space<vmem>>, %arg6: memref<9x128x128xbf16, #tpu.memory_space<vmem>>, %arg7: memref<1x128xf32, #tpu.memory_space<vmem>>, %arg8: memref<1x128xf32, #tpu.memory_space<vmem>>, %arg9: memref<1x16x16x128xf32, #tpu.memory_space<vmem>>, %arg10: memref<18x16x128xbf16, #tpu.memory_space<vmem>>) attributes {dimension_semantics = [#tpu.dimension_semantics<parallel>], iteration_bounds = array<i64: 2>, scalar_prefetch = 0 : i64, scratch_operands = 1 : i64, tpu.core_type = #tpu.core_type<tc>, window_params = [{transform_indices = @transform_0, window_bounds = array<i64: 1, 18, 16, 128>}, {transform_indices = @transform_1, window_bounds = array<i64: 1, 16, 16, 128>}, {pipeline_mode = #tpu.pipeline_mode<synchronous>, transform_indices = @transform_2, window_bounds = array<i64: 9, 128, 128>}, {pipeline_mode = #tpu.pipeline_mode<synchronous>, transform_indices = @transform_3, window_bounds = array<i64: 1, 128>}, {pipeline_mode = #tpu.pipeline_mode<synchronous>, transform_indices = @transform_4, window_bounds = array<i64: 1, 128>}, {pipeline_mode = #tpu.pipeline_mode<synchronous>, transform_indices = @transform_5, window_bounds = array<i64: 9, 128, 128>}, {pipeline_mode = #tpu.pipeline_mode<synchronous>, transform_indices = @transform_6, window_bounds = array<i64: 1, 128>}, {pipeline_mode = #tpu.pipeline_mode<synchronous>, transform_indices = @transform_7, window_bounds = array<i64: 1, 128>}, {transform_indices = @transform_8, window_bounds = array<i64: 1, 16, 16, 128>}]} {
    %0 = tpu.iota {dimensions = array<i32: 1>} : vector<8x16x128xi32>
    %1 = vector.shape_cast %0 : vector<8x16x128xi32> to vector<128x128xi32>
    %c0_i32 = arith.constant 0 : i32
    %2 = vector.broadcast %c0_i32 : i32 to vector<128x128xi32>
    %3 = arith.cmpi eq, %1, %2 : vector<128x128xi32>
    %c15_i32 = arith.constant 15 : i32
    %4 = vector.broadcast %c15_i32 : i32 to vector<128x128xi32>
    %5 = arith.cmpi eq, %1, %4 : vector<128x128xi32>
    %cst = arith.constant 0.000000e+00 : bf16
    %6 = vector.broadcast %cst : bf16 to vector<1x16x128xbf16>
    %c0 = arith.constant 0 : index
    %c0_0 = arith.constant 0 : index
    %c0_1 = arith.constant 0 : index
    %7 = vector.load %arg10[%c0, %c0_0, %c0_1] : memref<18x16x128xbf16, #tpu.memory_space<vmem>>, vector<1x16x128xbf16>
    tpu.vector_store %arg10[%c0, %c0_0, %c0_1], %6 {strides = array<i32>} : memref<18x16x128xbf16, #tpu.memory_space<vmem>>, vector<1x16x128xbf16>,
    %c17 = arith.constant 17 : index
    %c0_2 = arith.constant 0 : index
    %c0_3 = arith.constant 0 : index
    %8 = vector.load %arg10[%c17, %c0_2, %c0_3] : memref<18x16x128xbf16, #tpu.memory_space<vmem>>, vector<1x16x128xbf16>
    tpu.vector_store %arg10[%c17, %c0_2, %c0_3], %6 {strides = array<i32>} : memref<18x16x128xbf16, #tpu.memory_space<vmem>>, vector<1x16x128xbf16>,
    %c0_4 = arith.constant 0 : index
    %c0_5 = arith.constant 0 : index
    %9 = vector.load %arg4[%c0_4, %c0_5] : memref<1x128xf32, #tpu.memory_space<vmem>>, vector<1x128xf32>
    %10 = vector.shape_cast %9 : vector<1x128xf32> to vector<128xf32>
    %c0_6 = arith.constant 0 : index
    %c0_7 = arith.constant 0 : index
    %11 = vector.load %arg5[%c0_6, %c0_7] : memref<1x128xf32, #tpu.memory_space<vmem>>, vector<1x128xf32>
    %12 = vector.shape_cast %11 : vector<1x128xf32> to vector<128xf32>
    %c0_8 = arith.constant 0 : index
    %c0_9 = arith.constant 0 : index
    %c0_10 = arith.constant 0 : index
    %c0_11 = arith.constant 0 : index
    %13 = vector.load %arg1[%c0_8, %c0_9, %c0_10, %c0_11] : memref<1x18x16x128xbf16, #tpu.memory_space<vmem>>, vector<1x8x16x128xbf16>
    %14 = vector.shape_cast %13 : vector<1x8x16x128xbf16> to vector<8x16x128xbf16>
    %15 = vector.shape_cast %14 : vector<8x16x128xbf16> to vector<128x128xbf16>
    %c0_12 = arith.constant 0 : index
    %c0_13 = arith.constant 0 : index
    %c0_14 = arith.constant 0 : index
    %16 = vector.load %arg3[%c0_12, %c0_13, %c0_14] : memref<9x128x128xbf16, #tpu.memory_space<vmem>>, vector<1x128x128xbf16>
    %17 = vector.shape_cast %16 : vector<1x128x128xbf16> to vector<128x128xbf16>
    %cst_15 = arith.constant dense<0.000000e+00> : vector<128x128xf32>
    %18 = tpu.matmul %15, %17, %cst_15 {dimension_numbers = #tpu.dot_dimension_numbers<[1], [0], [0], [1], [0, 0, 1, 1], [], []>} : vector<128x128xbf16>, vector<128x128xbf16>, vector<128x128xf32> -> vector<128x128xf32>
    %c1_i32 = arith.constant 1 : i32
    %19 = tpu.dynamic_rotate %18 by %c1_i32 dim 0 : vector<128x128xf32>, i32 -> vector<128x128xf32>
    %cst_16 = arith.constant 0.000000e+00 : f32
    %20 = vector.broadcast %cst_16 : f32 to vector<128x128xf32>
    %21 = arith.select %3, %20, %19 : vector<128x128xi1>, vector<128x128xf32>
    %c1 = arith.constant 1 : index
    %c0_17 = arith.constant 0 : index
    %c0_18 = arith.constant 0 : index
    %22 = vector.load %arg3[%c1, %c0_17, %c0_18] : memref<9x128x128xbf16, #tpu.memory_space<vmem>>, vector<1x128x128xbf16>
    %23 = vector.shape_cast %22 : vector<1x128x128xbf16> to vector<128x128xbf16>
    %cst_19 = arith.constant dense<0.000000e+00> : vector<128x128xf32>
    %24 = tpu.matmul %15, %23, %cst_19 {dimension_numbers = #tpu.dot_dimension_numbers<[1], [0], [0], [1], [0, 0, 1, 1], [], []>} : vector<128x128xbf16>, vector<128x128xbf16>, vector<128x128xf32> -> vector<128x128xf32>
    %25 = arith.addf %21, %24 : vector<128x128xf32>
    %c2 = arith.constant 2 : index
    %c0_20 = arith.constant 0 : index
    %c0_21 = arith.constant 0 : index
    %26 = vector.load %arg3[%c2, %c0_20, %c0_21] : memref<9x128x128xbf16, #tpu.memory_space<vmem>>, vector<1x128x128xbf16>
    %27 = vector.shape_cast %26 : vector<1x128x128xbf16> to vector<128x128xbf16>
    %cst_22 = arith.constant dense<0.000000e+00> : vector<128x128xf32>
    %28 = tpu.matmul %15, %27, %cst_22 {dimension_numbers = #tpu.dot_dimension_numbers<[1], [0], [0], [1], [0, 0, 1, 1], [], []>} : vector<128x128xbf16>, vector<128x128xbf16>, vector<128x128xf32> -> vector<128x128xf32>
    %c127_i32 = arith.constant 127 : i32
    %29 = tpu.dynamic_rotate %28 by %c127_i32 dim 0 : vector<128x128xf32>, i32 -> vector<128x128xf32>
    %cst_23 = arith.constant 0.000000e+00 : f32
    %30 = vector.broadcast %cst_23 : f32 to vector<128x128xf32>
    %31 = arith.select %5, %30, %29 : vector<128x128xi1>, vector<128x128xf32>
    %32 = arith.addf %25, %31 : vector<128x128xf32>
    %c0_24 = arith.constant 0 : index
    %c1_25 = arith.constant 1 : index
    %c0_26 = arith.constant 0 : index
    %c0_27 = arith.constant 0 : index
    %33 = vector.load %arg1[%c0_24, %c1_25, %c0_26, %c0_27] : memref<1x18x16x128xbf16, #tpu.memory_space<vmem>>, vector<1x8x16x128xbf16>
    %34 = vector.shape_cast %33 : vector<1x8x16x128xbf16> to vector<8x16x128xbf16>
    %35 = vector.shape_cast %34 : vector<8x16x128xbf16> to vector<128x128xbf16>
    %c3 = arith.constant 3 : index
    %c0_28 = arith.constant 0 : index
    %c0_29 = arith.constant 0 : index
    %36 = vector.load %arg3[%c3, %c0_28, %c0_29] : memref<9x128x128xbf16, #tpu.memory_space<vmem>>, vector<1x128x128xbf16>
    %37 = vector.shape_cast %36 : vector<1x128x128xbf16> to vector<128x128xbf16>
    %cst_30 = arith.constant dense<0.000000e+00> : vector<128x128xf32>
    %38 = tpu.matmul %35, %37, %cst_30 {dimension_numbers = #tpu.dot_dimension_numbers<[1], [0], [0], [1], [0, 0, 1, 1], [], []>} : vector<128x128xbf16>, vector<128x128xbf16>, vector<128x128xf32> -> vector<128x128xf32>
    %c1_i32_31 = arith.constant 1 : i32
    %39 = tpu.dynamic_rotate %38 by %c1_i32_31 dim 0 : vector<128x128xf32>, i32 -> vector<128x128xf32>
    %cst_32 = arith.constant 0.000000e+00 : f32
    %40 = vector.broadcast %cst_32 : f32 to vector<128x128xf32>
    %41 = arith.select %3, %40, %39 : vector<128x128xi1>, vector<128x128xf32>
    %42 = arith.addf %32, %41 : vector<128x128xf32>
    %c4 = arith.constant 4 : index
    %c0_33 = arith.constant 0 : index
    %c0_34 = arith.constant 0 : index
    %43 = vector.load %arg3[%c4, %c0_33, %c0_34] : memref<9x128x128xbf16, #tpu.memory_space<vmem>>, vector<1x128x128xbf16>
    %44 = vector.shape_cast %43 : vector<1x128x128xbf16> to vector<128x128xbf16>
    %cst_35 = arith.constant dense<0.000000e+00> : vector<128x128xf32>
    %45 = tpu.matmul %35, %44, %cst_35 {dimension_numbers = #tpu.dot_dimension_numbers<[1], [0], [0], [1], [0, 0, 1, 1], [], []>} : vector<128x128xbf16>, vector<128x128xbf16>, vector<128x128xf32> -> vector<128x128xf32>
    %46 = arith.addf %42, %45 : vector<128x128xf32>
    %c5 = arith.constant 5 : index
    %c0_36 = arith.constant 0 : index
    %c0_37 = arith.constant 0 : index
    %47 = vector.load %arg3[%c5, %c0_36, %c0_37] : memref<9x128x128xbf16, #tpu.memory_space<vmem>>, vector<1x128x128xbf16>
    %48 = vector.shape_cast %47 : vector<1x128x128xbf16> to vector<128x128xbf16>
    %cst_38 = arith.constant dense<0.000000e+00> : vector<128x128xf32>
    %49 = tpu.matmul %35, %48, %cst_38 {dimension_numbers = #tpu.dot_dimension_numbers<[1], [0], [0], [1], [0, 0, 1, 1], [], []>} : vector<128x128xbf16>, vector<128x128xbf16>, vector<128x128xf32> -> vector<128x128xf32>
    %c127_i32_39 = arith.constant 127 : i32
    %50 = tpu.dynamic_rotate %49 by %c127_i32_39 dim 0 : vector<128x128xf32>, i32 -> vector<128x128xf32>
    %cst_40 = arith.constant 0.000000e+00 : f32
    %51 = vector.broadcast %cst_40 : f32 to vector<128x128xf32>
    %52 = arith.select %5, %51, %50 : vector<128x128xi1>, vector<128x128xf32>
    %53 = arith.addf %46, %52 : vector<128x128xf32>
    %c0_41 = arith.constant 0 : index
    %c2_42 = arith.constant 2 : index
    %c0_43 = arith.constant 0 : index
    %c0_44 = arith.constant 0 : index
    %54 = vector.load %arg1[%c0_41, %c2_42, %c0_43, %c0_44] : memref<1x18x16x128xbf16, #tpu.memory_space<vmem>>, vector<1x8x16x128xbf16>
    %55 = vector.shape_cast %54 : vector<1x8x16x128xbf16> to vector<8x16x128xbf16>
    %56 = vector.shape_cast %55 : vector<8x16x128xbf16> to vector<128x128xbf16>
    %c6 = arith.constant 6 : index
    %c0_45 = arith.constant 0 : index
    %c0_46 = arith.constant 0 : index
    %57 = vector.load %arg3[%c6, %c0_45, %c0_46] : memref<9x128x128xbf16, #tpu.memory_space<vmem>>, vector<1x128x128xbf16>
    %58 = vector.shape_cast %57 : vector<1x128x128xbf16> to vector<128x128xbf16>
    %cst_47 = arith.constant dense<0.000000e+00> : vector<128x128xf32>
    %59 = tpu.matmul %56, %58, %cst_47 {dimension_numbers = #tpu.dot_dimension_numbers<[1], [0], [0], [1], [0, 0, 1, 1], [], []>} : vector<128x128xbf16>, vector<128x128xbf16>, vector<128x128xf32> -> vector<128x128xf32>
    %c1_i32_48 = arith.constant 1 : i32
    %60 = tpu.dynamic_rotate %59 by %c1_i32_48 dim 0 : vector<128x128xf32>, i32 -> vector<128x128xf32>
    %cst_49 = arith.constant 0.000000e+00 : f32
    %61 = vector.broadcast %cst_49 : f32 to vector<128x128xf32>
    %62 = arith.select %3, %61, %60 : vector<128x128xi1>, vector<128x128xf32>
    %63 = arith.addf %53, %62 : vector<128x128xf32>
    %c7 = arith.constant 7 : index
    %c0_50 = arith.constant 0 : index
    %c0_51 = arith.constant 0 : index
    %64 = vector.load %arg3[%c7, %c0_50, %c0_51] : memref<9x128x128xbf16, #tpu.memory_space<vmem>>, vector<1x128x128xbf16>
    %65 = vector.shape_cast %64 : vector<1x128x128xbf16> to vector<128x128xbf16>
    %cst_52 = arith.constant dense<0.000000e+00> : vector<128x128xf32>
    %66 = tpu.matmul %56, %65, %cst_52 {dimension_numbers = #tpu.dot_dimension_numbers<[1], [0], [0], [1], [0, 0, 1, 1], [], []>} : vector<128x128xbf16>, vector<128x128xbf16>, vector<128x128xf32> -> vector<128x128xf32>
    %67 = arith.addf %63, %66 : vector<128x128xf32>
    %c8 = arith.constant 8 : index
    %c0_53 = arith.constant 0 : index
    %c0_54 = arith.constant 0 : index
    %68 = vector.load %arg3[%c8, %c0_53, %c0_54] : memref<9x128x128xbf16, #tpu.memory_space<vmem>>, vector<1x128x128xbf16>
    %69 = vector.shape_cast %68 : vector<1x128x128xbf16> to vector<128x128xbf16>
    %cst_55 = arith.constant dense<0.000000e+00> : vector<128x128xf32>
    %70 = tpu.matmul %56, %69, %cst_55 {dimension_numbers = #tpu.dot_dimension_numbers<[1], [0], [0], [1], [0, 0, 1, 1], [], []>} : vector<128x128xbf16>, vector<128x128xbf16>, vector<128x128xf32> -> vector<128x128xf32>
    %c127_i32_56 = arith.constant 127 : i32
    %71 = tpu.dynamic_rotate %70 by %c127_i32_56 dim 0 : vector<128x128xf32>, i32 -> vector<128x128xf32>
    %cst_57 = arith.constant 0.000000e+00 : f32
    %72 = vector.broadcast %cst_57 : f32 to vector<128x128xf32>
    %73 = arith.select %5, %72, %71 : vector<128x128xi1>, vector<128x128xf32>
    %74 = arith.addf %67, %73 : vector<128x128xf32>
    %75 = vector.shape_cast %10 : vector<128xf32> to vector<1x128xf32>
    %76 = vector.broadcast %75 : vector<1x128xf32> to vector<128x128xf32>
    %77 = arith.mulf %74, %76 : vector<128x128xf32>
    %78 = vector.shape_cast %12 : vector<128xf32> to vector<1x128xf32>
    %79 = vector.broadcast %78 : vector<1x128xf32> to vector<128x128xf32>
    %80 = arith.addf %77, %79 : vector<128x128xf32>
    %cst_58 = arith.constant 0.000000e+00 : f32
    %81 = vector.broadcast %cst_58 : f32 to vector<128x128xf32>
    %82 = arith.maximumf %80, %81 : vector<128x128xf32>
    %83 = vector.shape_cast %82 : vector<128x128xf32> to vector<8x16x128xf32>
    %84 = arith.truncf %83 : vector<8x16x128xf32> to vector<8x16x128xbf16>
    %c1_59 = arith.constant 1 : index
    %c0_60 = arith.constant 0 : index
    %c0_61 = arith.constant 0 : index
    %85 = vector.load %arg10[%c1_59, %c0_60, %c0_61] : memref<18x16x128xbf16, #tpu.memory_space<vmem>>, vector<8x16x128xbf16>
    tpu.vector_store %arg10[%c1_59, %c0_60, %c0_61], %84 {strides = array<i32>} : memref<18x16x128xbf16, #tpu.memory_space<vmem>>, vector<8x16x128xbf16>,
    %c0_62 = arith.constant 0 : index
    %c8_63 = arith.constant 8 : index
    %c0_64 = arith.constant 0 : index
    %c0_65 = arith.constant 0 : index
    %86 = vector.load %arg1[%c0_62, %c8_63, %c0_64, %c0_65] : memref<1x18x16x128xbf16, #tpu.memory_space<vmem>>, vector<1x8x16x128xbf16>
    %87 = vector.shape_cast %86 : vector<1x8x16x128xbf16> to vector<8x16x128xbf16>
    %88 = vector.shape_cast %87 : vector<8x16x128xbf16> to vector<128x128xbf16>
    %c0_66 = arith.constant 0 : index
    %c0_67 = arith.constant 0 : index
    %c0_68 = arith.constant 0 : index
    %89 = vector.load %arg3[%c0_66, %c0_67, %c0_68] : memref<9x128x128xbf16, #tpu.memory_space<vmem>>, vector<1x128x128xbf16>
    %90 = vector.shape_cast %89 : vector<1x128x128xbf16> to vector<128x128xbf16>
    %cst_69 = arith.constant dense<0.000000e+00> : vector<128x128xf32>
    %91 = tpu.matmul %88, %90, %cst_69 {dimension_numbers = #tpu.dot_dimension_numbers<[1], [0], [0], [1], [0, 0, 1, 1], [], []>} : vector<128x128xbf16>, vector<128x128xbf16>, vector<128x128xf32> -> vector<128x128xf32>
    %c1_i32_70 = arith.constant 1 : i32
    %92 = tpu.dynamic_rotate %91 by %c1_i32_70 dim 0 : vector<128x128xf32>, i32 -> vector<128x128xf32>
    %cst_71 = arith.constant 0.000000e+00 : f32
    %93 = vector.broadcast %cst_71 : f32 to vector<128x128xf32>
    %94 = arith.select %3, %93, %92 : vector<128x128xi1>, vector<128x128xf32>
    %c1_72 = arith.constant 1 : index
    %c0_73 = arith.constant 0 : index
    %c0_74 = arith.constant 0 : index
    %95 = vector.load %arg3[%c1_72, %c0_73, %c0_74] : memref<9x128x128xbf16, #tpu.memory_space<vmem>>, vector<1x128x128xbf16>
    %96 = vector.shape_cast %95 : vector<1x128x128xbf16> to vector<128x128xbf16>
    %cst_75 = arith.constant dense<0.000000e+00> : vector<128x128xf32>
    %97 = tpu.matmul %88, %96, %cst_75 {dimension_numbers = #tpu.dot_dimension_numbers<[1], [0], [0], [1], [0, 0, 1, 1], [], []>} : vector<128x128xbf16>, vector<128x128xbf16>, vector<128x128xf32> -> vector<128x128xf32>
    %98 = arith.addf %94, %97 : vector<128x128xf32>
    %c2_76 = arith.constant 2 : index
    %c0_77 = arith.constant 0 : index
    %c0_78 = arith.constant 0 : index
    %99 = vector.load %arg3[%c2_76, %c0_77, %c0_78] : memref<9x128x128xbf16, #tpu.memory_space<vmem>>, vector<1x128x128xbf16>
    %100 = vector.shape_cast %99 : vector<1x128x128xbf16> to vector<128x128xbf16>
    %cst_79 = arith.constant dense<0.000000e+00> : vector<128x128xf32>
    %101 = tpu.matmul %88, %100, %cst_79 {dimension_numbers = #tpu.dot_dimension_numbers<[1], [0], [0], [1], [0, 0, 1, 1], [], []>} : vector<128x128xbf16>, vector<128x128xbf16>, vector<128x128xf32> -> vector<128x128xf32>
    %c127_i32_80 = arith.constant 127 : i32
    %102 = tpu.dynamic_rotate %101 by %c127_i32_80 dim 0 : vector<128x128xf32>, i32 -> vector<128x128xf32>
    %cst_81 = arith.constant 0.000000e+00 : f32
    %103 = vector.broadcast %cst_81 : f32 to vector<128x128xf32>
    %104 = arith.select %5, %103, %102 : vector<128x128xi1>, vector<128x128xf32>
    %105 = arith.addf %98, %104 : vector<128x128xf32>
    %c0_82 = arith.constant 0 : index
    %c9 = arith.constant 9 : index
    %c0_83 = arith.constant 0 : index
    %c0_84 = arith.constant 0 : index
    %106 = vector.load %arg1[%c0_82, %c9, %c0_83, %c0_84] : memref<1x18x16x128xbf16, #tpu.memory_space<vmem>>, vector<1x8x16x128xbf16>
    %107 = vector.shape_cast %106 : vector<1x8x16x128xbf16> to vector<8x16x128xbf16>
    %108 = vector.shape_cast %107 : vector<8x16x128xbf16> to vector<128x128xbf16>
    %c3_85 = arith.constant 3 : index
    %c0_86 = arith.constant 0 : index
    %c0_87 = arith.constant 0 : index
    %109 = vector.load %arg3[%c3_85, %c0_86, %c0_87] : memref<9x128x128xbf16, #tpu.memory_space<vmem>>, vector<1x128x128xbf16>
    %110 = vector.shape_cast %109 : vector<1x128x128xbf16> to vector<128x128xbf16>
    %cst_88 = arith.constant dense<0.000000e+00> : vector<128x128xf32>
    %111 = tpu.matmul %108, %110, %cst_88 {dimension_numbers = #tpu.dot_dimension_numbers<[1], [0], [0], [1], [0, 0, 1, 1], [], []>} : vector<128x128xbf16>, vector<128x128xbf16>, vector<128x128xf32> -> vector<128x128xf32>
    %c1_i32_89 = arith.constant 1 : i32
    %112 = tpu.dynamic_rotate %111 by %c1_i32_89 dim 0 : vector<128x128xf32>, i32 -> vector<128x128xf32>
    %cst_90 = arith.constant 0.000000e+00 : f32
    %113 = vector.broadcast %cst_90 : f32 to vector<128x128xf32>
    %114 = arith.select %3, %113, %112 : vector<128x128xi1>, vector<128x128xf32>
    %115 = arith.addf %105, %114 : vector<128x128xf32>
    %c4_91 = arith.constant 4 : index
    %c0_92 = arith.constant 0 : index
    %c0_93 = arith.constant 0 : index
    %116 = vector.load %arg3[%c4_91, %c0_92, %c0_93] : memref<9x128x128xbf16, #tpu.memory_space<vmem>>, vector<1x128x128xbf16>
    %117 = vector.shape_cast %116 : vector<1x128x128xbf16> to vector<128x128xbf16>
    %cst_94 = arith.constant dense<0.000000e+00> : vector<128x128xf32>
    %118 = tpu.matmul %108, %117, %cst_94 {dimension_numbers = #tpu.dot_dimension_numbers<[1], [0], [0], [1], [0, 0, 1, 1], [], []>} : vector<128x128xbf16>, vector<128x128xbf16>, vector<128x128xf32> -> vector<128x128xf32>
    %119 = arith.addf %115, %118 : vector<128x128xf32>
    %c5_95 = arith.constant 5 : index
    %c0_96 = arith.constant 0 : index
    %c0_97 = arith.constant 0 : index
    %120 = vector.load %arg3[%c5_95, %c0_96, %c0_97] : memref<9x128x128xbf16, #tpu.memory_space<vmem>>, vector<1x128x128xbf16>
    %121 = vector.shape_cast %120 : vector<1x128x128xbf16> to vector<128x128xbf16>
    %cst_98 = arith.constant dense<0.000000e+00> : vector<128x128xf32>
    %122 = tpu.matmul %108, %121, %cst_98 {dimension_numbers = #tpu.dot_dimension_numbers<[1], [0], [0], [1], [0, 0, 1, 1], [], []>} : vector<128x128xbf16>, vector<128x128xbf16>, vector<128x128xf32> -> vector<128x128xf32>
    %c127_i32_99 = arith.constant 127 : i32
    %123 = tpu.dynamic_rotate %122 by %c127_i32_99 dim 0 : vector<128x128xf32>, i32 -> vector<128x128xf32>
    %cst_100 = arith.constant 0.000000e+00 : f32
    %124 = vector.broadcast %cst_100 : f32 to vector<128x128xf32>
    %125 = arith.select %5, %124, %123 : vector<128x128xi1>, vector<128x128xf32>
    %126 = arith.addf %119, %125 : vector<128x128xf32>
    %c0_101 = arith.constant 0 : index
    %c10 = arith.constant 10 : index
    %c0_102 = arith.constant 0 : index
    %c0_103 = arith.constant 0 : index
    %127 = vector.load %arg1[%c0_101, %c10, %c0_102, %c0_103] : memref<1x18x16x128xbf16, #tpu.memory_space<vmem>>, vector<1x8x16x128xbf16>
    %128 = vector.shape_cast %127 : vector<1x8x16x128xbf16> to vector<8x16x128xbf16>
    %129 = vector.shape_cast %128 : vector<8x16x128xbf16> to vector<128x128xbf16>
    %c6_104 = arith.constant 6 : index
    %c0_105 = arith.constant 0 : index
    %c0_106 = arith.constant 0 : index
    %130 = vector.load %arg3[%c6_104, %c0_105, %c0_106] : memref<9x128x128xbf16, #tpu.memory_space<vmem>>, vector<1x128x128xbf16>
    %131 = vector.shape_cast %130 : vector<1x128x128xbf16> to vector<128x128xbf16>
    %cst_107 = arith.constant dense<0.000000e+00> : vector<128x128xf32>
    %132 = tpu.matmul %129, %131, %cst_107 {dimension_numbers = #tpu.dot_dimension_numbers<[1], [0], [0], [1], [0, 0, 1, 1], [], []>} : vector<128x128xbf16>, vector<128x128xbf16>, vector<128x128xf32> -> vector<128x128xf32>
    %c1_i32_108 = arith.constant 1 : i32
    %133 = tpu.dynamic_rotate %132 by %c1_i32_108 dim 0 : vector<128x128xf32>, i32 -> vector<128x128xf32>
    %cst_109 = arith.constant 0.000000e+00 : f32
    %134 = vector.broadcast %cst_109 : f32 to vector<128x128xf32>
    %135 = arith.select %3, %134, %133 : vector<128x128xi1>, vector<128x128xf32>
    %136 = arith.addf %126, %135 : vector<128x128xf32>
    %c7_110 = arith.constant 7 : index
    %c0_111 = arith.constant 0 : index
    %c0_112 = arith.constant 0 : index
    %137 = vector.load %arg3[%c7_110, %c0_111, %c0_112] : memref<9x128x128xbf16, #tpu.memory_space<vmem>>, vector<1x128x128xbf16>
    %138 = vector.shape_cast %137 : vector<1x128x128xbf16> to vector<128x128xbf16>
    %cst_113 = arith.constant dense<0.000000e+00> : vector<128x128xf32>
    %139 = tpu.matmul %129, %138, %cst_113 {dimension_numbers = #tpu.dot_dimension_numbers<[1], [0], [0], [1], [0, 0, 1, 1], [], []>} : vector<128x128xbf16>, vector<128x128xbf16>, vector<128x128xf32> -> vector<128x128xf32>
    %140 = arith.addf %136, %139 : vector<128x128xf32>
    %c8_114 = arith.constant 8 : index
    %c0_115 = arith.constant 0 : index
    %c0_116 = arith.constant 0 : index
    %141 = vector.load %arg3[%c8_114, %c0_115, %c0_116] : memref<9x128x128xbf16, #tpu.memory_space<vmem>>, vector<1x128x128xbf16>
    %142 = vector.shape_cast %141 : vector<1x128x128xbf16> to vector<128x128xbf16>
    %cst_117 = arith.constant dense<0.000000e+00> : vector<128x128xf32>
    %143 = tpu.matmul %129, %142, %cst_117 {dimension_numbers = #tpu.dot_dimension_numbers<[1], [0], [0], [1], [0, 0, 1, 1], [], []>} : vector<128x128xbf16>, vector<128x128xbf16>, vector<128x128xf32> -> vector<128x128xf32>
    %c127_i32_118 = arith.constant 127 : i32
    %144 = tpu.dynamic_rotate %143 by %c127_i32_118 dim 0 : vector<128x128xf32>, i32 -> vector<128x128xf32>
    %cst_119 = arith.constant 0.000000e+00 : f32
    %145 = vector.broadcast %cst_119 : f32 to vector<128x128xf32>
    %146 = arith.select %5, %145, %144 : vector<128x128xi1>, vector<128x128xf32>
    %147 = arith.addf %140, %146 : vector<128x128xf32>
    %148 = vector.shape_cast %10 : vector<128xf32> to vector<1x128xf32>
    %149 = vector.broadcast %148 : vector<1x128xf32> to vector<128x128xf32>
    %150 = arith.mulf %147, %149 : vector<128x128xf32>
    %151 = vector.shape_cast %12 : vector<128xf32> to vector<1x128xf32>
    %152 = vector.broadcast %151 : vector<1x128xf32> to vector<128x128xf32>
    %153 = arith.addf %150, %152 : vector<128x128xf32>
    %cst_120 = arith.constant 0.000000e+00 : f32
    %154 = vector.broadcast %cst_120 : f32 to vector<128x128xf32>
    %155 = arith.maximumf %153, %154 : vector<128x128xf32>
    %156 = vector.shape_cast %155 : vector<128x128xf32> to vector<8x16x128xf32>
    %157 = arith.truncf %156 : vector<8x16x128xf32> to vector<8x16x128xbf16>
    %c9_121 = arith.constant 9 : index
    %c0_122 = arith.constant 0 : index
    %c0_123 = arith.constant 0 : index
    %158 = vector.load %arg10[%c9_121, %c0_122, %c0_123] : memref<18x16x128xbf16, #tpu.memory_space<vmem>>, vector<8x16x128xbf16>
    tpu.vector_store %arg10[%c9_121, %c0_122, %c0_123], %157 {strides = array<i32>} : memref<18x16x128xbf16, #tpu.memory_space<vmem>>, vector<8x16x128xbf16>,
    %c0_124 = arith.constant 0 : index
    %c0_125 = arith.constant 0 : index
    %159 = vector.load %arg7[%c0_124, %c0_125] : memref<1x128xf32, #tpu.memory_space<vmem>>, vector<1x128xf32>
    %160 = vector.shape_cast %159 : vector<1x128xf32> to vector<128xf32>
    %c0_126 = arith.constant 0 : index
    %c0_127 = arith.constant 0 : index
    %161 = vector.load %arg8[%c0_126, %c0_127] : memref<1x128xf32, #tpu.memory_space<vmem>>, vector<1x128xf32>
    %162 = vector.shape_cast %161 : vector<1x128xf32> to vector<128xf32>
    %c0_128 = arith.constant 0 : index
    %c0_129 = arith.constant 0 : index
    %c0_130 = arith.constant 0 : index
    %163 = vector.load %arg10[%c0_128, %c0_129, %c0_130] : memref<18x16x128xbf16, #tpu.memory_space<vmem>>, vector<8x16x128xbf16>
    %164 = vector.shape_cast %163 : vector<8x16x128xbf16> to vector<128x128xbf16>
    %c0_131 = arith.constant 0 : index
    %c0_132 = arith.constant 0 : index
    %c0_133 = arith.constant 0 : index
    %165 = vector.load %arg6[%c0_131, %c0_132, %c0_133] : memref<9x128x128xbf16, #tpu.memory_space<vmem>>, vector<1x128x128xbf16>
    %166 = vector.shape_cast %165 : vector<1x128x128xbf16> to vector<128x128xbf16>
    %cst_134 = arith.constant dense<0.000000e+00> : vector<128x128xf32>
    %167 = tpu.matmul %164, %166, %cst_134 {dimension_numbers = #tpu.dot_dimension_numbers<[1], [0], [0], [1], [0, 0, 1, 1], [], []>} : vector<128x128xbf16>, vector<128x128xbf16>, vector<128x128xf32> -> vector<128x128xf32>
    %c1_i32_135 = arith.constant 1 : i32
    %168 = tpu.dynamic_rotate %167 by %c1_i32_135 dim 0 : vector<128x128xf32>, i32 -> vector<128x128xf32>
    %cst_136 = arith.constant 0.000000e+00 : f32
    %169 = vector.broadcast %cst_136 : f32 to vector<128x128xf32>
    %170 = arith.select %3, %169, %168 : vector<128x128xi1>, vector<128x128xf32>
    %c1_137 = arith.constant 1 : index
    %c0_138 = arith.constant 0 : index
    %c0_139 = arith.constant 0 : index
    %171 = vector.load %arg6[%c1_137, %c0_138, %c0_139] : memref<9x128x128xbf16, #tpu.memory_space<vmem>>, vector<1x128x128xbf16>
    %172 = vector.shape_cast %171 : vector<1x128x128xbf16> to vector<128x128xbf16>
    %cst_140 = arith.constant dense<0.000000e+00> : vector<128x128xf32>
    %173 = tpu.matmul %164, %172, %cst_140 {dimension_numbers = #tpu.dot_dimension_numbers<[1], [0], [0], [1], [0, 0, 1, 1], [], []>} : vector<128x128xbf16>, vector<128x128xbf16>, vector<128x128xf32> -> vector<128x128xf32>
    %174 = arith.addf %170, %173 : vector<128x128xf32>
    %c2_141 = arith.constant 2 : index
    %c0_142 = arith.constant 0 : index
    %c0_143 = arith.constant 0 : index
    %175 = vector.load %arg6[%c2_141, %c0_142, %c0_143] : memref<9x128x128xbf16, #tpu.memory_space<vmem>>, vector<1x128x128xbf16>
    %176 = vector.shape_cast %175 : vector<1x128x128xbf16> to vector<128x128xbf16>
    %cst_144 = arith.constant dense<0.000000e+00> : vector<128x128xf32>
    %177 = tpu.matmul %164, %176, %cst_144 {dimension_numbers = #tpu.dot_dimension_numbers<[1], [0], [0], [1], [0, 0, 1, 1], [], []>} : vector<128x128xbf16>, vector<128x128xbf16>, vector<128x128xf32> -> vector<128x128xf32>
    %c127_i32_145 = arith.constant 127 : i32
    %178 = tpu.dynamic_rotate %177 by %c127_i32_145 dim 0 : vector<128x128xf32>, i32 -> vector<128x128xf32>
    %cst_146 = arith.constant 0.000000e+00 : f32
    %179 = vector.broadcast %cst_146 : f32 to vector<128x128xf32>
    %180 = arith.select %5, %179, %178 : vector<128x128xi1>, vector<128x128xf32>
    %181 = arith.addf %174, %180 : vector<128x128xf32>
    %c1_147 = arith.constant 1 : index
    %c0_148 = arith.constant 0 : index
    %c0_149 = arith.constant 0 : index
    %182 = vector.load %arg10[%c1_147, %c0_148, %c0_149] : memref<18x16x128xbf16, #tpu.memory_space<vmem>>, vector<8x16x128xbf16>
    %183 = vector.shape_cast %182 : vector<8x16x128xbf16> to vector<128x128xbf16>
    %c3_150 = arith.constant 3 : index
    %c0_151 = arith.constant 0 : index
    %c0_152 = arith.constant 0 : index
    %184 = vector.load %arg6[%c3_150, %c0_151, %c0_152] : memref<9x128x128xbf16, #tpu.memory_space<vmem>>, vector<1x128x128xbf16>
    %185 = vector.shape_cast %184 : vector<1x128x128xbf16> to vector<128x128xbf16>
    %cst_153 = arith.constant dense<0.000000e+00> : vector<128x128xf32>
    %186 = tpu.matmul %183, %185, %cst_153 {dimension_numbers = #tpu.dot_dimension_numbers<[1], [0], [0], [1], [0, 0, 1, 1], [], []>} : vector<128x128xbf16>, vector<128x128xbf16>, vector<128x128xf32> -> vector<128x128xf32>
    %c1_i32_154 = arith.constant 1 : i32
    %187 = tpu.dynamic_rotate %186 by %c1_i32_154 dim 0 : vector<128x128xf32>, i32 -> vector<128x128xf32>
    %cst_155 = arith.constant 0.000000e+00 : f32
    %188 = vector.broadcast %cst_155 : f32 to vector<128x128xf32>
    %189 = arith.select %3, %188, %187 : vector<128x128xi1>, vector<128x128xf32>
    %190 = arith.addf %181, %189 : vector<128x128xf32>
    %c4_156 = arith.constant 4 : index
    %c0_157 = arith.constant 0 : index
    %c0_158 = arith.constant 0 : index
    %191 = vector.load %arg6[%c4_156, %c0_157, %c0_158] : memref<9x128x128xbf16, #tpu.memory_space<vmem>>, vector<1x128x128xbf16>
    %192 = vector.shape_cast %191 : vector<1x128x128xbf16> to vector<128x128xbf16>
    %cst_159 = arith.constant dense<0.000000e+00> : vector<128x128xf32>
    %193 = tpu.matmul %183, %192, %cst_159 {dimension_numbers = #tpu.dot_dimension_numbers<[1], [0], [0], [1], [0, 0, 1, 1], [], []>} : vector<128x128xbf16>, vector<128x128xbf16>, vector<128x128xf32> -> vector<128x128xf32>
    %194 = arith.addf %190, %193 : vector<128x128xf32>
    %c5_160 = arith.constant 5 : index
    %c0_161 = arith.constant 0 : index
    %c0_162 = arith.constant 0 : index
    %195 = vector.load %arg6[%c5_160, %c0_161, %c0_162] : memref<9x128x128xbf16, #tpu.memory_space<vmem>>, vector<1x128x128xbf16>
    %196 = vector.shape_cast %195 : vector<1x128x128xbf16> to vector<128x128xbf16>
    %cst_163 = arith.constant dense<0.000000e+00> : vector<128x128xf32>
    %197 = tpu.matmul %183, %196, %cst_163 {dimension_numbers = #tpu.dot_dimension_numbers<[1], [0], [0], [1], [0, 0, 1, 1], [], []>} : vector<128x128xbf16>, vector<128x128xbf16>, vector<128x128xf32> -> vector<128x128xf32>
    %c127_i32_164 = arith.constant 127 : i32
    %198 = tpu.dynamic_rotate %197 by %c127_i32_164 dim 0 : vector<128x128xf32>, i32 -> vector<128x128xf32>
    %cst_165 = arith.constant 0.000000e+00 : f32
    %199 = vector.broadcast %cst_165 : f32 to vector<128x128xf32>
    %200 = arith.select %5, %199, %198 : vector<128x128xi1>, vector<128x128xf32>
    %201 = arith.addf %194, %200 : vector<128x128xf32>
    %c2_166 = arith.constant 2 : index
    %c0_167 = arith.constant 0 : index
    %c0_168 = arith.constant 0 : index
    %202 = vector.load %arg10[%c2_166, %c0_167, %c0_168] : memref<18x16x128xbf16, #tpu.memory_space<vmem>>, vector<8x16x128xbf16>
    %203 = vector.shape_cast %202 : vector<8x16x128xbf16> to vector<128x128xbf16>
    %c6_169 = arith.constant 6 : index
    %c0_170 = arith.constant 0 : index
    %c0_171 = arith.constant 0 : index
    %204 = vector.load %arg6[%c6_169, %c0_170, %c0_171] : memref<9x128x128xbf16, #tpu.memory_space<vmem>>, vector<1x128x128xbf16>
    %205 = vector.shape_cast %204 : vector<1x128x128xbf16> to vector<128x128xbf16>
    %cst_172 = arith.constant dense<0.000000e+00> : vector<128x128xf32>
    %206 = tpu.matmul %203, %205, %cst_172 {dimension_numbers = #tpu.dot_dimension_numbers<[1], [0], [0], [1], [0, 0, 1, 1], [], []>} : vector<128x128xbf16>, vector<128x128xbf16>, vector<128x128xf32> -> vector<128x128xf32>
    %c1_i32_173 = arith.constant 1 : i32
    %207 = tpu.dynamic_rotate %206 by %c1_i32_173 dim 0 : vector<128x128xf32>, i32 -> vector<128x128xf32>
    %cst_174 = arith.constant 0.000000e+00 : f32
    %208 = vector.broadcast %cst_174 : f32 to vector<128x128xf32>
    %209 = arith.select %3, %208, %207 : vector<128x128xi1>, vector<128x128xf32>
    %210 = arith.addf %201, %209 : vector<128x128xf32>
    %c7_175 = arith.constant 7 : index
    %c0_176 = arith.constant 0 : index
    %c0_177 = arith.constant 0 : index
    %211 = vector.load %arg6[%c7_175, %c0_176, %c0_177] : memref<9x128x128xbf16, #tpu.memory_space<vmem>>, vector<1x128x128xbf16>
    %212 = vector.shape_cast %211 : vector<1x128x128xbf16> to vector<128x128xbf16>
    %cst_178 = arith.constant dense<0.000000e+00> : vector<128x128xf32>
    %213 = tpu.matmul %203, %212, %cst_178 {dimension_numbers = #tpu.dot_dimension_numbers<[1], [0], [0], [1], [0, 0, 1, 1], [], []>} : vector<128x128xbf16>, vector<128x128xbf16>, vector<128x128xf32> -> vector<128x128xf32>
    %214 = arith.addf %210, %213 : vector<128x128xf32>
    %c8_179 = arith.constant 8 : index
    %c0_180 = arith.constant 0 : index
    %c0_181 = arith.constant 0 : index
    %215 = vector.load %arg6[%c8_179, %c0_180, %c0_181] : memref<9x128x128xbf16, #tpu.memory_space<vmem>>, vector<1x128x128xbf16>
    %216 = vector.shape_cast %215 : vector<1x128x128xbf16> to vector<128x128xbf16>
    %cst_182 = arith.constant dense<0.000000e+00> : vector<128x128xf32>
    %217 = tpu.matmul %203, %216, %cst_182 {dimension_numbers = #tpu.dot_dimension_numbers<[1], [0], [0], [1], [0, 0, 1, 1], [], []>} : vector<128x128xbf16>, vector<128x128xbf16>, vector<128x128xf32> -> vector<128x128xf32>
    %c127_i32_183 = arith.constant 127 : i32
    %218 = tpu.dynamic_rotate %217 by %c127_i32_183 dim 0 : vector<128x128xf32>, i32 -> vector<128x128xf32>
    %cst_184 = arith.constant 0.000000e+00 : f32
    %219 = vector.broadcast %cst_184 : f32 to vector<128x128xf32>
    %220 = arith.select %5, %219, %218 : vector<128x128xi1>, vector<128x128xf32>
    %221 = arith.addf %214, %220 : vector<128x128xf32>
    %222 = vector.shape_cast %160 : vector<128xf32> to vector<1x128xf32>
    %223 = vector.broadcast %222 : vector<1x128xf32> to vector<128x128xf32>
    %224 = arith.mulf %221, %223 : vector<128x128xf32>
    %225 = vector.shape_cast %162 : vector<128xf32> to vector<1x128xf32>
    %226 = vector.broadcast %225 : vector<1x128xf32> to vector<128x128xf32>
    %227 = arith.addf %224, %226 : vector<128x128xf32>
    %228 = vector.shape_cast %227 : vector<128x128xf32> to vector<8x16x128xf32>
    %c0_185 = arith.constant 0 : index
    %c0_186 = arith.constant 0 : index
    %c0_187 = arith.constant 0 : index
    %c0_188 = arith.constant 0 : index
    %229 = vector.load %arg2[%c0_185, %c0_186, %c0_187, %c0_188] : memref<1x16x16x128xf32, #tpu.memory_space<vmem>>, vector<1x8x16x128xf32>
    %230 = vector.shape_cast %229 : vector<1x8x16x128xf32> to vector<8x16x128xf32>
    %231 = arith.addf %228, %230 : vector<8x16x128xf32>
    %cst_189 = arith.constant 0.000000e+00 : f32
    %232 = vector.broadcast %cst_189 : f32 to vector<8x16x128xf32>
    %233 = arith.maximumf %231, %232 : vector<8x16x128xf32>
    %234 = vector.shape_cast %233 : vector<8x16x128xf32> to vector<1x8x16x128xf32>
    %c0_190 = arith.constant 0 : index
    %c0_191 = arith.constant 0 : index
    %c0_192 = arith.constant 0 : index
    %c0_193 = arith.constant 0 : index
    %235 = vector.load %arg9[%c0_190, %c0_191, %c0_192, %c0_193] : memref<1x16x16x128xf32, #tpu.memory_space<vmem>>, vector<1x8x16x128xf32>
    tpu.vector_store %arg9[%c0_190, %c0_191, %c0_192, %c0_193], %234 {strides = array<i32>} : memref<1x16x16x128xf32, #tpu.memory_space<vmem>>, vector<1x8x16x128xf32>,
    %c8_194 = arith.constant 8 : index
    %c0_195 = arith.constant 0 : index
    %c0_196 = arith.constant 0 : index
    %236 = vector.load %arg10[%c8_194, %c0_195, %c0_196] : memref<18x16x128xbf16, #tpu.memory_space<vmem>>, vector<8x16x128xbf16>
    %237 = vector.shape_cast %236 : vector<8x16x128xbf16> to vector<128x128xbf16>
    %c0_197 = arith.constant 0 : index
    %c0_198 = arith.constant 0 : index
    %c0_199 = arith.constant 0 : index
    %238 = vector.load %arg6[%c0_197, %c0_198, %c0_199] : memref<9x128x128xbf16, #tpu.memory_space<vmem>>, vector<1x128x128xbf16>
    %239 = vector.shape_cast %238 : vector<1x128x128xbf16> to vector<128x128xbf16>
    %cst_200 = arith.constant dense<0.000000e+00> : vector<128x128xf32>
    %240 = tpu.matmul %237, %239, %cst_200 {dimension_numbers = #tpu.dot_dimension_numbers<[1], [0], [0], [1], [0, 0, 1, 1], [], []>} : vector<128x128xbf16>, vector<128x128xbf16>, vector<128x128xf32> -> vector<128x128xf32>
    %c1_i32_201 = arith.constant 1 : i32
    %241 = tpu.dynamic_rotate %240 by %c1_i32_201 dim 0 : vector<128x128xf32>, i32 -> vector<128x128xf32>
    %cst_202 = arith.constant 0.000000e+00 : f32
    %242 = vector.broadcast %cst_202 : f32 to vector<128x128xf32>
    %243 = arith.select %3, %242, %241 : vector<128x128xi1>, vector<128x128xf32>
    %c1_203 = arith.constant 1 : index
    %c0_204 = arith.constant 0 : index
    %c0_205 = arith.constant 0 : index
    %244 = vector.load %arg6[%c1_203, %c0_204, %c0_205] : memref<9x128x128xbf16, #tpu.memory_space<vmem>>, vector<1x128x128xbf16>
    %245 = vector.shape_cast %244 : vector<1x128x128xbf16> to vector<128x128xbf16>
    %cst_206 = arith.constant dense<0.000000e+00> : vector<128x128xf32>
    %246 = tpu.matmul %237, %245, %cst_206 {dimension_numbers = #tpu.dot_dimension_numbers<[1], [0], [0], [1], [0, 0, 1, 1], [], []>} : vector<128x128xbf16>, vector<128x128xbf16>, vector<128x128xf32> -> vector<128x128xf32>
    %247 = arith.addf %243, %246 : vector<128x128xf32>
    %c2_207 = arith.constant 2 : index
    %c0_208 = arith.constant 0 : index
    %c0_209 = arith.constant 0 : index
    %248 = vector.load %arg6[%c2_207, %c0_208, %c0_209] : memref<9x128x128xbf16, #tpu.memory_space<vmem>>, vector<1x128x128xbf16>
    %249 = vector.shape_cast %248 : vector<1x128x128xbf16> to vector<128x128xbf16>
    %cst_210 = arith.constant dense<0.000000e+00> : vector<128x128xf32>
    %250 = tpu.matmul %237, %249, %cst_210 {dimension_numbers = #tpu.dot_dimension_numbers<[1], [0], [0], [1], [0, 0, 1, 1], [], []>} : vector<128x128xbf16>, vector<128x128xbf16>, vector<128x128xf32> -> vector<128x128xf32>
    %c127_i32_211 = arith.constant 127 : i32
    %251 = tpu.dynamic_rotate %250 by %c127_i32_211 dim 0 : vector<128x128xf32>, i32 -> vector<128x128xf32>
    %cst_212 = arith.constant 0.000000e+00 : f32
    %252 = vector.broadcast %cst_212 : f32 to vector<128x128xf32>
    %253 = arith.select %5, %252, %251 : vector<128x128xi1>, vector<128x128xf32>
    %254 = arith.addf %247, %253 : vector<128x128xf32>
    %c9_213 = arith.constant 9 : index
    %c0_214 = arith.constant 0 : index
    %c0_215 = arith.constant 0 : index
    %255 = vector.load %arg10[%c9_213, %c0_214, %c0_215] : memref<18x16x128xbf16, #tpu.memory_space<vmem>>, vector<8x16x128xbf16>
    %256 = vector.shape_cast %255 : vector<8x16x128xbf16> to vector<128x128xbf16>
    %c3_216 = arith.constant 3 : index
    %c0_217 = arith.constant 0 : index
    %c0_218 = arith.constant 0 : index
    %257 = vector.load %arg6[%c3_216, %c0_217, %c0_218] : memref<9x128x128xbf16, #tpu.memory_space<vmem>>, vector<1x128x128xbf16>
    %258 = vector.shape_cast %257 : vector<1x128x128xbf16> to vector<128x128xbf16>
    %cst_219 = arith.constant dense<0.000000e+00> : vector<128x128xf32>
    %259 = tpu.matmul %256, %258, %cst_219 {dimension_numbers = #tpu.dot_dimension_numbers<[1], [0], [0], [1], [0, 0, 1, 1], [], []>} : vector<128x128xbf16>, vector<128x128xbf16>, vector<128x128xf32> -> vector<128x128xf32>
    %c1_i32_220 = arith.constant 1 : i32
    %260 = tpu.dynamic_rotate %259 by %c1_i32_220 dim 0 : vector<128x128xf32>, i32 -> vector<128x128xf32>
    %cst_221 = arith.constant 0.000000e+00 : f32
    %261 = vector.broadcast %cst_221 : f32 to vector<128x128xf32>
    %262 = arith.select %3, %261, %260 : vector<128x128xi1>, vector<128x128xf32>
    %263 = arith.addf %254, %262 : vector<128x128xf32>
    %c4_222 = arith.constant 4 : index
    %c0_223 = arith.constant 0 : index
    %c0_224 = arith.constant 0 : index
    %264 = vector.load %arg6[%c4_222, %c0_223, %c0_224] : memref<9x128x128xbf16, #tpu.memory_space<vmem>>, vector<1x128x128xbf16>
    %265 = vector.shape_cast %264 : vector<1x128x128xbf16> to vector<128x128xbf16>
    %cst_225 = arith.constant dense<0.000000e+00> : vector<128x128xf32>
    %266 = tpu.matmul %256, %265, %cst_225 {dimension_numbers = #tpu.dot_dimension_numbers<[1], [0], [0], [1], [0, 0, 1, 1], [], []>} : vector<128x128xbf16>, vector<128x128xbf16>, vector<128x128xf32> -> vector<128x128xf32>
    %267 = arith.addf %263, %266 : vector<128x128xf32>
    %c5_226 = arith.constant 5 : index
    %c0_227 = arith.constant 0 : index
    %c0_228 = arith.constant 0 : index
    %268 = vector.load %arg6[%c5_226, %c0_227, %c0_228] : memref<9x128x128xbf16, #tpu.memory_space<vmem>>, vector<1x128x128xbf16>
    %269 = vector.shape_cast %268 : vector<1x128x128xbf16> to vector<128x128xbf16>
    %cst_229 = arith.constant dense<0.000000e+00> : vector<128x128xf32>
    %270 = tpu.matmul %256, %269, %cst_229 {dimension_numbers = #tpu.dot_dimension_numbers<[1], [0], [0], [1], [0, 0, 1, 1], [], []>} : vector<128x128xbf16>, vector<128x128xbf16>, vector<128x128xf32> -> vector<128x128xf32>
    %c127_i32_230 = arith.constant 127 : i32
    %271 = tpu.dynamic_rotate %270 by %c127_i32_230 dim 0 : vector<128x128xf32>, i32 -> vector<128x128xf32>
    %cst_231 = arith.constant 0.000000e+00 : f32
    %272 = vector.broadcast %cst_231 : f32 to vector<128x128xf32>
    %273 = arith.select %5, %272, %271 : vector<128x128xi1>, vector<128x128xf32>
    %274 = arith.addf %267, %273 : vector<128x128xf32>
    %c10_232 = arith.constant 10 : index
    %c0_233 = arith.constant 0 : index
    %c0_234 = arith.constant 0 : index
    %275 = vector.load %arg10[%c10_232, %c0_233, %c0_234] : memref<18x16x128xbf16, #tpu.memory_space<vmem>>, vector<8x16x128xbf16>
    %276 = vector.shape_cast %275 : vector<8x16x128xbf16> to vector<128x128xbf16>
    %c6_235 = arith.constant 6 : index
    %c0_236 = arith.constant 0 : index
    %c0_237 = arith.constant 0 : index
    %277 = vector.load %arg6[%c6_235, %c0_236, %c0_237] : memref<9x128x128xbf16, #tpu.memory_space<vmem>>, vector<1x128x128xbf16>
    %278 = vector.shape_cast %277 : vector<1x128x128xbf16> to vector<128x128xbf16>
    %cst_238 = arith.constant dense<0.000000e+00> : vector<128x128xf32>
    %279 = tpu.matmul %276, %278, %cst_238 {dimension_numbers = #tpu.dot_dimension_numbers<[1], [0], [0], [1], [0, 0, 1, 1], [], []>} : vector<128x128xbf16>, vector<128x128xbf16>, vector<128x128xf32> -> vector<128x128xf32>
    %c1_i32_239 = arith.constant 1 : i32
    %280 = tpu.dynamic_rotate %279 by %c1_i32_239 dim 0 : vector<128x128xf32>, i32 -> vector<128x128xf32>
    %cst_240 = arith.constant 0.000000e+00 : f32
    %281 = vector.broadcast %cst_240 : f32 to vector<128x128xf32>
    %282 = arith.select %3, %281, %280 : vector<128x128xi1>, vector<128x128xf32>
    %283 = arith.addf %274, %282 : vector<128x128xf32>
    %c7_241 = arith.constant 7 : index
    %c0_242 = arith.constant 0 : index
    %c0_243 = arith.constant 0 : index
    %284 = vector.load %arg6[%c7_241, %c0_242, %c0_243] : memref<9x128x128xbf16, #tpu.memory_space<vmem>>, vector<1x128x128xbf16>
    %285 = vector.shape_cast %284 : vector<1x128x128xbf16> to vector<128x128xbf16>
    %cst_244 = arith.constant dense<0.000000e+00> : vector<128x128xf32>
    %286 = tpu.matmul %276, %285, %cst_244 {dimension_numbers = #tpu.dot_dimension_numbers<[1], [0], [0], [1], [0, 0, 1, 1], [], []>} : vector<128x128xbf16>, vector<128x128xbf16>, vector<128x128xf32> -> vector<128x128xf32>
    %287 = arith.addf %283, %286 : vector<128x128xf32>
    %c8_245 = arith.constant 8 : index
    %c0_246 = arith.constant 0 : index
    %c0_247 = arith.constant 0 : index
    %288 = vector.load %arg6[%c8_245, %c0_246, %c0_247] : memref<9x128x128xbf16, #tpu.memory_space<vmem>>, vector<1x128x128xbf16>
    %289 = vector.shape_cast %288 : vector<1x128x128xbf16> to vector<128x128xbf16>
    %cst_248 = arith.constant dense<0.000000e+00> : vector<128x128xf32>
    %290 = tpu.matmul %276, %289, %cst_248 {dimension_numbers = #tpu.dot_dimension_numbers<[1], [0], [0], [1], [0, 0, 1, 1], [], []>} : vector<128x128xbf16>, vector<128x128xbf16>, vector<128x128xf32> -> vector<128x128xf32>
    %c127_i32_249 = arith.constant 127 : i32
    %291 = tpu.dynamic_rotate %290 by %c127_i32_249 dim 0 : vector<128x128xf32>, i32 -> vector<128x128xf32>
    %cst_250 = arith.constant 0.000000e+00 : f32
    %292 = vector.broadcast %cst_250 : f32 to vector<128x128xf32>
    %293 = arith.select %5, %292, %291 : vector<128x128xi1>, vector<128x128xf32>
    %294 = arith.addf %287, %293 : vector<128x128xf32>
    %295 = vector.shape_cast %160 : vector<128xf32> to vector<1x128xf32>
    %296 = vector.broadcast %295 : vector<1x128xf32> to vector<128x128xf32>
    %297 = arith.mulf %294, %296 : vector<128x128xf32>
    %298 = vector.shape_cast %162 : vector<128xf32> to vector<1x128xf32>
    %299 = vector.broadcast %298 : vector<1x128xf32> to vector<128x128xf32>
    %300 = arith.addf %297, %299 : vector<128x128xf32>
    %301 = vector.shape_cast %300 : vector<128x128xf32> to vector<8x16x128xf32>
    %c0_251 = arith.constant 0 : index
    %c8_252 = arith.constant 8 : index
    %c0_253 = arith.constant 0 : index
    %c0_254 = arith.constant 0 : index
    %302 = vector.load %arg2[%c0_251, %c8_252, %c0_253, %c0_254] : memref<1x16x16x128xf32, #tpu.memory_space<vmem>>, vector<1x8x16x128xf32>
    %303 = vector.shape_cast %302 : vector<1x8x16x128xf32> to vector<8x16x128xf32>
    %304 = arith.addf %301, %303 : vector<8x16x128xf32>
    %cst_255 = arith.constant 0.000000e+00 : f32
    %305 = vector.broadcast %cst_255 : f32 to vector<8x16x128xf32>
    %306 = arith.maximumf %304, %305 : vector<8x16x128xf32>
    %307 = vector.shape_cast %306 : vector<8x16x128xf32> to vector<1x8x16x128xf32>
    %c0_256 = arith.constant 0 : index
    %c8_257 = arith.constant 8 : index
    %c0_258 = arith.constant 0 : index
    %c0_259 = arith.constant 0 : index
    %308 = vector.load %arg9[%c0_256, %c8_257, %c0_258, %c0_259] : memref<1x16x16x128xf32, #tpu.memory_space<vmem>>, vector<1x8x16x128xf32>
    tpu.vector_store %arg9[%c0_256, %c8_257, %c0_258, %c0_259], %307 {strides = array<i32>} : memref<1x16x16x128xf32, #tpu.memory_space<vmem>>, vector<1x8x16x128xf32>,
    return
  }
  func.func @transform_0(%arg0: i32) -> (i32, i32, i32, i32) {
    %c0_i32 = arith.constant 0 : i32
    %c0_i32_0 = arith.constant 0 : i32
    %c0_i32_1 = arith.constant 0 : i32
    %c0_i32_2 = arith.constant 0 : i32
    return %arg0, %c0_i32, %c0_i32_0, %c0_i32_1 : i32, i32, i32, i32
  }
  func.func @transform_1(%arg0: i32) -> (i32, i32, i32, i32) {
    %c0_i32 = arith.constant 0 : i32
    %c0_i32_0 = arith.constant 0 : i32
    %c0_i32_1 = arith.constant 0 : i32
    %c0_i32_2 = arith.constant 0 : i32
    return %arg0, %c0_i32, %c0_i32_0, %c0_i32_1 : i32, i32, i32, i32
  }
  func.func @transform_2(%arg0: i32) -> (i32, i32, i32) {
    %c0_i32 = arith.constant 0 : i32
    %c0_i32_0 = arith.constant 0 : i32
    %c0_i32_1 = arith.constant 0 : i32
    %c0_i32_2 = arith.constant 0 : i32
    return %c0_i32, %c0_i32_0, %c0_i32_1 : i32, i32, i32
  }
  func.func @transform_3(%arg0: i32) -> (i32, i32) {
    %c0_i32 = arith.constant 0 : i32
    %c0_i32_0 = arith.constant 0 : i32
    %c0_i32_1 = arith.constant 0 : i32
    return %c0_i32, %c0_i32_0 : i32, i32
  }
  func.func @transform_4(%arg0: i32) -> (i32, i32) {
    %c0_i32 = arith.constant 0 : i32
    %c0_i32_0 = arith.constant 0 : i32
    %c0_i32_1 = arith.constant 0 : i32
    return %c0_i32, %c0_i32_0 : i32, i32
  }
  func.func @transform_5(%arg0: i32) -> (i32, i32, i32) {
    %c0_i32 = arith.constant 0 : i32
    %c0_i32_0 = arith.constant 0 : i32
    %c0_i32_1 = arith.constant 0 : i32
    %c0_i32_2 = arith.constant 0 : i32
    return %c0_i32, %c0_i32_0, %c0_i32_1 : i32, i32, i32
  }
  func.func @transform_6(%arg0: i32) -> (i32, i32) {
    %c0_i32 = arith.constant 0 : i32
    %c0_i32_0 = arith.constant 0 : i32
    %c0_i32_1 = arith.constant 0 : i32
    return %c0_i32, %c0_i32_0 : i32, i32
  }
  func.func @transform_7(%arg0: i32) -> (i32, i32) {
    %c0_i32 = arith.constant 0 : i32
    %c0_i32_0 = arith.constant 0 : i32
    %c0_i32_1 = arith.constant 0 : i32
    return %c0_i32, %c0_i32_0 : i32, i32
  }
  func.func @transform_8(%arg0: i32) -> (i32, i32, i32, i32) {
    %c0_i32 = arith.constant 0 : i32
    %c0_i32_0 = arith.constant 0 : i32
    %c0_i32_1 = arith.constant 0 : i32
    %c0_i32_2 = arith.constant 0 : i32
    return %arg0, %c0_i32, %c0_i32_0, %c0_i32_1 : i32, i32, i32, i32
  }
}

</mosaic_0001>

<llo_original>
// kernel: tpu_custom_call.1
$region0: #{tpu_custom_call.1}
  #allocation0 [shape = 'u32[]', space=smem, size = 0x4, offset = 0x4, fixed_abs, tag = 'smem constant byte address 0x4 - core index']
  #allocation1 [shape = 'u32[144,128]{1,0:T(1,128)}', space=vmem, size = 0x12000, scoped, tag = 'internal scratch']
  #allocation2 [shape = 'bf16[18,16,128]{2,1,0:T(8,128)(2,1)}', space=vmem, size = 0x12000, scoped, tag = 'scratch operand']
  %s0 = inlined_call_operand.hbm [shape: bf16[2,18,16,128], index: 0, kind: input, shape index: {}]
  %s1 = inlined_call_operand.hbm [shape: f32[2,16,16,128], index: 1, kind: input, shape index: {}]
  %s2 = inlined_call_operand.hbm [shape: bf16[9,128,128], index: 2, kind: input, shape index: {}]
  %s3 = inlined_call_operand.vmem [shape: f32[1,128], index: 3, kind: input, shape index: {}]
  %s4 = inlined_call_operand.vmem [shape: f32[1,128], index: 4, kind: input, shape index: {}]
  %s5 = inlined_call_operand.hbm [shape: bf16[9,128,128], index: 5, kind: input, shape index: {}]
  %s6 = inlined_call_operand.vmem [shape: f32[1,128], index: 6, kind: input, shape index: {}]
  %s7 = inlined_call_operand.vmem [shape: f32[1,128], index: 7, kind: input, shape index: {}]
  %s8 = inlined_call_operand.hbm [shape: f32[2,16,16,128], index: 8, kind: output, shape index: {}]
  %s9 = sld [smem:[#allocation0]]
  $region81: #{tpu_custom_call.1} parent=0
    _
  %s11 = ssub.s32 1, %s9
  %s12 = scalar_select 0, %s11, %s9
  $region1: #{tpu_custom_call.1} parent=0
    #allocation3 [shape = 'u8[147456]{0}', space=vmem, size = 0x24000, scoped, tag = 'input window, operand 0']
    #allocation4 [shape = 's32[2]{0}', space=sflag, size = 0x8, scoped, tag = 'scoped memory for tpu_custom_call.1']
    #allocation5 [shape = 's32[2]{0}', space=sflag, size = 0x8, scoped, tag = 'scoped memory for tpu_custom_call.1']
    #allocation6 [shape = 'u8[262144]{0}', space=vmem, size = 0x40000, scoped, tag = 'input window, operand 1']
    #allocation7 [shape = 's32[2]{0}', space=sflag, size = 0x8, scoped, tag = 'scoped memory for tpu_custom_call.1']
    #allocation8 [shape = 'u8[294912]{0}', space=vmem, size = 0x48000, scoped, tag = 'input window, operand 2, single buffered']
    #allocation9 [shape = 'u8[294912]{0}', space=vmem, size = 0x48000, scoped, tag = 'input window, operand 5, single buffered']
    #allocation10 [shape = 's32[1]{0}', space=sflag, size = 0x4, scoped, tag = 'scoped memory for tpu_custom_call.1']
    #allocation11 [shape = 'u8[262144]{0}', space=vmem, size = 0x40000, scoped, tag = 'output window, operand 0']
    %13 = vsyncpa [#allocation4], 0
    %s14 = scalar_lea.sflag [#allocation4], 1
    %15 = vsyncpa %s14, 0
    %16 = vsyncpa [#allocation7], 0
    %s17 = scalar_lea.sflag [#allocation7], 1
    %18 = vsyncpa %s17, 0
    %19 = vsyncpa [#allocation10], 0
    %20 = vsyncpa [#allocation5], 0
    %s21 = scalar_lea.sflag [#allocation5], 1
    %22 = vsyncpa %s21, 0
    loop: start=0, step=1, limit=4
    $region2: #{tpu_custom_call.1} parent=1 // loop_pre_header
      _
    $region3: #{tpu_custom_call.1} parent=1 // loop_header
      %s24 = sphi 0, %s28
      %p25 = scmp.ge.s32.totalorder %s24, 4
      %s34 = sphi 0, %s36
      %s37 = sphi 0, %s34
      %s38 = sphi 0, %s37
      %s54 = sphi 0, %s38
      %s60 = sphi 0, %s62
      %s63 = sphi 0, %s60
      %s64 = sphi 0, %s63
      %s80 = sphi 0, %s64
      %s84 = sphi 0, %s84
      %s86 = sphi 0, %s84
      %s87 = sphi 0, %s86
      %s101 = sphi 0, %s87
      %s105 = sphi 0, %s105
      %s107 = sphi 0, %s105
      %s108 = sphi 0, %s107
      %s122 = sphi 0, %s108
      %s126 = sphi 0, %s126
      %s128 = sphi 0, %s126
      %s129 = sphi 0, %s128
      %s143 = sphi 0, %s129
      %s147 = sphi 0, %s147
      %s149 = sphi 0, %s147
      %s150 = sphi 0, %s149
      %s164 = sphi 0, %s150
      %s168 = sphi 0, %s168
      %s170 = sphi 0, %s168
      %s171 = sphi 0, %s170
      %s185 = sphi 0, %s171
      %s189 = sphi 0, %s189
      %s191 = sphi 0, %s189
      %s192 = sphi 0, %s191
      %s206 = sphi 0, %s192
      %s212 = sphi 0, %s214
      %s215 = sphi 0, %s212
      %s216 = sphi 0, %s215
      %s232 = sphi 0, %s216
    $region4: #{tpu_custom_call.1} parent=1 // loop_header_branch
      %27 = sbr.rel (%p25) target = $region8
    $region5: #{tpu_custom_call.1} parent=1 // loop_body
      %s29 = ssub.s32 %s24, 1
      %s30 = ssub.s32 %s24, 2
      %s31 = sadd.s32 %s24, 1
      %s32 = ssub.s32 %s24, %s31
      %p33 = scmp.eq.s32.totalorder %s32, 0
      %s35 = sadd.s32 %s34, 1
      %s36 = scalar_select %p33, %s34, %s35
      %p39 = pneg %p33
      %p40 = scmp.eq.s32.totalorder %s24, 1
      %p41 = por %p39, %p40
      %p42 = scmp.ne.s32.totalorder %s34, %s37
      %p43 = scmp.eq.s32.totalorder %s24, 0
      %p44 = por %p42, %p43
      %p45 = scmp.ne.s32.totalorder %s34, %s37
      %p46 = scmp.eq.s32.totalorder %s29, 1
      %p47 = por %p45, %p46
      %p48 = scmp.ne.s32.totalorder %s37, %s38
      %p49 = scmp.eq.s32.totalorder %s29, 0
      %p50 = por %p48, %p49
      %p51 = scmp.ne.s32.totalorder %s37, %s38
      %p52 = scmp.eq.s32.totalorder %s30, 1
      %p53 = por %p51, %p52
      %p55 = scmp.ne.s32.totalorder %s38, %s54
      %p56 = scmp.eq.s32.totalorder %s30, 0
      %p57 = por %p55, %p56
      %s58 = ssub.s32 %s24, %s31
      %p59 = scmp.eq.s32.totalorder %s58, 0
      %s61 = sadd.s32 %s60, 1
      %s62 = scalar_select %p59, %s60, %s61
      %p65 = pneg %p59
      %p66 = scmp.eq.s32.totalorder %s24, 1
      %p67 = por %p65, %p66
      %p68 = scmp.ne.s32.totalorder %s60, %s63
      %p69 = scmp.eq.s32.totalorder %s24, 0
      %p70 = por %p68, %p69
      %p71 = scmp.ne.s32.totalorder %s60, %s63
      %p72 = scmp.eq.s32.totalorder %s29, 1
      %p73 = por %p71, %p72
      %p74 = scmp.ne.s32.totalorder %s63, %s64
      %p75 = scmp.eq.s32.totalorder %s29, 0
      %p76 = por %p74, %p75
      %p77 = scmp.ne.s32.totalorder %s63, %s64
      %p78 = scmp.eq.s32.totalorder %s30, 1
      %p79 = por %p77, %p78
      %p81 = scmp.ne.s32.totalorder %s64, %s80
      %p82 = scmp.eq.s32.totalorder %s30, 0
      %p83 = por %p81, %p82
      %s85 = sadd.s32 %s84, 1
      %p88 = scmp.eq.s32.totalorder %s24, 1
      %p89 = scmp.ne.s32.totalorder %s84, %s86
      %p90 = scmp.eq.s32.totalorder %s24, 0
      %p91 = por %p89, %p90
      %p92 = scmp.ne.s32.totalorder %s84, %s86
      %p93 = scmp.eq.s32.totalorder %s29, 1
      %p94 = por %p92, %p93
      %p95 = scmp.ne.s32.totalorder %s86, %s87
      %p96 = scmp.eq.s32.totalorder %s29, 0
      %p97 = por %p95, %p96
      %p98 = scmp.ne.s32.totalorder %s86, %s87
      %p99 = scmp.eq.s32.totalorder %s30, 1
      %p100 = por %p98, %p99
      %p102 = scmp.ne.s32.totalorder %s87, %s101
      %p103 = scmp.eq.s32.totalorder %s30, 0
      %p104 = por %p102, %p103
      %s106 = sadd.s32 %s105, 1
      %p109 = scmp.eq.s32.totalorder %s24, 1
      %p110 = scmp.ne.s32.totalorder %s105, %s107
      %p111 = scmp.eq.s32.totalorder %s24, 0
      %p112 = por %p110, %p111
      %p113 = scmp.ne.s32.totalorder %s105, %s107
      %p114 = scmp.eq.s32.totalorder %s29, 1
      %p115 = por %p113, %p114
      %p116 = scmp.ne.s32.totalorder %s107, %s108
      %p117 = scmp.eq.s32.totalorder %s29, 0
      %p118 = por %p116, %p117
      %p119 = scmp.ne.s32.totalorder %s107, %s108
      %p120 = scmp.eq.s32.totalorder %s30, 1
      %p121 = por %p119, %p120
      %p123 = scmp.ne.s32.totalorder %s108, %s122
      %p124 = scmp.eq.s32.totalorder %s30, 0
      %p125 = por %p123, %p124
      %s127 = sadd.s32 %s126, 1
      %p130 = scmp.eq.s32.totalorder %s24, 1
      %p131 = scmp.ne.s32.totalorder %s126, %s128
      %p132 = scmp.eq.s32.totalorder %s24, 0
      %p133 = por %p131, %p132
      %p134 = scmp.ne.s32.totalorder %s126, %s128
      %p135 = scmp.eq.s32.totalorder %s29, 1
      %p136 = por %p134, %p135
      %p137 = scmp.ne.s32.totalorder %s128, %s129
      %p138 = scmp.eq.s32.totalorder %s29, 0
      %p139 = por %p137, %p138
      %p140 = scmp.ne.s32.totalorder %s128, %s129
      %p141 = scmp.eq.s32.totalorder %s30, 1
      %p142 = por %p140, %p141
      %p144 = scmp.ne.s32.totalorder %s129, %s143
      %p145 = scmp.eq.s32.totalorder %s30, 0
      %p146 = por %p144, %p145
      %s148 = sadd.s32 %s147, 1
      %p151 = scmp.eq.s32.totalorder %s24, 1
      %p152 = scmp.ne.s32.totalorder %s147, %s149
      %p153 = scmp.eq.s32.totalorder %s24, 0
      %p154 = por %p152, %p153
      %p155 = scmp.ne.s32.totalorder %s147, %s149
      %p156 = scmp.eq.s32.totalorder %s29, 1
      %p157 = por %p155, %p156
      %p158 = scmp.ne.s32.totalorder %s149, %s150
      %p159 = scmp.eq.s32.totalorder %s29, 0
      %p160 = por %p158, %p159
      %p161 = scmp.ne.s32.totalorder %s149, %s150
      %p162 = scmp.eq.s32.totalorder %s30, 1
      %p163 = por %p161, %p162
      %p165 = scmp.ne.s32.totalorder %s150, %s164
      %p166 = scmp.eq.s32.totalorder %s30, 0
      %p167 = por %p165, %p166
      %s169 = sadd.s32 %s168, 1
      %p172 = scmp.eq.s32.totalorder %s24, 1
      %p173 = scmp.ne.s32.totalorder %s168, %s170
      %p174 = scmp.eq.s32.totalorder %s24, 0
      %p175 = por %p173, %p174
      %p176 = scmp.ne.s32.totalorder %s168, %s170
      %p177 = scmp.eq.s32.totalorder %s29, 1
      %p178 = por %p176, %p177
      %p179 = scmp.ne.s32.totalorder %s170, %s171
      %p180 = scmp.eq.s32.totalorder %s29, 0
      %p181 = por %p179, %p180
      %p182 = scmp.ne.s32.totalorder %s170, %s171
      %p183 = scmp.eq.s32.totalorder %s30, 1
      %p184 = por %p182, %p183
      %p186 = scmp.ne.s32.totalorder %s171, %s185
      %p187 = scmp.eq.s32.totalorder %s30, 0
      %p188 = por %p186, %p187
      %s190 = sadd.s32 %s189, 1
      %p193 = scmp.eq.s32.totalorder %s24, 1
      %p194 = scmp.ne.s32.totalorder %s189, %s191
      %p195 = scmp.eq.s32.totalorder %s24, 0
      %p196 = por %p194, %p195
      %p197 = scmp.ne.s32.totalorder %s189, %s191
      %p198 = scmp.eq.s32.totalorder %s29, 1
      %p199 = por %p197, %p198
      %p200 = scmp.ne.s32.totalorder %s191, %s192
      %p201 = scmp.eq.s32.totalorder %s29, 0
      %p202 = por %p200, %p201
      %p203 = scmp.ne.s32.totalorder %s191, %s192
      %p204 = scmp.eq.s32.totalorder %s30, 1
      %p205 = por %p203, %p204
      %p207 = scmp.ne.s32.totalorder %s192, %s206
      %p208 = scmp.eq.s32.totalorder %s30, 0
      %p209 = por %p207, %p208
      %s210 = ssub.s32 %s24, %s31
      %p211 = scmp.eq.s32.totalorder %s210, 0
      %s213 = sadd.s32 %s212, 1
      %s214 = scalar_select %p211, %s212, %s213
      %p217 = pneg %p211
      %p218 = scmp.eq.s32.totalorder %s24, 1
      %p219 = por %p217, %p218
      %p220 = scmp.ne.s32.totalorder %s212, %s215
      %p221 = scmp.eq.s32.totalorder %s24, 0
      %p222 = por %p220, %p221
      %p223 = scmp.ne.s32.totalorder %s212, %s215
      %p224 = scmp.eq.s32.totalorder %s29, 1
      %p225 = por %p223, %p224
      %p226 = scmp.ne.s32.totalorder %s215, %s216
      %p227 = scmp.eq.s32.totalorder %s29, 0
      %p228 = por %p226, %p227
      %p229 = scmp.ne.s32.totalorder %s215, %s216
      %p230 = scmp.eq.s32.totalorder %s30, 1
      %p231 = por %p229, %p230
      %p233 = scmp.ne.s32.totalorder %s216, %s232
      %p234 = scmp.eq.s32.totalorder %s30, 0
      %p235 = por %p233, %p234
      %p236 = scmp.le.s32.totalorder 1, %s24
      %p237 = scmp.lt.s32.totalorder %s24, 3
      %p238 = pnand %p236, %p237
      %p239 = pneg %p238
      // Predicated region
      $region9: #{tpu_custom_call.1} parent=5 // pred_check
        _
      $region10: #{tpu_custom_call.1} parent=5 // pred_check_branch
        %241 = sbr.rel (%p238) target = $region12
      $region11: #{tpu_custom_call.1} parent=5 // pred_region
        %s242 = ssub.s32 %s24, 1
        // Predicated region
        $region13: #{tpu_custom_call.1} parent=11 // pred_check
          %p243 = pneg %p97
        $region14: #{tpu_custom_call.1} parent=11 // pred_check_branch
          %245 = sbr.rel (%p243) target = $region16
        $region15: #{tpu_custom_call.1} parent=11 // pred_region
          %s247 = ssub.s32 9216, 9216
          %248 = vsyncadd [#allocation7], %s247
          %s249 = sshll.u32 [#allocation8], 4
          %s250 = int_to_ptr.vmem [resolvable:$true] %s249
          %255 = dma.hbm_to_vmem [thread:$0]  %s2, 9216, %s250, [#allocation7], 64, 64, 4
        $region16: #{tpu_custom_call.1} parent=11 // pred_fallthru
          _
        // Predicated region
        $region17: #{tpu_custom_call.1} parent=11 // pred_check
          %p256 = pneg %p118
        $region18: #{tpu_custom_call.1} parent=11 // pred_check_branch
          %258 = sbr.rel (%p256) target = $region20
        $region19: #{tpu_custom_call.1} parent=11 // pred_region
          _
        $region20: #{tpu_custom_call.1} parent=11 // pred_fallthru
          _
        // Predicated region
        $region21: #{tpu_custom_call.1} parent=11 // pred_check
          %p259 = pneg %p139
        $region22: #{tpu_custom_call.1} parent=11 // pred_check_branch
          %261 = sbr.rel (%p259) target = $region24
        $region23: #{tpu_custom_call.1} parent=11 // pred_region
          _
        $region24: #{tpu_custom_call.1} parent=11 // pred_fallthru
          _
        // Predicated region
        $region25: #{tpu_custom_call.1} parent=11 // pred_check
          %p262 = pneg %p160
        $region26: #{tpu_custom_call.1} parent=11 // pred_check_branch
          %264 = sbr.rel (%p262) target = $region28
        $region27: #{tpu_custom_call.1} parent=11 // pred_region
          %s266 = ssub.s32 9216, 9216
          %267 = vsyncadd [#allocation10], %s266
          %s268 = sshll.u32 [#allocation9], 4
          %s269 = int_to_ptr.vmem [resolvable:$true] %s268
          %274 = dma.hbm_to_vmem [thread:$0]  %s5, 9216, %s269, [#allocation10], 64, 64, 4
        $region28: #{tpu_custom_call.1} parent=11 // pred_fallthru
          _
        // Predicated region
        $region29: #{tpu_custom_call.1} parent=11 // pred_check
          %p275 = pneg %p181
        $region30: #{tpu_custom_call.1} parent=11 // pred_check_branch
          %277 = sbr.rel (%p275) target = $region32
        $region31: #{tpu_custom_call.1} parent=11 // pred_region
          _
        $region32: #{tpu_custom_call.1} parent=11 // pred_fallthru
          _
        // Predicated region
        $region33: #{tpu_custom_call.1} parent=11 // pred_check
          %p278 = pneg %p202
        $region34: #{tpu_custom_call.1} parent=11 // pred_check_branch
          %280 = sbr.rel (%p278) target = $region36
        $region35: #{tpu_custom_call.1} parent=11 // pred_region
          _
        $region36: #{tpu_custom_call.1} parent=11 // pred_fallthru
          _
      $region12: #{tpu_custom_call.1} parent=5 // pred_fallthru
        _
      %p281 = scmp.lt.s32.totalorder %s24, 2
      // Predicated region
      $region37: #{tpu_custom_call.1} parent=5 // pred_check
        %p282 = pneg %p281
      $region38: #{tpu_custom_call.1} parent=5 // pred_check_branch
        %284 = sbr.rel (%p282) target = $region40
      $region39: #{tpu_custom_call.1} parent=5 // pred_region
        // Predicated region
        $region41: #{tpu_custom_call.1} parent=39 // pred_check
          %p285 = pneg %p44
        $region42: #{tpu_custom_call.1} parent=39 // pred_check_branch
          %287 = sbr.rel (%p285) target = $region44
        $region43: #{tpu_custom_call.1} parent=39 // pred_region
          %s288 = sand.u32 %s34, 1
          %s289 = scalar_lea.sflag [#allocation4], %s288
          %s290 = sand.u32 %s34, 1
          %s291 = smul.addr %s290, 144
          %s292 = scalar_lea.vmem [#allocation3], %s291
          %s294 = ssub.s32 2304, 2304
          %295 = vsyncadd %s289, %s294
          %s296 = smul.addr %s24, 36
          %s297 = smul.addr %s296, 64
          %s298 = scalar_lea.hbm %s0, %s297
          %s299 = sshll.u32 %s292, 4
          %s300 = int_to_ptr.vmem [resolvable:$true] %s299
          %305 = dma.hbm_to_vmem [thread:$0]  %s298, 2304, %s300, %s289, 64, 64, 4
        $region44: #{tpu_custom_call.1} parent=39 // pred_fallthru
          _
        // Predicated region
        $region45: #{tpu_custom_call.1} parent=39 // pred_check
          %p306 = pneg %p70
        $region46: #{tpu_custom_call.1} parent=39 // pred_check_branch
          %308 = sbr.rel (%p306) target = $region48
        $region47: #{tpu_custom_call.1} parent=39 // pred_region
          %s309 = sand.u32 %s24, 1
          %s310 = scalar_lea.sflag [#allocation7], %s309
          %s311 = sand.u32 %s60, 1
          %s312 = smul.addr %s311, 256
          %s313 = scalar_lea.vmem [#allocation6], %s312
          %s315 = ssub.s32 4096, 4096
          %316 = vsyncadd %s310, %s315
          %s317 = smul.addr %s24, 32
          %s318 = smul.addr %s317, 128
          %s319 = scalar_lea.hbm %s1, %s318
          %s320 = sshll.u32 %s313, 4
          %s321 = int_to_ptr.vmem [resolvable:$true] %s320
          %326 = dma.hbm_to_vmem [thread:$0]  %s319, 4096, %s321, %s310, 128, 128, 8
        $region48: #{tpu_custom_call.1} parent=39 // pred_fallthru
          _
      $region40: #{tpu_custom_call.1} parent=5 // pred_fallthru
        _
      %p327 = scmp.le.s32.totalorder 1, %s24
      %p328 = scmp.lt.s32.totalorder %s24, 3
      %p329 = pnand %p327, %p328
      %p330 = pneg %p329
      // Predicated region
      $region49: #{tpu_custom_call.1} parent=5 // pred_check
        _
      $region50: #{tpu_custom_call.1} parent=5 // pred_check_branch
        %332 = sbr.rel (%p329) target = $region52
      $region51: #{tpu_custom_call.1} parent=5 // pred_region
        %s333 = ssub.s32 %s24, 1
        %s334 = sand.u32 %s37, 1
        %s335 = scalar_lea.sflag [#allocation4], %s334
        %s336 = sand.u32 %s37, 1
        %s337 = smul.addr %s336, 144
        %s338 = scalar_lea.vmem [#allocation3], %s337
        // Predicated region
        $region53: #{tpu_custom_call.1} parent=51 // pred_check
          %p339 = pneg %p50
        $region54: #{tpu_custom_call.1} parent=51 // pred_check_branch
          %341 = sbr.rel (%p339) target = $region56
        $region55: #{tpu_custom_call.1} parent=51 // pred_region
          %342 = dma.done %s335, 2304
        $region56: #{tpu_custom_call.1} parent=51 // pred_fallthru
          _
        %s343 = sand.u32 %s29, 1
        %s344 = scalar_lea.sflag [#allocation7], %s343
        %s345 = sand.u32 %s63, 1
        %s346 = smul.addr %s345, 256
        %s347 = scalar_lea.vmem [#allocation6], %s346
        // Predicated region
        $region57: #{tpu_custom_call.1} parent=51 // pred_check
          %p348 = pneg %p76
        $region58: #{tpu_custom_call.1} parent=51 // pred_check_branch
          %350 = sbr.rel (%p348) target = $region60
        $region59: #{tpu_custom_call.1} parent=51 // pred_region
          %351 = dma.done %s344, 4096
        $region60: #{tpu_custom_call.1} parent=51 // pred_fallthru
          _
        // Predicated region
        $region61: #{tpu_custom_call.1} parent=51 // pred_check
          %p352 = pneg %p97
        $region62: #{tpu_custom_call.1} parent=51 // pred_check_branch
          %354 = sbr.rel (%p352) target = $region64
        $region63: #{tpu_custom_call.1} parent=51 // pred_region
          %355 = dma.done [#allocation7], 9216
        $region64: #{tpu_custom_call.1} parent=51 // pred_fallthru
          _
        // Predicated region
        $region65: #{tpu_custom_call.1} parent=51 // pred_check
          %p356 = pneg %p160
        $region66: #{tpu_custom_call.1} parent=51 // pred_check_branch
          %358 = sbr.rel (%p356) target = $region68
        $region67: #{tpu_custom_call.1} parent=51 // pred_region
          %359 = dma.done [#allocation10], 9216
        $region68: #{tpu_custom_call.1} parent=51 // pred_fallthru
          _
        %s360 = sand.u32 %s37, 1
        %s361 = scalar_lea.sflag [#allocation4], %s360
        %s362 = sand.u32 %s37, 1
        %s363 = smul.addr %s362, 144
        %s364 = scalar_lea.vmem [#allocation3], %s363
        %p365 = pneg %p50
        %p366 = pneg %p47
        %s367 = sand.u32 %s29, 1
        %s368 = scalar_lea.sflag [#allocation7], %s367
        %s369 = sand.u32 %s63, 1
        %s370 = smul.addr %s369, 256
        %s371 = scalar_lea.vmem [#allocation6], %s370
        %p372 = pneg %p76
        %p373 = pneg %p73
        %p374 = pneg %p97
        %p375 = pneg %p94
        %p376 = pneg %p118
        %p377 = pneg %p115
        %p378 = pneg %p139
        %p379 = pneg %p136
        %p380 = pneg %p160
        %p381 = pneg %p157
        %p382 = pneg %p181
        %p383 = pneg %p178
        %p384 = pneg %p202
        %p385 = pneg %p199
        %p386 = pneg %p228
        %p387 = pneg %p225
        %s388 = sand.u32 %s215, 1
        %s389 = scalar_lea.sflag [#allocation5], %s388
        %s390 = sand.u32 %s215, 1
        %s391 = smul.addr %s390, 256
        %s392 = scalar_lea.vmem [#allocation11], %s391
        %v394 = vlaneseq
        %v395 = vshrl.u32 %v394, 7
        %v396 = vadd.s32 %v395, 8
        %vm397 = vcmp.eq.s32.totalorder %v395, 0
        %vm398 = vcmp.eq.s32.totalorder %v396, 0
        %vm399 = vcmp.eq.s32.totalorder %v395, 15
        %vm400 = vcmp.eq.s32.totalorder %v396, 15
        %401 = vst [vmem:[#allocation2] sm:$0xf] 0
        %402 = vst [vmem:[#allocation2 + $0x4] sm:$0xf] 0
        %s403 = scalar_lea.vmem [#allocation2], 136
        %404 = vst [vmem:[%s403] sm:$0xf] 0
        %405 = vst [vmem:[%s403 + $0x4] sm:$0xf] 0
        %v406 = vld [vmem:[%s3] sm:$0x1]
        %v407 = vld [vmem:[%s4] sm:$0x1]
        %v408 = vld [vmem:[%s338] sm:$0xf]
        %v409 = vld [vmem:[%s338 + $0x4] sm:$0xf]
        %v410 = vld [vmem:[%s338 + $0x8] sm:$0xf]
        %v411 = vld [vmem:[%s338 + $0xc] sm:$0xf]
        %v412 = vld [vmem:[%s338 + $0x10] sm:$0xf]
        %v413 = vld [vmem:[%s338 + $0x14] sm:$0xf]
        %v414 = vld [vmem:[%s338 + $0x18] sm:$0xf]
        %v415 = vld [vmem:[%s338 + $0x1c] sm:$0xf]
        %v416 = vld [vmem:[%s338 + $0x20] sm:$0xf]
        %v417 = vld [vmem:[%s338 + $0x24] sm:$0xf]
        %v418 = vld [vmem:[%s338 + $0x28] sm:$0xf]
        %v419 = vld [vmem:[%s338 + $0x2c] sm:$0xf]
        %v420 = vld [vmem:[%s338 + $0x30] sm:$0xf]
        %v421 = vld [vmem:[%s338 + $0x34] sm:$0xf]
        %v422 = vld [vmem:[%s338 + $0x38] sm:$0xf]
        %v423 = vld [vmem:[%s338 + $0x3c] sm:$0xf]
        %v424 = vld [vmem:[#allocation8] sm:$0xf]
        %v425 = vld [vmem:[#allocation8 + $0x4] sm:$0xf]
        %v426 = vld [vmem:[#allocation8 + $0x8] sm:$0xf]
        %v427 = vld [vmem:[#allocation8 + $0xc] sm:$0xf]
        %v428 = vld [vmem:[#allocation8 + $0x10] sm:$0xf]
        %v429 = vld [vmem:[#allocation8 + $0x14] sm:$0xf]
        %v430 = vld [vmem:[#allocation8 + $0x18] sm:$0xf]
        %v431 = vld [vmem:[#allocation8 + $0x1c] sm:$0xf]
        %v432 = vld [vmem:[#allocation8 + $0x20] sm:$0xf]
        %v433 = vld [vmem:[#allocation8 + $0x24] sm:$0xf]
        %v434 = vld [vmem:[#allocation8 + $0x28] sm:$0xf]
        %v435 = vld [vmem:[#allocation8 + $0x2c] sm:$0xf]
        %v436 = vld [vmem:[#allocation8 + $0x30] sm:$0xf]
        %v437 = vld [vmem:[#allocation8 + $0x34] sm:$0xf]
        %v438 = vld [vmem:[#allocation8 + $0x38] sm:$0xf]
        %v439 = vld [vmem:[#allocation8 + $0x3c] sm:$0xf]
        %v456 = vunpack.c.l.b16 %v408
        %v457 = vunpack.c.l.b16 %v409
        %v458 = vunpack.c.l.b16 %v410
        %v459 = vunpack.c.l.b16 %v411
        %v460 = vunpack.c.l.b16 %v412
        %v461 = vunpack.c.l.b16 %v413
        %v462 = vunpack.c.l.b16 %v414
        %v463 = vunpack.c.l.b16 %v415
        %v464 = vunpack.c.l.b16 %v416
        %v465 = vunpack.c.l.b16 %v417
        %v466 = vunpack.c.l.b16 %v418
        %v467 = vunpack.c.l.b16 %v419
        %v468 = vunpack.c.l.b16 %v420
        %v469 = vunpack.c.l.b16 %v421
        %v470 = vunpack.c.l.b16 %v422
        %v471 = vunpack.c.l.b16 %v423
        %v472 = vpack.c.b16 %v457, %v456
        %v473 = vpack.c.b16 %v459, %v458
        %v474 = vpack.c.b16 %v461, %v460
        %v475 = vpack.c.b16 %v463, %v462
        %v476 = vpack.c.b16 %v465, %v464
        %v477 = vpack.c.b16 %v467, %v466
        %v478 = vpack.c.b16 %v469, %v468
        %v479 = vpack.c.b16 %v471, %v470
        %v504 = vunpack.c.l.b16 %v424
        %v505 = vunpack.c.l.b16 %v425
        %v506 = vunpack.c.l.b16 %v426
        %v507 = vunpack.c.l.b16 %v427
        %v508 = vunpack.c.l.b16 %v428
        %v509 = vunpack.c.l.b16 %v429
        %v510 = vunpack.c.l.b16 %v430
        %v511 = vunpack.c.l.b16 %v431
        %v512 = vunpack.c.l.b16 %v432
        %v513 = vunpack.c.l.b16 %v433
        %v514 = vunpack.c.l.b16 %v434
        %v515 = vunpack.c.l.b16 %v435
        %v516 = vunpack.c.l.b16 %v436
        %v517 = vunpack.c.l.b16 %v437
        %v518 = vunpack.c.l.b16 %v438
        %v519 = vunpack.c.l.b16 %v439
        %v520 = vpack.c.b16 %v505, %v504
        %v521 = vpack.c.b16 %v507, %v506
        %v522 = vpack.c.b16 %v509, %v508
        %v523 = vpack.c.b16 %v511, %v510
        %v524 = vpack.c.b16 %v513, %v512
        %v525 = vpack.c.b16 %v515, %v514
        %v526 = vpack.c.b16 %v517, %v516
        %v527 = vpack.c.b16 %v519, %v518
        %536 = vmatprep.subr.bf16.mxu0 0
        %537 = vmatpush1.bf16.msra.mxu0 %v527
        %538 = vmatprep.subr.bf16.mxu0 0
        %539 = vmatpush1.bf16.msra.mxu0 %v526
        %540 = vmatprep.subr.bf16.mxu0 0
        %541 = vmatpush1.bf16.msra.mxu0 %v525
        %542 = vmatprep.subr.bf16.mxu0 0
        %543 = vmatpush1.bf16.msra.mxu0 %v524
        %544 = vmatprep.subr.bf16.mxu0 0
        %545 = vmatpush1.bf16.msra.mxu0 %v523
        %546 = vmatprep.subr.bf16.mxu0 0
        %547 = vmatpush1.bf16.msra.mxu0 %v522
        %548 = vmatprep.subr.bf16.mxu0 0
        %549 = vmatpush1.bf16.msra.mxu0 %v521
        %550 = vmatprep.subr.bf16.mxu0 0
        %551 = vmatpush1.bf16.msra.mxu0 %v520
        %552 = vmatprep.subr.bf16.mxu0 0
        %553 = vmatpush2.bf16.msra.mxu0 0
        %554 = vmatprep.subr.bf16.mxu0 0
        %555 = vmatpush2.bf16.msra.mxu0 0
        %556 = vmatprep.subr.bf16.mxu0 0
        %557 = vmatpush2.bf16.msra.mxu0 0
        %558 = vmatprep.subr.bf16.mxu0 0
        %559 = vmatpush2.bf16.msra.mxu0 0
        %560 = vmatprep.subr.bf16.mxu0 0
        %561 = vmatpush2.bf16.msra.mxu0 0
        %562 = vmatprep.subr.bf16.mxu0 0
        %563 = vmatpush2.bf16.msra.mxu0 0
        %564 = vmatprep.subr.bf16.mxu0 0
        %565 = vmatpush2.bf16.msra.mxu0 0
        %566 = vmatprep.subr.bf16.mxu0 0
        %567 = vmatpush2.bf16.msra.mxu0 0
        %568 = vmatprep.mubr.bf16.mxu0 0
        %569 = vmatmul.mubr.bf16.gmra.mxu0 %v472
        %v570 = vpop.f32.mrf.mxu0
        %v571 = vadd.f32 0.0, %v570
        %v572 = vpop.f32.mrf.mxu0
        %v573 = vpop.f32.mrf.mxu0
        %v574 = vadd.f32 0.0, %v573
        %v575 = vpop.f32.mrf.mxu0
        %576 = vmatprep.mubr.bf16.mxu0 0
        %577 = vmatmul.mubr.bf16.gmra.mxu0 %v473
        %v578 = vpop.f32.mrf.mxu0
        %v579 = vadd.f32 0.0, %v578
        %v580 = vpop.f32.mrf.mxu0
        %v581 = vpop.f32.mrf.mxu0
        %v582 = vadd.f32 0.0, %v581
        %v583 = vpop.f32.mrf.mxu0
        %584 = vmatprep.mubr.bf16.mxu0 0
        %585 = vmatmul.mubr.bf16.gmra.mxu0 %v474
        %v586 = vpop.f32.mrf.mxu0
        %v587 = vadd.f32 0.0, %v586
        %v588 = vpop.f32.mrf.mxu0
        %v589 = vpop.f32.mrf.mxu0
        %v590 = vadd.f32 0.0, %v589
        %v591 = vpop.f32.mrf.mxu0
        %592 = vmatprep.mubr.bf16.mxu0 0
        %593 = vmatmul.mubr.bf16.gmra.mxu0 %v475
        %v594 = vpop.f32.mrf.mxu0
        %v595 = vadd.f32 0.0, %v594
        %v596 = vpop.f32.mrf.mxu0
        %v597 = vpop.f32.mrf.mxu0
        %v598 = vadd.f32 0.0, %v597
        %v599 = vpop.f32.mrf.mxu0
        %600 = vmatprep.mubr.bf16.mxu0 0
        %601 = vmatmul.mubr.bf16.gmra.mxu0 %v476
        %v602 = vpop.f32.mrf.mxu0
        %v603 = vadd.f32 0.0, %v602
        %v604 = vpop.f32.mrf.mxu0
        %v605 = vpop.f32.mrf.mxu0
        %v606 = vadd.f32 0.0, %v605
        %v607 = vpop.f32.mrf.mxu0
        %608 = vmatprep.mubr.bf16.mxu0 0
        %609 = vmatmul.mubr.bf16.gmra.mxu0 %v477
        %v610 = vpop.f32.mrf.mxu0
        %v611 = vadd.f32 0.0, %v610
        %v612 = vpop.f32.mrf.mxu0
        %v613 = vpop.f32.mrf.mxu0
        %v614 = vadd.f32 0.0, %v613
        %v615 = vpop.f32.mrf.mxu0
        %616 = vmatprep.mubr.bf16.mxu0 0
        %617 = vmatmul.mubr.bf16.gmra.mxu0 %v478
        %v618 = vpop.f32.mrf.mxu0
        %v619 = vadd.f32 0.0, %v618
        %v620 = vpop.f32.mrf.mxu0
        %v621 = vpop.f32.mrf.mxu0
        %v622 = vadd.f32 0.0, %v621
        %v623 = vpop.f32.mrf.mxu0
        %624 = vmatprep.mubr.bf16.mxu0 0
        %625 = vmatmul.mubr.bf16.gmra.mxu0 %v479
        %v626 = vpop.f32.mrf.mxu0
        %v627 = vadd.f32 0.0, %v626
        %v628 = vpop.f32.mrf.mxu0
        %v629 = vpop.f32.mrf.mxu0
        %v630 = vadd.f32 0.0, %v629
        %v631 = vpop.f32.mrf.mxu0
        %632 = vdwg.mxu0
        %v633 = vrot.slane %v571, 7
        %v634 = vrot.slane %v574, 7
        %v635 = vrot.slane %v579, 7
        %v636 = vrot.slane %v582, 7
        %v637 = vrot.slane %v587, 7
        %v638 = vrot.slane %v590, 7
        %v639 = vrot.slane %v595, 7
        %v640 = vrot.slane %v598, 7
        %v641 = vrot.slane %v603, 7
        %v642 = vrot.slane %v606, 7
        %v643 = vrot.slane %v611, 7
        %v644 = vrot.slane %v614, 7
        %v645 = vrot.slane %v619, 7
        %v646 = vrot.slane %v622, 7
        %v647 = vrot.slane %v627, 7
        %v648 = vrot.slane %v630, 7
        %vm649 = vcmp.lt.s32.totalorder %v395, 1
        %v650 = vsel %vm649, %v647, %v648
        %v651 = vsel %vm649, %v646, %v647
        %v652 = vsel %vm649, %v645, %v646
        %v653 = vsel %vm649, %v644, %v645
        %v654 = vsel %vm649, %v643, %v644
        %v655 = vsel %vm649, %v642, %v643
        %v656 = vsel %vm649, %v641, %v642
        %v657 = vsel %vm649, %v640, %v641
        %v658 = vsel %vm649, %v639, %v640
        %v659 = vsel %vm649, %v638, %v639
        %v660 = vsel %vm649, %v637, %v638
        %v661 = vsel %vm649, %v636, %v637
        %v662 = vsel %vm649, %v635, %v636
        %v663 = vsel %vm649, %v634, %v635
        %v664 = vsel %vm649, %v633, %v634
        %v665 = vsel %vm649, %v648, %v633
        %v666 = vsel %vm397, 0.0, %v665
        %v667 = vsel %vm398, 0.0, %v664
        %v668 = vsel %vm397, 0.0, %v663
        %v669 = vsel %vm398, 0.0, %v662
        %v670 = vsel %vm397, 0.0, %v661
        %v671 = vsel %vm398, 0.0, %v660
        %v672 = vsel %vm397, 0.0, %v659
        %v673 = vsel %vm398, 0.0, %v658
        %v674 = vsel %vm397, 0.0, %v657
        %v675 = vsel %vm398, 0.0, %v656
        %v676 = vsel %vm397, 0.0, %v655
        %v677 = vsel %vm398, 0.0, %v654
        %v678 = vsel %vm397, 0.0, %v653
        %v679 = vsel %vm398, 0.0, %v652
        %v680 = vsel %vm397, 0.0, %v651
        %v681 = vsel %vm398, 0.0, %v650
        %s682 = scalar_lea.vmem [#allocation8], 64
        %v683 = vld [vmem:[%s682] sm:$0xf]
        %v684 = vld [vmem:[%s682 + $0x4] sm:$0xf]
        %v685 = vld [vmem:[%s682 + $0x8] sm:$0xf]
        %v686 = vld [vmem:[%s682 + $0xc] sm:$0xf]
        %v687 = vld [vmem:[%s682 + $0x10] sm:$0xf]
        %v688 = vld [vmem:[%s682 + $0x14] sm:$0xf]
        %v689 = vld [vmem:[%s682 + $0x18] sm:$0xf]
        %v690 = vld [vmem:[%s682 + $0x1c] sm:$0xf]
        %v691 = vld [vmem:[%s682 + $0x20] sm:$0xf]
        %v692 = vld [vmem:[%s682 + $0x24] sm:$0xf]
        %v693 = vld [vmem:[%s682 + $0x28] sm:$0xf]
        %v694 = vld [vmem:[%s682 + $0x2c] sm:$0xf]
        %v695 = vld [vmem:[%s682 + $0x30] sm:$0xf]
        %v696 = vld [vmem:[%s682 + $0x34] sm:$0xf]
        %v697 = vld [vmem:[%s682 + $0x38] sm:$0xf]
        %v698 = vld [vmem:[%s682 + $0x3c] sm:$0xf]
        %v715 = vunpack.c.l.b16 %v683
        %v716 = vunpack.c.l.b16 %v684
        %v717 = vunpack.c.l.b16 %v685
        %v718 = vunpack.c.l.b16 %v686
        %v719 = vunpack.c.l.b16 %v687
        %v720 = vunpack.c.l.b16 %v688
        %v721 = vunpack.c.l.b16 %v689
        %v722 = vunpack.c.l.b16 %v690
        %v723 = vunpack.c.l.b16 %v691
        %v724 = vunpack.c.l.b16 %v692
        %v725 = vunpack.c.l.b16 %v693
        %v726 = vunpack.c.l.b16 %v694
        %v727 = vunpack.c.l.b16 %v695
        %v728 = vunpack.c.l.b16 %v696
        %v729 = vunpack.c.l.b16 %v697
        %v730 = vunpack.c.l.b16 %v698
        %v731 = vpack.c.b16 %v716, %v715
        %v732 = vpack.c.b16 %v718, %v717
        %v733 = vpack.c.b16 %v720, %v719
        %v734 = vpack.c.b16 %v722, %v721
        %v735 = vpack.c.b16 %v724, %v723
        %v736 = vpack.c.b16 %v726, %v725
        %v737 = vpack.c.b16 %v728, %v727
        %v738 = vpack.c.b16 %v730, %v729
        %747 = vmatprep.subr.bf16.mxu0 0
        %748 = vmatpush1.bf16.msra.mxu0 %v738
        %749 = vmatprep.subr.bf16.mxu0 0
        %750 = vmatpush1.bf16.msra.mxu0 %v737
        %751 = vmatprep.subr.bf16.mxu0 0
        %752 = vmatpush1.bf16.msra.mxu0 %v736
        %753 = vmatprep.subr.bf16.mxu0 0
        %754 = vmatpush1.bf16.msra.mxu0 %v735
        %755 = vmatprep.subr.bf16.mxu0 0
        %756 = vmatpush1.bf16.msra.mxu0 %v734
        %757 = vmatprep.subr.bf16.mxu0 0
        %758 = vmatpush1.bf16.msra.mxu0 %v733
        %759 = vmatprep.subr.bf16.mxu0 0
        %760 = vmatpush1.bf16.msra.mxu0 %v732
        %761 = vmatprep.subr.bf16.mxu0 0
        %762 = vmatpush1.bf16.msra.mxu0 %v731
        %763 = vmatprep.subr.bf16.mxu0 0
        %764 = vmatpush2.bf16.msra.mxu0 0
        %765 = vmatprep.subr.bf16.mxu0 0
        %766 = vmatpush2.bf16.msra.mxu0 0
        %767 = vmatprep.subr.bf16.mxu0 0
        %768 = vmatpush2.bf16.msra.mxu0 0
        %769 = vmatprep.subr.bf16.mxu0 0
        %770 = vmatpush2.bf16.msra.mxu0 0
        %771 = vmatprep.subr.bf16.mxu0 0
        %772 = vmatpush2.bf16.msra.mxu0 0
        %773 = vmatprep.subr.bf16.mxu0 0
        %774 = vmatpush2.bf16.msra.mxu0 0
        %775 = vmatprep.subr.bf16.mxu0 0
        %776 = vmatpush2.bf16.msra.mxu0 0
        %777 = vmatprep.subr.bf16.mxu0 0
        %778 = vmatpush2.bf16.msra.mxu0 0
        %779 = vmatprep.mubr.bf16.mxu0 0
        %780 = vmatmul.mubr.bf16.gmra.mxu0 %v472
        %v781 = vpop.f32.mrf.mxu0
        %v782 = vadd.f32 0.0, %v781
        %v783 = vpop.f32.mrf.mxu0
        %v784 = vpop.f32.mrf.mxu0
        %v785 = vadd.f32 0.0, %v784
        %v786 = vpop.f32.mrf.mxu0
        %787 = vmatprep.mubr.bf16.mxu0 0
        %788 = vmatmul.mubr.bf16.gmra.mxu0 %v473
        %v789 = vpop.f32.mrf.mxu0
        %v790 = vadd.f32 0.0, %v789
        %v791 = vpop.f32.mrf.mxu0
        %v792 = vpop.f32.mrf.mxu0
        %v793 = vadd.f32 0.0, %v792
        %v794 = vpop.f32.mrf.mxu0
        %795 = vmatprep.mubr.bf16.mxu0 0
        %796 = vmatmul.mubr.bf16.gmra.mxu0 %v474
        %v797 = vpop.f32.mrf.mxu0
        %v798 = vadd.f32 0.0, %v797
        %v799 = vpop.f32.mrf.mxu0
        %v800 = vpop.f32.mrf.mxu0
        %v801 = vadd.f32 0.0, %v800
        %v802 = vpop.f32.mrf.mxu0
        %803 = vmatprep.mubr.bf16.mxu0 0
        %804 = vmatmul.mubr.bf16.gmra.mxu0 %v475
        %v805 = vpop.f32.mrf.mxu0
        %v806 = vadd.f32 0.0, %v805
        %v807 = vpop.f32.mrf.mxu0
        %v808 = vpop.f32.mrf.mxu0
        %v809 = vadd.f32 0.0, %v808
        %v810 = vpop.f32.mrf.mxu0
        %811 = vmatprep.mubr.bf16.mxu0 0
        %812 = vmatmul.mubr.bf16.gmra.mxu0 %v476
        %v813 = vpop.f32.mrf.mxu0
        %v814 = vadd.f32 0.0, %v813
        %v815 = vpop.f32.mrf.mxu0
        %v816 = vpop.f32.mrf.mxu0
        %v817 = vadd.f32 0.0, %v816
        %v818 = vpop.f32.mrf.mxu0
        %819 = vmatprep.mubr.bf16.mxu0 0
        %820 = vmatmul.mubr.bf16.gmra.mxu0 %v477
        %v821 = vpop.f32.mrf.mxu0
        %v822 = vadd.f32 0.0, %v821
        %v823 = vpop.f32.mrf.mxu0
        %v824 = vpop.f32.mrf.mxu0
        %v825 = vadd.f32 0.0, %v824
        %v826 = vpop.f32.mrf.mxu0
        %827 = vmatprep.mubr.bf16.mxu0 0
        %828 = vmatmul.mubr.bf16.gmra.mxu0 %v478
        %v829 = vpop.f32.mrf.mxu0
        %v830 = vadd.f32 0.0, %v829
        %v831 = vpop.f32.mrf.mxu0
        %v832 = vpop.f32.mrf.mxu0
        %v833 = vadd.f32 0.0, %v832
        %v834 = vpop.f32.mrf.mxu0
        %835 = vmatprep.mubr.bf16.mxu0 0
        %836 = vmatmul.mubr.bf16.gmra.mxu0 %v479
        %v837 = vpop.f32.mrf.mxu0
        %v838 = vadd.f32 0.0, %v837
        %v839 = vpop.f32.mrf.mxu0
        %v840 = vpop.f32.mrf.mxu0
        %v841 = vadd.f32 0.0, %v840
        %v842 = vpop.f32.mrf.mxu0
        %843 = vdwg.mxu0
        %v844 = vadd.f32 %v666, %v782
        %v845 = vadd.f32 %v667, %v785
        %v846 = vadd.f32 %v668, %v790
        %v847 = vadd.f32 %v669, %v793
        %v848 = vadd.f32 %v670, %v798
        %v849 = vadd.f32 %v671, %v801
        %v850 = vadd.f32 %v672, %v806
        %v851 = vadd.f32 %v673, %v809
        %v852 = vadd.f32 %v674, %v814
        %v853 = vadd.f32 %v675, %v817
        %v854 = vadd.f32 %v676, %v822
        %v855 = vadd.f32 %v677, %v825
        %v856 = vadd.f32 %v678, %v830
        %v857 = vadd.f32 %v679, %v833
        %v858 = vadd.f32 %v680, %v838
        %v859 = vadd.f32 %v681, %v841
        %s860 = scalar_lea.vmem [#allocation8], 128
        %v861 = vld [vmem:[%s860] sm:$0xf]
        %v862 = vld [vmem:[%s860 + $0x4] sm:$0xf]
        %v863 = vld [vmem:[%s860 + $0x8] sm:$0xf]
        %v864 = vld [vmem:[%s860 + $0xc] sm:$0xf]
        %v865 = vld [vmem:[%s860 + $0x10] sm:$0xf]
        %v866 = vld [vmem:[%s860 + $0x14] sm:$0xf]
        %v867 = vld [vmem:[%s860 + $0x18] sm:$0xf]
        %v868 = vld [vmem:[%s860 + $0x1c] sm:$0xf]
        %v869 = vld [vmem:[%s860 + $0x20] sm:$0xf]
        %v870 = vld [vmem:[%s860 + $0x24] sm:$0xf]
        %v871 = vld [vmem:[%s860 + $0x28] sm:$0xf]
        %v872 = vld [vmem:[%s860 + $0x2c] sm:$0xf]
        %v873 = vld [vmem:[%s860 + $0x30] sm:$0xf]
        %v874 = vld [vmem:[%s860 + $0x34] sm:$0xf]
        %v875 = vld [vmem:[%s860 + $0x38] sm:$0xf]
        %v876 = vld [vmem:[%s860 + $0x3c] sm:$0xf]
        %v893 = vunpack.c.l.b16 %v861
        %v894 = vunpack.c.l.b16 %v862
        %v895 = vunpack.c.l.b16 %v863
        %v896 = vunpack.c.l.b16 %v864
        %v897 = vunpack.c.l.b16 %v865
        %v898 = vunpack.c.l.b16 %v866
        %v899 = vunpack.c.l.b16 %v867
        %v900 = vunpack.c.l.b16 %v868
        %v901 = vunpack.c.l.b16 %v869
        %v902 = vunpack.c.l.b16 %v870
        %v903 = vunpack.c.l.b16 %v871
        %v904 = vunpack.c.l.b16 %v872
        %v905 = vunpack.c.l.b16 %v873
        %v906 = vunpack.c.l.b16 %v874
        %v907 = vunpack.c.l.b16 %v875
        %v908 = vunpack.c.l.b16 %v876
        %v909 = vpack.c.b16 %v894, %v893
        %v910 = vpack.c.b16 %v896, %v895
        %v911 = vpack.c.b16 %v898, %v897
        %v912 = vpack.c.b16 %v900, %v899
        %v913 = vpack.c.b16 %v902, %v901
        %v914 = vpack.c.b16 %v904, %v903
        %v915 = vpack.c.b16 %v906, %v905
        %v916 = vpack.c.b16 %v908, %v907
        %925 = vmatprep.subr.bf16.mxu0 0
        %926 = vmatpush1.bf16.msra.mxu0 %v916
        %927 = vmatprep.subr.bf16.mxu0 0
        %928 = vmatpush1.bf16.msra.mxu0 %v915
        %929 = vmatprep.subr.bf16.mxu0 0
        %930 = vmatpush1.bf16.msra.mxu0 %v914
        %931 = vmatprep.subr.bf16.mxu0 0
        %932 = vmatpush1.bf16.msra.mxu0 %v913
        %933 = vmatprep.subr.bf16.mxu0 0
        %934 = vmatpush1.bf16.msra.mxu0 %v912
        %935 = vmatprep.subr.bf16.mxu0 0
        %936 = vmatpush1.bf16.msra.mxu0 %v911
        %937 = vmatprep.subr.bf16.mxu0 0
        %938 = vmatpush1.bf16.msra.mxu0 %v910
        %939 = vmatprep.subr.bf16.mxu0 0
        %940 = vmatpush1.bf16.msra.mxu0 %v909
        %941 = vmatprep.subr.bf16.mxu0 0
        %942 = vmatpush2.bf16.msra.mxu0 0
        %943 = vmatprep.subr.bf16.mxu0 0
        %944 = vmatpush2.bf16.msra.mxu0 0
        %945 = vmatprep.subr.bf16.mxu0 0
        %946 = vmatpush2.bf16.msra.mxu0 0
        %947 = vmatprep.subr.bf16.mxu0 0
        %948 = vmatpush2.bf16.msra.mxu0 0
        %949 = vmatprep.subr.bf16.mxu0 0
        %950 = vmatpush2.bf16.msra.mxu0 0
        %951 = vmatprep.subr.bf16.mxu0 0
        %952 = vmatpush2.bf16.msra.mxu0 0
        %953 = vmatprep.subr.bf16.mxu0 0
        %954 = vmatpush2.bf16.msra.mxu0 0
        %955 = vmatprep.subr.bf16.mxu0 0
        %956 = vmatpush2.bf16.msra.mxu0 0
        %957 = vmatprep.mubr.bf16.mxu0 0
        %958 = vmatmul.mubr.bf16.gmra.mxu0 %v472
        %v959 = vpop.f32.mrf.mxu0
        %v960 = vadd.f32 0.0, %v959
        %v961 = vpop.f32.mrf.mxu0
        %v962 = vpop.f32.mrf.mxu0
        %v963 = vadd.f32 0.0, %v962
        %v964 = vpop.f32.mrf.mxu0
        %965 = vmatprep.mubr.bf16.mxu0 0
        %966 = vmatmul.mubr.bf16.gmra.mxu0 %v473
        %v967 = vpop.f32.mrf.mxu0
        %v968 = vadd.f32 0.0, %v967
        %v969 = vpop.f32.mrf.mxu0
        %v970 = vpop.f32.mrf.mxu0
        %v971 = vadd.f32 0.0, %v970
        %v972 = vpop.f32.mrf.mxu0
        %973 = vmatprep.mubr.bf16.mxu0 0
        %974 = vmatmul.mubr.bf16.gmra.mxu0 %v474
        %v975 = vpop.f32.mrf.mxu0
        %v976 = vadd.f32 0.0, %v975
        %v977 = vpop.f32.mrf.mxu0
        %v978 = vpop.f32.mrf.mxu0
        %v979 = vadd.f32 0.0, %v978
        %v980 = vpop.f32.mrf.mxu0
        %981 = vmatprep.mubr.bf16.mxu0 0
        %982 = vmatmul.mubr.bf16.gmra.mxu0 %v475
        %v983 = vpop.f32.mrf.mxu0
        %v984 = vadd.f32 0.0, %v983
        %v985 = vpop.f32.mrf.mxu0
        %v986 = vpop.f32.mrf.mxu0
        %v987 = vadd.f32 0.0, %v986
        %v988 = vpop.f32.mrf.mxu0
        %989 = vmatprep.mubr.bf16.mxu0 0
        %990 = vmatmul.mubr.bf16.gmra.mxu0 %v476
        %v991 = vpop.f32.mrf.mxu0
        %v992 = vadd.f32 0.0, %v991
        %v993 = vpop.f32.mrf.mxu0
        %v994 = vpop.f32.mrf.mxu0
        %v995 = vadd.f32 0.0, %v994
        %v996 = vpop.f32.mrf.mxu0
        %997 = vmatprep.mubr.bf16.mxu0 0
        %998 = vmatmul.mubr.bf16.gmra.mxu0 %v477
        %v999 = vpop.f32.mrf.mxu0
        %v1000 = vadd.f32 0.0, %v999
        %v1001 = vpop.f32.mrf.mxu0
        %v1002 = vpop.f32.mrf.mxu0
        %v1003 = vadd.f32 0.0, %v1002
        %v1004 = vpop.f32.mrf.mxu0
        %1005 = vmatprep.mubr.bf16.mxu0 0
        %1006 = vmatmul.mubr.bf16.gmra.mxu0 %v478
        %v1007 = vpop.f32.mrf.mxu0
        %v1008 = vadd.f32 0.0, %v1007
        %v1009 = vpop.f32.mrf.mxu0
        %v1010 = vpop.f32.mrf.mxu0
        %v1011 = vadd.f32 0.0, %v1010
        %v1012 = vpop.f32.mrf.mxu0
        %1013 = vmatprep.mubr.bf16.mxu0 0
        %1014 = vmatmul.mubr.bf16.gmra.mxu0 %v479
        %v1015 = vpop.f32.mrf.mxu0
        %v1016 = vadd.f32 0.0, %v1015
        %v1017 = vpop.f32.mrf.mxu0
        %v1018 = vpop.f32.mrf.mxu0
        %v1019 = vadd.f32 0.0, %v1018
        %v1020 = vpop.f32.mrf.mxu0
        %1021 = vdwg.mxu0
        %v1022 = vrot.slane %v960, 1
        %v1023 = vrot.slane %v963, 1
        %v1024 = vrot.slane %v968, 1
        %v1025 = vrot.slane %v971, 1
        %v1026 = vrot.slane %v976, 1
        %v1027 = vrot.slane %v979, 1
        %v1028 = vrot.slane %v984, 1
        %v1029 = vrot.slane %v987, 1
        %v1030 = vrot.slane %v992, 1
        %v1031 = vrot.slane %v995, 1
        %v1032 = vrot.slane %v1000, 1
        %v1033 = vrot.slane %v1003, 1
        %v1034 = vrot.slane %v1008, 1
        %v1035 = vrot.slane %v1011, 1
        %v1036 = vrot.slane %v1016, 1
        %v1037 = vrot.slane %v1019, 1
        %vm1038 = vcmp.lt.s32.totalorder %v395, 7
        %v1039 = vsel %vm1038, %v1036, %v1037
        %v1040 = vsel %vm1038, %v1035, %v1036
        %v1041 = vsel %vm1038, %v1034, %v1035
        %v1042 = vsel %vm1038, %v1033, %v1034
        %v1043 = vsel %vm1038, %v1032, %v1033
        %v1044 = vsel %vm1038, %v1031, %v1032
        %v1045 = vsel %vm1038, %v1030, %v1031
        %v1046 = vsel %vm1038, %v1029, %v1030
        %v1047 = vsel %vm1038, %v1028, %v1029
        %v1048 = vsel %vm1038, %v1027, %v1028
        %v1049 = vsel %vm1038, %v1026, %v1027
        %v1050 = vsel %vm1038, %v1025, %v1026
        %v1051 = vsel %vm1038, %v1024, %v1025
        %v1052 = vsel %vm1038, %v1023, %v1024
        %v1053 = vsel %vm1038, %v1022, %v1023
        %v1054 = vsel %vm1038, %v1037, %v1022
        %v1055 = vsel %vm399, 0.0, %v1053
        %v1056 = vsel %vm400, 0.0, %v1052
        %v1057 = vsel %vm399, 0.0, %v1051
        %v1058 = vsel %vm400, 0.0, %v1050
        %v1059 = vsel %vm399, 0.0, %v1049
        %v1060 = vsel %vm400, 0.0, %v1048
        %v1061 = vsel %vm399, 0.0, %v1047
        %v1062 = vsel %vm400, 0.0, %v1046
        %v1063 = vsel %vm399, 0.0, %v1045
        %v1064 = vsel %vm400, 0.0, %v1044
        %v1065 = vsel %vm399, 0.0, %v1043
        %v1066 = vsel %vm400, 0.0, %v1042
        %v1067 = vsel %vm399, 0.0, %v1041
        %v1068 = vsel %vm400, 0.0, %v1040
        %v1069 = vsel %vm399, 0.0, %v1039
        %v1070 = vsel %vm400, 0.0, %v1054
        %v1071 = vadd.f32 %v844, %v1055
        %v1072 = vadd.f32 %v845, %v1056
        %v1073 = vadd.f32 %v846, %v1057
        %v1074 = vadd.f32 %v847, %v1058
        %v1075 = vadd.f32 %v848, %v1059
        %v1076 = vadd.f32 %v849, %v1060
        %v1077 = vadd.f32 %v850, %v1061
        %v1078 = vadd.f32 %v851, %v1062
        %v1079 = vadd.f32 %v852, %v1063
        %v1080 = vadd.f32 %v853, %v1064
        %v1081 = vadd.f32 %v854, %v1065
        %v1082 = vadd.f32 %v855, %v1066
        %v1083 = vadd.f32 %v856, %v1067
        %v1084 = vadd.f32 %v857, %v1068
        %v1085 = vadd.f32 %v858, %v1069
        %v1086 = vadd.f32 %v859, %v1070
        %s1087 = scalar_lea.vmem %s338, 8 [#allocation3]
        %v1088 = vld [vmem:[%s1087] sm:$0xf]
        %v1089 = vld [vmem:[%s1087 + $0x4] sm:$0xf]
        %v1090 = vld [vmem:[%s1087 + $0x8] sm:$0xf]
        %v1091 = vld [vmem:[%s1087 + $0xc] sm:$0xf]
        %v1092 = vld [vmem:[%s1087 + $0x10] sm:$0xf]
        %v1093 = vld [vmem:[%s1087 + $0x14] sm:$0xf]
        %v1094 = vld [vmem:[%s1087 + $0x18] sm:$0xf]
        %v1095 = vld [vmem:[%s1087 + $0x1c] sm:$0xf]
        %v1096 = vld [vmem:[%s1087 + $0x20] sm:$0xf]
        %v1097 = vld [vmem:[%s1087 + $0x24] sm:$0xf]
        %v1098 = vld [vmem:[%s1087 + $0x28] sm:$0xf]
        %v1099 = vld [vmem:[%s1087 + $0x2c] sm:$0xf]
        %v1100 = vld [vmem:[%s1087 + $0x30] sm:$0xf]
        %v1101 = vld [vmem:[%s1087 + $0x34] sm:$0xf]
        %v1102 = vld [vmem:[%s1087 + $0x38] sm:$0xf]
        %v1103 = vld [vmem:[%s1087 + $0x3c] sm:$0xf]
        %s1104 = scalar_lea.vmem [#allocation8], 192
        %v1105 = vld [vmem:[%s1104] sm:$0xf]
        %v1106 = vld [vmem:[%s1104 + $0x4] sm:$0xf]
        %v1107 = vld [vmem:[%s1104 + $0x8] sm:$0xf]
        %v1108 = vld [vmem:[%s1104 + $0xc] sm:$0xf]
        %v1109 = vld [vmem:[%s1104 + $0x10] sm:$0xf]
        %v1110 = vld [vmem:[%s1104 + $0x14] sm:$0xf]
        %v1111 = vld [vmem:[%s1104 + $0x18] sm:$0xf]
        %v1112 = vld [vmem:[%s1104 + $0x1c] sm:$0xf]
        %v1113 = vld [vmem:[%s1104 + $0x20] sm:$0xf]
        %v1114 = vld [vmem:[%s1104 + $0x24] sm:$0xf]
        %v1115 = vld [vmem:[%s1104 + $0x28] sm:$0xf]
        %v1116 = vld [vmem:[%s1104 + $0x2c] sm:$0xf]
        %v1117 = vld [vmem:[%s1104 + $0x30] sm:$0xf]
        %v1118 = vld [vmem:[%s1104 + $0x34] sm:$0xf]
        %v1119 = vld [vmem:[%s1104 + $0x38] sm:$0xf]
        %v1120 = vld [vmem:[%s1104 + $0x3c] sm:$0xf]
        %v1137 = vunpack.c.l.b16 %v1088
        %v1138 = vunpack.c.l.b16 %v1089
        %v1139 = vunpack.c.l.b16 %v1090
        %v1140 = vunpack.c.l.b16 %v1091
        %v1141 = vunpack.c.l.b16 %v1092
        %v1142 = vunpack.c.l.b16 %v1093
        %v1143 = vunpack.c.l.b16 %v1094
        %v1144 = vunpack.c.l.b16 %v1095
        %v1145 = vunpack.c.l.b16 %v1096
        %v1146 = vunpack.c.l.b16 %v1097
        %v1147 = vunpack.c.l.b16 %v1098
        %v1148 = vunpack.c.l.b16 %v1099
        %v1149 = vunpack.c.l.b16 %v1100
        %v1150 = vunpack.c.l.b16 %v1101
        %v1151 = vunpack.c.l.b16 %v1102
        %v1152 = vunpack.c.l.b16 %v1103
        %v1153 = vpack.c.b16 %v1138, %v1137
        %v1154 = vpack.c.b16 %v1140, %v1139
        %v1155 = vpack.c.b16 %v1142, %v1141
        %v1156 = vpack.c.b16 %v1144, %v1143
        %v1157 = vpack.c.b16 %v1146, %v1145
        %v1158 = vpack.c.b16 %v1148, %v1147
        %v1159 = vpack.c.b16 %v1150, %v1149
        %v1160 = vpack.c.b16 %v1152, %v1151
        %v1185 = vunpack.c.l.b16 %v1105
        %v1186 = vunpack.c.l.b16 %v1106
        %v1187 = vunpack.c.l.b16 %v1107
        %v1188 = vunpack.c.l.b16 %v1108
        %v1189 = vunpack.c.l.b16 %v1109
        %v1190 = vunpack.c.l.b16 %v1110
        %v1191 = vunpack.c.l.b16 %v1111
        %v1192 = vunpack.c.l.b16 %v1112
        %v1193 = vunpack.c.l.b16 %v1113
        %v1194 = vunpack.c.l.b16 %v1114
        %v1195 = vunpack.c.l.b16 %v1115
        %v1196 = vunpack.c.l.b16 %v1116
        %v1197 = vunpack.c.l.b16 %v1117
        %v1198 = vunpack.c.l.b16 %v1118
        %v1199 = vunpack.c.l.b16 %v1119
        %v1200 = vunpack.c.l.b16 %v1120
        %v1201 = vpack.c.b16 %v1186, %v1185
        %v1202 = vpack.c.b16 %v1188, %v1187
        %v1203 = vpack.c.b16 %v1190, %v1189
        %v1204 = vpack.c.b16 %v1192, %v1191
        %v1205 = vpack.c.b16 %v1194, %v1193
        %v1206 = vpack.c.b16 %v1196, %v1195
        %v1207 = vpack.c.b16 %v1198, %v1197
        %v1208 = vpack.c.b16 %v1200, %v1199
        %1217 = vmatprep.subr.bf16.mxu0 0
        %1218 = vmatpush1.bf16.msra.mxu0 %v1208
        %1219 = vmatprep.subr.bf16.mxu0 0
        %1220 = vmatpush1.bf16.msra.mxu0 %v1207
        %1221 = vmatprep.subr.bf16.mxu0 0
        %1222 = vmatpush1.bf16.msra.mxu0 %v1206
        %1223 = vmatprep.subr.bf16.mxu0 0
        %1224 = vmatpush1.bf16.msra.mxu0 %v1205
        %1225 = vmatprep.subr.bf16.mxu0 0
        %1226 = vmatpush1.bf16.msra.mxu0 %v1204
        %1227 = vmatprep.subr.bf16.mxu0 0
        %1228 = vmatpush1.bf16.msra.mxu0 %v1203
        %1229 = vmatprep.subr.bf16.mxu0 0
        %1230 = vmatpush1.bf16.msra.mxu0 %v1202
        %1231 = vmatprep.subr.bf16.mxu0 0
        %1232 = vmatpush1.bf16.msra.mxu0 %v1201
        %1233 = vmatprep.subr.bf16.mxu0 0
        %1234 = vmatpush2.bf16.msra.mxu0 0
        %1235 = vmatprep.subr.bf16.mxu0 0
        %1236 = vmatpush2.bf16.msra.mxu0 0
        %1237 = vmatprep.subr.bf16.mxu0 0
        %1238 = vmatpush2.bf16.msra.mxu0 0
        %1239 = vmatprep.subr.bf16.mxu0 0
        %1240 = vmatpush2.bf16.msra.mxu0 0
        %1241 = vmatprep.subr.bf16.mxu0 0
        %1242 = vmatpush2.bf16.msra.mxu0 0
        %1243 = vmatprep.subr.bf16.mxu0 0
        %1244 = vmatpush2.bf16.msra.mxu0 0
        %1245 = vmatprep.subr.bf16.mxu0 0
        %1246 = vmatpush2.bf16.msra.mxu0 0
        %1247 = vmatprep.subr.bf16.mxu0 0
        %1248 = vmatpush2.bf16.msra.mxu0 0
        %1249 = vmatprep.mubr.bf16.mxu0 0
        %1250 = vmatmul.mubr.bf16.gmra.mxu0 %v1153
        %v1251 = vpop.f32.mrf.mxu0
        %v1252 = vadd.f32 0.0, %v1251
        %v1253 = vpop.f32.mrf.mxu0
        %v1254 = vpop.f32.mrf.mxu0
        %v1255 = vadd.f32 0.0, %v1254
        %v1256 = vpop.f32.mrf.mxu0
        %1257 = vmatprep.mubr.bf16.mxu0 0
        %1258 = vmatmul.mubr.bf16.gmra.mxu0 %v1154
        %v1259 = vpop.f32.mrf.mxu0
        %v1260 = vadd.f32 0.0, %v1259
        %v1261 = vpop.f32.mrf.mxu0
        %v1262 = vpop.f32.mrf.mxu0
        %v1263 = vadd.f32 0.0, %v1262
        %v1264 = vpop.f32.mrf.mxu0
        %1265 = vmatprep.mubr.bf16.mxu0 0
        %1266 = vmatmul.mubr.bf16.gmra.mxu0 %v1155
        %v1267 = vpop.f32.mrf.mxu0
        %v1268 = vadd.f32 0.0, %v1267
        %v1269 = vpop.f32.mrf.mxu0
        %v1270 = vpop.f32.mrf.mxu0
        %v1271 = vadd.f32 0.0, %v1270
        %v1272 = vpop.f32.mrf.mxu0
        %1273 = vmatprep.mubr.bf16.mxu0 0
        %1274 = vmatmul.mubr.bf16.gmra.mxu0 %v1156
        %v1275 = vpop.f32.mrf.mxu0
        %v1276 = vadd.f32 0.0, %v1275
        %v1277 = vpop.f32.mrf.mxu0
        %v1278 = vpop.f32.mrf.mxu0
        %v1279 = vadd.f32 0.0, %v1278
        %v1280 = vpop.f32.mrf.mxu0
        %1281 = vmatprep.mubr.bf16.mxu0 0
        %1282 = vmatmul.mubr.bf16.gmra.mxu0 %v1157
        %v1283 = vpop.f32.mrf.mxu0
        %v1284 = vadd.f32 0.0, %v1283
        %v1285 = vpop.f32.mrf.mxu0
        %v1286 = vpop.f32.mrf.mxu0
        %v1287 = vadd.f32 0.0, %v1286
        %v1288 = vpop.f32.mrf.mxu0
        %1289 = vmatprep.mubr.bf16.mxu0 0
        %1290 = vmatmul.mubr.bf16.gmra.mxu0 %v1158
        %v1291 = vpop.f32.mrf.mxu0
        %v1292 = vadd.f32 0.0, %v1291
        %v1293 = vpop.f32.mrf.mxu0
        %v1294 = vpop.f32.mrf.mxu0
        %v1295 = vadd.f32 0.0, %v1294
        %v1296 = vpop.f32.mrf.mxu0
        %1297 = vmatprep.mubr.bf16.mxu0 0
        %1298 = vmatmul.mubr.bf16.gmra.mxu0 %v1159
        %v1299 = vpop.f32.mrf.mxu0
        %v1300 = vadd.f32 0.0, %v1299
        %v1301 = vpop.f32.mrf.mxu0
        %v1302 = vpop.f32.mrf.mxu0
        %v1303 = vadd.f32 0.0, %v1302
        %v1304 = vpop.f32.mrf.mxu0
        %1305 = vmatprep.mubr.bf16.mxu0 0
        %1306 = vmatmul.mubr.bf16.gmra.mxu0 %v1160
        %v1307 = vpop.f32.mrf.mxu0
        %v1308 = vadd.f32 0.0, %v1307
        %v1309 = vpop.f32.mrf.mxu0
        %v1310 = vpop.f32.mrf.mxu0
        %v1311 = vadd.f32 0.0, %v1310
        %v1312 = vpop.f32.mrf.mxu0
        %1313 = vdwg.mxu0
        %v1314 = vrot.slane %v1252, 7
        %v1315 = vrot.slane %v1255, 7
        %v1316 = vrot.slane %v1260, 7
        %v1317 = vrot.slane %v1263, 7
        %v1318 = vrot.slane %v1268, 7
        %v1319 = vrot.slane %v1271, 7
        %v1320 = vrot.slane %v1276, 7
        %v1321 = vrot.slane %v1279, 7
        %v1322 = vrot.slane %v1284, 7
        %v1323 = vrot.slane %v1287, 7
        %v1324 = vrot.slane %v1292, 7
        %v1325 = vrot.slane %v1295, 7
        %v1326 = vrot.slane %v1300, 7
        %v1327 = vrot.slane %v1303, 7
        %v1328 = vrot.slane %v1308, 7
        %v1329 = vrot.slane %v1311, 7
        %v1330 = vsel %vm649, %v1328, %v1329
        %v1331 = vsel %vm649, %v1327, %v1328
        %v1332 = vsel %vm649, %v1326, %v1327
        %v1333 = vsel %vm649, %v1325, %v1326
        %v1334 = vsel %vm649, %v1324, %v1325
        %v1335 = vsel %vm649, %v1323, %v1324
        %v1336 = vsel %vm649, %v1322, %v1323
        %v1337 = vsel %vm649, %v1321, %v1322
        %v1338 = vsel %vm649, %v1320, %v1321
        %v1339 = vsel %vm649, %v1319, %v1320
        %v1340 = vsel %vm649, %v1318, %v1319
        %v1341 = vsel %vm649, %v1317, %v1318
        %v1342 = vsel %vm649, %v1316, %v1317
        %v1343 = vsel %vm649, %v1315, %v1316
        %v1344 = vsel %vm649, %v1314, %v1315
        %v1345 = vsel %vm649, %v1329, %v1314
        %v1346 = vsel %vm397, 0.0, %v1345
        %v1347 = vsel %vm398, 0.0, %v1344
        %v1348 = vsel %vm397, 0.0, %v1343
        %v1349 = vsel %vm398, 0.0, %v1342
        %v1350 = vsel %vm397, 0.0, %v1341
        %v1351 = vsel %vm398, 0.0, %v1340
        %v1352 = vsel %vm397, 0.0, %v1339
        %v1353 = vsel %vm398, 0.0, %v1338
        %v1354 = vsel %vm397, 0.0, %v1337
        %v1355 = vsel %vm398, 0.0, %v1336
        %v1356 = vsel %vm397, 0.0, %v1335
        %v1357 = vsel %vm398, 0.0, %v1334
        %v1358 = vsel %vm397, 0.0, %v1333
        %v1359 = vsel %vm398, 0.0, %v1332
        %v1360 = vsel %vm397, 0.0, %v1331
        %v1361 = vsel %vm398, 0.0, %v1330
        %v1362 = vadd.f32 %v1071, %v1346
        %v1363 = vadd.f32 %v1072, %v1347
        %v1364 = vadd.f32 %v1073, %v1348
        %v1365 = vadd.f32 %v1074, %v1349
        %v1366 = vadd.f32 %v1075, %v1350
        %v1367 = vadd.f32 %v1076, %v1351
        %v1368 = vadd.f32 %v1077, %v1352
        %v1369 = vadd.f32 %v1078, %v1353
        %v1370 = vadd.f32 %v1079, %v1354
        %v1371 = vadd.f32 %v1080, %v1355
        %v1372 = vadd.f32 %v1081, %v1356
        %v1373 = vadd.f32 %v1082, %v1357
        %v1374 = vadd.f32 %v1083, %v1358
        %v1375 = vadd.f32 %v1084, %v1359
        %v1376 = vadd.f32 %v1085, %v1360
        %v1377 = vadd.f32 %v1086, %v1361
        %s1378 = scalar_lea.vmem [#allocation8], 256
        %v1379 = vld [vmem:[%s1378] sm:$0xf]
        %v1380 = vld [vmem:[%s1378 + $0x4] sm:$0xf]
        %v1381 = vld [vmem:[%s1378 + $0x8] sm:$0xf]
        %v1382 = vld [vmem:[%s1378 + $0xc] sm:$0xf]
        %v1383 = vld [vmem:[%s1378 + $0x10] sm:$0xf]
        %v1384 = vld [vmem:[%s1378 + $0x14] sm:$0xf]
        %v1385 = vld [vmem:[%s1378 + $0x18] sm:$0xf]
        %v1386 = vld [vmem:[%s1378 + $0x1c] sm:$0xf]
        %v1387 = vld [vmem:[%s1378 + $0x20] sm:$0xf]
        %v1388 = vld [vmem:[%s1378 + $0x24] sm:$0xf]
        %v1389 = vld [vmem:[%s1378 + $0x28] sm:$0xf]
        %v1390 = vld [vmem:[%s1378 + $0x2c] sm:$0xf]
        %v1391 = vld [vmem:[%s1378 + $0x30] sm:$0xf]
        %v1392 = vld [vmem:[%s1378 + $0x34] sm:$0xf]
        %v1393 = vld [vmem:[%s1378 + $0x38] sm:$0xf]
        %v1394 = vld [vmem:[%s1378 + $0x3c] sm:$0xf]
        %v1411 = vunpack.c.l.b16 %v1379
        %v1412 = vunpack.c.l.b16 %v1380
        %v1413 = vunpack.c.l.b16 %v1381
        %v1414 = vunpack.c.l.b16 %v1382
        %v1415 = vunpack.c.l.b16 %v1383
        %v1416 = vunpack.c.l.b16 %v1384
        %v1417 = vunpack.c.l.b16 %v1385
        %v1418 = vunpack.c.l.b16 %v1386
        %v1419 = vunpack.c.l.b16 %v1387
        %v1420 = vunpack.c.l.b16 %v1388
        %v1421 = vunpack.c.l.b16 %v1389
        %v1422 = vunpack.c.l.b16 %v1390
        %v1423 = vunpack.c.l.b16 %v1391
        %v1424 = vunpack.c.l.b16 %v1392
        %v1425 = vunpack.c.l.b16 %v1393
        %v1426 = vunpack.c.l.b16 %v1394
        %v1427 = vpack.c.b16 %v1412, %v1411
        %v1428 = vpack.c.b16 %v1414, %v1413
        %v1429 = vpack.c.b16 %v1416, %v1415
        %v1430 = vpack.c.b16 %v1418, %v1417
        %v1431 = vpack.c.b16 %v1420, %v1419
        %v1432 = vpack.c.b16 %v1422, %v1421
        %v1433 = vpack.c.b16 %v1424, %v1423
        %v1434 = vpack.c.b16 %v1426, %v1425
        %1443 = vmatprep.subr.bf16.mxu0 0
        %1444 = vmatpush1.bf16.msra.mxu0 %v1434
        %1445 = vmatprep.subr.bf16.mxu0 0
        %1446 = vmatpush1.bf16.msra.mxu0 %v1433
        %1447 = vmatprep.subr.bf16.mxu0 0
        %1448 = vmatpush1.bf16.msra.mxu0 %v1432
        %1449 = vmatprep.subr.bf16.mxu0 0
        %1450 = vmatpush1.bf16.msra.mxu0 %v1431
        %1451 = vmatprep.subr.bf16.mxu0 0
        %1452 = vmatpush1.bf16.msra.mxu0 %v1430
        %1453 = vmatprep.subr.bf16.mxu0 0
        %1454 = vmatpush1.bf16.msra.mxu0 %v1429
        %1455 = vmatprep.subr.bf16.mxu0 0
        %1456 = vmatpush1.bf16.msra.mxu0 %v1428
        %1457 = vmatprep.subr.bf16.mxu0 0
        %1458 = vmatpush1.bf16.msra.mxu0 %v1427
        %1459 = vmatprep.subr.bf16.mxu0 0
        %1460 = vmatpush2.bf16.msra.mxu0 0
        %1461 = vmatprep.subr.bf16.mxu0 0
        %1462 = vmatpush2.bf16.msra.mxu0 0
        %1463 = vmatprep.subr.bf16.mxu0 0
        %1464 = vmatpush2.bf16.msra.mxu0 0
        %1465 = vmatprep.subr.bf16.mxu0 0
        %1466 = vmatpush2.bf16.msra.mxu0 0
        %1467 = vmatprep.subr.bf16.mxu0 0
        %1468 = vmatpush2.bf16.msra.mxu0 0
        %1469 = vmatprep.subr.bf16.mxu0 0
        %1470 = vmatpush2.bf16.msra.mxu0 0
        %1471 = vmatprep.subr.bf16.mxu0 0
        %1472 = vmatpush2.bf16.msra.mxu0 0
        %1473 = vmatprep.subr.bf16.mxu0 0
        %1474 = vmatpush2.bf16.msra.mxu0 0
        %1475 = vmatprep.mubr.bf16.mxu0 0
        %1476 = vmatmul.mubr.bf16.gmra.mxu0 %v1153
        %v1477 = vpop.f32.mrf.mxu0
        %v1478 = vadd.f32 0.0, %v1477
        %v1479 = vpop.f32.mrf.mxu0
        %v1480 = vpop.f32.mrf.mxu0
        %v1481 = vadd.f32 0.0, %v1480
        %v1482 = vpop.f32.mrf.mxu0
        %1483 = vmatprep.mubr.bf16.mxu0 0
        %1484 = vmatmul.mubr.bf16.gmra.mxu0 %v1154
        %v1485 = vpop.f32.mrf.mxu0
        %v1486 = vadd.f32 0.0, %v1485
        %v1487 = vpop.f32.mrf.mxu0
        %v1488 = vpop.f32.mrf.mxu0
        %v1489 = vadd.f32 0.0, %v1488
        %v1490 = vpop.f32.mrf.mxu0
        %1491 = vmatprep.mubr.bf16.mxu0 0
        %1492 = vmatmul.mubr.bf16.gmra.mxu0 %v1155
        %v1493 = vpop.f32.mrf.mxu0
        %v1494 = vadd.f32 0.0, %v1493
        %v1495 = vpop.f32.mrf.mxu0
        %v1496 = vpop.f32.mrf.mxu0
        %v1497 = vadd.f32 0.0, %v1496
        %v1498 = vpop.f32.mrf.mxu0
        %1499 = vmatprep.mubr.bf16.mxu0 0
        %1500 = vmatmul.mubr.bf16.gmra.mxu0 %v1156
        %v1501 = vpop.f32.mrf.mxu0
        %v1502 = vadd.f32 0.0, %v1501
        %v1503 = vpop.f32.mrf.mxu0
        %v1504 = vpop.f32.mrf.mxu0
        %v1505 = vadd.f32 0.0, %v1504
        %v1506 = vpop.f32.mrf.mxu0
        %1507 = vmatprep.mubr.bf16.mxu0 0
        %1508 = vmatmul.mubr.bf16.gmra.mxu0 %v1157
        %v1509 = vpop.f32.mrf.mxu0
        %v1510 = vadd.f32 0.0, %v1509
        %v1511 = vpop.f32.mrf.mxu0
        %v1512 = vpop.f32.mrf.mxu0
        %v1513 = vadd.f32 0.0, %v1512
        %v1514 = vpop.f32.mrf.mxu0
        %1515 = vmatprep.mubr.bf16.mxu0 0
        %1516 = vmatmul.mubr.bf16.gmra.mxu0 %v1158
        %v1517 = vpop.f32.mrf.mxu0
        %v1518 = vadd.f32 0.0, %v1517
        %v1519 = vpop.f32.mrf.mxu0
        %v1520 = vpop.f32.mrf.mxu0
        %v1521 = vadd.f32 0.0, %v1520
        %v1522 = vpop.f32.mrf.mxu0
        %1523 = vmatprep.mubr.bf16.mxu0 0
        %1524 = vmatmul.mubr.bf16.gmra.mxu0 %v1159
        %v1525 = vpop.f32.mrf.mxu0
        %v1526 = vadd.f32 0.0, %v1525
        %v1527 = vpop.f32.mrf.mxu0
        %v1528 = vpop.f32.mrf.mxu0
        %v1529 = vadd.f32 0.0, %v1528
        %v1530 = vpop.f32.mrf.mxu0
        %1531 = vmatprep.mubr.bf16.mxu0 0
        %1532 = vmatmul.mubr.bf16.gmra.mxu0 %v1160
        %v1533 = vpop.f32.mrf.mxu0
        %v1534 = vadd.f32 0.0, %v1533
        %v1535 = vpop.f32.mrf.mxu0
        %v1536 = vpop.f32.mrf.mxu0
        %v1537 = vadd.f32 0.0, %v1536
        %v1538 = vpop.f32.mrf.mxu0
        %1539 = vdwg.mxu0
        %v1540 = vadd.f32 %v1362, %v1478
        %v1541 = vadd.f32 %v1363, %v1481
        %v1542 = vadd.f32 %v1364, %v1486
        %v1543 = vadd.f32 %v1365, %v1489
        %v1544 = vadd.f32 %v1366, %v1494
        %v1545 = vadd.f32 %v1367, %v1497
        %v1546 = vadd.f32 %v1368, %v1502
        %v1547 = vadd.f32 %v1369, %v1505
        %v1548 = vadd.f32 %v1370, %v1510
        %v1549 = vadd.f32 %v1371, %v1513
        %v1550 = vadd.f32 %v1372, %v1518
        %v1551 = vadd.f32 %v1373, %v1521
        %v1552 = vadd.f32 %v1374, %v1526
        %v1553 = vadd.f32 %v1375, %v1529
        %v1554 = vadd.f32 %v1376, %v1534
        %v1555 = vadd.f32 %v1377, %v1537
        %s1556 = scalar_lea.vmem [#allocation8], 320
        %v1557 = vld [vmem:[%s1556] sm:$0xf]
        %v1558 = vld [vmem:[%s1556 + $0x4] sm:$0xf]
        %v1559 = vld [vmem:[%s1556 + $0x8] sm:$0xf]
        %v1560 = vld [vmem:[%s1556 + $0xc] sm:$0xf]
        %v1561 = vld [vmem:[%s1556 + $0x10] sm:$0xf]
        %v1562 = vld [vmem:[%s1556 + $0x14] sm:$0xf]
        %v1563 = vld [vmem:[%s1556 + $0x18] sm:$0xf]
        %v1564 = vld [vmem:[%s1556 + $0x1c] sm:$0xf]
        %v1565 = vld [vmem:[%s1556 + $0x20] sm:$0xf]
        %v1566 = vld [vmem:[%s1556 + $0x24] sm:$0xf]
        %v1567 = vld [vmem:[%s1556 + $0x28] sm:$0xf]
        %v1568 = vld [vmem:[%s1556 + $0x2c] sm:$0xf]
        %v1569 = vld [vmem:[%s1556 + $0x30] sm:$0xf]
        %v1570 = vld [vmem:[%s1556 + $0x34] sm:$0xf]
        %v1571 = vld [vmem:[%s1556 + $0x38] sm:$0xf]
        %v1572 = vld [vmem:[%s1556 + $0x3c] sm:$0xf]
        %v1589 = vunpack.c.l.b16 %v1557
        %v1590 = vunpack.c.l.b16 %v1558
        %v1591 = vunpack.c.l.b16 %v1559
        %v1592 = vunpack.c.l.b16 %v1560
        %v1593 = vunpack.c.l.b16 %v1561
        %v1594 = vunpack.c.l.b16 %v1562
        %v1595 = vunpack.c.l.b16 %v1563
        %v1596 = vunpack.c.l.b16 %v1564
        %v1597 = vunpack.c.l.b16 %v1565
        %v1598 = vunpack.c.l.b16 %v1566
        %v1599 = vunpack.c.l.b16 %v1567
        %v1600 = vunpack.c.l.b16 %v1568
        %v1601 = vunpack.c.l.b16 %v1569
        %v1602 = vunpack.c.l.b16 %v1570
        %v1603 = vunpack.c.l.b16 %v1571
        %v1604 = vunpack.c.l.b16 %v1572
        %v1605 = vpack.c.b16 %v1590, %v1589
        %v1606 = vpack.c.b16 %v1592, %v1591
        %v1607 = vpack.c.b16 %v1594, %v1593
        %v1608 = vpack.c.b16 %v1596, %v1595
        %v1609 = vpack.c.b16 %v1598, %v1597
        %v1610 = vpack.c.b16 %v1600, %v1599
        %v1611 = vpack.c.b16 %v1602, %v1601
        %v1612 = vpack.c.b16 %v1604, %v1603
        %1621 = vmatprep.subr.bf16.mxu0 0
        %1622 = vmatpush1.bf16.msra.mxu0 %v1612
        %1623 = vmatprep.subr.bf16.mxu0 0
        %1624 = vmatpush1.bf16.msra.mxu0 %v1611
        %1625 = vmatprep.subr.bf16.mxu0 0
        %1626 = vmatpush1.bf16.msra.mxu0 %v1610
        %1627 = vmatprep.subr.bf16.mxu0 0
        %1628 = vmatpush1.bf16.msra.mxu0 %v1609
        %1629 = vmatprep.subr.bf16.mxu0 0
        %1630 = vmatpush1.bf16.msra.mxu0 %v1608
        %1631 = vmatprep.subr.bf16.mxu0 0
        %1632 = vmatpush1.bf16.msra.mxu0 %v1607
        %1633 = vmatprep.subr.bf16.mxu0 0
        %1634 = vmatpush1.bf16.msra.mxu0 %v1606
        %1635 = vmatprep.subr.bf16.mxu0 0
        %1636 = vmatpush1.bf16.msra.mxu0 %v1605
        %1637 = vmatprep.subr.bf16.mxu0 0
        %1638 = vmatpush2.bf16.msra.mxu0 0
        %1639 = vmatprep.subr.bf16.mxu0 0
        %1640 = vmatpush2.bf16.msra.mxu0 0
        %1641 = vmatprep.subr.bf16.mxu0 0
        %1642 = vmatpush2.bf16.msra.mxu0 0
        %1643 = vmatprep.subr.bf16.mxu0 0
        %1644 = vmatpush2.bf16.msra.mxu0 0
        %1645 = vmatprep.subr.bf16.mxu0 0
        %1646 = vmatpush2.bf16.msra.mxu0 0
        %1647 = vmatprep.subr.bf16.mxu0 0
        %1648 = vmatpush2.bf16.msra.mxu0 0
        %1649 = vmatprep.subr.bf16.mxu0 0
        %1650 = vmatpush2.bf16.msra.mxu0 0
        %1651 = vmatprep.subr.bf16.mxu0 0
        %1652 = vmatpush2.bf16.msra.mxu0 0
        %1653 = vmatprep.mubr.bf16.mxu0 0
        %1654 = vmatmul.mubr.bf16.gmra.mxu0 %v1153
        %v1655 = vpop.f32.mrf.mxu0
        %v1656 = vadd.f32 0.0, %v1655
        %v1657 = vpop.f32.mrf.mxu0
        %v1658 = vpop.f32.mrf.mxu0
        %v1659 = vadd.f32 0.0, %v1658
        %v1660 = vpop.f32.mrf.mxu0
        %1661 = vmatprep.mubr.bf16.mxu0 0
        %1662 = vmatmul.mubr.bf16.gmra.mxu0 %v1154
        %v1663 = vpop.f32.mrf.mxu0
        %v1664 = vadd.f32 0.0, %v1663
        %v1665 = vpop.f32.mrf.mxu0
        %v1666 = vpop.f32.mrf.mxu0
        %v1667 = vadd.f32 0.0, %v1666
        %v1668 = vpop.f32.mrf.mxu0
        %1669 = vmatprep.mubr.bf16.mxu0 0
        %1670 = vmatmul.mubr.bf16.gmra.mxu0 %v1155
        %v1671 = vpop.f32.mrf.mxu0
        %v1672 = vadd.f32 0.0, %v1671
        %v1673 = vpop.f32.mrf.mxu0
        %v1674 = vpop.f32.mrf.mxu0
        %v1675 = vadd.f32 0.0, %v1674
        %v1676 = vpop.f32.mrf.mxu0
        %1677 = vmatprep.mubr.bf16.mxu0 0
        %1678 = vmatmul.mubr.bf16.gmra.mxu0 %v1156
        %v1679 = vpop.f32.mrf.mxu0
        %v1680 = vadd.f32 0.0, %v1679
        %v1681 = vpop.f32.mrf.mxu0
        %v1682 = vpop.f32.mrf.mxu0
        %v1683 = vadd.f32 0.0, %v1682
        %v1684 = vpop.f32.mrf.mxu0
        %1685 = vmatprep.mubr.bf16.mxu0 0
        %1686 = vmatmul.mubr.bf16.gmra.mxu0 %v1157
        %v1687 = vpop.f32.mrf.mxu0
        %v1688 = vadd.f32 0.0, %v1687
        %v1689 = vpop.f32.mrf.mxu0
        %v1690 = vpop.f32.mrf.mxu0
        %v1691 = vadd.f32 0.0, %v1690
        %v1692 = vpop.f32.mrf.mxu0
        %1693 = vmatprep.mubr.bf16.mxu0 0
        %1694 = vmatmul.mubr.bf16.gmra.mxu0 %v1158
        %v1695 = vpop.f32.mrf.mxu0
        %v1696 = vadd.f32 0.0, %v1695
        %v1697 = vpop.f32.mrf.mxu0
        %v1698 = vpop.f32.mrf.mxu0
        %v1699 = vadd.f32 0.0, %v1698
        %v1700 = vpop.f32.mrf.mxu0
        %1701 = vmatprep.mubr.bf16.mxu0 0
        %1702 = vmatmul.mubr.bf16.gmra.mxu0 %v1159
        %v1703 = vpop.f32.mrf.mxu0
        %v1704 = vadd.f32 0.0, %v1703
        %v1705 = vpop.f32.mrf.mxu0
        %v1706 = vpop.f32.mrf.mxu0
        %v1707 = vadd.f32 0.0, %v1706
        %v1708 = vpop.f32.mrf.mxu0
        %1709 = vmatprep.mubr.bf16.mxu0 0
        %1710 = vmatmul.mubr.bf16.gmra.mxu0 %v1160
        %v1711 = vpop.f32.mrf.mxu0
        %v1712 = vadd.f32 0.0, %v1711
        %v1713 = vpop.f32.mrf.mxu0
        %v1714 = vpop.f32.mrf.mxu0
        %v1715 = vadd.f32 0.0, %v1714
        %v1716 = vpop.f32.mrf.mxu0
        %1717 = vdwg.mxu0
        %v1718 = vrot.slane %v1656, 1
        %v1719 = vrot.slane %v1659, 1
        %v1720 = vrot.slane %v1664, 1
        %v1721 = vrot.slane %v1667, 1
        %v1722 = vrot.slane %v1672, 1
        %v1723 = vrot.slane %v1675, 1
        %v1724 = vrot.slane %v1680, 1
        %v1725 = vrot.slane %v1683, 1
        %v1726 = vrot.slane %v1688, 1
        %v1727 = vrot.slane %v1691, 1
        %v1728 = vrot.slane %v1696, 1
        %v1729 = vrot.slane %v1699, 1
        %v1730 = vrot.slane %v1704, 1
        %v1731 = vrot.slane %v1707, 1
        %v1732 = vrot.slane %v1712, 1
        %v1733 = vrot.slane %v1715, 1
        %v1734 = vsel %vm1038, %v1732, %v1733
        %v1735 = vsel %vm1038, %v1731, %v1732
        %v1736 = vsel %vm1038, %v1730, %v1731
        %v1737 = vsel %vm1038, %v1729, %v1730
        %v1738 = vsel %vm1038, %v1728, %v1729
        %v1739 = vsel %vm1038, %v1727, %v1728
        %v1740 = vsel %vm1038, %v1726, %v1727
        %v1741 = vsel %vm1038, %v1725, %v1726
        %v1742 = vsel %vm1038, %v1724, %v1725
        %v1743 = vsel %vm1038, %v1723, %v1724
        %v1744 = vsel %vm1038, %v1722, %v1723
        %v1745 = vsel %vm1038, %v1721, %v1722
        %v1746 = vsel %vm1038, %v1720, %v1721
        %v1747 = vsel %vm1038, %v1719, %v1720
        %v1748 = vsel %vm1038, %v1718, %v1719
        %v1749 = vsel %vm1038, %v1733, %v1718
        %v1750 = vsel %vm399, 0.0, %v1748
        %v1751 = vsel %vm400, 0.0, %v1747
        %v1752 = vsel %vm399, 0.0, %v1746
        %v1753 = vsel %vm400, 0.0, %v1745
        %v1754 = vsel %vm399, 0.0, %v1744
        %v1755 = vsel %vm400, 0.0, %v1743
        %v1756 = vsel %vm399, 0.0, %v1742
        %v1757 = vsel %vm400, 0.0, %v1741
        %v1758 = vsel %vm399, 0.0, %v1740
        %v1759 = vsel %vm400, 0.0, %v1739
        %v1760 = vsel %vm399, 0.0, %v1738
        %v1761 = vsel %vm400, 0.0, %v1737
        %v1762 = vsel %vm399, 0.0, %v1736
        %v1763 = vsel %vm400, 0.0, %v1735
        %v1764 = vsel %vm399, 0.0, %v1734
        %v1765 = vsel %vm400, 0.0, %v1749
        %v1766 = vadd.f32 %v1540, %v1750
        %v1767 = vadd.f32 %v1541, %v1751
        %v1768 = vadd.f32 %v1542, %v1752
        %v1769 = vadd.f32 %v1543, %v1753
        %v1770 = vadd.f32 %v1544, %v1754
        %v1771 = vadd.f32 %v1545, %v1755
        %v1772 = vadd.f32 %v1546, %v1756
        %v1773 = vadd.f32 %v1547, %v1757
        %v1774 = vadd.f32 %v1548, %v1758
        %v1775 = vadd.f32 %v1549, %v1759
        %v1776 = vadd.f32 %v1550, %v1760
        %v1777 = vadd.f32 %v1551, %v1761
        %v1778 = vadd.f32 %v1552, %v1762
        %v1779 = vadd.f32 %v1553, %v1763
        %v1780 = vadd.f32 %v1554, %v1764
        %v1781 = vadd.f32 %v1555, %v1765
        %s1782 = scalar_lea.vmem %s338, 16 [#allocation3]
        %v1783 = vld [vmem:[%s1782] sm:$0xf]
        %v1784 = vld [vmem:[%s1782 + $0x4] sm:$0xf]
        %v1785 = vld [vmem:[%s1782 + $0x8] sm:$0xf]
        %v1786 = vld [vmem:[%s1782 + $0xc] sm:$0xf]
        %v1787 = vld [vmem:[%s1782 + $0x10] sm:$0xf]
        %v1788 = vld [vmem:[%s1782 + $0x14] sm:$0xf]
        %v1789 = vld [vmem:[%s1782 + $0x18] sm:$0xf]
        %v1790 = vld [vmem:[%s1782 + $0x1c] sm:$0xf]
        %v1791 = vld [vmem:[%s1782 + $0x20] sm:$0xf]
        %v1792 = vld [vmem:[%s1782 + $0x24] sm:$0xf]
        %v1793 = vld [vmem:[%s1782 + $0x28] sm:$0xf]
        %v1794 = vld [vmem:[%s1782 + $0x2c] sm:$0xf]
        %v1795 = vld [vmem:[%s1782 + $0x30] sm:$0xf]
        %v1796 = vld [vmem:[%s1782 + $0x34] sm:$0xf]
        %v1797 = vld [vmem:[%s1782 + $0x38] sm:$0xf]
        %v1798 = vld [vmem:[%s1782 + $0x3c] sm:$0xf]
        %s1799 = scalar_lea.vmem [#allocation8], 384
        %v1800 = vld [vmem:[%s1799] sm:$0xf]
        %v1801 = vld [vmem:[%s1799 + $0x4] sm:$0xf]
        %v1802 = vld [vmem:[%s1799 + $0x8] sm:$0xf]
        %v1803 = vld [vmem:[%s1799 + $0xc] sm:$0xf]
        %v1804 = vld [vmem:[%s1799 + $0x10] sm:$0xf]
        %v1805 = vld [vmem:[%s1799 + $0x14] sm:$0xf]
        %v1806 = vld [vmem:[%s1799 + $0x18] sm:$0xf]
        %v1807 = vld [vmem:[%s1799 + $0x1c] sm:$0xf]
        %v1808 = vld [vmem:[%s1799 + $0x20] sm:$0xf]
        %v1809 = vld [vmem:[%s1799 + $0x24] sm:$0xf]
        %v1810 = vld [vmem:[%s1799 + $0x28] sm:$0xf]
        %v1811 = vld [vmem:[%s1799 + $0x2c] sm:$0xf]
        %v1812 = vld [vmem:[%s1799 + $0x30] sm:$0xf]
        %v1813 = vld [vmem:[%s1799 + $0x34] sm:$0xf]
        %v1814 = vld [vmem:[%s1799 + $0x38] sm:$0xf]
        %v1815 = vld [vmem:[%s1799 + $0x3c] sm:$0xf]
        %v1832 = vunpack.c.l.b16 %v1783
        %v1833 = vunpack.c.l.b16 %v1784
        %v1834 = vunpack.c.l.b16 %v1785
        %v1835 = vunpack.c.l.b16 %v1786
        %v1836 = vunpack.c.l.b16 %v1787
        %v1837 = vunpack.c.l.b16 %v1788
        %v1838 = vunpack.c.l.b16 %v1789
        %v1839 = vunpack.c.l.b16 %v1790
        %v1840 = vunpack.c.l.b16 %v1791
        %v1841 = vunpack.c.l.b16 %v1792
        %v1842 = vunpack.c.l.b16 %v1793
        %v1843 = vunpack.c.l.b16 %v1794
        %v1844 = vunpack.c.l.b16 %v1795
        %v1845 = vunpack.c.l.b16 %v1796
        %v1846 = vunpack.c.l.b16 %v1797
        %v1847 = vunpack.c.l.b16 %v1798
        %v1848 = vpack.c.b16 %v1833, %v1832
        %v1849 = vpack.c.b16 %v1835, %v1834
        %v1850 = vpack.c.b16 %v1837, %v1836
        %v1851 = vpack.c.b16 %v1839, %v1838
        %v1852 = vpack.c.b16 %v1841, %v1840
        %v1853 = vpack.c.b16 %v1843, %v1842
        %v1854 = vpack.c.b16 %v1845, %v1844
        %v1855 = vpack.c.b16 %v1847, %v1846
        %v1880 = vunpack.c.l.b16 %v1800
        %v1881 = vunpack.c.l.b16 %v1801
        %v1882 = vunpack.c.l.b16 %v1802
        %v1883 = vunpack.c.l.b16 %v1803
        %v1884 = vunpack.c.l.b16 %v1804
        %v1885 = vunpack.c.l.b16 %v1805
        %v1886 = vunpack.c.l.b16 %v1806
        %v1887 = vunpack.c.l.b16 %v1807
        %v1888 = vunpack.c.l.b16 %v1808
        %v1889 = vunpack.c.l.b16 %v1809
        %v1890 = vunpack.c.l.b16 %v1810
        %v1891 = vunpack.c.l.b16 %v1811
        %v1892 = vunpack.c.l.b16 %v1812
        %v1893 = vunpack.c.l.b16 %v1813
        %v1894 = vunpack.c.l.b16 %v1814
        %v1895 = vunpack.c.l.b16 %v1815
        %v1896 = vpack.c.b16 %v1881, %v1880
        %v1897 = vpack.c.b16 %v1883, %v1882
        %v1898 = vpack.c.b16 %v1885, %v1884
        %v1899 = vpack.c.b16 %v1887, %v1886
        %v1900 = vpack.c.b16 %v1889, %v1888
        %v1901 = vpack.c.b16 %v1891, %v1890
        %v1902 = vpack.c.b16 %v1893, %v1892
        %v1903 = vpack.c.b16 %v1895, %v1894
        %1912 = vmatprep.subr.bf16.mxu0 0
        %1913 = vmatpush1.bf16.msra.mxu0 %v1903
        %1914 = vmatprep.subr.bf16.mxu0 0
        %1915 = vmatpush1.bf16.msra.mxu0 %v1902
        %1916 = vmatprep.subr.bf16.mxu0 0
        %1917 = vmatpush1.bf16.msra.mxu0 %v1901
        %1918 = vmatprep.subr.bf16.mxu0 0
        %1919 = vmatpush1.bf16.msra.mxu0 %v1900
        %1920 = vmatprep.subr.bf16.mxu0 0
        %1921 = vmatpush1.bf16.msra.mxu0 %v1899
        %1922 = vmatprep.subr.bf16.mxu0 0
        %1923 = vmatpush1.bf16.msra.mxu0 %v1898
        %1924 = vmatprep.subr.bf16.mxu0 0
        %1925 = vmatpush1.bf16.msra.mxu0 %v1897
        %1926 = vmatprep.subr.bf16.mxu0 0
        %1927 = vmatpush1.bf16.msra.mxu0 %v1896
        %1928 = vmatprep.subr.bf16.mxu0 0
        %1929 = vmatpush2.bf16.msra.mxu0 0
        %1930 = vmatprep.subr.bf16.mxu0 0
        %1931 = vmatpush2.bf16.msra.mxu0 0
        %1932 = vmatprep.subr.bf16.mxu0 0
        %1933 = vmatpush2.bf16.msra.mxu0 0
        %1934 = vmatprep.subr.bf16.mxu0 0
        %1935 = vmatpush2.bf16.msra.mxu0 0
        %1936 = vmatprep.subr.bf16.mxu0 0
        %1937 = vmatpush2.bf16.msra.mxu0 0
        %1938 = vmatprep.subr.bf16.mxu0 0
        %1939 = vmatpush2.bf16.msra.mxu0 0
        %1940 = vmatprep.subr.bf16.mxu0 0
        %1941 = vmatpush2.bf16.msra.mxu0 0
        %1942 = vmatprep.subr.bf16.mxu0 0
        %1943 = vmatpush2.bf16.msra.mxu0 0
        %1944 = vmatprep.mubr.bf16.mxu0 0
        %1945 = vmatmul.mubr.bf16.gmra.mxu0 %v1848
        %v1946 = vpop.f32.mrf.mxu0
        %v1947 = vadd.f32 0.0, %v1946
        %v1948 = vpop.f32.mrf.mxu0
        %v1949 = vpop.f32.mrf.mxu0
        %v1950 = vadd.f32 0.0, %v1949
        %v1951 = vpop.f32.mrf.mxu0
        %1952 = vmatprep.mubr.bf16.mxu0 0
        %1953 = vmatmul.mubr.bf16.gmra.mxu0 %v1849
        %v1954 = vpop.f32.mrf.mxu0
        %v1955 = vadd.f32 0.0, %v1954
        %v1956 = vpop.f32.mrf.mxu0
        %v1957 = vpop.f32.mrf.mxu0
        %v1958 = vadd.f32 0.0, %v1957
        %v1959 = vpop.f32.mrf.mxu0
        %1960 = vmatprep.mubr.bf16.mxu0 0
        %1961 = vmatmul.mubr.bf16.gmra.mxu0 %v1850
        %v1962 = vpop.f32.mrf.mxu0
        %v1963 = vadd.f32 0.0, %v1962
        %v1964 = vpop.f32.mrf.mxu0
        %v1965 = vpop.f32.mrf.mxu0
        %v1966 = vadd.f32 0.0, %v1965
        %v1967 = vpop.f32.mrf.mxu0
        %1968 = vmatprep.mubr.bf16.mxu0 0
        %1969 = vmatmul.mubr.bf16.gmra.mxu0 %v1851
        %v1970 = vpop.f32.mrf.mxu0
        %v1971 = vadd.f32 0.0, %v1970
        %v1972 = vpop.f32.mrf.mxu0
        %v1973 = vpop.f32.mrf.mxu0
        %v1974 = vadd.f32 0.0, %v1973
        %v1975 = vpop.f32.mrf.mxu0
        %1976 = vmatprep.mubr.bf16.mxu0 0
        %1977 = vmatmul.mubr.bf16.gmra.mxu0 %v1852
        %v1978 = vpop.f32.mrf.mxu0
        %v1979 = vadd.f32 0.0, %v1978
        %v1980 = vpop.f32.mrf.mxu0
        %v1981 = vpop.f32.mrf.mxu0
        %v1982 = vadd.f32 0.0, %v1981
        %v1983 = vpop.f32.mrf.mxu0
        %1984 = vmatprep.mubr.bf16.mxu0 0
        %1985 = vmatmul.mubr.bf16.gmra.mxu0 %v1853
        %v1986 = vpop.f32.mrf.mxu0
        %v1987 = vadd.f32 0.0, %v1986
        %v1988 = vpop.f32.mrf.mxu0
        %v1989 = vpop.f32.mrf.mxu0
        %v1990 = vadd.f32 0.0, %v1989
        %v1991 = vpop.f32.mrf.mxu0
        %1992 = vmatprep.mubr.bf16.mxu0 0
        %1993 = vmatmul.mubr.bf16.gmra.mxu0 %v1854
        %v1994 = vpop.f32.mrf.mxu0
        %v1995 = vadd.f32 0.0, %v1994
        %v1996 = vpop.f32.mrf.mxu0
        %v1997 = vpop.f32.mrf.mxu0
        %v1998 = vadd.f32 0.0, %v1997
        %v1999 = vpop.f32.mrf.mxu0
        %2000 = vmatprep.mubr.bf16.mxu0 0
        %2001 = vmatmul.mubr.bf16.gmra.mxu0 %v1855
        %v2002 = vpop.f32.mrf.mxu0
        %v2003 = vadd.f32 0.0, %v2002
        %v2004 = vpop.f32.mrf.mxu0
        %v2005 = vpop.f32.mrf.mxu0
        %v2006 = vadd.f32 0.0, %v2005
        %v2007 = vpop.f32.mrf.mxu0
        %2008 = vdwg.mxu0
        %v2009 = vrot.slane %v1947, 7
        %v2010 = vrot.slane %v1950, 7
        %v2011 = vrot.slane %v1955, 7
        %v2012 = vrot.slane %v1958, 7
        %v2013 = vrot.slane %v1963, 7
        %v2014 = vrot.slane %v1966, 7
        %v2015 = vrot.slane %v1971, 7
        %v2016 = vrot.slane %v1974, 7
        %v2017 = vrot.slane %v1979, 7
        %v2018 = vrot.slane %v1982, 7
        %v2019 = vrot.slane %v1987, 7
        %v2020 = vrot.slane %v1990, 7
        %v2021 = vrot.slane %v1995, 7
        %v2022 = vrot.slane %v1998, 7
        %v2023 = vrot.slane %v2003, 7
        %v2024 = vrot.slane %v2006, 7
        %v2025 = vsel %vm649, %v2023, %v2024
        %v2026 = vsel %vm649, %v2022, %v2023
        %v2027 = vsel %vm649, %v2021, %v2022
        %v2028 = vsel %vm649, %v2020, %v2021
        %v2029 = vsel %vm649, %v2019, %v2020
        %v2030 = vsel %vm649, %v2018, %v2019
        %v2031 = vsel %vm649, %v2017, %v2018
        %v2032 = vsel %vm649, %v2016, %v2017
        %v2033 = vsel %vm649, %v2015, %v2016
        %v2034 = vsel %vm649, %v2014, %v2015
        %v2035 = vsel %vm649, %v2013, %v2014
        %v2036 = vsel %vm649, %v2012, %v2013
        %v2037 = vsel %vm649, %v2011, %v2012
        %v2038 = vsel %vm649, %v2010, %v2011
        %v2039 = vsel %vm649, %v2009, %v2010
        %v2040 = vsel %vm649, %v2024, %v2009
        %v2041 = vsel %vm397, 0.0, %v2040
        %v2042 = vsel %vm398, 0.0, %v2039
        %v2043 = vsel %vm397, 0.0, %v2038
        %v2044 = vsel %vm398, 0.0, %v2037
        %v2045 = vsel %vm397, 0.0, %v2036
        %v2046 = vsel %vm398, 0.0, %v2035
        %v2047 = vsel %vm397, 0.0, %v2034
        %v2048 = vsel %vm398, 0.0, %v2033
        %v2049 = vsel %vm397, 0.0, %v2032
        %v2050 = vsel %vm398, 0.0, %v2031
        %v2051 = vsel %vm397, 0.0, %v2030
        %v2052 = vsel %vm398, 0.0, %v2029
        %v2053 = vsel %vm397, 0.0, %v2028
        %v2054 = vsel %vm398, 0.0, %v2027
        %v2055 = vsel %vm397, 0.0, %v2026
        %v2056 = vsel %vm398, 0.0, %v2025
        %v2057 = vadd.f32 %v1766, %v2041
        %v2058 = vadd.f32 %v1767, %v2042
        %v2059 = vadd.f32 %v1768, %v2043
        %v2060 = vadd.f32 %v1769, %v2044
        %v2061 = vadd.f32 %v1770, %v2045
        %v2062 = vadd.f32 %v1771, %v2046
        %v2063 = vadd.f32 %v1772, %v2047
        %v2064 = vadd.f32 %v1773, %v2048
        %v2065 = vadd.f32 %v1774, %v2049
        %v2066 = vadd.f32 %v1775, %v2050
        %v2067 = vadd.f32 %v1776, %v2051
        %v2068 = vadd.f32 %v1777, %v2052
        %v2069 = vadd.f32 %v1778, %v2053
        %v2070 = vadd.f32 %v1779, %v2054
        %v2071 = vadd.f32 %v1780, %v2055
        %v2072 = vadd.f32 %v1781, %v2056
        %s2073 = scalar_lea.vmem [#allocation8], 448
        %v2074 = vld [vmem:[%s2073] sm:$0xf]
        %v2075 = vld [vmem:[%s2073 + $0x4] sm:$0xf]
        %v2076 = vld [vmem:[%s2073 + $0x8] sm:$0xf]
        %v2077 = vld [vmem:[%s2073 + $0xc] sm:$0xf]
        %v2078 = vld [vmem:[%s2073 + $0x10] sm:$0xf]
        %v2079 = vld [vmem:[%s2073 + $0x14] sm:$0xf]
        %v2080 = vld [vmem:[%s2073 + $0x18] sm:$0xf]
        %v2081 = vld [vmem:[%s2073 + $0x1c] sm:$0xf]
        %v2082 = vld [vmem:[%s2073 + $0x20] sm:$0xf]
        %v2083 = vld [vmem:[%s2073 + $0x24] sm:$0xf]
        %v2084 = vld [vmem:[%s2073 + $0x28] sm:$0xf]
        %v2085 = vld [vmem:[%s2073 + $0x2c] sm:$0xf]
        %v2086 = vld [vmem:[%s2073 + $0x30] sm:$0xf]
        %v2087 = vld [vmem:[%s2073 + $0x34] sm:$0xf]
        %v2088 = vld [vmem:[%s2073 + $0x38] sm:$0xf]
        %v2089 = vld [vmem:[%s2073 + $0x3c] sm:$0xf]
        %v2106 = vunpack.c.l.b16 %v2074
        %v2107 = vunpack.c.l.b16 %v2075
        %v2108 = vunpack.c.l.b16 %v2076
        %v2109 = vunpack.c.l.b16 %v2077
        %v2110 = vunpack.c.l.b16 %v2078
        %v2111 = vunpack.c.l.b16 %v2079
        %v2112 = vunpack.c.l.b16 %v2080
        %v2113 = vunpack.c.l.b16 %v2081
        %v2114 = vunpack.c.l.b16 %v2082
        %v2115 = vunpack.c.l.b16 %v2083
        %v2116 = vunpack.c.l.b16 %v2084
        %v2117 = vunpack.c.l.b16 %v2085
        %v2118 = vunpack.c.l.b16 %v2086
        %v2119 = vunpack.c.l.b16 %v2087
        %v2120 = vunpack.c.l.b16 %v2088
        %v2121 = vunpack.c.l.b16 %v2089
        %v2122 = vpack.c.b16 %v2107, %v2106
        %v2123 = vpack.c.b16 %v2109, %v2108
        %v2124 = vpack.c.b16 %v2111, %v2110
        %v2125 = vpack.c.b16 %v2113, %v2112
        %v2126 = vpack.c.b16 %v2115, %v2114
        %v2127 = vpack.c.b16 %v2117, %v2116
        %v2128 = vpack.c.b16 %v2119, %v2118
        %v2129 = vpack.c.b16 %v2121, %v2120
        %2138 = vmatprep.subr.bf16.mxu0 0
        %2139 = vmatpush1.bf16.msra.mxu0 %v2129
        %2140 = vmatprep.subr.bf16.mxu0 0
        %2141 = vmatpush1.bf16.msra.mxu0 %v2128
        %2142 = vmatprep.subr.bf16.mxu0 0
        %2143 = vmatpush1.bf16.msra.mxu0 %v2127
        %2144 = vmatprep.subr.bf16.mxu0 0
        %2145 = vmatpush1.bf16.msra.mxu0 %v2126
        %2146 = vmatprep.subr.bf16.mxu0 0
        %2147 = vmatpush1.bf16.msra.mxu0 %v2125
        %2148 = vmatprep.subr.bf16.mxu0 0
        %2149 = vmatpush1.bf16.msra.mxu0 %v2124
        %2150 = vmatprep.subr.bf16.mxu0 0
        %2151 = vmatpush1.bf16.msra.mxu0 %v2123
        %2152 = vmatprep.subr.bf16.mxu0 0
        %2153 = vmatpush1.bf16.msra.mxu0 %v2122
        %2154 = vmatprep.subr.bf16.mxu0 0
        %2155 = vmatpush2.bf16.msra.mxu0 0
        %2156 = vmatprep.subr.bf16.mxu0 0
        %2157 = vmatpush2.bf16.msra.mxu0 0
        %2158 = vmatprep.subr.bf16.mxu0 0
        %2159 = vmatpush2.bf16.msra.mxu0 0
        %2160 = vmatprep.subr.bf16.mxu0 0
        %2161 = vmatpush2.bf16.msra.mxu0 0
        %2162 = vmatprep.subr.bf16.mxu0 0
        %2163 = vmatpush2.bf16.msra.mxu0 0
        %2164 = vmatprep.subr.bf16.mxu0 0
        %2165 = vmatpush2.bf16.msra.mxu0 0
        %2166 = vmatprep.subr.bf16.mxu0 0
        %2167 = vmatpush2.bf16.msra.mxu0 0
        %2168 = vmatprep.subr.bf16.mxu0 0
        %2169 = vmatpush2.bf16.msra.mxu0 0
        %2170 = vmatprep.mubr.bf16.mxu0 0
        %2171 = vmatmul.mubr.bf16.gmra.mxu0 %v1848
        %v2172 = vpop.f32.mrf.mxu0
        %v2173 = vadd.f32 0.0, %v2172
        %v2174 = vpop.f32.mrf.mxu0
        %v2175 = vpop.f32.mrf.mxu0
        %v2176 = vadd.f32 0.0, %v2175
        %v2177 = vpop.f32.mrf.mxu0
        %2178 = vmatprep.mubr.bf16.mxu0 0
        %2179 = vmatmul.mubr.bf16.gmra.mxu0 %v1849
        %v2180 = vpop.f32.mrf.mxu0
        %v2181 = vadd.f32 0.0, %v2180
        %v2182 = vpop.f32.mrf.mxu0
        %v2183 = vpop.f32.mrf.mxu0
        %v2184 = vadd.f32 0.0, %v2183
        %v2185 = vpop.f32.mrf.mxu0
        %2186 = vmatprep.mubr.bf16.mxu0 0
        %2187 = vmatmul.mubr.bf16.gmra.mxu0 %v1850
        %v2188 = vpop.f32.mrf.mxu0
        %v2189 = vadd.f32 0.0, %v2188
        %v2190 = vpop.f32.mrf.mxu0
        %v2191 = vpop.f32.mrf.mxu0
        %v2192 = vadd.f32 0.0, %v2191
        %v2193 = vpop.f32.mrf.mxu0
        %2194 = vmatprep.mubr.bf16.mxu0 0
        %2195 = vmatmul.mubr.bf16.gmra.mxu0 %v1851
        %v2196 = vpop.f32.mrf.mxu0
        %v2197 = vadd.f32 0.0, %v2196
        %v2198 = vpop.f32.mrf.mxu0
        %v2199 = vpop.f32.mrf.mxu0
        %v2200 = vadd.f32 0.0, %v2199
        %v2201 = vpop.f32.mrf.mxu0
        %2202 = vmatprep.mubr.bf16.mxu0 0
        %2203 = vmatmul.mubr.bf16.gmra.mxu0 %v1852
        %v2204 = vpop.f32.mrf.mxu0
        %v2205 = vadd.f32 0.0, %v2204
        %v2206 = vpop.f32.mrf.mxu0
        %v2207 = vpop.f32.mrf.mxu0
        %v2208 = vadd.f32 0.0, %v2207
        %v2209 = vpop.f32.mrf.mxu0
        %2210 = vmatprep.mubr.bf16.mxu0 0
        %2211 = vmatmul.mubr.bf16.gmra.mxu0 %v1853
        %v2212 = vpop.f32.mrf.mxu0
        %v2213 = vadd.f32 0.0, %v2212
        %v2214 = vpop.f32.mrf.mxu0
        %v2215 = vpop.f32.mrf.mxu0
        %v2216 = vadd.f32 0.0, %v2215
        %v2217 = vpop.f32.mrf.mxu0
        %2218 = vmatprep.mubr.bf16.mxu0 0
        %2219 = vmatmul.mubr.bf16.gmra.mxu0 %v1854
        %v2220 = vpop.f32.mrf.mxu0
        %v2221 = vadd.f32 0.0, %v2220
        %v2222 = vpop.f32.mrf.mxu0
        %v2223 = vpop.f32.mrf.mxu0
        %v2224 = vadd.f32 0.0, %v2223
        %v2225 = vpop.f32.mrf.mxu0
        %2226 = vmatprep.mubr.bf16.mxu0 0
        %2227 = vmatmul.mubr.bf16.gmra.mxu0 %v1855
        %v2228 = vpop.f32.mrf.mxu0
        %v2229 = vadd.f32 0.0, %v2228
        %v2230 = vpop.f32.mrf.mxu0
        %v2231 = vpop.f32.mrf.mxu0
        %v2232 = vadd.f32 0.0, %v2231
        %v2233 = vpop.f32.mrf.mxu0
        %2234 = vdwg.mxu0
        %v2235 = vadd.f32 %v2057, %v2173
        %v2236 = vadd.f32 %v2058, %v2176
        %v2237 = vadd.f32 %v2059, %v2181
        %v2238 = vadd.f32 %v2060, %v2184
        %v2239 = vadd.f32 %v2061, %v2189
        %v2240 = vadd.f32 %v2062, %v2192
        %v2241 = vadd.f32 %v2063, %v2197
        %v2242 = vadd.f32 %v2064, %v2200
        %v2243 = vadd.f32 %v2065, %v2205
        %v2244 = vadd.f32 %v2066, %v2208
        %v2245 = vadd.f32 %v2067, %v2213
        %v2246 = vadd.f32 %v2068, %v2216
        %v2247 = vadd.f32 %v2069, %v2221
        %v2248 = vadd.f32 %v2070, %v2224
        %v2249 = vadd.f32 %v2071, %v2229
        %v2250 = vadd.f32 %v2072, %v2232
        %s2251 = scalar_lea.vmem [#allocation8], 512
        %v2252 = vld [vmem:[%s2251] sm:$0xf]
        %v2253 = vld [vmem:[%s2251 + $0x4] sm:$0xf]
        %v2254 = vld [vmem:[%s2251 + $0x8] sm:$0xf]
        %v2255 = vld [vmem:[%s2251 + $0xc] sm:$0xf]
        %v2256 = vld [vmem:[%s2251 + $0x10] sm:$0xf]
        %v2257 = vld [vmem:[%s2251 + $0x14] sm:$0xf]
        %v2258 = vld [vmem:[%s2251 + $0x18] sm:$0xf]
        %v2259 = vld [vmem:[%s2251 + $0x1c] sm:$0xf]
        %v2260 = vld [vmem:[%s2251 + $0x20] sm:$0xf]
        %v2261 = vld [vmem:[%s2251 + $0x24] sm:$0xf]
        %v2262 = vld [vmem:[%s2251 + $0x28] sm:$0xf]
        %v2263 = vld [vmem:[%s2251 + $0x2c] sm:$0xf]
        %v2264 = vld [vmem:[%s2251 + $0x30] sm:$0xf]
        %v2265 = vld [vmem:[%s2251 + $0x34] sm:$0xf]
        %v2266 = vld [vmem:[%s2251 + $0x38] sm:$0xf]
        %v2267 = vld [vmem:[%s2251 + $0x3c] sm:$0xf]
        %v2284 = vunpack.c.l.b16 %v2252
        %v2285 = vunpack.c.l.b16 %v2253
        %v2286 = vunpack.c.l.b16 %v2254
        %v2287 = vunpack.c.l.b16 %v2255
        %v2288 = vunpack.c.l.b16 %v2256
        %v2289 = vunpack.c.l.b16 %v2257
        %v2290 = vunpack.c.l.b16 %v2258
        %v2291 = vunpack.c.l.b16 %v2259
        %v2292 = vunpack.c.l.b16 %v2260
        %v2293 = vunpack.c.l.b16 %v2261
        %v2294 = vunpack.c.l.b16 %v2262
        %v2295 = vunpack.c.l.b16 %v2263
        %v2296 = vunpack.c.l.b16 %v2264
        %v2297 = vunpack.c.l.b16 %v2265
        %v2298 = vunpack.c.l.b16 %v2266
        %v2299 = vunpack.c.l.b16 %v2267
        %v2300 = vpack.c.b16 %v2285, %v2284
        %v2301 = vpack.c.b16 %v2287, %v2286
        %v2302 = vpack.c.b16 %v2289, %v2288
        %v2303 = vpack.c.b16 %v2291, %v2290
        %v2304 = vpack.c.b16 %v2293, %v2292
        %v2305 = vpack.c.b16 %v2295, %v2294
        %v2306 = vpack.c.b16 %v2297, %v2296
        %v2307 = vpack.c.b16 %v2299, %v2298
        %2316 = vmatprep.subr.bf16.mxu0 0
        %2317 = vmatpush1.bf16.msra.mxu0 %v2307
        %2318 = vmatprep.subr.bf16.mxu0 0
        %2319 = vmatpush1.bf16.msra.mxu0 %v2306
        %2320 = vmatprep.subr.bf16.mxu0 0
        %2321 = vmatpush1.bf16.msra.mxu0 %v2305
        %2322 = vmatprep.subr.bf16.mxu0 0
        %2323 = vmatpush1.bf16.msra.mxu0 %v2304
        %2324 = vmatprep.subr.bf16.mxu0 0
        %2325 = vmatpush1.bf16.msra.mxu0 %v2303
        %2326 = vmatprep.subr.bf16.mxu0 0
        %2327 = vmatpush1.bf16.msra.mxu0 %v2302
        %2328 = vmatprep.subr.bf16.mxu0 0
        %2329 = vmatpush1.bf16.msra.mxu0 %v2301
        %2330 = vmatprep.subr.bf16.mxu0 0
        %2331 = vmatpush1.bf16.msra.mxu0 %v2300
        %2332 = vmatprep.subr.bf16.mxu0 0
        %2333 = vmatpush2.bf16.msra.mxu0 0
        %2334 = vmatprep.subr.bf16.mxu0 0
        %2335 = vmatpush2.bf16.msra.mxu0 0
        %2336 = vmatprep.subr.bf16.mxu0 0
        %2337 = vmatpush2.bf16.msra.mxu0 0
        %2338 = vmatprep.subr.bf16.mxu0 0
        %2339 = vmatpush2.bf16.msra.mxu0 0
        %2340 = vmatprep.subr.bf16.mxu0 0
        %2341 = vmatpush2.bf16.msra.mxu0 0
        %2342 = vmatprep.subr.bf16.mxu0 0
        %2343 = vmatpush2.bf16.msra.mxu0 0
        %2344 = vmatprep.subr.bf16.mxu0 0
        %2345 = vmatpush2.bf16.msra.mxu0 0
        %2346 = vmatprep.subr.bf16.mxu0 0
        %2347 = vmatpush2.bf16.msra.mxu0 0
        %2348 = vmatprep.mubr.bf16.mxu0 0
        %2349 = vmatmul.mubr.bf16.gmra.mxu0 %v1848
        %v2350 = vpop.f32.mrf.mxu0
        %v2351 = vadd.f32 0.0, %v2350
        %v2352 = vpop.f32.mrf.mxu0
        %v2353 = vpop.f32.mrf.mxu0
        %v2354 = vadd.f32 0.0, %v2353
        %v2355 = vpop.f32.mrf.mxu0
        %2356 = vmatprep.mubr.bf16.mxu0 0
        %2357 = vmatmul.mubr.bf16.gmra.mxu0 %v1849
        %v2358 = vpop.f32.mrf.mxu0
        %v2359 = vadd.f32 0.0, %v2358
        %v2360 = vpop.f32.mrf.mxu0
        %v2361 = vpop.f32.mrf.mxu0
        %v2362 = vadd.f32 0.0, %v2361
        %v2363 = vpop.f32.mrf.mxu0
        %2364 = vmatprep.mubr.bf16.mxu0 0
        %2365 = vmatmul.mubr.bf16.gmra.mxu0 %v1850
        %v2366 = vpop.f32.mrf.mxu0
        %v2367 = vadd.f32 0.0, %v2366
        %v2368 = vpop.f32.mrf.mxu0
        %v2369 = vpop.f32.mrf.mxu0
        %v2370 = vadd.f32 0.0, %v2369
        %v2371 = vpop.f32.mrf.mxu0
        %2372 = vmatprep.mubr.bf16.mxu0 0
        %2373 = vmatmul.mubr.bf16.gmra.mxu0 %v1851
        %v2374 = vpop.f32.mrf.mxu0
        %v2375 = vadd.f32 0.0, %v2374
        %v2376 = vpop.f32.mrf.mxu0
        %v2377 = vpop.f32.mrf.mxu0
        %v2378 = vadd.f32 0.0, %v2377
        %v2379 = vpop.f32.mrf.mxu0
        %2380 = vmatprep.mubr.bf16.mxu0 0
        %2381 = vmatmul.mubr.bf16.gmra.mxu0 %v1852
        %v2382 = vpop.f32.mrf.mxu0
        %v2383 = vadd.f32 0.0, %v2382
        %v2384 = vpop.f32.mrf.mxu0
        %v2385 = vpop.f32.mrf.mxu0
        %v2386 = vadd.f32 0.0, %v2385
        %v2387 = vpop.f32.mrf.mxu0
        %2388 = vmatprep.mubr.bf16.mxu0 0
        %2389 = vmatmul.mubr.bf16.gmra.mxu0 %v1853
        %v2390 = vpop.f32.mrf.mxu0
        %v2391 = vadd.f32 0.0, %v2390
        %v2392 = vpop.f32.mrf.mxu0
        %v2393 = vpop.f32.mrf.mxu0
        %v2394 = vadd.f32 0.0, %v2393
        %v2395 = vpop.f32.mrf.mxu0
        %2396 = vmatprep.mubr.bf16.mxu0 0
        %2397 = vmatmul.mubr.bf16.gmra.mxu0 %v1854
        %v2398 = vpop.f32.mrf.mxu0
        %v2399 = vadd.f32 0.0, %v2398
        %v2400 = vpop.f32.mrf.mxu0
        %v2401 = vpop.f32.mrf.mxu0
        %v2402 = vadd.f32 0.0, %v2401
        %v2403 = vpop.f32.mrf.mxu0
        %2404 = vmatprep.mubr.bf16.mxu0 0
        %2405 = vmatmul.mubr.bf16.gmra.mxu0 %v1855
        %v2406 = vpop.f32.mrf.mxu0
        %v2407 = vadd.f32 0.0, %v2406
        %v2408 = vpop.f32.mrf.mxu0
        %v2409 = vpop.f32.mrf.mxu0
        %v2410 = vadd.f32 0.0, %v2409
        %v2411 = vpop.f32.mrf.mxu0
        %2412 = vdwg.mxu0
        %v2413 = vrot.slane %v2351, 1
        %v2414 = vrot.slane %v2354, 1
        %v2415 = vrot.slane %v2359, 1
        %v2416 = vrot.slane %v2362, 1
        %v2417 = vrot.slane %v2367, 1
        %v2418 = vrot.slane %v2370, 1
        %v2419 = vrot.slane %v2375, 1
        %v2420 = vrot.slane %v2378, 1
        %v2421 = vrot.slane %v2383, 1
        %v2422 = vrot.slane %v2386, 1
        %v2423 = vrot.slane %v2391, 1
        %v2424 = vrot.slane %v2394, 1
        %v2425 = vrot.slane %v2399, 1
        %v2426 = vrot.slane %v2402, 1
        %v2427 = vrot.slane %v2407, 1
        %v2428 = vrot.slane %v2410, 1
        %v2429 = vsel %vm1038, %v2427, %v2428
        %v2430 = vsel %vm1038, %v2426, %v2427
        %v2431 = vsel %vm1038, %v2425, %v2426
        %v2432 = vsel %vm1038, %v2424, %v2425
        %v2433 = vsel %vm1038, %v2423, %v2424
        %v2434 = vsel %vm1038, %v2422, %v2423
        %v2435 = vsel %vm1038, %v2421, %v2422
        %v2436 = vsel %vm1038, %v2420, %v2421
        %v2437 = vsel %vm1038, %v2419, %v2420
        %v2438 = vsel %vm1038, %v2418, %v2419
        %v2439 = vsel %vm1038, %v2417, %v2418
        %v2440 = vsel %vm1038, %v2416, %v2417
        %v2441 = vsel %vm1038, %v2415, %v2416
        %v2442 = vsel %vm1038, %v2414, %v2415
        %v2443 = vsel %vm1038, %v2413, %v2414
        %v2444 = vsel %vm1038, %v2428, %v2413
        %v2445 = vsel %vm399, 0.0, %v2443
        %v2446 = vsel %vm400, 0.0, %v2442
        %v2447 = vsel %vm399, 0.0, %v2441
        %v2448 = vsel %vm400, 0.0, %v2440
        %v2449 = vsel %vm399, 0.0, %v2439
        %v2450 = vsel %vm400, 0.0, %v2438
        %v2451 = vsel %vm399, 0.0, %v2437
        %v2452 = vsel %vm400, 0.0, %v2436
        %v2453 = vsel %vm399, 0.0, %v2435
        %v2454 = vsel %vm400, 0.0, %v2434
        %v2455 = vsel %vm399, 0.0, %v2433
        %v2456 = vsel %vm400, 0.0, %v2432
        %v2457 = vsel %vm399, 0.0, %v2431
        %v2458 = vsel %vm400, 0.0, %v2430
        %v2459 = vsel %vm399, 0.0, %v2429
        %v2460 = vsel %vm400, 0.0, %v2444
        %v2461 = vadd.f32 %v2235, %v2445
        %v2462 = vadd.f32 %v2236, %v2446
        %v2463 = vadd.f32 %v2237, %v2447
        %v2464 = vadd.f32 %v2238, %v2448
        %v2465 = vadd.f32 %v2239, %v2449
        %v2466 = vadd.f32 %v2240, %v2450
        %v2467 = vadd.f32 %v2241, %v2451
        %v2468 = vadd.f32 %v2242, %v2452
        %v2469 = vadd.f32 %v2243, %v2453
        %v2470 = vadd.f32 %v2244, %v2454
        %v2471 = vadd.f32 %v2245, %v2455
        %v2472 = vadd.f32 %v2246, %v2456
        %v2473 = vadd.f32 %v2247, %v2457
        %v2474 = vadd.f32 %v2248, %v2458
        %v2475 = vadd.f32 %v2249, %v2459
        %v2476 = vadd.f32 %v2250, %v2460
        %v2478 = vlaneseq
        %v2479 = vshrl.u32 %v2478, 7
        %v2480 = vsub.s32 0, %v2479
        %v2481 = vrot.slane %v406, %v2480
        %v2483 = vmul.f32 %v2461, %v2481
        %v2484 = vmul.f32 %v2462, %v2481
        %v2485 = vmul.f32 %v2463, %v2481
        %v2486 = vmul.f32 %v2464, %v2481
        %v2487 = vmul.f32 %v2465, %v2481
        %v2488 = vmul.f32 %v2466, %v2481
        %v2489 = vmul.f32 %v2467, %v2481
        %v2490 = vmul.f32 %v2468, %v2481
        %v2491 = vmul.f32 %v2469, %v2481
        %v2492 = vmul.f32 %v2470, %v2481
        %v2493 = vmul.f32 %v2471, %v2481
        %v2494 = vmul.f32 %v2472, %v2481
        %v2495 = vmul.f32 %v2473, %v2481
        %v2496 = vmul.f32 %v2474, %v2481
        %v2497 = vmul.f32 %v2475, %v2481
        %v2498 = vmul.f32 %v2476, %v2481
        %v2500 = vlaneseq
        %v2501 = vshrl.u32 %v2500, 7
        %v2502 = vsub.s32 0, %v2501
        %v2503 = vrot.slane %v407, %v2502
        %v2505 = vadd.f32 %v2483, %v2503
        %v2506 = vadd.f32 %v2484, %v2503
        %v2507 = vadd.f32 %v2485, %v2503
        %v2508 = vadd.f32 %v2486, %v2503
        %v2509 = vadd.f32 %v2487, %v2503
        %v2510 = vadd.f32 %v2488, %v2503
        %v2511 = vadd.f32 %v2489, %v2503
        %v2512 = vadd.f32 %v2490, %v2503
        %v2513 = vadd.f32 %v2491, %v2503
        %v2514 = vadd.f32 %v2492, %v2503
        %v2515 = vadd.f32 %v2493, %v2503
        %v2516 = vadd.f32 %v2494, %v2503
        %v2517 = vadd.f32 %v2495, %v2503
        %v2518 = vadd.f32 %v2496, %v2503
        %v2519 = vadd.f32 %v2497, %v2503
        %v2520 = vadd.f32 %v2498, %v2503
        %v2521 = vmax.f32 %v2505, 0.0
        %v2522 = vmax.f32 %v2506, 0.0
        %v2523 = vmax.f32 %v2507, 0.0
        %v2524 = vmax.f32 %v2508, 0.0
        %v2525 = vmax.f32 %v2509, 0.0
        %v2526 = vmax.f32 %v2510, 0.0
        %v2527 = vmax.f32 %v2511, 0.0
        %v2528 = vmax.f32 %v2512, 0.0
        %v2529 = vmax.f32 %v2513, 0.0
        %v2530 = vmax.f32 %v2514, 0.0
        %v2531 = vmax.f32 %v2515, 0.0
        %v2532 = vmax.f32 %v2516, 0.0
        %v2533 = vmax.f32 %v2517, 0.0
        %v2534 = vmax.f32 %v2518, 0.0
        %v2535 = vmax.f32 %v2519, 0.0
        %v2536 = vmax.f32 %v2520, 0.0
        %v2537 = vpack.c.bf16 %v2522, %v2521
        %v2538 = vpack.c.bf16 %v2524, %v2523
        %v2539 = vpack.c.bf16 %v2526, %v2525
        %v2540 = vpack.c.bf16 %v2528, %v2527
        %v2541 = vpack.c.bf16 %v2530, %v2529
        %v2542 = vpack.c.bf16 %v2532, %v2531
        %v2543 = vpack.c.bf16 %v2534, %v2533
        %v2544 = vpack.c.bf16 %v2536, %v2535
        %v2553 = vunpack.c.l.b16 %v2537
        %v2554 = vunpack.c.h.b16 %v2537
        %v2555 = vunpack.c.l.b16 %v2538
        %v2556 = vunpack.c.h.b16 %v2538
        %v2557 = vunpack.c.l.b16 %v2539
        %v2558 = vunpack.c.h.b16 %v2539
        %v2559 = vunpack.c.l.b16 %v2540
        %v2560 = vunpack.c.h.b16 %v2540
        %v2561 = vunpack.c.l.b16 %v2541
        %v2562 = vunpack.c.h.b16 %v2541
        %v2563 = vunpack.c.l.b16 %v2542
        %v2564 = vunpack.c.h.b16 %v2542
        %v2565 = vunpack.c.l.b16 %v2543
        %v2566 = vunpack.c.h.b16 %v2543
        %v2567 = vunpack.c.l.b16 %v2544
        %v2568 = vunpack.c.h.b16 %v2544
        %v2569 = vpack.c.b16 %v2553, %v2553
        %v2570 = vpack.c.b16 %v2554, %v2554
        %v2571 = vpack.c.b16 %v2555, %v2555
        %v2572 = vpack.c.b16 %v2556, %v2556
        %v2573 = vpack.c.b16 %v2557, %v2557
        %v2574 = vpack.c.b16 %v2558, %v2558
        %v2575 = vpack.c.b16 %v2559, %v2559
        %v2576 = vpack.c.b16 %v2560, %v2560
        %v2577 = vpack.c.b16 %v2561, %v2561
        %v2578 = vpack.c.b16 %v2562, %v2562
        %v2579 = vpack.c.b16 %v2563, %v2563
        %v2580 = vpack.c.b16 %v2564, %v2564
        %v2581 = vpack.c.b16 %v2565, %v2565
        %v2582 = vpack.c.b16 %v2566, %v2566
        %v2583 = vpack.c.b16 %v2567, %v2567
        %v2584 = vpack.c.b16 %v2568, %v2568
        %s2601 = scalar_lea.vmem [#allocation2], 8
        %2602 = vst [vmem:[%s2601] sm:$0xf] %v2569
        %2603 = vst [vmem:[%s2601 + $0x4] sm:$0xf] %v2570
        %2604 = vst [vmem:[%s2601 + $0x8] sm:$0xf] %v2571
        %2605 = vst [vmem:[%s2601 + $0xc] sm:$0xf] %v2572
        %2606 = vst [vmem:[%s2601 + $0x10] sm:$0xf] %v2573
        %2607 = vst [vmem:[%s2601 + $0x14] sm:$0xf] %v2574
        %2608 = vst [vmem:[%s2601 + $0x18] sm:$0xf] %v2575
        %2609 = vst [vmem:[%s2601 + $0x1c] sm:$0xf] %v2576
        %2610 = vst [vmem:[%s2601 + $0x20] sm:$0xf] %v2577
        %2611 = vst [vmem:[%s2601 + $0x24] sm:$0xf] %v2578
        %2612 = vst [vmem:[%s2601 + $0x28] sm:$0xf] %v2579
        %2613 = vst [vmem:[%s2601 + $0x2c] sm:$0xf] %v2580
        %2614 = vst [vmem:[%s2601 + $0x30] sm:$0xf] %v2581
        %2615 = vst [vmem:[%s2601 + $0x34] sm:$0xf] %v2582
        %2616 = vst [vmem:[%s2601 + $0x38] sm:$0xf] %v2583
        %2617 = vst [vmem:[%s2601 + $0x3c] sm:$0xf] %v2584
        %s2618 = scalar_lea.vmem %s338, 64 [#allocation3]
        %v2619 = vld [vmem:[%s2618] sm:$0xf]
        %v2620 = vld [vmem:[%s2618 + $0x4] sm:$0xf]
        %v2621 = vld [vmem:[%s2618 + $0x8] sm:$0xf]
        %v2622 = vld [vmem:[%s2618 + $0xc] sm:$0xf]
        %v2623 = vld [vmem:[%s2618 + $0x10] sm:$0xf]
        %v2624 = vld [vmem:[%s2618 + $0x14] sm:$0xf]
        %v2625 = vld [vmem:[%s2618 + $0x18] sm:$0xf]
        %v2626 = vld [vmem:[%s2618 + $0x1c] sm:$0xf]
        %v2627 = vld [vmem:[%s2618 + $0x20] sm:$0xf]
        %v2628 = vld [vmem:[%s2618 + $0x24] sm:$0xf]
        %v2629 = vld [vmem:[%s2618 + $0x28] sm:$0xf]
        %v2630 = vld [vmem:[%s2618 + $0x2c] sm:$0xf]
        %v2631 = vld [vmem:[%s2618 + $0x30] sm:$0xf]
        %v2632 = vld [vmem:[%s2618 + $0x34] sm:$0xf]
        %v2633 = vld [vmem:[%s2618 + $0x38] sm:$0xf]
        %v2634 = vld [vmem:[%s2618 + $0x3c] sm:$0xf]
        %v2635 = vld [vmem:[#allocation8] sm:$0xf]
        %v2636 = vld [vmem:[#allocation8 + $0x4] sm:$0xf]
        %v2637 = vld [vmem:[#allocation8 + $0x8] sm:$0xf]
        %v2638 = vld [vmem:[#allocation8 + $0xc] sm:$0xf]
        %v2639 = vld [vmem:[#allocation8 + $0x10] sm:$0xf]
        %v2640 = vld [vmem:[#allocation8 + $0x14] sm:$0xf]
        %v2641 = vld [vmem:[#allocation8 + $0x18] sm:$0xf]
        %v2642 = vld [vmem:[#allocation8 + $0x1c] sm:$0xf]
        %v2643 = vld [vmem:[#allocation8 + $0x20] sm:$0xf]
        %v2644 = vld [vmem:[#allocation8 + $0x24] sm:$0xf]
        %v2645 = vld [vmem:[#allocation8 + $0x28] sm:$0xf]
        %v2646 = vld [vmem:[#allocation8 + $0x2c] sm:$0xf]
        %v2647 = vld [vmem:[#allocation8 + $0x30] sm:$0xf]
        %v2648 = vld [vmem:[#allocation8 + $0x34] sm:$0xf]
        %v2649 = vld [vmem:[#allocation8 + $0x38] sm:$0xf]
        %v2650 = vld [vmem:[#allocation8 + $0x3c] sm:$0xf]
        %v2667 = vunpack.c.l.b16 %v2619
        %v2668 = vunpack.c.l.b16 %v2620
        %v2669 = vunpack.c.l.b16 %v2621
        %v2670 = vunpack.c.l.b16 %v2622
        %v2671 = vunpack.c.l.b16 %v2623
        %v2672 = vunpack.c.l.b16 %v2624
        %v2673 = vunpack.c.l.b16 %v2625
        %v2674 = vunpack.c.l.b16 %v2626
        %v2675 = vunpack.c.l.b16 %v2627
        %v2676 = vunpack.c.l.b16 %v2628
        %v2677 = vunpack.c.l.b16 %v2629
        %v2678 = vunpack.c.l.b16 %v2630
        %v2679 = vunpack.c.l.b16 %v2631
        %v2680 = vunpack.c.l.b16 %v2632
        %v2681 = vunpack.c.l.b16 %v2633
        %v2682 = vunpack.c.l.b16 %v2634
        %v2683 = vpack.c.b16 %v2668, %v2667
        %v2684 = vpack.c.b16 %v2670, %v2669
        %v2685 = vpack.c.b16 %v2672, %v2671
        %v2686 = vpack.c.b16 %v2674, %v2673
        %v2687 = vpack.c.b16 %v2676, %v2675
        %v2688 = vpack.c.b16 %v2678, %v2677
        %v2689 = vpack.c.b16 %v2680, %v2679
        %v2690 = vpack.c.b16 %v2682, %v2681
        %v2715 = vunpack.c.l.b16 %v2635
        %v2716 = vunpack.c.l.b16 %v2636
        %v2717 = vunpack.c.l.b16 %v2637
        %v2718 = vunpack.c.l.b16 %v2638
        %v2719 = vunpack.c.l.b16 %v2639
        %v2720 = vunpack.c.l.b16 %v2640
        %v2721 = vunpack.c.l.b16 %v2641
        %v2722 = vunpack.c.l.b16 %v2642
        %v2723 = vunpack.c.l.b16 %v2643
        %v2724 = vunpack.c.l.b16 %v2644
        %v2725 = vunpack.c.l.b16 %v2645
        %v2726 = vunpack.c.l.b16 %v2646
        %v2727 = vunpack.c.l.b16 %v2647
        %v2728 = vunpack.c.l.b16 %v2648
        %v2729 = vunpack.c.l.b16 %v2649
        %v2730 = vunpack.c.l.b16 %v2650
        %v2731 = vpack.c.b16 %v2716, %v2715
        %v2732 = vpack.c.b16 %v2718, %v2717
        %v2733 = vpack.c.b16 %v2720, %v2719
        %v2734 = vpack.c.b16 %v2722, %v2721
        %v2735 = vpack.c.b16 %v2724, %v2723
        %v2736 = vpack.c.b16 %v2726, %v2725
        %v2737 = vpack.c.b16 %v2728, %v2727
        %v2738 = vpack.c.b16 %v2730, %v2729
        %2747 = vmatprep.subr.bf16.mxu0 0
        %2748 = vmatpush1.bf16.msra.mxu0 %v2738
        %2749 = vmatprep.subr.bf16.mxu0 0
        %2750 = vmatpush1.bf16.msra.mxu0 %v2737
        %2751 = vmatprep.subr.bf16.mxu0 0
        %2752 = vmatpush1.bf16.msra.mxu0 %v2736
        %2753 = vmatprep.subr.bf16.mxu0 0
        %2754 = vmatpush1.bf16.msra.mxu0 %v2735
        %2755 = vmatprep.subr.bf16.mxu0 0
        %2756 = vmatpush1.bf16.msra.mxu0 %v2734
        %2757 = vmatprep.subr.bf16.mxu0 0
        %2758 = vmatpush1.bf16.msra.mxu0 %v2733
        %2759 = vmatprep.subr.bf16.mxu0 0
        %2760 = vmatpush1.bf16.msra.mxu0 %v2732
        %2761 = vmatprep.subr.bf16.mxu0 0
        %2762 = vmatpush1.bf16.msra.mxu0 %v2731
        %2763 = vmatprep.subr.bf16.mxu0 0
        %2764 = vmatpush2.bf16.msra.mxu0 0
        %2765 = vmatprep.subr.bf16.mxu0 0
        %2766 = vmatpush2.bf16.msra.mxu0 0
        %2767 = vmatprep.subr.bf16.mxu0 0
        %2768 = vmatpush2.bf16.msra.mxu0 0
        %2769 = vmatprep.subr.bf16.mxu0 0
        %2770 = vmatpush2.bf16.msra.mxu0 0
        %2771 = vmatprep.subr.bf16.mxu0 0
        %2772 = vmatpush2.bf16.msra.mxu0 0
        %2773 = vmatprep.subr.bf16.mxu0 0
        %2774 = vmatpush2.bf16.msra.mxu0 0
        %2775 = vmatprep.subr.bf16.mxu0 0
        %2776 = vmatpush2.bf16.msra.mxu0 0
        %2777 = vmatprep.subr.bf16.mxu0 0
        %2778 = vmatpush2.bf16.msra.mxu0 0
        %2779 = vmatprep.mubr.bf16.mxu0 0
        %2780 = vmatmul.mubr.bf16.gmra.mxu0 %v2683
        %v2781 = vpop.f32.mrf.mxu0
        %v2782 = vadd.f32 0.0, %v2781
        %v2783 = vpop.f32.mrf.mxu0
        %v2784 = vpop.f32.mrf.mxu0
        %v2785 = vadd.f32 0.0, %v2784
        %v2786 = vpop.f32.mrf.mxu0
        %2787 = vmatprep.mubr.bf16.mxu0 0
        %2788 = vmatmul.mubr.bf16.gmra.mxu0 %v2684
        %v2789 = vpop.f32.mrf.mxu0
        %v2790 = vadd.f32 0.0, %v2789
        %v2791 = vpop.f32.mrf.mxu0
        %v2792 = vpop.f32.mrf.mxu0
        %v2793 = vadd.f32 0.0, %v2792
        %v2794 = vpop.f32.mrf.mxu0
        %2795 = vmatprep.mubr.bf16.mxu0 0
        %2796 = vmatmul.mubr.bf16.gmra.mxu0 %v2685
        %v2797 = vpop.f32.mrf.mxu0
        %v2798 = vadd.f32 0.0, %v2797
        %v2799 = vpop.f32.mrf.mxu0
        %v2800 = vpop.f32.mrf.mxu0
        %v2801 = vadd.f32 0.0, %v2800
        %v2802 = vpop.f32.mrf.mxu0
        %2803 = vmatprep.mubr.bf16.mxu0 0
        %2804 = vmatmul.mubr.bf16.gmra.mxu0 %v2686
        %v2805 = vpop.f32.mrf.mxu0
        %v2806 = vadd.f32 0.0, %v2805
        %v2807 = vpop.f32.mrf.mxu0
        %v2808 = vpop.f32.mrf.mxu0
        %v2809 = vadd.f32 0.0, %v2808
        %v2810 = vpop.f32.mrf.mxu0
        %2811 = vmatprep.mubr.bf16.mxu0 0
        %2812 = vmatmul.mubr.bf16.gmra.mxu0 %v2687
        %v2813 = vpop.f32.mrf.mxu0
        %v2814 = vadd.f32 0.0, %v2813
        %v2815 = vpop.f32.mrf.mxu0
        %v2816 = vpop.f32.mrf.mxu0
        %v2817 = vadd.f32 0.0, %v2816
        %v2818 = vpop.f32.mrf.mxu0
        %2819 = vmatprep.mubr.bf16.mxu0 0
        %2820 = vmatmul.mubr.bf16.gmra.mxu0 %v2688
        %v2821 = vpop.f32.mrf.mxu0
        %v2822 = vadd.f32 0.0, %v2821
        %v2823 = vpop.f32.mrf.mxu0
        %v2824 = vpop.f32.mrf.mxu0
        %v2825 = vadd.f32 0.0, %v2824
        %v2826 = vpop.f32.mrf.mxu0
        %2827 = vmatprep.mubr.bf16.mxu0 0
        %2828 = vmatmul.mubr.bf16.gmra.mxu0 %v2689
        %v2829 = vpop.f32.mrf.mxu0
        %v2830 = vadd.f32 0.0, %v2829
        %v2831 = vpop.f32.mrf.mxu0
        %v2832 = vpop.f32.mrf.mxu0
        %v2833 = vadd.f32 0.0, %v2832
        %v2834 = vpop.f32.mrf.mxu0
        %2835 = vmatprep.mubr.bf16.mxu0 0
        %2836 = vmatmul.mubr.bf16.gmra.mxu0 %v2690
        %v2837 = vpop.f32.mrf.mxu0
        %v2838 = vadd.f32 0.0, %v2837
        %v2839 = vpop.f32.mrf.mxu0
        %v2840 = vpop.f32.mrf.mxu0
        %v2841 = vadd.f32 0.0, %v2840
        %v2842 = vpop.f32.mrf.mxu0
        %2843 = vdwg.mxu0
        %v2844 = vrot.slane %v2782, 7
        %v2845 = vrot.slane %v2785, 7
        %v2846 = vrot.slane %v2790, 7
        %v2847 = vrot.slane %v2793, 7
        %v2848 = vrot.slane %v2798, 7
        %v2849 = vrot.slane %v2801, 7
        %v2850 = vrot.slane %v2806, 7
        %v2851 = vrot.slane %v2809, 7
        %v2852 = vrot.slane %v2814, 7
        %v2853 = vrot.slane %v2817, 7
        %v2854 = vrot.slane %v2822, 7
        %v2855 = vrot.slane %v2825, 7
        %v2856 = vrot.slane %v2830, 7
        %v2857 = vrot.slane %v2833, 7
        %v2858 = vrot.slane %v2838, 7
        %v2859 = vrot.slane %v2841, 7
        %v2860 = vsel %vm649, %v2858, %v2859
        %v2861 = vsel %vm649, %v2857, %v2858
        %v2862 = vsel %vm649, %v2856, %v2857
        %v2863 = vsel %vm649, %v2855, %v2856
        %v2864 = vsel %vm649, %v2854, %v2855
        %v2865 = vsel %vm649, %v2853, %v2854
        %v2866 = vsel %vm649, %v2852, %v2853
        %v2867 = vsel %vm649, %v2851, %v2852
        %v2868 = vsel %vm649, %v2850, %v2851
        %v2869 = vsel %vm649, %v2849, %v2850
        %v2870 = vsel %vm649, %v2848, %v2849
        %v2871 = vsel %vm649, %v2847, %v2848
        %v2872 = vsel %vm649, %v2846, %v2847
        %v2873 = vsel %vm649, %v2845, %v2846
        %v2874 = vsel %vm649, %v2844, %v2845
        %v2875 = vsel %vm649, %v2859, %v2844
        %v2876 = vsel %vm397, 0.0, %v2875
        %v2877 = vsel %vm398, 0.0, %v2874
        %v2878 = vsel %vm397, 0.0, %v2873
        %v2879 = vsel %vm398, 0.0, %v2872
        %v2880 = vsel %vm397, 0.0, %v2871
        %v2881 = vsel %vm398, 0.0, %v2870
        %v2882 = vsel %vm397, 0.0, %v2869
        %v2883 = vsel %vm398, 0.0, %v2868
        %v2884 = vsel %vm397, 0.0, %v2867
        %v2885 = vsel %vm398, 0.0, %v2866
        %v2886 = vsel %vm397, 0.0, %v2865
        %v2887 = vsel %vm398, 0.0, %v2864
        %v2888 = vsel %vm397, 0.0, %v2863
        %v2889 = vsel %vm398, 0.0, %v2862
        %v2890 = vsel %vm397, 0.0, %v2861
        %v2891 = vsel %vm398, 0.0, %v2860
        %v2892 = vld [vmem:[%s682] sm:$0xf]
        %v2893 = vld [vmem:[%s682 + $0x4] sm:$0xf]
        %v2894 = vld [vmem:[%s682 + $0x8] sm:$0xf]
        %v2895 = vld [vmem:[%s682 + $0xc] sm:$0xf]
        %v2896 = vld [vmem:[%s682 + $0x10] sm:$0xf]
        %v2897 = vld [vmem:[%s682 + $0x14] sm:$0xf]
        %v2898 = vld [vmem:[%s682 + $0x18] sm:$0xf]
        %v2899 = vld [vmem:[%s682 + $0x1c] sm:$0xf]
        %v2900 = vld [vmem:[%s682 + $0x20] sm:$0xf]
        %v2901 = vld [vmem:[%s682 + $0x24] sm:$0xf]
        %v2902 = vld [vmem:[%s682 + $0x28] sm:$0xf]
        %v2903 = vld [vmem:[%s682 + $0x2c] sm:$0xf]
        %v2904 = vld [vmem:[%s682 + $0x30] sm:$0xf]
        %v2905 = vld [vmem:[%s682 + $0x34] sm:$0xf]
        %v2906 = vld [vmem:[%s682 + $0x38] sm:$0xf]
        %v2907 = vld [vmem:[%s682 + $0x3c] sm:$0xf]
        %v2924 = vunpack.c.l.b16 %v2892
        %v2925 = vunpack.c.l.b16 %v2893
        %v2926 = vunpack.c.l.b16 %v2894
        %v2927 = vunpack.c.l.b16 %v2895
        %v2928 = vunpack.c.l.b16 %v2896
        %v2929 = vunpack.c.l.b16 %v2897
        %v2930 = vunpack.c.l.b16 %v2898
        %v2931 = vunpack.c.l.b16 %v2899
        %v2932 = vunpack.c.l.b16 %v2900
        %v2933 = vunpack.c.l.b16 %v2901
        %v2934 = vunpack.c.l.b16 %v2902
        %v2935 = vunpack.c.l.b16 %v2903
        %v2936 = vunpack.c.l.b16 %v2904
        %v2937 = vunpack.c.l.b16 %v2905
        %v2938 = vunpack.c.l.b16 %v2906
        %v2939 = vunpack.c.l.b16 %v2907
        %v2940 = vpack.c.b16 %v2925, %v2924
        %v2941 = vpack.c.b16 %v2927, %v2926
        %v2942 = vpack.c.b16 %v2929, %v2928
        %v2943 = vpack.c.b16 %v2931, %v2930
        %v2944 = vpack.c.b16 %v2933, %v2932
        %v2945 = vpack.c.b16 %v2935, %v2934
        %v2946 = vpack.c.b16 %v2937, %v2936
        %v2947 = vpack.c.b16 %v2939, %v2938
        %2956 = vmatprep.subr.bf16.mxu0 0
        %2957 = vmatpush1.bf16.msra.mxu0 %v2947
        %2958 = vmatprep.subr.bf16.mxu0 0
        %2959 = vmatpush1.bf16.msra.mxu0 %v2946
        %2960 = vmatprep.subr.bf16.mxu0 0
        %2961 = vmatpush1.bf16.msra.mxu0 %v2945
        %2962 = vmatprep.subr.bf16.mxu0 0
        %2963 = vmatpush1.bf16.msra.mxu0 %v2944
        %2964 = vmatprep.subr.bf16.mxu0 0
        %2965 = vmatpush1.bf16.msra.mxu0 %v2943
        %2966 = vmatprep.subr.bf16.mxu0 0
        %2967 = vmatpush1.bf16.msra.mxu0 %v2942
        %2968 = vmatprep.subr.bf16.mxu0 0
        %2969 = vmatpush1.bf16.msra.mxu0 %v2941
        %2970 = vmatprep.subr.bf16.mxu0 0
        %2971 = vmatpush1.bf16.msra.mxu0 %v2940
        %2972 = vmatprep.subr.bf16.mxu0 0
        %2973 = vmatpush2.bf16.msra.mxu0 0
        %2974 = vmatprep.subr.bf16.mxu0 0
        %2975 = vmatpush2.bf16.msra.mxu0 0
        %2976 = vmatprep.subr.bf16.mxu0 0
        %2977 = vmatpush2.bf16.msra.mxu0 0
        %2978 = vmatprep.subr.bf16.mxu0 0
        %2979 = vmatpush2.bf16.msra.mxu0 0
        %2980 = vmatprep.subr.bf16.mxu0 0
        %2981 = vmatpush2.bf16.msra.mxu0 0
        %2982 = vmatprep.subr.bf16.mxu0 0
        %2983 = vmatpush2.bf16.msra.mxu0 0
        %2984 = vmatprep.subr.bf16.mxu0 0
        %2985 = vmatpush2.bf16.msra.mxu0 0
        %2986 = vmatprep.subr.bf16.mxu0 0
        %2987 = vmatpush2.bf16.msra.mxu0 0
        %2988 = vmatprep.mubr.bf16.mxu0 0
        %2989 = vmatmul.mubr.bf16.gmra.mxu0 %v2683
        %v2990 = vpop.f32.mrf.mxu0
        %v2991 = vadd.f32 0.0, %v2990
        %v2992 = vpop.f32.mrf.mxu0
        %v2993 = vpop.f32.mrf.mxu0
        %v2994 = vadd.f32 0.0, %v2993
        %v2995 = vpop.f32.mrf.mxu0
        %2996 = vmatprep.mubr.bf16.mxu0 0
        %2997 = vmatmul.mubr.bf16.gmra.mxu0 %v2684
        %v2998 = vpop.f32.mrf.mxu0
        %v2999 = vadd.f32 0.0, %v2998
        %v3000 = vpop.f32.mrf.mxu0
        %v3001 = vpop.f32.mrf.mxu0
        %v3002 = vadd.f32 0.0, %v3001
        %v3003 = vpop.f32.mrf.mxu0
        %3004 = vmatprep.mubr.bf16.mxu0 0
        %3005 = vmatmul.mubr.bf16.gmra.mxu0 %v2685
        %v3006 = vpop.f32.mrf.mxu0
        %v3007 = vadd.f32 0.0, %v3006
        %v3008 = vpop.f32.mrf.mxu0
        %v3009 = vpop.f32.mrf.mxu0
        %v3010 = vadd.f32 0.0, %v3009
        %v3011 = vpop.f32.mrf.mxu0
        %3012 = vmatprep.mubr.bf16.mxu0 0
        %3013 = vmatmul.mubr.bf16.gmra.mxu0 %v2686
        %v3014 = vpop.f32.mrf.mxu0
        %v3015 = vadd.f32 0.0, %v3014
        %v3016 = vpop.f32.mrf.mxu0
        %v3017 = vpop.f32.mrf.mxu0
        %v3018 = vadd.f32 0.0, %v3017
        %v3019 = vpop.f32.mrf.mxu0
        %3020 = vmatprep.mubr.bf16.mxu0 0
        %3021 = vmatmul.mubr.bf16.gmra.mxu0 %v2687
        %v3022 = vpop.f32.mrf.mxu0
        %v3023 = vadd.f32 0.0, %v3022
        %v3024 = vpop.f32.mrf.mxu0
        %v3025 = vpop.f32.mrf.mxu0
        %v3026 = vadd.f32 0.0, %v3025
        %v3027 = vpop.f32.mrf.mxu0
        %3028 = vmatprep.mubr.bf16.mxu0 0
        %3029 = vmatmul.mubr.bf16.gmra.mxu0 %v2688
        %v3030 = vpop.f32.mrf.mxu0
        %v3031 = vadd.f32 0.0, %v3030
        %v3032 = vpop.f32.mrf.mxu0
        %v3033 = vpop.f32.mrf.mxu0
        %v3034 = vadd.f32 0.0, %v3033
        %v3035 = vpop.f32.mrf.mxu0
        %3036 = vmatprep.mubr.bf16.mxu0 0
        %3037 = vmatmul.mubr.bf16.gmra.mxu0 %v2689
        %v3038 = vpop.f32.mrf.mxu0
        %v3039 = vadd.f32 0.0, %v3038
        %v3040 = vpop.f32.mrf.mxu0
        %v3041 = vpop.f32.mrf.mxu0
        %v3042 = vadd.f32 0.0, %v3041
        %v3043 = vpop.f32.mrf.mxu0
        %3044 = vmatprep.mubr.bf16.mxu0 0
        %3045 = vmatmul.mubr.bf16.gmra.mxu0 %v2690
        %v3046 = vpop.f32.mrf.mxu0
        %v3047 = vadd.f32 0.0, %v3046
        %v3048 = vpop.f32.mrf.mxu0
        %v3049 = vpop.f32.mrf.mxu0
        %v3050 = vadd.f32 0.0, %v3049
        %v3051 = vpop.f32.mrf.mxu0
        %3052 = vdwg.mxu0
        %v3053 = vadd.f32 %v2876, %v2991
        %v3054 = vadd.f32 %v2877, %v2994
        %v3055 = vadd.f32 %v2878, %v2999
        %v3056 = vadd.f32 %v2879, %v3002
        %v3057 = vadd.f32 %v2880, %v3007
        %v3058 = vadd.f32 %v2881, %v3010
        %v3059 = vadd.f32 %v2882, %v3015
        %v3060 = vadd.f32 %v2883, %v3018
        %v3061 = vadd.f32 %v2884, %v3023
        %v3062 = vadd.f32 %v2885, %v3026
        %v3063 = vadd.f32 %v2886, %v3031
        %v3064 = vadd.f32 %v2887, %v3034
        %v3065 = vadd.f32 %v2888, %v3039
        %v3066 = vadd.f32 %v2889, %v3042
        %v3067 = vadd.f32 %v2890, %v3047
        %v3068 = vadd.f32 %v2891, %v3050
        %v3069 = vld [vmem:[%s860] sm:$0xf]
        %v3070 = vld [vmem:[%s860 + $0x4] sm:$0xf]
        %v3071 = vld [vmem:[%s860 + $0x8] sm:$0xf]
        %v3072 = vld [vmem:[%s860 + $0xc] sm:$0xf]
        %v3073 = vld [vmem:[%s860 + $0x10] sm:$0xf]
        %v3074 = vld [vmem:[%s860 + $0x14] sm:$0xf]
        %v3075 = vld [vmem:[%s860 + $0x18] sm:$0xf]
        %v3076 = vld [vmem:[%s860 + $0x1c] sm:$0xf]
        %v3077 = vld [vmem:[%s860 + $0x20] sm:$0xf]
        %v3078 = vld [vmem:[%s860 + $0x24] sm:$0xf]
        %v3079 = vld [vmem:[%s860 + $0x28] sm:$0xf]
        %v3080 = vld [vmem:[%s860 + $0x2c] sm:$0xf]
        %v3081 = vld [vmem:[%s860 + $0x30] sm:$0xf]
        %v3082 = vld [vmem:[%s860 + $0x34] sm:$0xf]
        %v3083 = vld [vmem:[%s860 + $0x38] sm:$0xf]
        %v3084 = vld [vmem:[%s860 + $0x3c] sm:$0xf]
        %v3101 = vunpack.c.l.b16 %v3069
        %v3102 = vunpack.c.l.b16 %v3070
        %v3103 = vunpack.c.l.b16 %v3071
        %v3104 = vunpack.c.l.b16 %v3072
        %v3105 = vunpack.c.l.b16 %v3073
        %v3106 = vunpack.c.l.b16 %v3074
        %v3107 = vunpack.c.l.b16 %v3075
        %v3108 = vunpack.c.l.b16 %v3076
        %v3109 = vunpack.c.l.b16 %v3077
        %v3110 = vunpack.c.l.b16 %v3078
        %v3111 = vunpack.c.l.b16 %v3079
        %v3112 = vunpack.c.l.b16 %v3080
        %v3113 = vunpack.c.l.b16 %v3081
        %v3114 = vunpack.c.l.b16 %v3082
        %v3115 = vunpack.c.l.b16 %v3083
        %v3116 = vunpack.c.l.b16 %v3084
        %v3117 = vpack.c.b16 %v3102, %v3101
        %v3118 = vpack.c.b16 %v3104, %v3103
        %v3119 = vpack.c.b16 %v3106, %v3105
        %v3120 = vpack.c.b16 %v3108, %v3107
        %v3121 = vpack.c.b16 %v3110, %v3109
        %v3122 = vpack.c.b16 %v3112, %v3111
        %v3123 = vpack.c.b16 %v3114, %v3113
        %v3124 = vpack.c.b16 %v3116, %v3115
        %3133 = vmatprep.subr.bf16.mxu0 0
        %3134 = vmatpush1.bf16.msra.mxu0 %v3124
        %3135 = vmatprep.subr.bf16.mxu0 0
        %3136 = vmatpush1.bf16.msra.mxu0 %v3123
        %3137 = vmatprep.subr.bf16.mxu0 0
        %3138 = vmatpush1.bf16.msra.mxu0 %v3122
        %3139 = vmatprep.subr.bf16.mxu0 0
        %3140 = vmatpush1.bf16.msra.mxu0 %v3121
        %3141 = vmatprep.subr.bf16.mxu0 0
        %3142 = vmatpush1.bf16.msra.mxu0 %v3120
        %3143 = vmatprep.subr.bf16.mxu0 0
        %3144 = vmatpush1.bf16.msra.mxu0 %v3119
        %3145 = vmatprep.subr.bf16.mxu0 0
        %3146 = vmatpush1.bf16.msra.mxu0 %v3118
        %3147 = vmatprep.subr.bf16.mxu0 0
        %3148 = vmatpush1.bf16.msra.mxu0 %v3117
        %3149 = vmatprep.subr.bf16.mxu0 0
        %3150 = vmatpush2.bf16.msra.mxu0 0
        %3151 = vmatprep.subr.bf16.mxu0 0
        %3152 = vmatpush2.bf16.msra.mxu0 0
        %3153 = vmatprep.subr.bf16.mxu0 0
        %3154 = vmatpush2.bf16.msra.mxu0 0
        %3155 = vmatprep.subr.bf16.mxu0 0
        %3156 = vmatpush2.bf16.msra.mxu0 0
        %3157 = vmatprep.subr.bf16.mxu0 0
        %3158 = vmatpush2.bf16.msra.mxu0 0
        %3159 = vmatprep.subr.bf16.mxu0 0
        %3160 = vmatpush2.bf16.msra.mxu0 0
        %3161 = vmatprep.subr.bf16.mxu0 0
        %3162 = vmatpush2.bf16.msra.mxu0 0
        %3163 = vmatprep.subr.bf16.mxu0 0
        %3164 = vmatpush2.bf16.msra.mxu0 0
        %3165 = vmatprep.mubr.bf16.mxu0 0
        %3166 = vmatmul.mubr.bf16.gmra.mxu0 %v2683
        %v3167 = vpop.f32.mrf.mxu0
        %v3168 = vadd.f32 0.0, %v3167
        %v3169 = vpop.f32.mrf.mxu0
        %v3170 = vpop.f32.mrf.mxu0
        %v3171 = vadd.f32 0.0, %v3170
        %v3172 = vpop.f32.mrf.mxu0
        %3173 = vmatprep.mubr.bf16.mxu0 0
        %3174 = vmatmul.mubr.bf16.gmra.mxu0 %v2684
        %v3175 = vpop.f32.mrf.mxu0
        %v3176 = vadd.f32 0.0, %v3175
        %v3177 = vpop.f32.mrf.mxu0
        %v3178 = vpop.f32.mrf.mxu0
        %v3179 = vadd.f32 0.0, %v3178
        %v3180 = vpop.f32.mrf.mxu0
        %3181 = vmatprep.mubr.bf16.mxu0 0
        %3182 = vmatmul.mubr.bf16.gmra.mxu0 %v2685
        %v3183 = vpop.f32.mrf.mxu0
        %v3184 = vadd.f32 0.0, %v3183
        %v3185 = vpop.f32.mrf.mxu0
        %v3186 = vpop.f32.mrf.mxu0
        %v3187 = vadd.f32 0.0, %v3186
        %v3188 = vpop.f32.mrf.mxu0
        %3189 = vmatprep.mubr.bf16.mxu0 0
        %3190 = vmatmul.mubr.bf16.gmra.mxu0 %v2686
        %v3191 = vpop.f32.mrf.mxu0
        %v3192 = vadd.f32 0.0, %v3191
        %v3193 = vpop.f32.mrf.mxu0
        %v3194 = vpop.f32.mrf.mxu0
        %v3195 = vadd.f32 0.0, %v3194
        %v3196 = vpop.f32.mrf.mxu0
        %3197 = vmatprep.mubr.bf16.mxu0 0
        %3198 = vmatmul.mubr.bf16.gmra.mxu0 %v2687
        %v3199 = vpop.f32.mrf.mxu0
        %v3200 = vadd.f32 0.0, %v3199
        %v3201 = vpop.f32.mrf.mxu0
        %v3202 = vpop.f32.mrf.mxu0
        %v3203 = vadd.f32 0.0, %v3202
        %v3204 = vpop.f32.mrf.mxu0
        %3205 = vmatprep.mubr.bf16.mxu0 0
        %3206 = vmatmul.mubr.bf16.gmra.mxu0 %v2688
        %v3207 = vpop.f32.mrf.mxu0
        %v3208 = vadd.f32 0.0, %v3207
        %v3209 = vpop.f32.mrf.mxu0
        %v3210 = vpop.f32.mrf.mxu0
        %v3211 = vadd.f32 0.0, %v3210
        %v3212 = vpop.f32.mrf.mxu0
        %3213 = vmatprep.mubr.bf16.mxu0 0
        %3214 = vmatmul.mubr.bf16.gmra.mxu0 %v2689
        %v3215 = vpop.f32.mrf.mxu0
        %v3216 = vadd.f32 0.0, %v3215
        %v3217 = vpop.f32.mrf.mxu0
        %v3218 = vpop.f32.mrf.mxu0
        %v3219 = vadd.f32 0.0, %v3218
        %v3220 = vpop.f32.mrf.mxu0
        %3221 = vmatprep.mubr.bf16.mxu0 0
        %3222 = vmatmul.mubr.bf16.gmra.mxu0 %v2690
        %v3223 = vpop.f32.mrf.mxu0
        %v3224 = vadd.f32 0.0, %v3223
        %v3225 = vpop.f32.mrf.mxu0
        %v3226 = vpop.f32.mrf.mxu0
        %v3227 = vadd.f32 0.0, %v3226
        %v3228 = vpop.f32.mrf.mxu0
        %3229 = vdwg.mxu0
        %v3230 = vrot.slane %v3168, 1
        %v3231 = vrot.slane %v3171, 1
        %v3232 = vrot.slane %v3176, 1
        %v3233 = vrot.slane %v3179, 1
        %v3234 = vrot.slane %v3184, 1
        %v3235 = vrot.slane %v3187, 1
        %v3236 = vrot.slane %v3192, 1
        %v3237 = vrot.slane %v3195, 1
        %v3238 = vrot.slane %v3200, 1
        %v3239 = vrot.slane %v3203, 1
        %v3240 = vrot.slane %v3208, 1
        %v3241 = vrot.slane %v3211, 1
        %v3242 = vrot.slane %v3216, 1
        %v3243 = vrot.slane %v3219, 1
        %v3244 = vrot.slane %v3224, 1
        %v3245 = vrot.slane %v3227, 1
        %v3246 = vsel %vm1038, %v3244, %v3245
        %v3247 = vsel %vm1038, %v3243, %v3244
        %v3248 = vsel %vm1038, %v3242, %v3243
        %v3249 = vsel %vm1038, %v3241, %v3242
        %v3250 = vsel %vm1038, %v3240, %v3241
        %v3251 = vsel %vm1038, %v3239, %v3240
        %v3252 = vsel %vm1038, %v3238, %v3239
        %v3253 = vsel %vm1038, %v3237, %v3238
        %v3254 = vsel %vm1038, %v3236, %v3237
        %v3255 = vsel %vm1038, %v3235, %v3236
        %v3256 = vsel %vm1038, %v3234, %v3235
        %v3257 = vsel %vm1038, %v3233, %v3234
        %v3258 = vsel %vm1038, %v3232, %v3233
        %v3259 = vsel %vm1038, %v3231, %v3232
        %v3260 = vsel %vm1038, %v3230, %v3231
        %v3261 = vsel %vm1038, %v3245, %v3230
        %v3262 = vsel %vm399, 0.0, %v3260
        %v3263 = vsel %vm400, 0.0, %v3259
        %v3264 = vsel %vm399, 0.0, %v3258
        %v3265 = vsel %vm400, 0.0, %v3257
        %v3266 = vsel %vm399, 0.0, %v3256
        %v3267 = vsel %vm400, 0.0, %v3255
        %v3268 = vsel %vm399, 0.0, %v3254
        %v3269 = vsel %vm400, 0.0, %v3253
        %v3270 = vsel %vm399, 0.0, %v3252
        %v3271 = vsel %vm400, 0.0, %v3251
        %v3272 = vsel %vm399, 0.0, %v3250
        %v3273 = vsel %vm400, 0.0, %v3249
        %v3274 = vsel %vm399, 0.0, %v3248
        %v3275 = vsel %vm400, 0.0, %v3247
        %v3276 = vsel %vm399, 0.0, %v3246
        %v3277 = vsel %vm400, 0.0, %v3261
        %v3278 = vadd.f32 %v3053, %v3262
        %v3279 = vadd.f32 %v3054, %v3263
        %v3280 = vadd.f32 %v3055, %v3264
        %v3281 = vadd.f32 %v3056, %v3265
        %v3282 = vadd.f32 %v3057, %v3266
        %v3283 = vadd.f32 %v3058, %v3267
        %v3284 = vadd.f32 %v3059, %v3268
        %v3285 = vadd.f32 %v3060, %v3269
        %v3286 = vadd.f32 %v3061, %v3270
        %v3287 = vadd.f32 %v3062, %v3271
        %v3288 = vadd.f32 %v3063, %v3272
        %v3289 = vadd.f32 %v3064, %v3273
        %v3290 = vadd.f32 %v3065, %v3274
        %v3291 = vadd.f32 %v3066, %v3275
        %v3292 = vadd.f32 %v3067, %v3276
        %v3293 = vadd.f32 %v3068, %v3277
        %s3294 = scalar_lea.vmem %s338, 72 [#allocation3]
        %v3295 = vld [vmem:[%s3294] sm:$0xf]
        %v3296 = vld [vmem:[%s3294 + $0x4] sm:$0xf]
        %v3297 = vld [vmem:[%s3294 + $0x8] sm:$0xf]
        %v3298 = vld [vmem:[%s3294 + $0xc] sm:$0xf]
        %v3299 = vld [vmem:[%s3294 + $0x10] sm:$0xf]
        %v3300 = vld [vmem:[%s3294 + $0x14] sm:$0xf]
        %v3301 = vld [vmem:[%s3294 + $0x18] sm:$0xf]
        %v3302 = vld [vmem:[%s3294 + $0x1c] sm:$0xf]
        %v3303 = vld [vmem:[%s3294 + $0x20] sm:$0xf]
        %v3304 = vld [vmem:[%s3294 + $0x24] sm:$0xf]
        %v3305 = vld [vmem:[%s3294 + $0x28] sm:$0xf]
        %v3306 = vld [vmem:[%s3294 + $0x2c] sm:$0xf]
        %v3307 = vld [vmem:[%s3294 + $0x30] sm:$0xf]
        %v3308 = vld [vmem:[%s3294 + $0x34] sm:$0xf]
        %v3309 = vld [vmem:[%s3294 + $0x38] sm:$0xf]
        %v3310 = vld [vmem:[%s3294 + $0x3c] sm:$0xf]
        %v3311 = vld [vmem:[%s1104] sm:$0xf]
        %v3312 = vld [vmem:[%s1104 + $0x4] sm:$0xf]
        %v3313 = vld [vmem:[%s1104 + $0x8] sm:$0xf]
        %v3314 = vld [vmem:[%s1104 + $0xc] sm:$0xf]
        %v3315 = vld [vmem:[%s1104 + $0x10] sm:$0xf]
        %v3316 = vld [vmem:[%s1104 + $0x14] sm:$0xf]
        %v3317 = vld [vmem:[%s1104 + $0x18] sm:$0xf]
        %v3318 = vld [vmem:[%s1104 + $0x1c] sm:$0xf]
        %v3319 = vld [vmem:[%s1104 + $0x20] sm:$0xf]
        %v3320 = vld [vmem:[%s1104 + $0x24] sm:$0xf]
        %v3321 = vld [vmem:[%s1104 + $0x28] sm:$0xf]
        %v3322 = vld [vmem:[%s1104 + $0x2c] sm:$0xf]
        %v3323 = vld [vmem:[%s1104 + $0x30] sm:$0xf]
        %v3324 = vld [vmem:[%s1104 + $0x34] sm:$0xf]
        %v3325 = vld [vmem:[%s1104 + $0x38] sm:$0xf]
        %v3326 = vld [vmem:[%s1104 + $0x3c] sm:$0xf]
        %v3343 = vunpack.c.l.b16 %v3295
        %v3344 = vunpack.c.l.b16 %v3296
        %v3345 = vunpack.c.l.b16 %v3297
        %v3346 = vunpack.c.l.b16 %v3298
        %v3347 = vunpack.c.l.b16 %v3299
        %v3348 = vunpack.c.l.b16 %v3300
        %v3349 = vunpack.c.l.b16 %v3301
        %v3350 = vunpack.c.l.b16 %v3302
        %v3351 = vunpack.c.l.b16 %v3303
        %v3352 = vunpack.c.l.b16 %v3304
        %v3353 = vunpack.c.l.b16 %v3305
        %v3354 = vunpack.c.l.b16 %v3306
        %v3355 = vunpack.c.l.b16 %v3307
        %v3356 = vunpack.c.l.b16 %v3308
        %v3357 = vunpack.c.l.b16 %v3309
        %v3358 = vunpack.c.l.b16 %v3310
        %v3359 = vpack.c.b16 %v3344, %v3343
        %v3360 = vpack.c.b16 %v3346, %v3345
        %v3361 = vpack.c.b16 %v3348, %v3347
        %v3362 = vpack.c.b16 %v3350, %v3349
        %v3363 = vpack.c.b16 %v3352, %v3351
        %v3364 = vpack.c.b16 %v3354, %v3353
        %v3365 = vpack.c.b16 %v3356, %v3355
        %v3366 = vpack.c.b16 %v3358, %v3357
        %v3391 = vunpack.c.l.b16 %v3311
        %v3392 = vunpack.c.l.b16 %v3312
        %v3393 = vunpack.c.l.b16 %v3313
        %v3394 = vunpack.c.l.b16 %v3314
        %v3395 = vunpack.c.l.b16 %v3315
        %v3396 = vunpack.c.l.b16 %v3316
        %v3397 = vunpack.c.l.b16 %v3317
        %v3398 = vunpack.c.l.b16 %v3318
        %v3399 = vunpack.c.l.b16 %v3319
        %v3400 = vunpack.c.l.b16 %v3320
        %v3401 = vunpack.c.l.b16 %v3321
        %v3402 = vunpack.c.l.b16 %v3322
        %v3403 = vunpack.c.l.b16 %v3323
        %v3404 = vunpack.c.l.b16 %v3324
        %v3405 = vunpack.c.l.b16 %v3325
        %v3406 = vunpack.c.l.b16 %v3326
        %v3407 = vpack.c.b16 %v3392, %v3391
        %v3408 = vpack.c.b16 %v3394, %v3393
        %v3409 = vpack.c.b16 %v3396, %v3395
        %v3410 = vpack.c.b16 %v3398, %v3397
        %v3411 = vpack.c.b16 %v3400, %v3399
        %v3412 = vpack.c.b16 %v3402, %v3401
        %v3413 = vpack.c.b16 %v3404, %v3403
        %v3414 = vpack.c.b16 %v3406, %v3405
        %3423 = vmatprep.subr.bf16.mxu0 0
        %3424 = vmatpush1.bf16.msra.mxu0 %v3414
        %3425 = vmatprep.subr.bf16.mxu0 0
        %3426 = vmatpush1.bf16.msra.mxu0 %v3413
        %3427 = vmatprep.subr.bf16.mxu0 0
        %3428 = vmatpush1.bf16.msra.mxu0 %v3412
        %3429 = vmatprep.subr.bf16.mxu0 0
        %3430 = vmatpush1.bf16.msra.mxu0 %v3411
        %3431 = vmatprep.subr.bf16.mxu0 0
        %3432 = vmatpush1.bf16.msra.mxu0 %v3410
        %3433 = vmatprep.subr.bf16.mxu0 0
        %3434 = vmatpush1.bf16.msra.mxu0 %v3409
        %3435 = vmatprep.subr.bf16.mxu0 0
        %3436 = vmatpush1.bf16.msra.mxu0 %v3408
        %3437 = vmatprep.subr.bf16.mxu0 0
        %3438 = vmatpush1.bf16.msra.mxu0 %v3407
        %3439 = vmatprep.subr.bf16.mxu0 0
        %3440 = vmatpush2.bf16.msra.mxu0 0
        %3441 = vmatprep.subr.bf16.mxu0 0
        %3442 = vmatpush2.bf16.msra.mxu0 0
        %3443 = vmatprep.subr.bf16.mxu0 0
        %3444 = vmatpush2.bf16.msra.mxu0 0
        %3445 = vmatprep.subr.bf16.mxu0 0
        %3446 = vmatpush2.bf16.msra.mxu0 0
        %3447 = vmatprep.subr.bf16.mxu0 0
        %3448 = vmatpush2.bf16.msra.mxu0 0
        %3449 = vmatprep.subr.bf16.mxu0 0
        %3450 = vmatpush2.bf16.msra.mxu0 0
        %3451 = vmatprep.subr.bf16.mxu0 0
        %3452 = vmatpush2.bf16.msra.mxu0 0
        %3453 = vmatprep.subr.bf16.mxu0 0
        %3454 = vmatpush2.bf16.msra.mxu0 0
        %3455 = vmatprep.mubr.bf16.mxu0 0
        %3456 = vmatmul.mubr.bf16.gmra.mxu0 %v3359
        %v3457 = vpop.f32.mrf.mxu0
        %v3458 = vadd.f32 0.0, %v3457
        %v3459 = vpop.f32.mrf.mxu0
        %v3460 = vpop.f32.mrf.mxu0
        %v3461 = vadd.f32 0.0, %v3460
        %v3462 = vpop.f32.mrf.mxu0
        %3463 = vmatprep.mubr.bf16.mxu0 0
        %3464 = vmatmul.mubr.bf16.gmra.mxu0 %v3360
        %v3465 = vpop.f32.mrf.mxu0
        %v3466 = vadd.f32 0.0, %v3465
        %v3467 = vpop.f32.mrf.mxu0
        %v3468 = vpop.f32.mrf.mxu0
        %v3469 = vadd.f32 0.0, %v3468
        %v3470 = vpop.f32.mrf.mxu0
        %3471 = vmatprep.mubr.bf16.mxu0 0
        %3472 = vmatmul.mubr.bf16.gmra.mxu0 %v3361
        %v3473 = vpop.f32.mrf.mxu0
        %v3474 = vadd.f32 0.0, %v3473
        %v3475 = vpop.f32.mrf.mxu0
        %v3476 = vpop.f32.mrf.mxu0
        %v3477 = vadd.f32 0.0, %v3476
        %v3478 = vpop.f32.mrf.mxu0
        %3479 = vmatprep.mubr.bf16.mxu0 0
        %3480 = vmatmul.mubr.bf16.gmra.mxu0 %v3362
        %v3481 = vpop.f32.mrf.mxu0
        %v3482 = vadd.f32 0.0, %v3481
        %v3483 = vpop.f32.mrf.mxu0
        %v3484 = vpop.f32.mrf.mxu0
        %v3485 = vadd.f32 0.0, %v3484
        %v3486 = vpop.f32.mrf.mxu0
        %3487 = vmatprep.mubr.bf16.mxu0 0
        %3488 = vmatmul.mubr.bf16.gmra.mxu0 %v3363
        %v3489 = vpop.f32.mrf.mxu0
        %v3490 = vadd.f32 0.0, %v3489
        %v3491 = vpop.f32.mrf.mxu0
        %v3492 = vpop.f32.mrf.mxu0
        %v3493 = vadd.f32 0.0, %v3492
        %v3494 = vpop.f32.mrf.mxu0
        %3495 = vmatprep.mubr.bf16.mxu0 0
        %3496 = vmatmul.mubr.bf16.gmra.mxu0 %v3364
        %v3497 = vpop.f32.mrf.mxu0
        %v3498 = vadd.f32 0.0, %v3497
        %v3499 = vpop.f32.mrf.mxu0
        %v3500 = vpop.f32.mrf.mxu0
        %v3501 = vadd.f32 0.0, %v3500
        %v3502 = vpop.f32.mrf.mxu0
        %3503 = vmatprep.mubr.bf16.mxu0 0
        %3504 = vmatmul.mubr.bf16.gmra.mxu0 %v3365
        %v3505 = vpop.f32.mrf.mxu0
        %v3506 = vadd.f32 0.0, %v3505
        %v3507 = vpop.f32.mrf.mxu0
        %v3508 = vpop.f32.mrf.mxu0
        %v3509 = vadd.f32 0.0, %v3508
        %v3510 = vpop.f32.mrf.mxu0
        %3511 = vmatprep.mubr.bf16.mxu0 0
        %3512 = vmatmul.mubr.bf16.gmra.mxu0 %v3366
        %v3513 = vpop.f32.mrf.mxu0
        %v3514 = vadd.f32 0.0, %v3513
        %v3515 = vpop.f32.mrf.mxu0
        %v3516 = vpop.f32.mrf.mxu0
        %v3517 = vadd.f32 0.0, %v3516
        %v3518 = vpop.f32.mrf.mxu0
        %3519 = vdwg.mxu0
        %v3520 = vrot.slane %v3458, 7
        %v3521 = vrot.slane %v3461, 7
        %v3522 = vrot.slane %v3466, 7
        %v3523 = vrot.slane %v3469, 7
        %v3524 = vrot.slane %v3474, 7
        %v3525 = vrot.slane %v3477, 7
        %v3526 = vrot.slane %v3482, 7
        %v3527 = vrot.slane %v3485, 7
        %v3528 = vrot.slane %v3490, 7
        %v3529 = vrot.slane %v3493, 7
        %v3530 = vrot.slane %v3498, 7
        %v3531 = vrot.slane %v3501, 7
        %v3532 = vrot.slane %v3506, 7
        %v3533 = vrot.slane %v3509, 7
        %v3534 = vrot.slane %v3514, 7
        %v3535 = vrot.slane %v3517, 7
        %v3536 = vsel %vm649, %v3534, %v3535
        %v3537 = vsel %vm649, %v3533, %v3534
        %v3538 = vsel %vm649, %v3532, %v3533
        %v3539 = vsel %vm649, %v3531, %v3532
        %v3540 = vsel %vm649, %v3530, %v3531
        %v3541 = vsel %vm649, %v3529, %v3530
        %v3542 = vsel %vm649, %v3528, %v3529
        %v3543 = vsel %vm649, %v3527, %v3528
        %v3544 = vsel %vm649, %v3526, %v3527
        %v3545 = vsel %vm649, %v3525, %v3526
        %v3546 = vsel %vm649, %v3524, %v3525
        %v3547 = vsel %vm649, %v3523, %v3524
        %v3548 = vsel %vm649, %v3522, %v3523
        %v3549 = vsel %vm649, %v3521, %v3522
        %v3550 = vsel %vm649, %v3520, %v3521
        %v3551 = vsel %vm649, %v3535, %v3520
        %v3552 = vsel %vm397, 0.0, %v3551
        %v3553 = vsel %vm398, 0.0, %v3550
        %v3554 = vsel %vm397, 0.0, %v3549
        %v3555 = vsel %vm398, 0.0, %v3548
        %v3556 = vsel %vm397, 0.0, %v3547
        %v3557 = vsel %vm398, 0.0, %v3546
        %v3558 = vsel %vm397, 0.0, %v3545
        %v3559 = vsel %vm398, 0.0, %v3544
        %v3560 = vsel %vm397, 0.0, %v3543
        %v3561 = vsel %vm398, 0.0, %v3542
        %v3562 = vsel %vm397, 0.0, %v3541
        %v3563 = vsel %vm398, 0.0, %v3540
        %v3564 = vsel %vm397, 0.0, %v3539
        %v3565 = vsel %vm398, 0.0, %v3538
        %v3566 = vsel %vm397, 0.0, %v3537
        %v3567 = vsel %vm398, 0.0, %v3536
        %v3568 = vadd.f32 %v3278, %v3552
        %v3569 = vadd.f32 %v3279, %v3553
        %v3570 = vadd.f32 %v3280, %v3554
        %v3571 = vadd.f32 %v3281, %v3555
        %v3572 = vadd.f32 %v3282, %v3556
        %v3573 = vadd.f32 %v3283, %v3557
        %v3574 = vadd.f32 %v3284, %v3558
        %v3575 = vadd.f32 %v3285, %v3559
        %v3576 = vadd.f32 %v3286, %v3560
        %v3577 = vadd.f32 %v3287, %v3561
        %v3578 = vadd.f32 %v3288, %v3562
        %v3579 = vadd.f32 %v3289, %v3563
        %v3580 = vadd.f32 %v3290, %v3564
        %v3581 = vadd.f32 %v3291, %v3565
        %v3582 = vadd.f32 %v3292, %v3566
        %v3583 = vadd.f32 %v3293, %v3567
        %v3584 = vld [vmem:[%s1378] sm:$0xf]
        %v3585 = vld [vmem:[%s1378 + $0x4] sm:$0xf]
        %v3586 = vld [vmem:[%s1378 + $0x8] sm:$0xf]
        %v3587 = vld [vmem:[%s1378 + $0xc] sm:$0xf]
        %v3588 = vld [vmem:[%s1378 + $0x10] sm:$0xf]
        %v3589 = vld [vmem:[%s1378 + $0x14] sm:$0xf]
        %v3590 = vld [vmem:[%s1378 + $0x18] sm:$0xf]
        %v3591 = vld [vmem:[%s1378 + $0x1c] sm:$0xf]
        %v3592 = vld [vmem:[%s1378 + $0x20] sm:$0xf]
        %v3593 = vld [vmem:[%s1378 + $0x24] sm:$0xf]
        %v3594 = vld [vmem:[%s1378 + $0x28] sm:$0xf]
        %v3595 = vld [vmem:[%s1378 + $0x2c] sm:$0xf]
        %v3596 = vld [vmem:[%s1378 + $0x30] sm:$0xf]
        %v3597 = vld [vmem:[%s1378 + $0x34] sm:$0xf]
        %v3598 = vld [vmem:[%s1378 + $0x38] sm:$0xf]
        %v3599 = vld [vmem:[%s1378 + $0x3c] sm:$0xf]
        %v3616 = vunpack.c.l.b16 %v3584
        %v3617 = vunpack.c.l.b16 %v3585
        %v3618 = vunpack.c.l.b16 %v3586
        %v3619 = vunpack.c.l.b16 %v3587
        %v3620 = vunpack.c.l.b16 %v3588
        %v3621 = vunpack.c.l.b16 %v3589
        %v3622 = vunpack.c.l.b16 %v3590
        %v3623 = vunpack.c.l.b16 %v3591
        %v3624 = vunpack.c.l.b16 %v3592
        %v3625 = vunpack.c.l.b16 %v3593
        %v3626 = vunpack.c.l.b16 %v3594
        %v3627 = vunpack.c.l.b16 %v3595
        %v3628 = vunpack.c.l.b16 %v3596
        %v3629 = vunpack.c.l.b16 %v3597
        %v3630 = vunpack.c.l.b16 %v3598
        %v3631 = vunpack.c.l.b16 %v3599
        %v3632 = vpack.c.b16 %v3617, %v3616
        %v3633 = vpack.c.b16 %v3619, %v3618
        %v3634 = vpack.c.b16 %v3621, %v3620
        %v3635 = vpack.c.b16 %v3623, %v3622
        %v3636 = vpack.c.b16 %v3625, %v3624
        %v3637 = vpack.c.b16 %v3627, %v3626
        %v3638 = vpack.c.b16 %v3629, %v3628
        %v3639 = vpack.c.b16 %v3631, %v3630
        %3648 = vmatprep.subr.bf16.mxu0 0
        %3649 = vmatpush1.bf16.msra.mxu0 %v3639
        %3650 = vmatprep.subr.bf16.mxu0 0
        %3651 = vmatpush1.bf16.msra.mxu0 %v3638
        %3652 = vmatprep.subr.bf16.mxu0 0
        %3653 = vmatpush1.bf16.msra.mxu0 %v3637
        %3654 = vmatprep.subr.bf16.mxu0 0
        %3655 = vmatpush1.bf16.msra.mxu0 %v3636
        %3656 = vmatprep.subr.bf16.mxu0 0
        %3657 = vmatpush1.bf16.msra.mxu0 %v3635
        %3658 = vmatprep.subr.bf16.mxu0 0
        %3659 = vmatpush1.bf16.msra.mxu0 %v3634
        %3660 = vmatprep.subr.bf16.mxu0 0
        %3661 = vmatpush1.bf16.msra.mxu0 %v3633
        %3662 = vmatprep.subr.bf16.mxu0 0
        %3663 = vmatpush1.bf16.msra.mxu0 %v3632
        %3664 = vmatprep.subr.bf16.mxu0 0
        %3665 = vmatpush2.bf16.msra.mxu0 0
        %3666 = vmatprep.subr.bf16.mxu0 0
        %3667 = vmatpush2.bf16.msra.mxu0 0
        %3668 = vmatprep.subr.bf16.mxu0 0
        %3669 = vmatpush2.bf16.msra.mxu0 0
        %3670 = vmatprep.subr.bf16.mxu0 0
        %3671 = vmatpush2.bf16.msra.mxu0 0
        %3672 = vmatprep.subr.bf16.mxu0 0
        %3673 = vmatpush2.bf16.msra.mxu0 0
        %3674 = vmatprep.subr.bf16.mxu0 0
        %3675 = vmatpush2.bf16.msra.mxu0 0
        %3676 = vmatprep.subr.bf16.mxu0 0
        %3677 = vmatpush2.bf16.msra.mxu0 0
        %3678 = vmatprep.subr.bf16.mxu0 0
        %3679 = vmatpush2.bf16.msra.mxu0 0
        %3680 = vmatprep.mubr.bf16.mxu0 0
        %3681 = vmatmul.mubr.bf16.gmra.mxu0 %v3359
        %v3682 = vpop.f32.mrf.mxu0
        %v3683 = vadd.f32 0.0, %v3682
        %v3684 = vpop.f32.mrf.mxu0
        %v3685 = vpop.f32.mrf.mxu0
        %v3686 = vadd.f32 0.0, %v3685
        %v3687 = vpop.f32.mrf.mxu0
        %3688 = vmatprep.mubr.bf16.mxu0 0
        %3689 = vmatmul.mubr.bf16.gmra.mxu0 %v3360
        %v3690 = vpop.f32.mrf.mxu0
        %v3691 = vadd.f32 0.0, %v3690
        %v3692 = vpop.f32.mrf.mxu0
        %v3693 = vpop.f32.mrf.mxu0
        %v3694 = vadd.f32 0.0, %v3693
        %v3695 = vpop.f32.mrf.mxu0
        %3696 = vmatprep.mubr.bf16.mxu0 0
        %3697 = vmatmul.mubr.bf16.gmra.mxu0 %v3361
        %v3698 = vpop.f32.mrf.mxu0
        %v3699 = vadd.f32 0.0, %v3698
        %v3700 = vpop.f32.mrf.mxu0
        %v3701 = vpop.f32.mrf.mxu0
        %v3702 = vadd.f32 0.0, %v3701
        %v3703 = vpop.f32.mrf.mxu0
        %3704 = vmatprep.mubr.bf16.mxu0 0
        %3705 = vmatmul.mubr.bf16.gmra.mxu0 %v3362
        %v3706 = vpop.f32.mrf.mxu0
        %v3707 = vadd.f32 0.0, %v3706
        %v3708 = vpop.f32.mrf.mxu0
        %v3709 = vpop.f32.mrf.mxu0
        %v3710 = vadd.f32 0.0, %v3709
        %v3711 = vpop.f32.mrf.mxu0
        %3712 = vmatprep.mubr.bf16.mxu0 0
        %3713 = vmatmul.mubr.bf16.gmra.mxu0 %v3363
        %v3714 = vpop.f32.mrf.mxu0
        %v3715 = vadd.f32 0.0, %v3714
        %v3716 = vpop.f32.mrf.mxu0
        %v3717 = vpop.f32.mrf.mxu0
        %v3718 = vadd.f32 0.0, %v3717
        %v3719 = vpop.f32.mrf.mxu0
        %3720 = vmatprep.mubr.bf16.mxu0 0
        %3721 = vmatmul.mubr.bf16.gmra.mxu0 %v3364
        %v3722 = vpop.f32.mrf.mxu0
        %v3723 = vadd.f32 0.0, %v3722
        %v3724 = vpop.f32.mrf.mxu0
        %v3725 = vpop.f32.mrf.mxu0
        %v3726 = vadd.f32 0.0, %v3725
        %v3727 = vpop.f32.mrf.mxu0
        %3728 = vmatprep.mubr.bf16.mxu0 0
        %3729 = vmatmul.mubr.bf16.gmra.mxu0 %v3365
        %v3730 = vpop.f32.mrf.mxu0
        %v3731 = vadd.f32 0.0, %v3730
        %v3732 = vpop.f32.mrf.mxu0
        %v3733 = vpop.f32.mrf.mxu0
        %v3734 = vadd.f32 0.0, %v3733
        %v3735 = vpop.f32.mrf.mxu0
        %3736 = vmatprep.mubr.bf16.mxu0 0
        %3737 = vmatmul.mubr.bf16.gmra.mxu0 %v3366
        %v3738 = vpop.f32.mrf.mxu0
        %v3739 = vadd.f32 0.0, %v3738
        %v3740 = vpop.f32.mrf.mxu0
        %v3741 = vpop.f32.mrf.mxu0
        %v3742 = vadd.f32 0.0, %v3741
        %v3743 = vpop.f32.mrf.mxu0
        %3744 = vdwg.mxu0
        %v3745 = vadd.f32 %v3568, %v3683
        %v3746 = vadd.f32 %v3569, %v3686
        %v3747 = vadd.f32 %v3570, %v3691
        %v3748 = vadd.f32 %v3571, %v3694
        %v3749 = vadd.f32 %v3572, %v3699
        %v3750 = vadd.f32 %v3573, %v3702
        %v3751 = vadd.f32 %v3574, %v3707
        %v3752 = vadd.f32 %v3575, %v3710
        %v3753 = vadd.f32 %v3576, %v3715
        %v3754 = vadd.f32 %v3577, %v3718
        %v3755 = vadd.f32 %v3578, %v3723
        %v3756 = vadd.f32 %v3579, %v3726
        %v3757 = vadd.f32 %v3580, %v3731
        %v3758 = vadd.f32 %v3581, %v3734
        %v3759 = vadd.f32 %v3582, %v3739
        %v3760 = vadd.f32 %v3583, %v3742
        %v3761 = vld [vmem:[%s1556] sm:$0xf]
        %v3762 = vld [vmem:[%s1556 + $0x4] sm:$0xf]
        %v3763 = vld [vmem:[%s1556 + $0x8] sm:$0xf]
        %v3764 = vld [vmem:[%s1556 + $0xc] sm:$0xf]
        %v3765 = vld [vmem:[%s1556 + $0x10] sm:$0xf]
        %v3766 = vld [vmem:[%s1556 + $0x14] sm:$0xf]
        %v3767 = vld [vmem:[%s1556 + $0x18] sm:$0xf]
        %v3768 = vld [vmem:[%s1556 + $0x1c] sm:$0xf]
        %v3769 = vld [vmem:[%s1556 + $0x20] sm:$0xf]
        %v3770 = vld [vmem:[%s1556 + $0x24] sm:$0xf]
        %v3771 = vld [vmem:[%s1556 + $0x28] sm:$0xf]
        %v3772 = vld [vmem:[%s1556 + $0x2c] sm:$0xf]
        %v3773 = vld [vmem:[%s1556 + $0x30] sm:$0xf]
        %v3774 = vld [vmem:[%s1556 + $0x34] sm:$0xf]
        %v3775 = vld [vmem:[%s1556 + $0x38] sm:$0xf]
        %v3776 = vld [vmem:[%s1556 + $0x3c] sm:$0xf]
        %v3793 = vunpack.c.l.b16 %v3761
        %v3794 = vunpack.c.l.b16 %v3762
        %v3795 = vunpack.c.l.b16 %v3763
        %v3796 = vunpack.c.l.b16 %v3764
        %v3797 = vunpack.c.l.b16 %v3765
        %v3798 = vunpack.c.l.b16 %v3766
        %v3799 = vunpack.c.l.b16 %v3767
        %v3800 = vunpack.c.l.b16 %v3768
        %v3801 = vunpack.c.l.b16 %v3769
        %v3802 = vunpack.c.l.b16 %v3770
        %v3803 = vunpack.c.l.b16 %v3771
        %v3804 = vunpack.c.l.b16 %v3772
        %v3805 = vunpack.c.l.b16 %v3773
        %v3806 = vunpack.c.l.b16 %v3774
        %v3807 = vunpack.c.l.b16 %v3775
        %v3808 = vunpack.c.l.b16 %v3776
        %v3809 = vpack.c.b16 %v3794, %v3793
        %v3810 = vpack.c.b16 %v3796, %v3795
        %v3811 = vpack.c.b16 %v3798, %v3797
        %v3812 = vpack.c.b16 %v3800, %v3799
        %v3813 = vpack.c.b16 %v3802, %v3801
        %v3814 = vpack.c.b16 %v3804, %v3803
        %v3815 = vpack.c.b16 %v3806, %v3805
        %v3816 = vpack.c.b16 %v3808, %v3807
        %3825 = vmatprep.subr.bf16.mxu0 0
        %3826 = vmatpush1.bf16.msra.mxu0 %v3816
        %3827 = vmatprep.subr.bf16.mxu0 0
        %3828 = vmatpush1.bf16.msra.mxu0 %v3815
        %3829 = vmatprep.subr.bf16.mxu0 0
        %3830 = vmatpush1.bf16.msra.mxu0 %v3814
        %3831 = vmatprep.subr.bf16.mxu0 0
        %3832 = vmatpush1.bf16.msra.mxu0 %v3813
        %3833 = vmatprep.subr.bf16.mxu0 0
        %3834 = vmatpush1.bf16.msra.mxu0 %v3812
        %3835 = vmatprep.subr.bf16.mxu0 0
        %3836 = vmatpush1.bf16.msra.mxu0 %v3811
        %3837 = vmatprep.subr.bf16.mxu0 0
        %3838 = vmatpush1.bf16.msra.mxu0 %v3810
        %3839 = vmatprep.subr.bf16.mxu0 0
        %3840 = vmatpush1.bf16.msra.mxu0 %v3809
        %3841 = vmatprep.subr.bf16.mxu0 0
        %3842 = vmatpush2.bf16.msra.mxu0 0
        %3843 = vmatprep.subr.bf16.mxu0 0
        %3844 = vmatpush2.bf16.msra.mxu0 0
        %3845 = vmatprep.subr.bf16.mxu0 0
        %3846 = vmatpush2.bf16.msra.mxu0 0
        %3847 = vmatprep.subr.bf16.mxu0 0
        %3848 = vmatpush2.bf16.msra.mxu0 0
        %3849 = vmatprep.subr.bf16.mxu0 0
        %3850 = vmatpush2.bf16.msra.mxu0 0
        %3851 = vmatprep.subr.bf16.mxu0 0
        %3852 = vmatpush2.bf16.msra.mxu0 0
        %3853 = vmatprep.subr.bf16.mxu0 0
        %3854 = vmatpush2.bf16.msra.mxu0 0
        %3855 = vmatprep.subr.bf16.mxu0 0
        %3856 = vmatpush2.bf16.msra.mxu0 0
        %3857 = vmatprep.mubr.bf16.mxu0 0
        %3858 = vmatmul.mubr.bf16.gmra.mxu0 %v3359
        %v3859 = vpop.f32.mrf.mxu0
        %v3860 = vadd.f32 0.0, %v3859
        %v3861 = vpop.f32.mrf.mxu0
        %v3862 = vpop.f32.mrf.mxu0
        %v3863 = vadd.f32 0.0, %v3862
        %v3864 = vpop.f32.mrf.mxu0
        %3865 = vmatprep.mubr.bf16.mxu0 0
        %3866 = vmatmul.mubr.bf16.gmra.mxu0 %v3360
        %v3867 = vpop.f32.mrf.mxu0
        %v3868 = vadd.f32 0.0, %v3867
        %v3869 = vpop.f32.mrf.mxu0
        %v3870 = vpop.f32.mrf.mxu0
        %v3871 = vadd.f32 0.0, %v3870
        %v3872 = vpop.f32.mrf.mxu0
        %3873 = vmatprep.mubr.bf16.mxu0 0
        %3874 = vmatmul.mubr.bf16.gmra.mxu0 %v3361
        %v3875 = vpop.f32.mrf.mxu0
        %v3876 = vadd.f32 0.0, %v3875
        %v3877 = vpop.f32.mrf.mxu0
        %v3878 = vpop.f32.mrf.mxu0
        %v3879 = vadd.f32 0.0, %v3878
        %v3880 = vpop.f32.mrf.mxu0
        %3881 = vmatprep.mubr.bf16.mxu0 0
        %3882 = vmatmul.mubr.bf16.gmra.mxu0 %v3362
        %v3883 = vpop.f32.mrf.mxu0
        %v3884 = vadd.f32 0.0, %v3883
        %v3885 = vpop.f32.mrf.mxu0
        %v3886 = vpop.f32.mrf.mxu0
        %v3887 = vadd.f32 0.0, %v3886
        %v3888 = vpop.f32.mrf.mxu0
        %3889 = vmatprep.mubr.bf16.mxu0 0
        %3890 = vmatmul.mubr.bf16.gmra.mxu0 %v3363
        %v3891 = vpop.f32.mrf.mxu0
        %v3892 = vadd.f32 0.0, %v3891
        %v3893 = vpop.f32.mrf.mxu0
        %v3894 = vpop.f32.mrf.mxu0
        %v3895 = vadd.f32 0.0, %v3894
        %v3896 = vpop.f32.mrf.mxu0
        %3897 = vmatprep.mubr.bf16.mxu0 0
        %3898 = vmatmul.mubr.bf16.gmra.mxu0 %v3364
        %v3899 = vpop.f32.mrf.mxu0
        %v3900 = vadd.f32 0.0, %v3899
        %v3901 = vpop.f32.mrf.mxu0
        %v3902 = vpop.f32.mrf.mxu0
        %v3903 = vadd.f32 0.0, %v3902
        %v3904 = vpop.f32.mrf.mxu0
        %3905 = vmatprep.mubr.bf16.mxu0 0
        %3906 = vmatmul.mubr.bf16.gmra.mxu0 %v3365
        %v3907 = vpop.f32.mrf.mxu0
        %v3908 = vadd.f32 0.0, %v3907
        %v3909 = vpop.f32.mrf.mxu0
        %v3910 = vpop.f32.mrf.mxu0
        %v3911 = vadd.f32 0.0, %v3910
        %v3912 = vpop.f32.mrf.mxu0
        %3913 = vmatprep.mubr.bf16.mxu0 0
        %3914 = vmatmul.mubr.bf16.gmra.mxu0 %v3366
        %v3915 = vpop.f32.mrf.mxu0
        %v3916 = vadd.f32 0.0, %v3915
        %v3917 = vpop.f32.mrf.mxu0
        %v3918 = vpop.f32.mrf.mxu0
        %v3919 = vadd.f32 0.0, %v3918
        %v3920 = vpop.f32.mrf.mxu0
        %3921 = vdwg.mxu0
        %v3922 = vrot.slane %v3860, 1
        %v3923 = vrot.slane %v3863, 1
        %v3924 = vrot.slane %v3868, 1
        %v3925 = vrot.slane %v3871, 1
        %v3926 = vrot.slane %v3876, 1
        %v3927 = vrot.slane %v3879, 1
        %v3928 = vrot.slane %v3884, 1
        %v3929 = vrot.slane %v3887, 1
        %v3930 = vrot.slane %v3892, 1
        %v3931 = vrot.slane %v3895, 1
        %v3932 = vrot.slane %v3900, 1
        %v3933 = vrot.slane %v3903, 1
        %v3934 = vrot.slane %v3908, 1
        %v3935 = vrot.slane %v3911, 1
        %v3936 = vrot.slane %v3916, 1
        %v3937 = vrot.slane %v3919, 1
        %v3938 = vsel %vm1038, %v3936, %v3937
        %v3939 = vsel %vm1038, %v3935, %v3936
        %v3940 = vsel %vm1038, %v3934, %v3935
        %v3941 = vsel %vm1038, %v3933, %v3934
        %v3942 = vsel %vm1038, %v3932, %v3933
        %v3943 = vsel %vm1038, %v3931, %v3932
        %v3944 = vsel %vm1038, %v3930, %v3931
        %v3945 = vsel %vm1038, %v3929, %v3930
        %v3946 = vsel %vm1038, %v3928, %v3929
        %v3947 = vsel %vm1038, %v3927, %v3928
        %v3948 = vsel %vm1038, %v3926, %v3927
        %v3949 = vsel %vm1038, %v3925, %v3926
        %v3950 = vsel %vm1038, %v3924, %v3925
        %v3951 = vsel %vm1038, %v3923, %v3924
        %v3952 = vsel %vm1038, %v3922, %v3923
        %v3953 = vsel %vm1038, %v3937, %v3922
        %v3954 = vsel %vm399, 0.0, %v3952
        %v3955 = vsel %vm400, 0.0, %v3951
        %v3956 = vsel %vm399, 0.0, %v3950
        %v3957 = vsel %vm400, 0.0, %v3949
        %v3958 = vsel %vm399, 0.0, %v3948
        %v3959 = vsel %vm400, 0.0, %v3947
        %v3960 = vsel %vm399, 0.0, %v3946
        %v3961 = vsel %vm400, 0.0, %v3945
        %v3962 = vsel %vm399, 0.0, %v3944
        %v3963 = vsel %vm400, 0.0, %v3943
        %v3964 = vsel %vm399, 0.0, %v3942
        %v3965 = vsel %vm400, 0.0, %v3941
        %v3966 = vsel %vm399, 0.0, %v3940
        %v3967 = vsel %vm400, 0.0, %v3939
        %v3968 = vsel %vm399, 0.0, %v3938
        %v3969 = vsel %vm400, 0.0, %v3953
        %v3970 = vadd.f32 %v3745, %v3954
        %v3971 = vadd.f32 %v3746, %v3955
        %v3972 = vadd.f32 %v3747, %v3956
        %v3973 = vadd.f32 %v3748, %v3957
        %v3974 = vadd.f32 %v3749, %v3958
        %v3975 = vadd.f32 %v3750, %v3959
        %v3976 = vadd.f32 %v3751, %v3960
        %v3977 = vadd.f32 %v3752, %v3961
        %v3978 = vadd.f32 %v3753, %v3962
        %v3979 = vadd.f32 %v3754, %v3963
        %v3980 = vadd.f32 %v3755, %v3964
        %v3981 = vadd.f32 %v3756, %v3965
        %v3982 = vadd.f32 %v3757, %v3966
        %v3983 = vadd.f32 %v3758, %v3967
        %v3984 = vadd.f32 %v3759, %v3968
        %v3985 = vadd.f32 %v3760, %v3969
        %s3986 = scalar_lea.vmem %s338, 80 [#allocation3]
        %v3987 = vld [vmem:[%s3986] sm:$0xf]
        %v3988 = vld [vmem:[%s3986 + $0x4] sm:$0xf]
        %v3989 = vld [vmem:[%s3986 + $0x8] sm:$0xf]
        %v3990 = vld [vmem:[%s3986 + $0xc] sm:$0xf]
        %v3991 = vld [vmem:[%s3986 + $0x10] sm:$0xf]
        %v3992 = vld [vmem:[%s3986 + $0x14] sm:$0xf]
        %v3993 = vld [vmem:[%s3986 + $0x18] sm:$0xf]
        %v3994 = vld [vmem:[%s3986 + $0x1c] sm:$0xf]
        %v3995 = vld [vmem:[%s3986 + $0x20] sm:$0xf]
        %v3996 = vld [vmem:[%s3986 + $0x24] sm:$0xf]
        %v3997 = vld [vmem:[%s3986 + $0x28] sm:$0xf]
        %v3998 = vld [vmem:[%s3986 + $0x2c] sm:$0xf]
        %v3999 = vld [vmem:[%s3986 + $0x30] sm:$0xf]
        %v4000 = vld [vmem:[%s3986 + $0x34] sm:$0xf]
        %v4001 = vld [vmem:[%s3986 + $0x38] sm:$0xf]
        %v4002 = vld [vmem:[%s3986 + $0x3c] sm:$0xf]
        %v4003 = vld [vmem:[%s1799] sm:$0xf]
        %v4004 = vld [vmem:[%s1799 + $0x4] sm:$0xf]
        %v4005 = vld [vmem:[%s1799 + $0x8] sm:$0xf]
        %v4006 = vld [vmem:[%s1799 + $0xc] sm:$0xf]
        %v4007 = vld [vmem:[%s1799 + $0x10] sm:$0xf]
        %v4008 = vld [vmem:[%s1799 + $0x14] sm:$0xf]
        %v4009 = vld [vmem:[%s1799 + $0x18] sm:$0xf]
        %v4010 = vld [vmem:[%s1799 + $0x1c] sm:$0xf]
        %v4011 = vld [vmem:[%s1799 + $0x20] sm:$0xf]
        %v4012 = vld [vmem:[%s1799 + $0x24] sm:$0xf]
        %v4013 = vld [vmem:[%s1799 + $0x28] sm:$0xf]
        %v4014 = vld [vmem:[%s1799 + $0x2c] sm:$0xf]
        %v4015 = vld [vmem:[%s1799 + $0x30] sm:$0xf]
        %v4016 = vld [vmem:[%s1799 + $0x34] sm:$0xf]
        %v4017 = vld [vmem:[%s1799 + $0x38] sm:$0xf]
        %v4018 = vld [vmem:[%s1799 + $0x3c] sm:$0xf]
        %v4035 = vunpack.c.l.b16 %v3987
        %v4036 = vunpack.c.l.b16 %v3988
        %v4037 = vunpack.c.l.b16 %v3989
        %v4038 = vunpack.c.l.b16 %v3990
        %v4039 = vunpack.c.l.b16 %v3991
        %v4040 = vunpack.c.l.b16 %v3992
        %v4041 = vunpack.c.l.b16 %v3993
        %v4042 = vunpack.c.l.b16 %v3994
        %v4043 = vunpack.c.l.b16 %v3995
        %v4044 = vunpack.c.l.b16 %v3996
        %v4045 = vunpack.c.l.b16 %v3997
        %v4046 = vunpack.c.l.b16 %v3998
        %v4047 = vunpack.c.l.b16 %v3999
        %v4048 = vunpack.c.l.b16 %v4000
        %v4049 = vunpack.c.l.b16 %v4001
        %v4050 = vunpack.c.l.b16 %v4002
        %v4051 = vpack.c.b16 %v4036, %v4035
        %v4052 = vpack.c.b16 %v4038, %v4037
        %v4053 = vpack.c.b16 %v4040, %v4039
        %v4054 = vpack.c.b16 %v4042, %v4041
        %v4055 = vpack.c.b16 %v4044, %v4043
        %v4056 = vpack.c.b16 %v4046, %v4045
        %v4057 = vpack.c.b16 %v4048, %v4047
        %v4058 = vpack.c.b16 %v4050, %v4049
        %v4083 = vunpack.c.l.b16 %v4003
        %v4084 = vunpack.c.l.b16 %v4004
        %v4085 = vunpack.c.l.b16 %v4005
        %v4086 = vunpack.c.l.b16 %v4006
        %v4087 = vunpack.c.l.b16 %v4007
        %v4088 = vunpack.c.l.b16 %v4008
        %v4089 = vunpack.c.l.b16 %v4009
        %v4090 = vunpack.c.l.b16 %v4010
        %v4091 = vunpack.c.l.b16 %v4011
        %v4092 = vunpack.c.l.b16 %v4012
        %v4093 = vunpack.c.l.b16 %v4013
        %v4094 = vunpack.c.l.b16 %v4014
        %v4095 = vunpack.c.l.b16 %v4015
        %v4096 = vunpack.c.l.b16 %v4016
        %v4097 = vunpack.c.l.b16 %v4017
        %v4098 = vunpack.c.l.b16 %v4018
        %v4099 = vpack.c.b16 %v4084, %v4083
        %v4100 = vpack.c.b16 %v4086, %v4085
        %v4101 = vpack.c.b16 %v4088, %v4087
        %v4102 = vpack.c.b16 %v4090, %v4089
        %v4103 = vpack.c.b16 %v4092, %v4091
        %v4104 = vpack.c.b16 %v4094, %v4093
        %v4105 = vpack.c.b16 %v4096, %v4095
        %v4106 = vpack.c.b16 %v4098, %v4097
        %4115 = vmatprep.subr.bf16.mxu0 0
        %4116 = vmatpush1.bf16.msra.mxu0 %v4106
        %4117 = vmatprep.subr.bf16.mxu0 0
        %4118 = vmatpush1.bf16.msra.mxu0 %v4105
        %4119 = vmatprep.subr.bf16.mxu0 0
        %4120 = vmatpush1.bf16.msra.mxu0 %v4104
        %4121 = vmatprep.subr.bf16.mxu0 0
        %4122 = vmatpush1.bf16.msra.mxu0 %v4103
        %4123 = vmatprep.subr.bf16.mxu0 0
        %4124 = vmatpush1.bf16.msra.mxu0 %v4102
        %4125 = vmatprep.subr.bf16.mxu0 0
        %4126 = vmatpush1.bf16.msra.mxu0 %v4101
        %4127 = vmatprep.subr.bf16.mxu0 0
        %4128 = vmatpush1.bf16.msra.mxu0 %v4100
        %4129 = vmatprep.subr.bf16.mxu0 0
        %4130 = vmatpush1.bf16.msra.mxu0 %v4099
        %4131 = vmatprep.subr.bf16.mxu0 0
        %4132 = vmatpush2.bf16.msra.mxu0 0
        %4133 = vmatprep.subr.bf16.mxu0 0
        %4134 = vmatpush2.bf16.msra.mxu0 0
        %4135 = vmatprep.subr.bf16.mxu0 0
        %4136 = vmatpush2.bf16.msra.mxu0 0
        %4137 = vmatprep.subr.bf16.mxu0 0
        %4138 = vmatpush2.bf16.msra.mxu0 0
        %4139 = vmatprep.subr.bf16.mxu0 0
        %4140 = vmatpush2.bf16.msra.mxu0 0
        %4141 = vmatprep.subr.bf16.mxu0 0
        %4142 = vmatpush2.bf16.msra.mxu0 0
        %4143 = vmatprep.subr.bf16.mxu0 0
        %4144 = vmatpush2.bf16.msra.mxu0 0
        %4145 = vmatprep.subr.bf16.mxu0 0
        %4146 = vmatpush2.bf16.msra.mxu0 0
        %4147 = vmatprep.mubr.bf16.mxu0 0
        %4148 = vmatmul.mubr.bf16.gmra.mxu0 %v4051
        %v4149 = vpop.f32.mrf.mxu0
        %v4150 = vadd.f32 0.0, %v4149
        %v4151 = vpop.f32.mrf.mxu0
        %v4152 = vpop.f32.mrf.mxu0
        %v4153 = vadd.f32 0.0, %v4152
        %v4154 = vpop.f32.mrf.mxu0
        %4155 = vmatprep.mubr.bf16.mxu0 0
        %4156 = vmatmul.mubr.bf16.gmra.mxu0 %v4052
        %v4157 = vpop.f32.mrf.mxu0
        %v4158 = vadd.f32 0.0, %v4157
        %v4159 = vpop.f32.mrf.mxu0
        %v4160 = vpop.f32.mrf.mxu0
        %v4161 = vadd.f32 0.0, %v4160
        %v4162 = vpop.f32.mrf.mxu0
        %4163 = vmatprep.mubr.bf16.mxu0 0
        %4164 = vmatmul.mubr.bf16.gmra.mxu0 %v4053
        %v4165 = vpop.f32.mrf.mxu0
        %v4166 = vadd.f32 0.0, %v4165
        %v4167 = vpop.f32.mrf.mxu0
        %v4168 = vpop.f32.mrf.mxu0
        %v4169 = vadd.f32 0.0, %v4168
        %v4170 = vpop.f32.mrf.mxu0
        %4171 = vmatprep.mubr.bf16.mxu0 0
        %4172 = vmatmul.mubr.bf16.gmra.mxu0 %v4054
        %v4173 = vpop.f32.mrf.mxu0
        %v4174 = vadd.f32 0.0, %v4173
        %v4175 = vpop.f32.mrf.mxu0
        %v4176 = vpop.f32.mrf.mxu0
        %v4177 = vadd.f32 0.0, %v4176
        %v4178 = vpop.f32.mrf.mxu0
        %4179 = vmatprep.mubr.bf16.mxu0 0
        %4180 = vmatmul.mubr.bf16.gmra.mxu0 %v4055
        %v4181 = vpop.f32.mrf.mxu0
        %v4182 = vadd.f32 0.0, %v4181
        %v4183 = vpop.f32.mrf.mxu0
        %v4184 = vpop.f32.mrf.mxu0
        %v4185 = vadd.f32 0.0, %v4184
        %v4186 = vpop.f32.mrf.mxu0
        %4187 = vmatprep.mubr.bf16.mxu0 0
        %4188 = vmatmul.mubr.bf16.gmra.mxu0 %v4056
        %v4189 = vpop.f32.mrf.mxu0
        %v4190 = vadd.f32 0.0, %v4189
        %v4191 = vpop.f32.mrf.mxu0
        %v4192 = vpop.f32.mrf.mxu0
        %v4193 = vadd.f32 0.0, %v4192
        %v4194 = vpop.f32.mrf.mxu0
        %4195 = vmatprep.mubr.bf16.mxu0 0
        %4196 = vmatmul.mubr.bf16.gmra.mxu0 %v4057
        %v4197 = vpop.f32.mrf.mxu0
        %v4198 = vadd.f32 0.0, %v4197
        %v4199 = vpop.f32.mrf.mxu0
        %v4200 = vpop.f32.mrf.mxu0
        %v4201 = vadd.f32 0.0, %v4200
        %v4202 = vpop.f32.mrf.mxu0
        %4203 = vmatprep.mubr.bf16.mxu0 0
        %4204 = vmatmul.mubr.bf16.gmra.mxu0 %v4058
        %v4205 = vpop.f32.mrf.mxu0
        %v4206 = vadd.f32 0.0, %v4205
        %v4207 = vpop.f32.mrf.mxu0
        %v4208 = vpop.f32.mrf.mxu0
        %v4209 = vadd.f32 0.0, %v4208
        %v4210 = vpop.f32.mrf.mxu0
        %4211 = vdwg.mxu0
        %v4212 = vrot.slane %v4150, 7
        %v4213 = vrot.slane %v4153, 7
        %v4214 = vrot.slane %v4158, 7
        %v4215 = vrot.slane %v4161, 7
        %v4216 = vrot.slane %v4166, 7
        %v4217 = vrot.slane %v4169, 7
        %v4218 = vrot.slane %v4174, 7
        %v4219 = vrot.slane %v4177, 7
        %v4220 = vrot.slane %v4182, 7
        %v4221 = vrot.slane %v4185, 7
        %v4222 = vrot.slane %v4190, 7
        %v4223 = vrot.slane %v4193, 7
        %v4224 = vrot.slane %v4198, 7
        %v4225 = vrot.slane %v4201, 7
        %v4226 = vrot.slane %v4206, 7
        %v4227 = vrot.slane %v4209, 7
        %v4228 = vsel %vm649, %v4226, %v4227
        %v4229 = vsel %vm649, %v4225, %v4226
        %v4230 = vsel %vm649, %v4224, %v4225
        %v4231 = vsel %vm649, %v4223, %v4224
        %v4232 = vsel %vm649, %v4222, %v4223
        %v4233 = vsel %vm649, %v4221, %v4222
        %v4234 = vsel %vm649, %v4220, %v4221
        %v4235 = vsel %vm649, %v4219, %v4220
        %v4236 = vsel %vm649, %v4218, %v4219
        %v4237 = vsel %vm649, %v4217, %v4218
        %v4238 = vsel %vm649, %v4216, %v4217
        %v4239 = vsel %vm649, %v4215, %v4216
        %v4240 = vsel %vm649, %v4214, %v4215
        %v4241 = vsel %vm649, %v4213, %v4214
        %v4242 = vsel %vm649, %v4212, %v4213
        %v4243 = vsel %vm649, %v4227, %v4212
        %v4244 = vsel %vm397, 0.0, %v4243
        %v4245 = vsel %vm398, 0.0, %v4242
        %v4246 = vsel %vm397, 0.0, %v4241
        %v4247 = vsel %vm398, 0.0, %v4240
        %v4248 = vsel %vm397, 0.0, %v4239
        %v4249 = vsel %vm398, 0.0, %v4238
        %v4250 = vsel %vm397, 0.0, %v4237
        %v4251 = vsel %vm398, 0.0, %v4236
        %v4252 = vsel %vm397, 0.0, %v4235
        %v4253 = vsel %vm398, 0.0, %v4234
        %v4254 = vsel %vm397, 0.0, %v4233
        %v4255 = vsel %vm398, 0.0, %v4232
        %v4256 = vsel %vm397, 0.0, %v4231
        %v4257 = vsel %vm398, 0.0, %v4230
        %v4258 = vsel %vm397, 0.0, %v4229
        %v4259 = vsel %vm398, 0.0, %v4228
        %v4260 = vadd.f32 %v3970, %v4244
        %v4261 = vadd.f32 %v3971, %v4245
        %v4262 = vadd.f32 %v3972, %v4246
        %v4263 = vadd.f32 %v3973, %v4247
        %v4264 = vadd.f32 %v3974, %v4248
        %v4265 = vadd.f32 %v3975, %v4249
        %v4266 = vadd.f32 %v3976, %v4250
        %v4267 = vadd.f32 %v3977, %v4251
        %v4268 = vadd.f32 %v3978, %v4252
        %v4269 = vadd.f32 %v3979, %v4253
        %v4270 = vadd.f32 %v3980, %v4254
        %v4271 = vadd.f32 %v3981, %v4255
        %v4272 = vadd.f32 %v3982, %v4256
        %v4273 = vadd.f32 %v3983, %v4257
        %v4274 = vadd.f32 %v3984, %v4258
        %v4275 = vadd.f32 %v3985, %v4259
        %v4276 = vld [vmem:[%s2073] sm:$0xf]
        %v4277 = vld [vmem:[%s2073 + $0x4] sm:$0xf]
        %v4278 = vld [vmem:[%s2073 + $0x8] sm:$0xf]
        %v4279 = vld [vmem:[%s2073 + $0xc] sm:$0xf]
        %v4280 = vld [vmem:[%s2073 + $0x10] sm:$0xf]
        %v4281 = vld [vmem:[%s2073 + $0x14] sm:$0xf]
        %v4282 = vld [vmem:[%s2073 + $0x18] sm:$0xf]
        %v4283 = vld [vmem:[%s2073 + $0x1c] sm:$0xf]
        %v4284 = vld [vmem:[%s2073 + $0x20] sm:$0xf]
        %v4285 = vld [vmem:[%s2073 + $0x24] sm:$0xf]
        %v4286 = vld [vmem:[%s2073 + $0x28] sm:$0xf]
        %v4287 = vld [vmem:[%s2073 + $0x2c] sm:$0xf]
        %v4288 = vld [vmem:[%s2073 + $0x30] sm:$0xf]
        %v4289 = vld [vmem:[%s2073 + $0x34] sm:$0xf]
        %v4290 = vld [vmem:[%s2073 + $0x38] sm:$0xf]
        %v4291 = vld [vmem:[%s2073 + $0x3c] sm:$0xf]
        %v4308 = vunpack.c.l.b16 %v4276
        %v4309 = vunpack.c.l.b16 %v4277
        %v4310 = vunpack.c.l.b16 %v4278
        %v4311 = vunpack.c.l.b16 %v4279
        %v4312 = vunpack.c.l.b16 %v4280
        %v4313 = vunpack.c.l.b16 %v4281
        %v4314 = vunpack.c.l.b16 %v4282
        %v4315 = vunpack.c.l.b16 %v4283
        %v4316 = vunpack.c.l.b16 %v4284
        %v4317 = vunpack.c.l.b16 %v4285
        %v4318 = vunpack.c.l.b16 %v4286
        %v4319 = vunpack.c.l.b16 %v4287
        %v4320 = vunpack.c.l.b16 %v4288
        %v4321 = vunpack.c.l.b16 %v4289
        %v4322 = vunpack.c.l.b16 %v4290
        %v4323 = vunpack.c.l.b16 %v4291
        %v4324 = vpack.c.b16 %v4309, %v4308
        %v4325 = vpack.c.b16 %v4311, %v4310
        %v4326 = vpack.c.b16 %v4313, %v4312
        %v4327 = vpack.c.b16 %v4315, %v4314
        %v4328 = vpack.c.b16 %v4317, %v4316
        %v4329 = vpack.c.b16 %v4319, %v4318
        %v4330 = vpack.c.b16 %v4321, %v4320
        %v4331 = vpack.c.b16 %v4323, %v4322
        %4340 = vmatprep.subr.bf16.mxu0 0
        %4341 = vmatpush1.bf16.msra.mxu0 %v4331
        %4342 = vmatprep.subr.bf16.mxu0 0
        %4343 = vmatpush1.bf16.msra.mxu0 %v4330
        %4344 = vmatprep.subr.bf16.mxu0 0
        %4345 = vmatpush1.bf16.msra.mxu0 %v4329
        %4346 = vmatprep.subr.bf16.mxu0 0
        %4347 = vmatpush1.bf16.msra.mxu0 %v4328
        %4348 = vmatprep.subr.bf16.mxu0 0
        %4349 = vmatpush1.bf16.msra.mxu0 %v4327
        %4350 = vmatprep.subr.bf16.mxu0 0
        %4351 = vmatpush1.bf16.msra.mxu0 %v4326
        %4352 = vmatprep.subr.bf16.mxu0 0
        %4353 = vmatpush1.bf16.msra.mxu0 %v4325
        %4354 = vmatprep.subr.bf16.mxu0 0
        %4355 = vmatpush1.bf16.msra.mxu0 %v4324
        %4356 = vmatprep.subr.bf16.mxu0 0
        %4357 = vmatpush2.bf16.msra.mxu0 0
        %4358 = vmatprep.subr.bf16.mxu0 0
        %4359 = vmatpush2.bf16.msra.mxu0 0
        %4360 = vmatprep.subr.bf16.mxu0 0
        %4361 = vmatpush2.bf16.msra.mxu0 0
        %4362 = vmatprep.subr.bf16.mxu0 0
        %4363 = vmatpush2.bf16.msra.mxu0 0
        %4364 = vmatprep.subr.bf16.mxu0 0
        %4365 = vmatpush2.bf16.msra.mxu0 0
        %4366 = vmatprep.subr.bf16.mxu0 0
        %4367 = vmatpush2.bf16.msra.mxu0 0
        %4368 = vmatprep.subr.bf16.mxu0 0
        %4369 = vmatpush2.bf16.msra.mxu0 0
        %4370 = vmatprep.subr.bf16.mxu0 0
        %4371 = vmatpush2.bf16.msra.mxu0 0
        %4372 = vmatprep.mubr.bf16.mxu0 0
        %4373 = vmatmul.mubr.bf16.gmra.mxu0 %v4051
        %v4374 = vpop.f32.mrf.mxu0
        %v4375 = vadd.f32 0.0, %v4374
        %v4376 = vpop.f32.mrf.mxu0
        %v4377 = vpop.f32.mrf.mxu0
        %v4378 = vadd.f32 0.0, %v4377
        %v4379 = vpop.f32.mrf.mxu0
        %4380 = vmatprep.mubr.bf16.mxu0 0
        %4381 = vmatmul.mubr.bf16.gmra.mxu0 %v4052
        %v4382 = vpop.f32.mrf.mxu0
        %v4383 = vadd.f32 0.0, %v4382
        %v4384 = vpop.f32.mrf.mxu0
        %v4385 = vpop.f32.mrf.mxu0
        %v4386 = vadd.f32 0.0, %v4385
        %v4387 = vpop.f32.mrf.mxu0
        %4388 = vmatprep.mubr.bf16.mxu0 0
        %4389 = vmatmul.mubr.bf16.gmra.mxu0 %v4053
        %v4390 = vpop.f32.mrf.mxu0
        %v4391 = vadd.f32 0.0, %v4390
        %v4392 = vpop.f32.mrf.mxu0
        %v4393 = vpop.f32.mrf.mxu0
        %v4394 = vadd.f32 0.0, %v4393
        %v4395 = vpop.f32.mrf.mxu0
        %4396 = vmatprep.mubr.bf16.mxu0 0
        %4397 = vmatmul.mubr.bf16.gmra.mxu0 %v4054
        %v4398 = vpop.f32.mrf.mxu0
        %v4399 = vadd.f32 0.0, %v4398
        %v4400 = vpop.f32.mrf.mxu0
        %v4401 = vpop.f32.mrf.mxu0
        %v4402 = vadd.f32 0.0, %v4401
        %v4403 = vpop.f32.mrf.mxu0
        %4404 = vmatprep.mubr.bf16.mxu0 0
        %4405 = vmatmul.mubr.bf16.gmra.mxu0 %v4055
        %v4406 = vpop.f32.mrf.mxu0
        %v4407 = vadd.f32 0.0, %v4406
        %v4408 = vpop.f32.mrf.mxu0
        %v4409 = vpop.f32.mrf.mxu0
        %v4410 = vadd.f32 0.0, %v4409
        %v4411 = vpop.f32.mrf.mxu0
        %4412 = vmatprep.mubr.bf16.mxu0 0
        %4413 = vmatmul.mubr.bf16.gmra.mxu0 %v4056
        %v4414 = vpop.f32.mrf.mxu0
        %v4415 = vadd.f32 0.0, %v4414
        %v4416 = vpop.f32.mrf.mxu0
        %v4417 = vpop.f32.mrf.mxu0
        %v4418 = vadd.f32 0.0, %v4417
        %v4419 = vpop.f32.mrf.mxu0
        %4420 = vmatprep.mubr.bf16.mxu0 0
        %4421 = vmatmul.mubr.bf16.gmra.mxu0 %v4057
        %v4422 = vpop.f32.mrf.mxu0
        %v4423 = vadd.f32 0.0, %v4422
        %v4424 = vpop.f32.mrf.mxu0
        %v4425 = vpop.f32.mrf.mxu0
        %v4426 = vadd.f32 0.0, %v4425
        %v4427 = vpop.f32.mrf.mxu0
        %4428 = vmatprep.mubr.bf16.mxu0 0
        %4429 = vmatmul.mubr.bf16.gmra.mxu0 %v4058
        %v4430 = vpop.f32.mrf.mxu0
        %v4431 = vadd.f32 0.0, %v4430
        %v4432 = vpop.f32.mrf.mxu0
        %v4433 = vpop.f32.mrf.mxu0
        %v4434 = vadd.f32 0.0, %v4433
        %v4435 = vpop.f32.mrf.mxu0
        %4436 = vdwg.mxu0
        %v4437 = vadd.f32 %v4260, %v4375
        %v4438 = vadd.f32 %v4261, %v4378
        %v4439 = vadd.f32 %v4262, %v4383
        %v4440 = vadd.f32 %v4263, %v4386
        %v4441 = vadd.f32 %v4264, %v4391
        %v4442 = vadd.f32 %v4265, %v4394
        %v4443 = vadd.f32 %v4266, %v4399
        %v4444 = vadd.f32 %v4267, %v4402
        %v4445 = vadd.f32 %v4268, %v4407
        %v4446 = vadd.f32 %v4269, %v4410
        %v4447 = vadd.f32 %v4270, %v4415
        %v4448 = vadd.f32 %v4271, %v4418
        %v4449 = vadd.f32 %v4272, %v4423
        %v4450 = vadd.f32 %v4273, %v4426
        %v4451 = vadd.f32 %v4274, %v4431
        %v4452 = vadd.f32 %v4275, %v4434
        %v4453 = vld [vmem:[%s2251] sm:$0xf]
        %v4454 = vld [vmem:[%s2251 + $0x4] sm:$0xf]
        %v4455 = vld [vmem:[%s2251 + $0x8] sm:$0xf]
        %v4456 = vld [vmem:[%s2251 + $0xc] sm:$0xf]
        %v4457 = vld [vmem:[%s2251 + $0x10] sm:$0xf]
        %v4458 = vld [vmem:[%s2251 + $0x14] sm:$0xf]
        %v4459 = vld [vmem:[%s2251 + $0x18] sm:$0xf]
        %v4460 = vld [vmem:[%s2251 + $0x1c] sm:$0xf]
        %v4461 = vld [vmem:[%s2251 + $0x20] sm:$0xf]
        %v4462 = vld [vmem:[%s2251 + $0x24] sm:$0xf]
        %v4463 = vld [vmem:[%s2251 + $0x28] sm:$0xf]
        %v4464 = vld [vmem:[%s2251 + $0x2c] sm:$0xf]
        %v4465 = vld [vmem:[%s2251 + $0x30] sm:$0xf]
        %v4466 = vld [vmem:[%s2251 + $0x34] sm:$0xf]
        %v4467 = vld [vmem:[%s2251 + $0x38] sm:$0xf]
        %v4468 = vld [vmem:[%s2251 + $0x3c] sm:$0xf]
        %v4485 = vunpack.c.l.b16 %v4453
        %v4486 = vunpack.c.l.b16 %v4454
        %v4487 = vunpack.c.l.b16 %v4455
        %v4488 = vunpack.c.l.b16 %v4456
        %v4489 = vunpack.c.l.b16 %v4457
        %v4490 = vunpack.c.l.b16 %v4458
        %v4491 = vunpack.c.l.b16 %v4459
        %v4492 = vunpack.c.l.b16 %v4460
        %v4493 = vunpack.c.l.b16 %v4461
        %v4494 = vunpack.c.l.b16 %v4462
        %v4495 = vunpack.c.l.b16 %v4463
        %v4496 = vunpack.c.l.b16 %v4464
        %v4497 = vunpack.c.l.b16 %v4465
        %v4498 = vunpack.c.l.b16 %v4466
        %v4499 = vunpack.c.l.b16 %v4467
        %v4500 = vunpack.c.l.b16 %v4468
        %v4501 = vpack.c.b16 %v4486, %v4485
        %v4502 = vpack.c.b16 %v4488, %v4487
        %v4503 = vpack.c.b16 %v4490, %v4489
        %v4504 = vpack.c.b16 %v4492, %v4491
        %v4505 = vpack.c.b16 %v4494, %v4493
        %v4506 = vpack.c.b16 %v4496, %v4495
        %v4507 = vpack.c.b16 %v4498, %v4497
        %v4508 = vpack.c.b16 %v4500, %v4499
        %4517 = vmatprep.subr.bf16.mxu0 0
        %4518 = vmatpush1.bf16.msra.mxu0 %v4508
        %4519 = vmatprep.subr.bf16.mxu0 0
        %4520 = vmatpush1.bf16.msra.mxu0 %v4507
        %4521 = vmatprep.subr.bf16.mxu0 0
        %4522 = vmatpush1.bf16.msra.mxu0 %v4506
        %4523 = vmatprep.subr.bf16.mxu0 0
        %4524 = vmatpush1.bf16.msra.mxu0 %v4505
        %4525 = vmatprep.subr.bf16.mxu0 0
        %4526 = vmatpush1.bf16.msra.mxu0 %v4504
        %4527 = vmatprep.subr.bf16.mxu0 0
        %4528 = vmatpush1.bf16.msra.mxu0 %v4503
        %4529 = vmatprep.subr.bf16.mxu0 0
        %4530 = vmatpush1.bf16.msra.mxu0 %v4502
        %4531 = vmatprep.subr.bf16.mxu0 0
        %4532 = vmatpush1.bf16.msra.mxu0 %v4501
        %4533 = vmatprep.subr.bf16.mxu0 0
        %4534 = vmatpush2.bf16.msra.mxu0 0
        %4535 = vmatprep.subr.bf16.mxu0 0
        %4536 = vmatpush2.bf16.msra.mxu0 0
        %4537 = vmatprep.subr.bf16.mxu0 0
        %4538 = vmatpush2.bf16.msra.mxu0 0
        %4539 = vmatprep.subr.bf16.mxu0 0
        %4540 = vmatpush2.bf16.msra.mxu0 0
        %4541 = vmatprep.subr.bf16.mxu0 0
        %4542 = vmatpush2.bf16.msra.mxu0 0
        %4543 = vmatprep.subr.bf16.mxu0 0
        %4544 = vmatpush2.bf16.msra.mxu0 0
        %4545 = vmatprep.subr.bf16.mxu0 0
        %4546 = vmatpush2.bf16.msra.mxu0 0
        %4547 = vmatprep.subr.bf16.mxu0 0
        %4548 = vmatpush2.bf16.msra.mxu0 0
        %4549 = vmatprep.mubr.bf16.mxu0 0
        %4550 = vmatmul.mubr.bf16.gmra.mxu0 %v4051
        %v4551 = vpop.f32.mrf.mxu0
        %v4552 = vadd.f32 0.0, %v4551
        %v4553 = vpop.f32.mrf.mxu0
        %v4554 = vpop.f32.mrf.mxu0
        %v4555 = vadd.f32 0.0, %v4554
        %v4556 = vpop.f32.mrf.mxu0
        %4557 = vmatprep.mubr.bf16.mxu0 0
        %4558 = vmatmul.mubr.bf16.gmra.mxu0 %v4052
        %v4559 = vpop.f32.mrf.mxu0
        %v4560 = vadd.f32 0.0, %v4559
        %v4561 = vpop.f32.mrf.mxu0
        %v4562 = vpop.f32.mrf.mxu0
        %v4563 = vadd.f32 0.0, %v4562
        %v4564 = vpop.f32.mrf.mxu0
        %4565 = vmatprep.mubr.bf16.mxu0 0
        %4566 = vmatmul.mubr.bf16.gmra.mxu0 %v4053
        %v4567 = vpop.f32.mrf.mxu0
        %v4568 = vadd.f32 0.0, %v4567
        %v4569 = vpop.f32.mrf.mxu0
        %v4570 = vpop.f32.mrf.mxu0
        %v4571 = vadd.f32 0.0, %v4570
        %v4572 = vpop.f32.mrf.mxu0
        %4573 = vmatprep.mubr.bf16.mxu0 0
        %4574 = vmatmul.mubr.bf16.gmra.mxu0 %v4054
        %v4575 = vpop.f32.mrf.mxu0
        %v4576 = vadd.f32 0.0, %v4575
        %v4577 = vpop.f32.mrf.mxu0
        %v4578 = vpop.f32.mrf.mxu0
        %v4579 = vadd.f32 0.0, %v4578
        %v4580 = vpop.f32.mrf.mxu0
        %4581 = vmatprep.mubr.bf16.mxu0 0
        %4582 = vmatmul.mubr.bf16.gmra.mxu0 %v4055
        %v4583 = vpop.f32.mrf.mxu0
        %v4584 = vadd.f32 0.0, %v4583
        %v4585 = vpop.f32.mrf.mxu0
        %v4586 = vpop.f32.mrf.mxu0
        %v4587 = vadd.f32 0.0, %v4586
        %v4588 = vpop.f32.mrf.mxu0
        %4589 = vmatprep.mubr.bf16.mxu0 0
        %4590 = vmatmul.mubr.bf16.gmra.mxu0 %v4056
        %v4591 = vpop.f32.mrf.mxu0
        %v4592 = vadd.f32 0.0, %v4591
        %v4593 = vpop.f32.mrf.mxu0
        %v4594 = vpop.f32.mrf.mxu0
        %v4595 = vadd.f32 0.0, %v4594
        %v4596 = vpop.f32.mrf.mxu0
        %4597 = vmatprep.mubr.bf16.mxu0 0
        %4598 = vmatmul.mubr.bf16.gmra.mxu0 %v4057
        %v4599 = vpop.f32.mrf.mxu0
        %v4600 = vadd.f32 0.0, %v4599
        %v4601 = vpop.f32.mrf.mxu0
        %v4602 = vpop.f32.mrf.mxu0
        %v4603 = vadd.f32 0.0, %v4602
        %v4604 = vpop.f32.mrf.mxu0
        %4605 = vmatprep.mubr.bf16.mxu0 0
        %4606 = vmatmul.mubr.bf16.gmra.mxu0 %v4058
        %v4607 = vpop.f32.mrf.mxu0
        %v4608 = vadd.f32 0.0, %v4607
        %v4609 = vpop.f32.mrf.mxu0
        %v4610 = vpop.f32.mrf.mxu0
        %v4611 = vadd.f32 0.0, %v4610
        %v4612 = vpop.f32.mrf.mxu0
        %4613 = vdwg.mxu0
        %v4614 = vrot.slane %v4552, 1
        %v4615 = vrot.slane %v4555, 1
        %v4616 = vrot.slane %v4560, 1
        %v4617 = vrot.slane %v4563, 1
        %v4618 = vrot.slane %v4568, 1
        %v4619 = vrot.slane %v4571, 1
        %v4620 = vrot.slane %v4576, 1
        %v4621 = vrot.slane %v4579, 1
        %v4622 = vrot.slane %v4584, 1
        %v4623 = vrot.slane %v4587, 1
        %v4624 = vrot.slane %v4592, 1
        %v4625 = vrot.slane %v4595, 1
        %v4626 = vrot.slane %v4600, 1
        %v4627 = vrot.slane %v4603, 1
        %v4628 = vrot.slane %v4608, 1
        %v4629 = vrot.slane %v4611, 1
        %v4630 = vsel %vm1038, %v4628, %v4629
        %v4631 = vsel %vm1038, %v4627, %v4628
        %v4632 = vsel %vm1038, %v4626, %v4627
        %v4633 = vsel %vm1038, %v4625, %v4626
        %v4634 = vsel %vm1038, %v4624, %v4625
        %v4635 = vsel %vm1038, %v4623, %v4624
        %v4636 = vsel %vm1038, %v4622, %v4623
        %v4637 = vsel %vm1038, %v4621, %v4622
        %v4638 = vsel %vm1038, %v4620, %v4621
        %v4639 = vsel %vm1038, %v4619, %v4620
        %v4640 = vsel %vm1038, %v4618, %v4619
        %v4641 = vsel %vm1038, %v4617, %v4618
        %v4642 = vsel %vm1038, %v4616, %v4617
        %v4643 = vsel %vm1038, %v4615, %v4616
        %v4644 = vsel %vm1038, %v4614, %v4615
        %v4645 = vsel %vm1038, %v4629, %v4614
        %v4646 = vsel %vm399, 0.0, %v4644
        %v4647 = vsel %vm400, 0.0, %v4643
        %v4648 = vsel %vm399, 0.0, %v4642
        %v4649 = vsel %vm400, 0.0, %v4641
        %v4650 = vsel %vm399, 0.0, %v4640
        %v4651 = vsel %vm400, 0.0, %v4639
        %v4652 = vsel %vm399, 0.0, %v4638
        %v4653 = vsel %vm400, 0.0, %v4637
        %v4654 = vsel %vm399, 0.0, %v4636
        %v4655 = vsel %vm400, 0.0, %v4635
        %v4656 = vsel %vm399, 0.0, %v4634
        %v4657 = vsel %vm400, 0.0, %v4633
        %v4658 = vsel %vm399, 0.0, %v4632
        %v4659 = vsel %vm400, 0.0, %v4631
        %v4660 = vsel %vm399, 0.0, %v4630
        %v4661 = vsel %vm400, 0.0, %v4645
        %v4662 = vadd.f32 %v4437, %v4646
        %v4663 = vadd.f32 %v4438, %v4647
        %v4664 = vadd.f32 %v4439, %v4648
        %v4665 = vadd.f32 %v4440, %v4649
        %v4666 = vadd.f32 %v4441, %v4650
        %v4667 = vadd.f32 %v4442, %v4651
        %v4668 = vadd.f32 %v4443, %v4652
        %v4669 = vadd.f32 %v4444, %v4653
        %v4670 = vadd.f32 %v4445, %v4654
        %v4671 = vadd.f32 %v4446, %v4655
        %v4672 = vadd.f32 %v4447, %v4656
        %v4673 = vadd.f32 %v4448, %v4657
        %v4674 = vadd.f32 %v4449, %v4658
        %v4675 = vadd.f32 %v4450, %v4659
        %v4676 = vadd.f32 %v4451, %v4660
        %v4677 = vadd.f32 %v4452, %v4661
        %v4678 = vmul.f32 %v4662, %v2481
        %v4679 = vmul.f32 %v4663, %v2481
        %v4680 = vmul.f32 %v4664, %v2481
        %v4681 = vmul.f32 %v4665, %v2481
        %v4682 = vmul.f32 %v4666, %v2481
        %v4683 = vmul.f32 %v4667, %v2481
        %v4684 = vmul.f32 %v4668, %v2481
        %v4685 = vmul.f32 %v4669, %v2481
        %v4686 = vmul.f32 %v4670, %v2481
        %v4687 = vmul.f32 %v4671, %v2481
        %v4688 = vmul.f32 %v4672, %v2481
        %v4689 = vmul.f32 %v4673, %v2481
        %v4690 = vmul.f32 %v4674, %v2481
        %v4691 = vmul.f32 %v4675, %v2481
        %v4692 = vmul.f32 %v4676, %v2481
        %v4693 = vmul.f32 %v4677, %v2481
        %v4694 = vadd.f32 %v4678, %v2503
        %v4695 = vadd.f32 %v4679, %v2503
        %v4696 = vadd.f32 %v4680, %v2503
        %v4697 = vadd.f32 %v4681, %v2503
        %v4698 = vadd.f32 %v4682, %v2503
        %v4699 = vadd.f32 %v4683, %v2503
        %v4700 = vadd.f32 %v4684, %v2503
        %v4701 = vadd.f32 %v4685, %v2503
        %v4702 = vadd.f32 %v4686, %v2503
        %v4703 = vadd.f32 %v4687, %v2503
        %v4704 = vadd.f32 %v4688, %v2503
        %v4705 = vadd.f32 %v4689, %v2503
        %v4706 = vadd.f32 %v4690, %v2503
        %v4707 = vadd.f32 %v4691, %v2503
        %v4708 = vadd.f32 %v4692, %v2503
        %v4709 = vadd.f32 %v4693, %v2503
        %v4710 = vmax.f32 %v4694, 0.0
        %v4711 = vmax.f32 %v4695, 0.0
        %v4712 = vmax.f32 %v4696, 0.0
        %v4713 = vmax.f32 %v4697, 0.0
        %v4714 = vmax.f32 %v4698, 0.0
        %v4715 = vmax.f32 %v4699, 0.0
        %v4716 = vmax.f32 %v4700, 0.0
        %v4717 = vmax.f32 %v4701, 0.0
        %v4718 = vmax.f32 %v4702, 0.0
        %v4719 = vmax.f32 %v4703, 0.0
        %v4720 = vmax.f32 %v4704, 0.0
        %v4721 = vmax.f32 %v4705, 0.0
        %v4722 = vmax.f32 %v4706, 0.0
        %v4723 = vmax.f32 %v4707, 0.0
        %v4724 = vmax.f32 %v4708, 0.0
        %v4725 = vmax.f32 %v4709, 0.0
        %v4726 = vpack.c.bf16 %v4711, %v4710
        %v4727 = vpack.c.bf16 %v4713, %v4712
        %v4728 = vpack.c.bf16 %v4715, %v4714
        %v4729 = vpack.c.bf16 %v4717, %v4716
        %v4730 = vpack.c.bf16 %v4719, %v4718
        %v4731 = vpack.c.bf16 %v4721, %v4720
        %v4732 = vpack.c.bf16 %v4723, %v4722
        %v4733 = vpack.c.bf16 %v4725, %v4724
        %v4742 = vunpack.c.l.b16 %v4726
        %v4743 = vunpack.c.h.b16 %v4726
        %v4744 = vunpack.c.l.b16 %v4727
        %v4745 = vunpack.c.h.b16 %v4727
        %v4746 = vunpack.c.l.b16 %v4728
        %v4747 = vunpack.c.h.b16 %v4728
        %v4748 = vunpack.c.l.b16 %v4729
        %v4749 = vunpack.c.h.b16 %v4729
        %v4750 = vunpack.c.l.b16 %v4730
        %v4751 = vunpack.c.h.b16 %v4730
        %v4752 = vunpack.c.l.b16 %v4731
        %v4753 = vunpack.c.h.b16 %v4731
        %v4754 = vunpack.c.l.b16 %v4732
        %v4755 = vunpack.c.h.b16 %v4732
        %v4756 = vunpack.c.l.b16 %v4733
        %v4757 = vunpack.c.h.b16 %v4733
        %v4758 = vpack.c.b16 %v4742, %v4742
        %v4759 = vpack.c.b16 %v4743, %v4743
        %v4760 = vpack.c.b16 %v4744, %v4744
        %v4761 = vpack.c.b16 %v4745, %v4745
        %v4762 = vpack.c.b16 %v4746, %v4746
        %v4763 = vpack.c.b16 %v4747, %v4747
        %v4764 = vpack.c.b16 %v4748, %v4748
        %v4765 = vpack.c.b16 %v4749, %v4749
        %v4766 = vpack.c.b16 %v4750, %v4750
        %v4767 = vpack.c.b16 %v4751, %v4751
        %v4768 = vpack.c.b16 %v4752, %v4752
        %v4769 = vpack.c.b16 %v4753, %v4753
        %v4770 = vpack.c.b16 %v4754, %v4754
        %v4771 = vpack.c.b16 %v4755, %v4755
        %v4772 = vpack.c.b16 %v4756, %v4756
        %v4773 = vpack.c.b16 %v4757, %v4757
        %s4790 = scalar_lea.vmem [#allocation2], 72
        %4791 = vst [vmem:[%s4790] sm:$0xf] %v4758
        %4792 = vst [vmem:[%s4790 + $0x4] sm:$0xf] %v4759
        %4793 = vst [vmem:[%s4790 + $0x8] sm:$0xf] %v4760
        %4794 = vst [vmem:[%s4790 + $0xc] sm:$0xf] %v4761
        %4795 = vst [vmem:[%s4790 + $0x10] sm:$0xf] %v4762
        %4796 = vst [vmem:[%s4790 + $0x14] sm:$0xf] %v4763
        %4797 = vst [vmem:[%s4790 + $0x18] sm:$0xf] %v4764
        %4798 = vst [vmem:[%s4790 + $0x1c] sm:$0xf] %v4765
        %4799 = vst [vmem:[%s4790 + $0x20] sm:$0xf] %v4766
        %4800 = vst [vmem:[%s4790 + $0x24] sm:$0xf] %v4767
        %4801 = vst [vmem:[%s4790 + $0x28] sm:$0xf] %v4768
        %4802 = vst [vmem:[%s4790 + $0x2c] sm:$0xf] %v4769
        %4803 = vst [vmem:[%s4790 + $0x30] sm:$0xf] %v4770
        %4804 = vst [vmem:[%s4790 + $0x34] sm:$0xf] %v4771
        %4805 = vst [vmem:[%s4790 + $0x38] sm:$0xf] %v4772
        %4806 = vst [vmem:[%s4790 + $0x3c] sm:$0xf] %v4773
        %v4807 = vld [vmem:[%s6] sm:$0x1]
        %v4808 = vld [vmem:[%s7] sm:$0x1]
        %v4809 = vld [vmem:[#allocation2] sm:$0xf]
        %v4810 = vld [vmem:[#allocation2 + $0x4] sm:$0xf]
        %v4811 = vld [vmem:[#allocation2 + $0x8] sm:$0xf]
        %v4812 = vld [vmem:[#allocation2 + $0xc] sm:$0xf]
        %v4813 = vld [vmem:[#allocation2 + $0x10] sm:$0xf]
        %v4814 = vld [vmem:[#allocation2 + $0x14] sm:$0xf]
        %v4815 = vld [vmem:[#allocation2 + $0x18] sm:$0xf]
        %v4816 = vld [vmem:[#allocation2 + $0x1c] sm:$0xf]
        %v4817 = vld [vmem:[#allocation2 + $0x20] sm:$0xf]
        %v4818 = vld [vmem:[#allocation2 + $0x24] sm:$0xf]
        %v4819 = vld [vmem:[#allocation2 + $0x28] sm:$0xf]
        %v4820 = vld [vmem:[#allocation2 + $0x2c] sm:$0xf]
        %v4821 = vld [vmem:[#allocation2 + $0x30] sm:$0xf]
        %v4822 = vld [vmem:[#allocation2 + $0x34] sm:$0xf]
        %v4823 = vld [vmem:[#allocation2 + $0x38] sm:$0xf]
        %v4824 = vld [vmem:[#allocation2 + $0x3c] sm:$0xf]
        %v4825 = vld [vmem:[#allocation9] sm:$0xf]
        %v4826 = vld [vmem:[#allocation9 + $0x4] sm:$0xf]
        %v4827 = vld [vmem:[#allocation9 + $0x8] sm:$0xf]
        %v4828 = vld [vmem:[#allocation9 + $0xc] sm:$0xf]
        %v4829 = vld [vmem:[#allocation9 + $0x10] sm:$0xf]
        %v4830 = vld [vmem:[#allocation9 + $0x14] sm:$0xf]
        %v4831 = vld [vmem:[#allocation9 + $0x18] sm:$0xf]
        %v4832 = vld [vmem:[#allocation9 + $0x1c] sm:$0xf]
        %v4833 = vld [vmem:[#allocation9 + $0x20] sm:$0xf]
        %v4834 = vld [vmem:[#allocation9 + $0x24] sm:$0xf]
        %v4835 = vld [vmem:[#allocation9 + $0x28] sm:$0xf]
        %v4836 = vld [vmem:[#allocation9 + $0x2c] sm:$0xf]
        %v4837 = vld [vmem:[#allocation9 + $0x30] sm:$0xf]
        %v4838 = vld [vmem:[#allocation9 + $0x34] sm:$0xf]
        %v4839 = vld [vmem:[#allocation9 + $0x38] sm:$0xf]
        %v4840 = vld [vmem:[#allocation9 + $0x3c] sm:$0xf]
        %v4857 = vunpack.c.l.b16 %v4809
        %v4858 = vunpack.c.l.b16 %v4810
        %v4859 = vunpack.c.l.b16 %v4811
        %v4860 = vunpack.c.l.b16 %v4812
        %v4861 = vunpack.c.l.b16 %v4813
        %v4862 = vunpack.c.l.b16 %v4814
        %v4863 = vunpack.c.l.b16 %v4815
        %v4864 = vunpack.c.l.b16 %v4816
        %v4865 = vunpack.c.l.b16 %v4817
        %v4866 = vunpack.c.l.b16 %v4818
        %v4867 = vunpack.c.l.b16 %v4819
        %v4868 = vunpack.c.l.b16 %v4820
        %v4869 = vunpack.c.l.b16 %v4821
        %v4870 = vunpack.c.l.b16 %v4822
        %v4871 = vunpack.c.l.b16 %v4823
        %v4872 = vunpack.c.l.b16 %v4824
        %v4873 = vpack.c.b16 %v4858, %v4857
        %v4874 = vpack.c.b16 %v4860, %v4859
        %v4875 = vpack.c.b16 %v4862, %v4861
        %v4876 = vpack.c.b16 %v4864, %v4863
        %v4877 = vpack.c.b16 %v4866, %v4865
        %v4878 = vpack.c.b16 %v4868, %v4867
        %v4879 = vpack.c.b16 %v4870, %v4869
        %v4880 = vpack.c.b16 %v4872, %v4871
        %v4905 = vunpack.c.l.b16 %v4825
        %v4906 = vunpack.c.l.b16 %v4826
        %v4907 = vunpack.c.l.b16 %v4827
        %v4908 = vunpack.c.l.b16 %v4828
        %v4909 = vunpack.c.l.b16 %v4829
        %v4910 = vunpack.c.l.b16 %v4830
        %v4911 = vunpack.c.l.b16 %v4831
        %v4912 = vunpack.c.l.b16 %v4832
        %v4913 = vunpack.c.l.b16 %v4833
        %v4914 = vunpack.c.l.b16 %v4834
        %v4915 = vunpack.c.l.b16 %v4835
        %v4916 = vunpack.c.l.b16 %v4836
        %v4917 = vunpack.c.l.b16 %v4837
        %v4918 = vunpack.c.l.b16 %v4838
        %v4919 = vunpack.c.l.b16 %v4839
        %v4920 = vunpack.c.l.b16 %v4840
        %v4921 = vpack.c.b16 %v4906, %v4905
        %v4922 = vpack.c.b16 %v4908, %v4907
        %v4923 = vpack.c.b16 %v4910, %v4909
        %v4924 = vpack.c.b16 %v4912, %v4911
        %v4925 = vpack.c.b16 %v4914, %v4913
        %v4926 = vpack.c.b16 %v4916, %v4915
        %v4927 = vpack.c.b16 %v4918, %v4917
        %v4928 = vpack.c.b16 %v4920, %v4919
        %4937 = vmatprep.subr.bf16.mxu0 0
        %4938 = vmatpush1.bf16.msra.mxu0 %v4928
        %4939 = vmatprep.subr.bf16.mxu0 0
        %4940 = vmatpush1.bf16.msra.mxu0 %v4927
        %4941 = vmatprep.subr.bf16.mxu0 0
        %4942 = vmatpush1.bf16.msra.mxu0 %v4926
        %4943 = vmatprep.subr.bf16.mxu0 0
        %4944 = vmatpush1.bf16.msra.mxu0 %v4925
        %4945 = vmatprep.subr.bf16.mxu0 0
        %4946 = vmatpush1.bf16.msra.mxu0 %v4924
        %4947 = vmatprep.subr.bf16.mxu0 0
        %4948 = vmatpush1.bf16.msra.mxu0 %v4923
        %4949 = vmatprep.subr.bf16.mxu0 0
        %4950 = vmatpush1.bf16.msra.mxu0 %v4922
        %4951 = vmatprep.subr.bf16.mxu0 0
        %4952 = vmatpush1.bf16.msra.mxu0 %v4921
        %4953 = vmatprep.subr.bf16.mxu0 0
        %4954 = vmatpush2.bf16.msra.mxu0 0
        %4955 = vmatprep.subr.bf16.mxu0 0
        %4956 = vmatpush2.bf16.msra.mxu0 0
        %4957 = vmatprep.subr.bf16.mxu0 0
        %4958 = vmatpush2.bf16.msra.mxu0 0
        %4959 = vmatprep.subr.bf16.mxu0 0
        %4960 = vmatpush2.bf16.msra.mxu0 0
        %4961 = vmatprep.subr.bf16.mxu0 0
        %4962 = vmatpush2.bf16.msra.mxu0 0
        %4963 = vmatprep.subr.bf16.mxu0 0
        %4964 = vmatpush2.bf16.msra.mxu0 0
        %4965 = vmatprep.subr.bf16.mxu0 0
        %4966 = vmatpush2.bf16.msra.mxu0 0
        %4967 = vmatprep.subr.bf16.mxu0 0
        %4968 = vmatpush2.bf16.msra.mxu0 0
        %4969 = vmatprep.mubr.bf16.mxu0 0
        %4970 = vmatmul.mubr.bf16.gmra.mxu0 %v4873
        %v4971 = vpop.f32.mrf.mxu0
        %v4972 = vadd.f32 0.0, %v4971
        %v4973 = vpop.f32.mrf.mxu0
        %v4974 = vpop.f32.mrf.mxu0
        %v4975 = vadd.f32 0.0, %v4974
        %v4976 = vpop.f32.mrf.mxu0
        %4977 = vmatprep.mubr.bf16.mxu0 0
        %4978 = vmatmul.mubr.bf16.gmra.mxu0 %v4874
        %v4979 = vpop.f32.mrf.mxu0
        %v4980 = vadd.f32 0.0, %v4979
        %v4981 = vpop.f32.mrf.mxu0
        %v4982 = vpop.f32.mrf.mxu0
        %v4983 = vadd.f32 0.0, %v4982
        %v4984 = vpop.f32.mrf.mxu0
        %4985 = vmatprep.mubr.bf16.mxu0 0
        %4986 = vmatmul.mubr.bf16.gmra.mxu0 %v4875
        %v4987 = vpop.f32.mrf.mxu0
        %v4988 = vadd.f32 0.0, %v4987
        %v4989 = vpop.f32.mrf.mxu0
        %v4990 = vpop.f32.mrf.mxu0
        %v4991 = vadd.f32 0.0, %v4990
        %v4992 = vpop.f32.mrf.mxu0
        %4993 = vmatprep.mubr.bf16.mxu0 0
        %4994 = vmatmul.mubr.bf16.gmra.mxu0 %v4876
        %v4995 = vpop.f32.mrf.mxu0
        %v4996 = vadd.f32 0.0, %v4995
        %v4997 = vpop.f32.mrf.mxu0
        %v4998 = vpop.f32.mrf.mxu0
        %v4999 = vadd.f32 0.0, %v4998
        %v5000 = vpop.f32.mrf.mxu0
        %5001 = vmatprep.mubr.bf16.mxu0 0
        %5002 = vmatmul.mubr.bf16.gmra.mxu0 %v4877
        %v5003 = vpop.f32.mrf.mxu0
        %v5004 = vadd.f32 0.0, %v5003
        %v5005 = vpop.f32.mrf.mxu0
        %v5006 = vpop.f32.mrf.mxu0
        %v5007 = vadd.f32 0.0, %v5006
        %v5008 = vpop.f32.mrf.mxu0
        %5009 = vmatprep.mubr.bf16.mxu0 0
        %5010 = vmatmul.mubr.bf16.gmra.mxu0 %v4878
        %v5011 = vpop.f32.mrf.mxu0
        %v5012 = vadd.f32 0.0, %v5011
        %v5013 = vpop.f32.mrf.mxu0
        %v5014 = vpop.f32.mrf.mxu0
        %v5015 = vadd.f32 0.0, %v5014
        %v5016 = vpop.f32.mrf.mxu0
        %5017 = vmatprep.mubr.bf16.mxu0 0
        %5018 = vmatmul.mubr.bf16.gmra.mxu0 %v4879
        %v5019 = vpop.f32.mrf.mxu0
        %v5020 = vadd.f32 0.0, %v5019
        %v5021 = vpop.f32.mrf.mxu0
        %v5022 = vpop.f32.mrf.mxu0
        %v5023 = vadd.f32 0.0, %v5022
        %v5024 = vpop.f32.mrf.mxu0
        %5025 = vmatprep.mubr.bf16.mxu0 0
        %5026 = vmatmul.mubr.bf16.gmra.mxu0 %v4880
        %v5027 = vpop.f32.mrf.mxu0
        %v5028 = vadd.f32 0.0, %v5027
        %v5029 = vpop.f32.mrf.mxu0
        %v5030 = vpop.f32.mrf.mxu0
        %v5031 = vadd.f32 0.0, %v5030
        %v5032 = vpop.f32.mrf.mxu0
        %5033 = vdwg.mxu0
        %v5034 = vrot.slane %v4972, 7
        %v5035 = vrot.slane %v4975, 7
        %v5036 = vrot.slane %v4980, 7
        %v5037 = vrot.slane %v4983, 7
        %v5038 = vrot.slane %v4988, 7
        %v5039 = vrot.slane %v4991, 7
        %v5040 = vrot.slane %v4996, 7
        %v5041 = vrot.slane %v4999, 7
        %v5042 = vrot.slane %v5004, 7
        %v5043 = vrot.slane %v5007, 7
        %v5044 = vrot.slane %v5012, 7
        %v5045 = vrot.slane %v5015, 7
        %v5046 = vrot.slane %v5020, 7
        %v5047 = vrot.slane %v5023, 7
        %v5048 = vrot.slane %v5028, 7
        %v5049 = vrot.slane %v5031, 7
        %v5050 = vsel %vm649, %v5048, %v5049
        %v5051 = vsel %vm649, %v5047, %v5048
        %v5052 = vsel %vm649, %v5046, %v5047
        %v5053 = vsel %vm649, %v5045, %v5046
        %v5054 = vsel %vm649, %v5044, %v5045
        %v5055 = vsel %vm649, %v5043, %v5044
        %v5056 = vsel %vm649, %v5042, %v5043
        %v5057 = vsel %vm649, %v5041, %v5042
        %v5058 = vsel %vm649, %v5040, %v5041
        %v5059 = vsel %vm649, %v5039, %v5040
        %v5060 = vsel %vm649, %v5038, %v5039
        %v5061 = vsel %vm649, %v5037, %v5038
        %v5062 = vsel %vm649, %v5036, %v5037
        %v5063 = vsel %vm649, %v5035, %v5036
        %v5064 = vsel %vm649, %v5034, %v5035
        %v5065 = vsel %vm649, %v5049, %v5034
        %v5066 = vsel %vm397, 0.0, %v5065
        %v5067 = vsel %vm398, 0.0, %v5064
        %v5068 = vsel %vm397, 0.0, %v5063
        %v5069 = vsel %vm398, 0.0, %v5062
        %v5070 = vsel %vm397, 0.0, %v5061
        %v5071 = vsel %vm398, 0.0, %v5060
        %v5072 = vsel %vm397, 0.0, %v5059
        %v5073 = vsel %vm398, 0.0, %v5058
        %v5074 = vsel %vm397, 0.0, %v5057
        %v5075 = vsel %vm398, 0.0, %v5056
        %v5076 = vsel %vm397, 0.0, %v5055
        %v5077 = vsel %vm398, 0.0, %v5054
        %v5078 = vsel %vm397, 0.0, %v5053
        %v5079 = vsel %vm398, 0.0, %v5052
        %v5080 = vsel %vm397, 0.0, %v5051
        %v5081 = vsel %vm398, 0.0, %v5050
        %s5082 = scalar_lea.vmem [#allocation9], 64
        %v5083 = vld [vmem:[%s5082] sm:$0xf]
        %v5084 = vld [vmem:[%s5082 + $0x4] sm:$0xf]
        %v5085 = vld [vmem:[%s5082 + $0x8] sm:$0xf]
        %v5086 = vld [vmem:[%s5082 + $0xc] sm:$0xf]
        %v5087 = vld [vmem:[%s5082 + $0x10] sm:$0xf]
        %v5088 = vld [vmem:[%s5082 + $0x14] sm:$0xf]
        %v5089 = vld [vmem:[%s5082 + $0x18] sm:$0xf]
        %v5090 = vld [vmem:[%s5082 + $0x1c] sm:$0xf]
        %v5091 = vld [vmem:[%s5082 + $0x20] sm:$0xf]
        %v5092 = vld [vmem:[%s5082 + $0x24] sm:$0xf]
        %v5093 = vld [vmem:[%s5082 + $0x28] sm:$0xf]
        %v5094 = vld [vmem:[%s5082 + $0x2c] sm:$0xf]
        %v5095 = vld [vmem:[%s5082 + $0x30] sm:$0xf]
        %v5096 = vld [vmem:[%s5082 + $0x34] sm:$0xf]
        %v5097 = vld [vmem:[%s5082 + $0x38] sm:$0xf]
        %v5098 = vld [vmem:[%s5082 + $0x3c] sm:$0xf]
        %v5115 = vunpack.c.l.b16 %v5083
        %v5116 = vunpack.c.l.b16 %v5084
        %v5117 = vunpack.c.l.b16 %v5085
        %v5118 = vunpack.c.l.b16 %v5086
        %v5119 = vunpack.c.l.b16 %v5087
        %v5120 = vunpack.c.l.b16 %v5088
        %v5121 = vunpack.c.l.b16 %v5089
        %v5122 = vunpack.c.l.b16 %v5090
        %v5123 = vunpack.c.l.b16 %v5091
        %v5124 = vunpack.c.l.b16 %v5092
        %v5125 = vunpack.c.l.b16 %v5093
        %v5126 = vunpack.c.l.b16 %v5094
        %v5127 = vunpack.c.l.b16 %v5095
        %v5128 = vunpack.c.l.b16 %v5096
        %v5129 = vunpack.c.l.b16 %v5097
        %v5130 = vunpack.c.l.b16 %v5098
        %v5131 = vpack.c.b16 %v5116, %v5115
        %v5132 = vpack.c.b16 %v5118, %v5117
        %v5133 = vpack.c.b16 %v5120, %v5119
        %v5134 = vpack.c.b16 %v5122, %v5121
        %v5135 = vpack.c.b16 %v5124, %v5123
        %v5136 = vpack.c.b16 %v5126, %v5125
        %v5137 = vpack.c.b16 %v5128, %v5127
        %v5138 = vpack.c.b16 %v5130, %v5129
        %5147 = vmatprep.subr.bf16.mxu0 0
        %5148 = vmatpush1.bf16.msra.mxu0 %v5138
        %5149 = vmatprep.subr.bf16.mxu0 0
        %5150 = vmatpush1.bf16.msra.mxu0 %v5137
        %5151 = vmatprep.subr.bf16.mxu0 0
        %5152 = vmatpush1.bf16.msra.mxu0 %v5136
        %5153 = vmatprep.subr.bf16.mxu0 0
        %5154 = vmatpush1.bf16.msra.mxu0 %v5135
        %5155 = vmatprep.subr.bf16.mxu0 0
        %5156 = vmatpush1.bf16.msra.mxu0 %v5134
        %5157 = vmatprep.subr.bf16.mxu0 0
        %5158 = vmatpush1.bf16.msra.mxu0 %v5133
        %5159 = vmatprep.subr.bf16.mxu0 0
        %5160 = vmatpush1.bf16.msra.mxu0 %v5132
        %5161 = vmatprep.subr.bf16.mxu0 0
        %5162 = vmatpush1.bf16.msra.mxu0 %v5131
        %5163 = vmatprep.subr.bf16.mxu0 0
        %5164 = vmatpush2.bf16.msra.mxu0 0
        %5165 = vmatprep.subr.bf16.mxu0 0
        %5166 = vmatpush2.bf16.msra.mxu0 0
        %5167 = vmatprep.subr.bf16.mxu0 0
        %5168 = vmatpush2.bf16.msra.mxu0 0
        %5169 = vmatprep.subr.bf16.mxu0 0
        %5170 = vmatpush2.bf16.msra.mxu0 0
        %5171 = vmatprep.subr.bf16.mxu0 0
        %5172 = vmatpush2.bf16.msra.mxu0 0
        %5173 = vmatprep.subr.bf16.mxu0 0
        %5174 = vmatpush2.bf16.msra.mxu0 0
        %5175 = vmatprep.subr.bf16.mxu0 0
        %5176 = vmatpush2.bf16.msra.mxu0 0
        %5177 = vmatprep.subr.bf16.mxu0 0
        %5178 = vmatpush2.bf16.msra.mxu0 0
        %5179 = vmatprep.mubr.bf16.mxu0 0
        %5180 = vmatmul.mubr.bf16.gmra.mxu0 %v4873
        %v5181 = vpop.f32.mrf.mxu0
        %v5182 = vadd.f32 0.0, %v5181
        %v5183 = vpop.f32.mrf.mxu0
        %v5184 = vpop.f32.mrf.mxu0
        %v5185 = vadd.f32 0.0, %v5184
        %v5186 = vpop.f32.mrf.mxu0
        %5187 = vmatprep.mubr.bf16.mxu0 0
        %5188 = vmatmul.mubr.bf16.gmra.mxu0 %v4874
        %v5189 = vpop.f32.mrf.mxu0
        %v5190 = vadd.f32 0.0, %v5189
        %v5191 = vpop.f32.mrf.mxu0
        %v5192 = vpop.f32.mrf.mxu0
        %v5193 = vadd.f32 0.0, %v5192
        %v5194 = vpop.f32.mrf.mxu0
        %5195 = vmatprep.mubr.bf16.mxu0 0
        %5196 = vmatmul.mubr.bf16.gmra.mxu0 %v4875
        %v5197 = vpop.f32.mrf.mxu0
        %v5198 = vadd.f32 0.0, %v5197
        %v5199 = vpop.f32.mrf.mxu0
        %v5200 = vpop.f32.mrf.mxu0
        %v5201 = vadd.f32 0.0, %v5200
        %v5202 = vpop.f32.mrf.mxu0
        %5203 = vmatprep.mubr.bf16.mxu0 0
        %5204 = vmatmul.mubr.bf16.gmra.mxu0 %v4876
        %v5205 = vpop.f32.mrf.mxu0
        %v5206 = vadd.f32 0.0, %v5205
        %v5207 = vpop.f32.mrf.mxu0
        %v5208 = vpop.f32.mrf.mxu0
        %v5209 = vadd.f32 0.0, %v5208
        %v5210 = vpop.f32.mrf.mxu0
        %5211 = vmatprep.mubr.bf16.mxu0 0
        %5212 = vmatmul.mubr.bf16.gmra.mxu0 %v4877
        %v5213 = vpop.f32.mrf.mxu0
        %v5214 = vadd.f32 0.0, %v5213
        %v5215 = vpop.f32.mrf.mxu0
        %v5216 = vpop.f32.mrf.mxu0
        %v5217 = vadd.f32 0.0, %v5216
        %v5218 = vpop.f32.mrf.mxu0
        %5219 = vmatprep.mubr.bf16.mxu0 0
        %5220 = vmatmul.mubr.bf16.gmra.mxu0 %v4878
        %v5221 = vpop.f32.mrf.mxu0
        %v5222 = vadd.f32 0.0, %v5221
        %v5223 = vpop.f32.mrf.mxu0
        %v5224 = vpop.f32.mrf.mxu0
        %v5225 = vadd.f32 0.0, %v5224
        %v5226 = vpop.f32.mrf.mxu0
        %5227 = vmatprep.mubr.bf16.mxu0 0
        %5228 = vmatmul.mubr.bf16.gmra.mxu0 %v4879
        %v5229 = vpop.f32.mrf.mxu0
        %v5230 = vadd.f32 0.0, %v5229
        %v5231 = vpop.f32.mrf.mxu0
        %v5232 = vpop.f32.mrf.mxu0
        %v5233 = vadd.f32 0.0, %v5232
        %v5234 = vpop.f32.mrf.mxu0
        %5235 = vmatprep.mubr.bf16.mxu0 0
        %5236 = vmatmul.mubr.bf16.gmra.mxu0 %v4880
        %v5237 = vpop.f32.mrf.mxu0
        %v5238 = vadd.f32 0.0, %v5237
        %v5239 = vpop.f32.mrf.mxu0
        %v5240 = vpop.f32.mrf.mxu0
        %v5241 = vadd.f32 0.0, %v5240
        %v5242 = vpop.f32.mrf.mxu0
        %5243 = vdwg.mxu0
        %v5244 = vadd.f32 %v5066, %v5182
        %v5245 = vadd.f32 %v5067, %v5185
        %v5246 = vadd.f32 %v5068, %v5190
        %v5247 = vadd.f32 %v5069, %v5193
        %v5248 = vadd.f32 %v5070, %v5198
        %v5249 = vadd.f32 %v5071, %v5201
        %v5250 = vadd.f32 %v5072, %v5206
        %v5251 = vadd.f32 %v5073, %v5209
        %v5252 = vadd.f32 %v5074, %v5214
        %v5253 = vadd.f32 %v5075, %v5217
        %v5254 = vadd.f32 %v5076, %v5222
        %v5255 = vadd.f32 %v5077, %v5225
        %v5256 = vadd.f32 %v5078, %v5230
        %v5257 = vadd.f32 %v5079, %v5233
        %v5258 = vadd.f32 %v5080, %v5238
        %v5259 = vadd.f32 %v5081, %v5241
        %s5260 = scalar_lea.vmem [#allocation9], 128
        %v5261 = vld [vmem:[%s5260] sm:$0xf]
        %v5262 = vld [vmem:[%s5260 + $0x4] sm:$0xf]
        %v5263 = vld [vmem:[%s5260 + $0x8] sm:$0xf]
        %v5264 = vld [vmem:[%s5260 + $0xc] sm:$0xf]
        %v5265 = vld [vmem:[%s5260 + $0x10] sm:$0xf]
        %v5266 = vld [vmem:[%s5260 + $0x14] sm:$0xf]
        %v5267 = vld [vmem:[%s5260 + $0x18] sm:$0xf]
        %v5268 = vld [vmem:[%s5260 + $0x1c] sm:$0xf]
        %v5269 = vld [vmem:[%s5260 + $0x20] sm:$0xf]
        %v5270 = vld [vmem:[%s5260 + $0x24] sm:$0xf]
        %v5271 = vld [vmem:[%s5260 + $0x28] sm:$0xf]
        %v5272 = vld [vmem:[%s5260 + $0x2c] sm:$0xf]
        %v5273 = vld [vmem:[%s5260 + $0x30] sm:$0xf]
        %v5274 = vld [vmem:[%s5260 + $0x34] sm:$0xf]
        %v5275 = vld [vmem:[%s5260 + $0x38] sm:$0xf]
        %v5276 = vld [vmem:[%s5260 + $0x3c] sm:$0xf]
        %v5293 = vunpack.c.l.b16 %v5261
        %v5294 = vunpack.c.l.b16 %v5262
        %v5295 = vunpack.c.l.b16 %v5263
        %v5296 = vunpack.c.l.b16 %v5264
        %v5297 = vunpack.c.l.b16 %v5265
        %v5298 = vunpack.c.l.b16 %v5266
        %v5299 = vunpack.c.l.b16 %v5267
        %v5300 = vunpack.c.l.b16 %v5268
        %v5301 = vunpack.c.l.b16 %v5269
        %v5302 = vunpack.c.l.b16 %v5270
        %v5303 = vunpack.c.l.b16 %v5271
        %v5304 = vunpack.c.l.b16 %v5272
        %v5305 = vunpack.c.l.b16 %v5273
        %v5306 = vunpack.c.l.b16 %v5274
        %v5307 = vunpack.c.l.b16 %v5275
        %v5308 = vunpack.c.l.b16 %v5276
        %v5309 = vpack.c.b16 %v5294, %v5293
        %v5310 = vpack.c.b16 %v5296, %v5295
        %v5311 = vpack.c.b16 %v5298, %v5297
        %v5312 = vpack.c.b16 %v5300, %v5299
        %v5313 = vpack.c.b16 %v5302, %v5301
        %v5314 = vpack.c.b16 %v5304, %v5303
        %v5315 = vpack.c.b16 %v5306, %v5305
        %v5316 = vpack.c.b16 %v5308, %v5307
        %5325 = vmatprep.subr.bf16.mxu0 0
        %5326 = vmatpush1.bf16.msra.mxu0 %v5316
        %5327 = vmatprep.subr.bf16.mxu0 0
        %5328 = vmatpush1.bf16.msra.mxu0 %v5315
        %5329 = vmatprep.subr.bf16.mxu0 0
        %5330 = vmatpush1.bf16.msra.mxu0 %v5314
        %5331 = vmatprep.subr.bf16.mxu0 0
        %5332 = vmatpush1.bf16.msra.mxu0 %v5313
        %5333 = vmatprep.subr.bf16.mxu0 0
        %5334 = vmatpush1.bf16.msra.mxu0 %v5312
        %5335 = vmatprep.subr.bf16.mxu0 0
        %5336 = vmatpush1.bf16.msra.mxu0 %v5311
        %5337 = vmatprep.subr.bf16.mxu0 0
        %5338 = vmatpush1.bf16.msra.mxu0 %v5310
        %5339 = vmatprep.subr.bf16.mxu0 0
        %5340 = vmatpush1.bf16.msra.mxu0 %v5309
        %5341 = vmatprep.subr.bf16.mxu0 0
        %5342 = vmatpush2.bf16.msra.mxu0 0
        %5343 = vmatprep.subr.bf16.mxu0 0
        %5344 = vmatpush2.bf16.msra.mxu0 0
        %5345 = vmatprep.subr.bf16.mxu0 0
        %5346 = vmatpush2.bf16.msra.mxu0 0
        %5347 = vmatprep.subr.bf16.mxu0 0
        %5348 = vmatpush2.bf16.msra.mxu0 0
        %5349 = vmatprep.subr.bf16.mxu0 0
        %5350 = vmatpush2.bf16.msra.mxu0 0
        %5351 = vmatprep.subr.bf16.mxu0 0
        %5352 = vmatpush2.bf16.msra.mxu0 0
        %5353 = vmatprep.subr.bf16.mxu0 0
        %5354 = vmatpush2.bf16.msra.mxu0 0
        %5355 = vmatprep.subr.bf16.mxu0 0
        %5356 = vmatpush2.bf16.msra.mxu0 0
        %5357 = vmatprep.mubr.bf16.mxu0 0
        %5358 = vmatmul.mubr.bf16.gmra.mxu0 %v4873
        %v5359 = vpop.f32.mrf.mxu0
        %v5360 = vadd.f32 0.0, %v5359
        %v5361 = vpop.f32.mrf.mxu0
        %v5362 = vpop.f32.mrf.mxu0
        %v5363 = vadd.f32 0.0, %v5362
        %v5364 = vpop.f32.mrf.mxu0
        %5365 = vmatprep.mubr.bf16.mxu0 0
        %5366 = vmatmul.mubr.bf16.gmra.mxu0 %v4874
        %v5367 = vpop.f32.mrf.mxu0
        %v5368 = vadd.f32 0.0, %v5367
        %v5369 = vpop.f32.mrf.mxu0
        %v5370 = vpop.f32.mrf.mxu0
        %v5371 = vadd.f32 0.0, %v5370
        %v5372 = vpop.f32.mrf.mxu0
        %5373 = vmatprep.mubr.bf16.mxu0 0
        %5374 = vmatmul.mubr.bf16.gmra.mxu0 %v4875
        %v5375 = vpop.f32.mrf.mxu0
        %v5376 = vadd.f32 0.0, %v5375
        %v5377 = vpop.f32.mrf.mxu0
        %v5378 = vpop.f32.mrf.mxu0
        %v5379 = vadd.f32 0.0, %v5378
        %v5380 = vpop.f32.mrf.mxu0
        %5381 = vmatprep.mubr.bf16.mxu0 0
        %5382 = vmatmul.mubr.bf16.gmra.mxu0 %v4876
        %v5383 = vpop.f32.mrf.mxu0
        %v5384 = vadd.f32 0.0, %v5383
        %v5385 = vpop.f32.mrf.mxu0
        %v5386 = vpop.f32.mrf.mxu0
        %v5387 = vadd.f32 0.0, %v5386
        %v5388 = vpop.f32.mrf.mxu0
        %5389 = vmatprep.mubr.bf16.mxu0 0
        %5390 = vmatmul.mubr.bf16.gmra.mxu0 %v4877
        %v5391 = vpop.f32.mrf.mxu0
        %v5392 = vadd.f32 0.0, %v5391
        %v5393 = vpop.f32.mrf.mxu0
        %v5394 = vpop.f32.mrf.mxu0
        %v5395 = vadd.f32 0.0, %v5394
        %v5396 = vpop.f32.mrf.mxu0
        %5397 = vmatprep.mubr.bf16.mxu0 0
        %5398 = vmatmul.mubr.bf16.gmra.mxu0 %v4878
        %v5399 = vpop.f32.mrf.mxu0
        %v5400 = vadd.f32 0.0, %v5399
        %v5401 = vpop.f32.mrf.mxu0
        %v5402 = vpop.f32.mrf.mxu0
        %v5403 = vadd.f32 0.0, %v5402
        %v5404 = vpop.f32.mrf.mxu0
        %5405 = vmatprep.mubr.bf16.mxu0 0
        %5406 = vmatmul.mubr.bf16.gmra.mxu0 %v4879
        %v5407 = vpop.f32.mrf.mxu0
        %v5408 = vadd.f32 0.0, %v5407
        %v5409 = vpop.f32.mrf.mxu0
        %v5410 = vpop.f32.mrf.mxu0
        %v5411 = vadd.f32 0.0, %v5410
        %v5412 = vpop.f32.mrf.mxu0
        %5413 = vmatprep.mubr.bf16.mxu0 0
        %5414 = vmatmul.mubr.bf16.gmra.mxu0 %v4880
        %v5415 = vpop.f32.mrf.mxu0
        %v5416 = vadd.f32 0.0, %v5415
        %v5417 = vpop.f32.mrf.mxu0
        %v5418 = vpop.f32.mrf.mxu0
        %v5419 = vadd.f32 0.0, %v5418
        %v5420 = vpop.f32.mrf.mxu0
        %5421 = vdwg.mxu0
        %v5422 = vrot.slane %v5360, 1
        %v5423 = vrot.slane %v5363, 1
        %v5424 = vrot.slane %v5368, 1
        %v5425 = vrot.slane %v5371, 1
        %v5426 = vrot.slane %v5376, 1
        %v5427 = vrot.slane %v5379, 1
        %v5428 = vrot.slane %v5384, 1
        %v5429 = vrot.slane %v5387, 1
        %v5430 = vrot.slane %v5392, 1
        %v5431 = vrot.slane %v5395, 1
        %v5432 = vrot.slane %v5400, 1
        %v5433 = vrot.slane %v5403, 1
        %v5434 = vrot.slane %v5408, 1
        %v5435 = vrot.slane %v5411, 1
        %v5436 = vrot.slane %v5416, 1
        %v5437 = vrot.slane %v5419, 1
        %v5438 = vsel %vm1038, %v5436, %v5437
        %v5439 = vsel %vm1038, %v5435, %v5436
        %v5440 = vsel %vm1038, %v5434, %v5435
        %v5441 = vsel %vm1038, %v5433, %v5434
        %v5442 = vsel %vm1038, %v5432, %v5433
        %v5443 = vsel %vm1038, %v5431, %v5432
        %v5444 = vsel %vm1038, %v5430, %v5431
        %v5445 = vsel %vm1038, %v5429, %v5430
        %v5446 = vsel %vm1038, %v5428, %v5429
        %v5447 = vsel %vm1038, %v5427, %v5428
        %v5448 = vsel %vm1038, %v5426, %v5427
        %v5449 = vsel %vm1038, %v5425, %v5426
        %v5450 = vsel %vm1038, %v5424, %v5425
        %v5451 = vsel %vm1038, %v5423, %v5424
        %v5452 = vsel %vm1038, %v5422, %v5423
        %v5453 = vsel %vm1038, %v5437, %v5422
        %v5454 = vsel %vm399, 0.0, %v5452
        %v5455 = vsel %vm400, 0.0, %v5451
        %v5456 = vsel %vm399, 0.0, %v5450
        %v5457 = vsel %vm400, 0.0, %v5449
        %v5458 = vsel %vm399, 0.0, %v5448
        %v5459 = vsel %vm400, 0.0, %v5447
        %v5460 = vsel %vm399, 0.0, %v5446
        %v5461 = vsel %vm400, 0.0, %v5445
        %v5462 = vsel %vm399, 0.0, %v5444
        %v5463 = vsel %vm400, 0.0, %v5443
        %v5464 = vsel %vm399, 0.0, %v5442
        %v5465 = vsel %vm400, 0.0, %v5441
        %v5466 = vsel %vm399, 0.0, %v5440
        %v5467 = vsel %vm400, 0.0, %v5439
        %v5468 = vsel %vm399, 0.0, %v5438
        %v5469 = vsel %vm400, 0.0, %v5453
        %v5470 = vadd.f32 %v5244, %v5454
        %v5471 = vadd.f32 %v5245, %v5455
        %v5472 = vadd.f32 %v5246, %v5456
        %v5473 = vadd.f32 %v5247, %v5457
        %v5474 = vadd.f32 %v5248, %v5458
        %v5475 = vadd.f32 %v5249, %v5459
        %v5476 = vadd.f32 %v5250, %v5460
        %v5477 = vadd.f32 %v5251, %v5461
        %v5478 = vadd.f32 %v5252, %v5462
        %v5479 = vadd.f32 %v5253, %v5463
        %v5480 = vadd.f32 %v5254, %v5464
        %v5481 = vadd.f32 %v5255, %v5465
        %v5482 = vadd.f32 %v5256, %v5466
        %v5483 = vadd.f32 %v5257, %v5467
        %v5484 = vadd.f32 %v5258, %v5468
        %v5485 = vadd.f32 %v5259, %v5469
        %v5486 = vld [vmem:[%s2601] sm:$0xf]
        %v5487 = vld [vmem:[%s2601 + $0x4] sm:$0xf]
        %v5488 = vld [vmem:[%s2601 + $0x8] sm:$0xf]
        %v5489 = vld [vmem:[%s2601 + $0xc] sm:$0xf]
        %v5490 = vld [vmem:[%s2601 + $0x10] sm:$0xf]
        %v5491 = vld [vmem:[%s2601 + $0x14] sm:$0xf]
        %v5492 = vld [vmem:[%s2601 + $0x18] sm:$0xf]
        %v5493 = vld [vmem:[%s2601 + $0x1c] sm:$0xf]
        %v5494 = vld [vmem:[%s2601 + $0x20] sm:$0xf]
        %v5495 = vld [vmem:[%s2601 + $0x24] sm:$0xf]
        %v5496 = vld [vmem:[%s2601 + $0x28] sm:$0xf]
        %v5497 = vld [vmem:[%s2601 + $0x2c] sm:$0xf]
        %v5498 = vld [vmem:[%s2601 + $0x30] sm:$0xf]
        %v5499 = vld [vmem:[%s2601 + $0x34] sm:$0xf]
        %v5500 = vld [vmem:[%s2601 + $0x38] sm:$0xf]
        %v5501 = vld [vmem:[%s2601 + $0x3c] sm:$0xf]
        %s5502 = scalar_lea.vmem [#allocation9], 192
        %v5503 = vld [vmem:[%s5502] sm:$0xf]
        %v5504 = vld [vmem:[%s5502 + $0x4] sm:$0xf]
        %v5505 = vld [vmem:[%s5502 + $0x8] sm:$0xf]
        %v5506 = vld [vmem:[%s5502 + $0xc] sm:$0xf]
        %v5507 = vld [vmem:[%s5502 + $0x10] sm:$0xf]
        %v5508 = vld [vmem:[%s5502 + $0x14] sm:$0xf]
        %v5509 = vld [vmem:[%s5502 + $0x18] sm:$0xf]
        %v5510 = vld [vmem:[%s5502 + $0x1c] sm:$0xf]
        %v5511 = vld [vmem:[%s5502 + $0x20] sm:$0xf]
        %v5512 = vld [vmem:[%s5502 + $0x24] sm:$0xf]
        %v5513 = vld [vmem:[%s5502 + $0x28] sm:$0xf]
        %v5514 = vld [vmem:[%s5502 + $0x2c] sm:$0xf]
        %v5515 = vld [vmem:[%s5502 + $0x30] sm:$0xf]
        %v5516 = vld [vmem:[%s5502 + $0x34] sm:$0xf]
        %v5517 = vld [vmem:[%s5502 + $0x38] sm:$0xf]
        %v5518 = vld [vmem:[%s5502 + $0x3c] sm:$0xf]
        %v5535 = vunpack.c.l.b16 %v5486
        %v5536 = vunpack.c.l.b16 %v5487
        %v5537 = vunpack.c.l.b16 %v5488
        %v5538 = vunpack.c.l.b16 %v5489
        %v5539 = vunpack.c.l.b16 %v5490
        %v5540 = vunpack.c.l.b16 %v5491
        %v5541 = vunpack.c.l.b16 %v5492
        %v5542 = vunpack.c.l.b16 %v5493
        %v5543 = vunpack.c.l.b16 %v5494
        %v5544 = vunpack.c.l.b16 %v5495
        %v5545 = vunpack.c.l.b16 %v5496
        %v5546 = vunpack.c.l.b16 %v5497
        %v5547 = vunpack.c.l.b16 %v5498
        %v5548 = vunpack.c.l.b16 %v5499
        %v5549 = vunpack.c.l.b16 %v5500
        %v5550 = vunpack.c.l.b16 %v5501
        %v5551 = vpack.c.b16 %v5536, %v5535
        %v5552 = vpack.c.b16 %v5538, %v5537
        %v5553 = vpack.c.b16 %v5540, %v5539
        %v5554 = vpack.c.b16 %v5542, %v5541
        %v5555 = vpack.c.b16 %v5544, %v5543
        %v5556 = vpack.c.b16 %v5546, %v5545
        %v5557 = vpack.c.b16 %v5548, %v5547
        %v5558 = vpack.c.b16 %v5550, %v5549
        %v5583 = vunpack.c.l.b16 %v5503
        %v5584 = vunpack.c.l.b16 %v5504
        %v5585 = vunpack.c.l.b16 %v5505
        %v5586 = vunpack.c.l.b16 %v5506
        %v5587 = vunpack.c.l.b16 %v5507
        %v5588 = vunpack.c.l.b16 %v5508
        %v5589 = vunpack.c.l.b16 %v5509
        %v5590 = vunpack.c.l.b16 %v5510
        %v5591 = vunpack.c.l.b16 %v5511
        %v5592 = vunpack.c.l.b16 %v5512
        %v5593 = vunpack.c.l.b16 %v5513
        %v5594 = vunpack.c.l.b16 %v5514
        %v5595 = vunpack.c.l.b16 %v5515
        %v5596 = vunpack.c.l.b16 %v5516
        %v5597 = vunpack.c.l.b16 %v5517
        %v5598 = vunpack.c.l.b16 %v5518
        %v5599 = vpack.c.b16 %v5584, %v5583
        %v5600 = vpack.c.b16 %v5586, %v5585
        %v5601 = vpack.c.b16 %v5588, %v5587
        %v5602 = vpack.c.b16 %v5590, %v5589
        %v5603 = vpack.c.b16 %v5592, %v5591
        %v5604 = vpack.c.b16 %v5594, %v5593
        %v5605 = vpack.c.b16 %v5596, %v5595
        %v5606 = vpack.c.b16 %v5598, %v5597
        %5615 = vmatprep.subr.bf16.mxu0 0
        %5616 = vmatpush1.bf16.msra.mxu0 %v5606
        %5617 = vmatprep.subr.bf16.mxu0 0
        %5618 = vmatpush1.bf16.msra.mxu0 %v5605
        %5619 = vmatprep.subr.bf16.mxu0 0
        %5620 = vmatpush1.bf16.msra.mxu0 %v5604
        %5621 = vmatprep.subr.bf16.mxu0 0
        %5622 = vmatpush1.bf16.msra.mxu0 %v5603
        %5623 = vmatprep.subr.bf16.mxu0 0
        %5624 = vmatpush1.bf16.msra.mxu0 %v5602
        %5625 = vmatprep.subr.bf16.mxu0 0
        %5626 = vmatpush1.bf16.msra.mxu0 %v5601
        %5627 = vmatprep.subr.bf16.mxu0 0
        %5628 = vmatpush1.bf16.msra.mxu0 %v5600
        %5629 = vmatprep.subr.bf16.mxu0 0
        %5630 = vmatpush1.bf16.msra.mxu0 %v5599
        %5631 = vmatprep.subr.bf16.mxu0 0
        %5632 = vmatpush2.bf16.msra.mxu0 0
        %5633 = vmatprep.subr.bf16.mxu0 0
        %5634 = vmatpush2.bf16.msra.mxu0 0
        %5635 = vmatprep.subr.bf16.mxu0 0
        %5636 = vmatpush2.bf16.msra.mxu0 0
        %5637 = vmatprep.subr.bf16.mxu0 0
        %5638 = vmatpush2.bf16.msra.mxu0 0
        %5639 = vmatprep.subr.bf16.mxu0 0
        %5640 = vmatpush2.bf16.msra.mxu0 0
        %5641 = vmatprep.subr.bf16.mxu0 0
        %5642 = vmatpush2.bf16.msra.mxu0 0
        %5643 = vmatprep.subr.bf16.mxu0 0
        %5644 = vmatpush2.bf16.msra.mxu0 0
        %5645 = vmatprep.subr.bf16.mxu0 0
        %5646 = vmatpush2.bf16.msra.mxu0 0
        %5647 = vmatprep.mubr.bf16.mxu0 0
        %5648 = vmatmul.mubr.bf16.gmra.mxu0 %v5551
        %v5649 = vpop.f32.mrf.mxu0
        %v5650 = vadd.f32 0.0, %v5649
        %v5651 = vpop.f32.mrf.mxu0
        %v5652 = vpop.f32.mrf.mxu0
        %v5653 = vadd.f32 0.0, %v5652
        %v5654 = vpop.f32.mrf.mxu0
        %5655 = vmatprep.mubr.bf16.mxu0 0
        %5656 = vmatmul.mubr.bf16.gmra.mxu0 %v5552
        %v5657 = vpop.f32.mrf.mxu0
        %v5658 = vadd.f32 0.0, %v5657
        %v5659 = vpop.f32.mrf.mxu0
        %v5660 = vpop.f32.mrf.mxu0
        %v5661 = vadd.f32 0.0, %v5660
        %v5662 = vpop.f32.mrf.mxu0
        %5663 = vmatprep.mubr.bf16.mxu0 0
        %5664 = vmatmul.mubr.bf16.gmra.mxu0 %v5553
        %v5665 = vpop.f32.mrf.mxu0
        %v5666 = vadd.f32 0.0, %v5665
        %v5667 = vpop.f32.mrf.mxu0
        %v5668 = vpop.f32.mrf.mxu0
        %v5669 = vadd.f32 0.0, %v5668
        %v5670 = vpop.f32.mrf.mxu0
        %5671 = vmatprep.mubr.bf16.mxu0 0
        %5672 = vmatmul.mubr.bf16.gmra.mxu0 %v5554
        %v5673 = vpop.f32.mrf.mxu0
        %v5674 = vadd.f32 0.0, %v5673
        %v5675 = vpop.f32.mrf.mxu0
        %v5676 = vpop.f32.mrf.mxu0
        %v5677 = vadd.f32 0.0, %v5676
        %v5678 = vpop.f32.mrf.mxu0
        %5679 = vmatprep.mubr.bf16.mxu0 0
        %5680 = vmatmul.mubr.bf16.gmra.mxu0 %v5555
        %v5681 = vpop.f32.mrf.mxu0
        %v5682 = vadd.f32 0.0, %v5681
        %v5683 = vpop.f32.mrf.mxu0
        %v5684 = vpop.f32.mrf.mxu0
        %v5685 = vadd.f32 0.0, %v5684
        %v5686 = vpop.f32.mrf.mxu0
        %5687 = vmatprep.mubr.bf16.mxu0 0
        %5688 = vmatmul.mubr.bf16.gmra.mxu0 %v5556
        %v5689 = vpop.f32.mrf.mxu0
        %v5690 = vadd.f32 0.0, %v5689
        %v5691 = vpop.f32.mrf.mxu0
        %v5692 = vpop.f32.mrf.mxu0
        %v5693 = vadd.f32 0.0, %v5692
        %v5694 = vpop.f32.mrf.mxu0
        %5695 = vmatprep.mubr.bf16.mxu0 0
        %5696 = vmatmul.mubr.bf16.gmra.mxu0 %v5557
        %v5697 = vpop.f32.mrf.mxu0
        %v5698 = vadd.f32 0.0, %v5697
        %v5699 = vpop.f32.mrf.mxu0
        %v5700 = vpop.f32.mrf.mxu0
        %v5701 = vadd.f32 0.0, %v5700
        %v5702 = vpop.f32.mrf.mxu0
        %5703 = vmatprep.mubr.bf16.mxu0 0
        %5704 = vmatmul.mubr.bf16.gmra.mxu0 %v5558
        %v5705 = vpop.f32.mrf.mxu0
        %v5706 = vadd.f32 0.0, %v5705
        %v5707 = vpop.f32.mrf.mxu0
        %v5708 = vpop.f32.mrf.mxu0
        %v5709 = vadd.f32 0.0, %v5708
        %v5710 = vpop.f32.mrf.mxu0
        %5711 = vdwg.mxu0
        %v5712 = vrot.slane %v5650, 7
        %v5713 = vrot.slane %v5653, 7
        %v5714 = vrot.slane %v5658, 7
        %v5715 = vrot.slane %v5661, 7
        %v5716 = vrot.slane %v5666, 7
        %v5717 = vrot.slane %v5669, 7
        %v5718 = vrot.slane %v5674, 7
        %v5719 = vrot.slane %v5677, 7
        %v5720 = vrot.slane %v5682, 7
        %v5721 = vrot.slane %v5685, 7
        %v5722 = vrot.slane %v5690, 7
        %v5723 = vrot.slane %v5693, 7
        %v5724 = vrot.slane %v5698, 7
        %v5725 = vrot.slane %v5701, 7
        %v5726 = vrot.slane %v5706, 7
        %v5727 = vrot.slane %v5709, 7
        %v5728 = vsel %vm649, %v5726, %v5727
        %v5729 = vsel %vm649, %v5725, %v5726
        %v5730 = vsel %vm649, %v5724, %v5725
        %v5731 = vsel %vm649, %v5723, %v5724
        %v5732 = vsel %vm649, %v5722, %v5723
        %v5733 = vsel %vm649, %v5721, %v5722
        %v5734 = vsel %vm649, %v5720, %v5721
        %v5735 = vsel %vm649, %v5719, %v5720
        %v5736 = vsel %vm649, %v5718, %v5719
        %v5737 = vsel %vm649, %v5717, %v5718
        %v5738 = vsel %vm649, %v5716, %v5717
        %v5739 = vsel %vm649, %v5715, %v5716
        %v5740 = vsel %vm649, %v5714, %v5715
        %v5741 = vsel %vm649, %v5713, %v5714
        %v5742 = vsel %vm649, %v5712, %v5713
        %v5743 = vsel %vm649, %v5727, %v5712
        %v5744 = vsel %vm397, 0.0, %v5743
        %v5745 = vsel %vm398, 0.0, %v5742
        %v5746 = vsel %vm397, 0.0, %v5741
        %v5747 = vsel %vm398, 0.0, %v5740
        %v5748 = vsel %vm397, 0.0, %v5739
        %v5749 = vsel %vm398, 0.0, %v5738
        %v5750 = vsel %vm397, 0.0, %v5737
        %v5751 = vsel %vm398, 0.0, %v5736
        %v5752 = vsel %vm397, 0.0, %v5735
        %v5753 = vsel %vm398, 0.0, %v5734
        %v5754 = vsel %vm397, 0.0, %v5733
        %v5755 = vsel %vm398, 0.0, %v5732
        %v5756 = vsel %vm397, 0.0, %v5731
        %v5757 = vsel %vm398, 0.0, %v5730
        %v5758 = vsel %vm397, 0.0, %v5729
        %v5759 = vsel %vm398, 0.0, %v5728
        %v5760 = vadd.f32 %v5470, %v5744
        %v5761 = vadd.f32 %v5471, %v5745
        %v5762 = vadd.f32 %v5472, %v5746
        %v5763 = vadd.f32 %v5473, %v5747
        %v5764 = vadd.f32 %v5474, %v5748
        %v5765 = vadd.f32 %v5475, %v5749
        %v5766 = vadd.f32 %v5476, %v5750
        %v5767 = vadd.f32 %v5477, %v5751
        %v5768 = vadd.f32 %v5478, %v5752
        %v5769 = vadd.f32 %v5479, %v5753
        %v5770 = vadd.f32 %v5480, %v5754
        %v5771 = vadd.f32 %v5481, %v5755
        %v5772 = vadd.f32 %v5482, %v5756
        %v5773 = vadd.f32 %v5483, %v5757
        %v5774 = vadd.f32 %v5484, %v5758
        %v5775 = vadd.f32 %v5485, %v5759
        %s5776 = scalar_lea.vmem [#allocation9], 256
        %v5777 = vld [vmem:[%s5776] sm:$0xf]
        %v5778 = vld [vmem:[%s5776 + $0x4] sm:$0xf]
        %v5779 = vld [vmem:[%s5776 + $0x8] sm:$0xf]
        %v5780 = vld [vmem:[%s5776 + $0xc] sm:$0xf]
        %v5781 = vld [vmem:[%s5776 + $0x10] sm:$0xf]
        %v5782 = vld [vmem:[%s5776 + $0x14] sm:$0xf]
        %v5783 = vld [vmem:[%s5776 + $0x18] sm:$0xf]
        %v5784 = vld [vmem:[%s5776 + $0x1c] sm:$0xf]
        %v5785 = vld [vmem:[%s5776 + $0x20] sm:$0xf]
        %v5786 = vld [vmem:[%s5776 + $0x24] sm:$0xf]
        %v5787 = vld [vmem:[%s5776 + $0x28] sm:$0xf]
        %v5788 = vld [vmem:[%s5776 + $0x2c] sm:$0xf]
        %v5789 = vld [vmem:[%s5776 + $0x30] sm:$0xf]
        %v5790 = vld [vmem:[%s5776 + $0x34] sm:$0xf]
        %v5791 = vld [vmem:[%s5776 + $0x38] sm:$0xf]
        %v5792 = vld [vmem:[%s5776 + $0x3c] sm:$0xf]
        %v5809 = vunpack.c.l.b16 %v5777
        %v5810 = vunpack.c.l.b16 %v5778
        %v5811 = vunpack.c.l.b16 %v5779
        %v5812 = vunpack.c.l.b16 %v5780
        %v5813 = vunpack.c.l.b16 %v5781
        %v5814 = vunpack.c.l.b16 %v5782
        %v5815 = vunpack.c.l.b16 %v5783
        %v5816 = vunpack.c.l.b16 %v5784
        %v5817 = vunpack.c.l.b16 %v5785
        %v5818 = vunpack.c.l.b16 %v5786
        %v5819 = vunpack.c.l.b16 %v5787
        %v5820 = vunpack.c.l.b16 %v5788
        %v5821 = vunpack.c.l.b16 %v5789
        %v5822 = vunpack.c.l.b16 %v5790
        %v5823 = vunpack.c.l.b16 %v5791
        %v5824 = vunpack.c.l.b16 %v5792
        %v5825 = vpack.c.b16 %v5810, %v5809
        %v5826 = vpack.c.b16 %v5812, %v5811
        %v5827 = vpack.c.b16 %v5814, %v5813
        %v5828 = vpack.c.b16 %v5816, %v5815
        %v5829 = vpack.c.b16 %v5818, %v5817
        %v5830 = vpack.c.b16 %v5820, %v5819
        %v5831 = vpack.c.b16 %v5822, %v5821
        %v5832 = vpack.c.b16 %v5824, %v5823
        %5841 = vmatprep.subr.bf16.mxu0 0
        %5842 = vmatpush1.bf16.msra.mxu0 %v5832
        %5843 = vmatprep.subr.bf16.mxu0 0
        %5844 = vmatpush1.bf16.msra.mxu0 %v5831
        %5845 = vmatprep.subr.bf16.mxu0 0
        %5846 = vmatpush1.bf16.msra.mxu0 %v5830
        %5847 = vmatprep.subr.bf16.mxu0 0
        %5848 = vmatpush1.bf16.msra.mxu0 %v5829
        %5849 = vmatprep.subr.bf16.mxu0 0
        %5850 = vmatpush1.bf16.msra.mxu0 %v5828
        %5851 = vmatprep.subr.bf16.mxu0 0
        %5852 = vmatpush1.bf16.msra.mxu0 %v5827
        %5853 = vmatprep.subr.bf16.mxu0 0
        %5854 = vmatpush1.bf16.msra.mxu0 %v5826
        %5855 = vmatprep.subr.bf16.mxu0 0
        %5856 = vmatpush1.bf16.msra.mxu0 %v5825
        %5857 = vmatprep.subr.bf16.mxu0 0
        %5858 = vmatpush2.bf16.msra.mxu0 0
        %5859 = vmatprep.subr.bf16.mxu0 0
        %5860 = vmatpush2.bf16.msra.mxu0 0
        %5861 = vmatprep.subr.bf16.mxu0 0
        %5862 = vmatpush2.bf16.msra.mxu0 0
        %5863 = vmatprep.subr.bf16.mxu0 0
        %5864 = vmatpush2.bf16.msra.mxu0 0
        %5865 = vmatprep.subr.bf16.mxu0 0
        %5866 = vmatpush2.bf16.msra.mxu0 0
        %5867 = vmatprep.subr.bf16.mxu0 0
        %5868 = vmatpush2.bf16.msra.mxu0 0
        %5869 = vmatprep.subr.bf16.mxu0 0
        %5870 = vmatpush2.bf16.msra.mxu0 0
        %5871 = vmatprep.subr.bf16.mxu0 0
        %5872 = vmatpush2.bf16.msra.mxu0 0
        %5873 = vmatprep.mubr.bf16.mxu0 0
        %5874 = vmatmul.mubr.bf16.gmra.mxu0 %v5551
        %v5875 = vpop.f32.mrf.mxu0
        %v5876 = vadd.f32 0.0, %v5875
        %v5877 = vpop.f32.mrf.mxu0
        %v5878 = vpop.f32.mrf.mxu0
        %v5879 = vadd.f32 0.0, %v5878
        %v5880 = vpop.f32.mrf.mxu0
        %5881 = vmatprep.mubr.bf16.mxu0 0
        %5882 = vmatmul.mubr.bf16.gmra.mxu0 %v5552
        %v5883 = vpop.f32.mrf.mxu0
        %v5884 = vadd.f32 0.0, %v5883
        %v5885 = vpop.f32.mrf.mxu0
        %v5886 = vpop.f32.mrf.mxu0
        %v5887 = vadd.f32 0.0, %v5886
        %v5888 = vpop.f32.mrf.mxu0
        %5889 = vmatprep.mubr.bf16.mxu0 0
        %5890 = vmatmul.mubr.bf16.gmra.mxu0 %v5553
        %v5891 = vpop.f32.mrf.mxu0
        %v5892 = vadd.f32 0.0, %v5891
        %v5893 = vpop.f32.mrf.mxu0
        %v5894 = vpop.f32.mrf.mxu0
        %v5895 = vadd.f32 0.0, %v5894
        %v5896 = vpop.f32.mrf.mxu0
        %5897 = vmatprep.mubr.bf16.mxu0 0
        %5898 = vmatmul.mubr.bf16.gmra.mxu0 %v5554
        %v5899 = vpop.f32.mrf.mxu0
        %v5900 = vadd.f32 0.0, %v5899
        %v5901 = vpop.f32.mrf.mxu0
        %v5902 = vpop.f32.mrf.mxu0
        %v5903 = vadd.f32 0.0, %v5902
        %v5904 = vpop.f32.mrf.mxu0
        %5905 = vmatprep.mubr.bf16.mxu0 0
        %5906 = vmatmul.mubr.bf16.gmra.mxu0 %v5555
        %v5907 = vpop.f32.mrf.mxu0
        %v5908 = vadd.f32 0.0, %v5907
        %v5909 = vpop.f32.mrf.mxu0
        %v5910 = vpop.f32.mrf.mxu0
        %v5911 = vadd.f32 0.0, %v5910
        %v5912 = vpop.f32.mrf.mxu0
        %5913 = vmatprep.mubr.bf16.mxu0 0
        %5914 = vmatmul.mubr.bf16.gmra.mxu0 %v5556
        %v5915 = vpop.f32.mrf.mxu0
        %v5916 = vadd.f32 0.0, %v5915
        %v5917 = vpop.f32.mrf.mxu0
        %v5918 = vpop.f32.mrf.mxu0
        %v5919 = vadd.f32 0.0, %v5918
        %v5920 = vpop.f32.mrf.mxu0
        %5921 = vmatprep.mubr.bf16.mxu0 0
        %5922 = vmatmul.mubr.bf16.gmra.mxu0 %v5557
        %v5923 = vpop.f32.mrf.mxu0
        %v5924 = vadd.f32 0.0, %v5923
        %v5925 = vpop.f32.mrf.mxu0
        %v5926 = vpop.f32.mrf.mxu0
        %v5927 = vadd.f32 0.0, %v5926
        %v5928 = vpop.f32.mrf.mxu0
        %5929 = vmatprep.mubr.bf16.mxu0 0
        %5930 = vmatmul.mubr.bf16.gmra.mxu0 %v5558
        %v5931 = vpop.f32.mrf.mxu0
        %v5932 = vadd.f32 0.0, %v5931
        %v5933 = vpop.f32.mrf.mxu0
        %v5934 = vpop.f32.mrf.mxu0
        %v5935 = vadd.f32 0.0, %v5934
        %v5936 = vpop.f32.mrf.mxu0
        %5937 = vdwg.mxu0
        %v5938 = vadd.f32 %v5760, %v5876
        %v5939 = vadd.f32 %v5761, %v5879
        %v5940 = vadd.f32 %v5762, %v5884
        %v5941 = vadd.f32 %v5763, %v5887
        %v5942 = vadd.f32 %v5764, %v5892
        %v5943 = vadd.f32 %v5765, %v5895
        %v5944 = vadd.f32 %v5766, %v5900
        %v5945 = vadd.f32 %v5767, %v5903
        %v5946 = vadd.f32 %v5768, %v5908
        %v5947 = vadd.f32 %v5769, %v5911
        %v5948 = vadd.f32 %v5770, %v5916
        %v5949 = vadd.f32 %v5771, %v5919
        %v5950 = vadd.f32 %v5772, %v5924
        %v5951 = vadd.f32 %v5773, %v5927
        %v5952 = vadd.f32 %v5774, %v5932
        %v5953 = vadd.f32 %v5775, %v5935
        %s5954 = scalar_lea.vmem [#allocation9], 320
        %v5955 = vld [vmem:[%s5954] sm:$0xf]
        %v5956 = vld [vmem:[%s5954 + $0x4] sm:$0xf]
        %v5957 = vld [vmem:[%s5954 + $0x8] sm:$0xf]
        %v5958 = vld [vmem:[%s5954 + $0xc] sm:$0xf]
        %v5959 = vld [vmem:[%s5954 + $0x10] sm:$0xf]
        %v5960 = vld [vmem:[%s5954 + $0x14] sm:$0xf]
        %v5961 = vld [vmem:[%s5954 + $0x18] sm:$0xf]
        %v5962 = vld [vmem:[%s5954 + $0x1c] sm:$0xf]
        %v5963 = vld [vmem:[%s5954 + $0x20] sm:$0xf]
        %v5964 = vld [vmem:[%s5954 + $0x24] sm:$0xf]
        %v5965 = vld [vmem:[%s5954 + $0x28] sm:$0xf]
        %v5966 = vld [vmem:[%s5954 + $0x2c] sm:$0xf]
        %v5967 = vld [vmem:[%s5954 + $0x30] sm:$0xf]
        %v5968 = vld [vmem:[%s5954 + $0x34] sm:$0xf]
        %v5969 = vld [vmem:[%s5954 + $0x38] sm:$0xf]
        %v5970 = vld [vmem:[%s5954 + $0x3c] sm:$0xf]
        %v5987 = vunpack.c.l.b16 %v5955
        %v5988 = vunpack.c.l.b16 %v5956
        %v5989 = vunpack.c.l.b16 %v5957
        %v5990 = vunpack.c.l.b16 %v5958
        %v5991 = vunpack.c.l.b16 %v5959
        %v5992 = vunpack.c.l.b16 %v5960
        %v5993 = vunpack.c.l.b16 %v5961
        %v5994 = vunpack.c.l.b16 %v5962
        %v5995 = vunpack.c.l.b16 %v5963
        %v5996 = vunpack.c.l.b16 %v5964
        %v5997 = vunpack.c.l.b16 %v5965
        %v5998 = vunpack.c.l.b16 %v5966
        %v5999 = vunpack.c.l.b16 %v5967
        %v6000 = vunpack.c.l.b16 %v5968
        %v6001 = vunpack.c.l.b16 %v5969
        %v6002 = vunpack.c.l.b16 %v5970
        %v6003 = vpack.c.b16 %v5988, %v5987
        %v6004 = vpack.c.b16 %v5990, %v5989
        %v6005 = vpack.c.b16 %v5992, %v5991
        %v6006 = vpack.c.b16 %v5994, %v5993
        %v6007 = vpack.c.b16 %v5996, %v5995
        %v6008 = vpack.c.b16 %v5998, %v5997
        %v6009 = vpack.c.b16 %v6000, %v5999
        %v6010 = vpack.c.b16 %v6002, %v6001
        %6019 = vmatprep.subr.bf16.mxu0 0
        %6020 = vmatpush1.bf16.msra.mxu0 %v6010
        %6021 = vmatprep.subr.bf16.mxu0 0
        %6022 = vmatpush1.bf16.msra.mxu0 %v6009
        %6023 = vmatprep.subr.bf16.mxu0 0
        %6024 = vmatpush1.bf16.msra.mxu0 %v6008
        %6025 = vmatprep.subr.bf16.mxu0 0
        %6026 = vmatpush1.bf16.msra.mxu0 %v6007
        %6027 = vmatprep.subr.bf16.mxu0 0
        %6028 = vmatpush1.bf16.msra.mxu0 %v6006
        %6029 = vmatprep.subr.bf16.mxu0 0
        %6030 = vmatpush1.bf16.msra.mxu0 %v6005
        %6031 = vmatprep.subr.bf16.mxu0 0
        %6032 = vmatpush1.bf16.msra.mxu0 %v6004
        %6033 = vmatprep.subr.bf16.mxu0 0
        %6034 = vmatpush1.bf16.msra.mxu0 %v6003
        %6035 = vmatprep.subr.bf16.mxu0 0
        %6036 = vmatpush2.bf16.msra.mxu0 0
        %6037 = vmatprep.subr.bf16.mxu0 0
        %6038 = vmatpush2.bf16.msra.mxu0 0
        %6039 = vmatprep.subr.bf16.mxu0 0
        %6040 = vmatpush2.bf16.msra.mxu0 0
        %6041 = vmatprep.subr.bf16.mxu0 0
        %6042 = vmatpush2.bf16.msra.mxu0 0
        %6043 = vmatprep.subr.bf16.mxu0 0
        %6044 = vmatpush2.bf16.msra.mxu0 0
        %6045 = vmatprep.subr.bf16.mxu0 0
        %6046 = vmatpush2.bf16.msra.mxu0 0
        %6047 = vmatprep.subr.bf16.mxu0 0
        %6048 = vmatpush2.bf16.msra.mxu0 0
        %6049 = vmatprep.subr.bf16.mxu0 0
        %6050 = vmatpush2.bf16.msra.mxu0 0
        %6051 = vmatprep.mubr.bf16.mxu0 0
        %6052 = vmatmul.mubr.bf16.gmra.mxu0 %v5551
        %v6053 = vpop.f32.mrf.mxu0
        %v6054 = vadd.f32 0.0, %v6053
        %v6055 = vpop.f32.mrf.mxu0
        %v6056 = vpop.f32.mrf.mxu0
        %v6057 = vadd.f32 0.0, %v6056
        %v6058 = vpop.f32.mrf.mxu0
        %6059 = vmatprep.mubr.bf16.mxu0 0
        %6060 = vmatmul.mubr.bf16.gmra.mxu0 %v5552
        %v6061 = vpop.f32.mrf.mxu0
        %v6062 = vadd.f32 0.0, %v6061
        %v6063 = vpop.f32.mrf.mxu0
        %v6064 = vpop.f32.mrf.mxu0
        %v6065 = vadd.f32 0.0, %v6064
        %v6066 = vpop.f32.mrf.mxu0
        %6067 = vmatprep.mubr.bf16.mxu0 0
        %6068 = vmatmul.mubr.bf16.gmra.mxu0 %v5553
        %v6069 = vpop.f32.mrf.mxu0
        %v6070 = vadd.f32 0.0, %v6069
        %v6071 = vpop.f32.mrf.mxu0
        %v6072 = vpop.f32.mrf.mxu0
        %v6073 = vadd.f32 0.0, %v6072
        %v6074 = vpop.f32.mrf.mxu0
        %6075 = vmatprep.mubr.bf16.mxu0 0
        %6076 = vmatmul.mubr.bf16.gmra.mxu0 %v5554
        %v6077 = vpop.f32.mrf.mxu0
        %v6078 = vadd.f32 0.0, %v6077
        %v6079 = vpop.f32.mrf.mxu0
        %v6080 = vpop.f32.mrf.mxu0
        %v6081 = vadd.f32 0.0, %v6080
        %v6082 = vpop.f32.mrf.mxu0
        %6083 = vmatprep.mubr.bf16.mxu0 0
        %6084 = vmatmul.mubr.bf16.gmra.mxu0 %v5555
        %v6085 = vpop.f32.mrf.mxu0
        %v6086 = vadd.f32 0.0, %v6085
        %v6087 = vpop.f32.mrf.mxu0
        %v6088 = vpop.f32.mrf.mxu0
        %v6089 = vadd.f32 0.0, %v6088
        %v6090 = vpop.f32.mrf.mxu0
        %6091 = vmatprep.mubr.bf16.mxu0 0
        %6092 = vmatmul.mubr.bf16.gmra.mxu0 %v5556
        %v6093 = vpop.f32.mrf.mxu0
        %v6094 = vadd.f32 0.0, %v6093
        %v6095 = vpop.f32.mrf.mxu0
        %v6096 = vpop.f32.mrf.mxu0
        %v6097 = vadd.f32 0.0, %v6096
        %v6098 = vpop.f32.mrf.mxu0
        %6099 = vmatprep.mubr.bf16.mxu0 0
        %6100 = vmatmul.mubr.bf16.gmra.mxu0 %v5557
        %v6101 = vpop.f32.mrf.mxu0
        %v6102 = vadd.f32 0.0, %v6101
        %v6103 = vpop.f32.mrf.mxu0
        %v6104 = vpop.f32.mrf.mxu0
        %v6105 = vadd.f32 0.0, %v6104
        %v6106 = vpop.f32.mrf.mxu0
        %6107 = vmatprep.mubr.bf16.mxu0 0
        %6108 = vmatmul.mubr.bf16.gmra.mxu0 %v5558
        %v6109 = vpop.f32.mrf.mxu0
        %v6110 = vadd.f32 0.0, %v6109
        %v6111 = vpop.f32.mrf.mxu0
        %v6112 = vpop.f32.mrf.mxu0
        %v6113 = vadd.f32 0.0, %v6112
        %v6114 = vpop.f32.mrf.mxu0
        %6115 = vdwg.mxu0
        %v6116 = vrot.slane %v6054, 1
        %v6117 = vrot.slane %v6057, 1
        %v6118 = vrot.slane %v6062, 1
        %v6119 = vrot.slane %v6065, 1
        %v6120 = vrot.slane %v6070, 1
        %v6121 = vrot.slane %v6073, 1
        %v6122 = vrot.slane %v6078, 1
        %v6123 = vrot.slane %v6081, 1
        %v6124 = vrot.slane %v6086, 1
        %v6125 = vrot.slane %v6089, 1
        %v6126 = vrot.slane %v6094, 1
        %v6127 = vrot.slane %v6097, 1
        %v6128 = vrot.slane %v6102, 1
        %v6129 = vrot.slane %v6105, 1
        %v6130 = vrot.slane %v6110, 1
        %v6131 = vrot.slane %v6113, 1
        %v6132 = vsel %vm1038, %v6130, %v6131
        %v6133 = vsel %vm1038, %v6129, %v6130
        %v6134 = vsel %vm1038, %v6128, %v6129
        %v6135 = vsel %vm1038, %v6127, %v6128
        %v6136 = vsel %vm1038, %v6126, %v6127
        %v6137 = vsel %vm1038, %v6125, %v6126
        %v6138 = vsel %vm1038, %v6124, %v6125
        %v6139 = vsel %vm1038, %v6123, %v6124
        %v6140 = vsel %vm1038, %v6122, %v6123
        %v6141 = vsel %vm1038, %v6121, %v6122
        %v6142 = vsel %vm1038, %v6120, %v6121
        %v6143 = vsel %vm1038, %v6119, %v6120
        %v6144 = vsel %vm1038, %v6118, %v6119
        %v6145 = vsel %vm1038, %v6117, %v6118
        %v6146 = vsel %vm1038, %v6116, %v6117
        %v6147 = vsel %vm1038, %v6131, %v6116
        %v6148 = vsel %vm399, 0.0, %v6146
        %v6149 = vsel %vm400, 0.0, %v6145
        %v6150 = vsel %vm399, 0.0, %v6144
        %v6151 = vsel %vm400, 0.0, %v6143
        %v6152 = vsel %vm399, 0.0, %v6142
        %v6153 = vsel %vm400, 0.0, %v6141
        %v6154 = vsel %vm399, 0.0, %v6140
        %v6155 = vsel %vm400, 0.0, %v6139
        %v6156 = vsel %vm399, 0.0, %v6138
        %v6157 = vsel %vm400, 0.0, %v6137
        %v6158 = vsel %vm399, 0.0, %v6136
        %v6159 = vsel %vm400, 0.0, %v6135
        %v6160 = vsel %vm399, 0.0, %v6134
        %v6161 = vsel %vm400, 0.0, %v6133
        %v6162 = vsel %vm399, 0.0, %v6132
        %v6163 = vsel %vm400, 0.0, %v6147
        %v6164 = vadd.f32 %v5938, %v6148
        %v6165 = vadd.f32 %v5939, %v6149
        %v6166 = vadd.f32 %v5940, %v6150
        %v6167 = vadd.f32 %v5941, %v6151
        %v6168 = vadd.f32 %v5942, %v6152
        %v6169 = vadd.f32 %v5943, %v6153
        %v6170 = vadd.f32 %v5944, %v6154
        %v6171 = vadd.f32 %v5945, %v6155
        %v6172 = vadd.f32 %v5946, %v6156
        %v6173 = vadd.f32 %v5947, %v6157
        %v6174 = vadd.f32 %v5948, %v6158
        %v6175 = vadd.f32 %v5949, %v6159
        %v6176 = vadd.f32 %v5950, %v6160
        %v6177 = vadd.f32 %v5951, %v6161
        %v6178 = vadd.f32 %v5952, %v6162
        %v6179 = vadd.f32 %v5953, %v6163
        %s6180 = scalar_lea.vmem [#allocation2], 16
        %v6181 = vld [vmem:[%s6180] sm:$0xf]
        %v6182 = vld [vmem:[%s6180 + $0x4] sm:$0xf]
        %v6183 = vld [vmem:[%s6180 + $0x8] sm:$0xf]
        %v6184 = vld [vmem:[%s6180 + $0xc] sm:$0xf]
        %v6185 = vld [vmem:[%s6180 + $0x10] sm:$0xf]
        %v6186 = vld [vmem:[%s6180 + $0x14] sm:$0xf]
        %v6187 = vld [vmem:[%s6180 + $0x18] sm:$0xf]
        %v6188 = vld [vmem:[%s6180 + $0x1c] sm:$0xf]
        %v6189 = vld [vmem:[%s6180 + $0x20] sm:$0xf]
        %v6190 = vld [vmem:[%s6180 + $0x24] sm:$0xf]
        %v6191 = vld [vmem:[%s6180 + $0x28] sm:$0xf]
        %v6192 = vld [vmem:[%s6180 + $0x2c] sm:$0xf]
        %v6193 = vld [vmem:[%s6180 + $0x30] sm:$0xf]
        %v6194 = vld [vmem:[%s6180 + $0x34] sm:$0xf]
        %v6195 = vld [vmem:[%s6180 + $0x38] sm:$0xf]
        %v6196 = vld [vmem:[%s6180 + $0x3c] sm:$0xf]
        %s6197 = scalar_lea.vmem [#allocation9], 384
        %v6198 = vld [vmem:[%s6197] sm:$0xf]
        %v6199 = vld [vmem:[%s6197 + $0x4] sm:$0xf]
        %v6200 = vld [vmem:[%s6197 + $0x8] sm:$0xf]
        %v6201 = vld [vmem:[%s6197 + $0xc] sm:$0xf]
        %v6202 = vld [vmem:[%s6197 + $0x10] sm:$0xf]
        %v6203 = vld [vmem:[%s6197 + $0x14] sm:$0xf]
        %v6204 = vld [vmem:[%s6197 + $0x18] sm:$0xf]
        %v6205 = vld [vmem:[%s6197 + $0x1c] sm:$0xf]
        %v6206 = vld [vmem:[%s6197 + $0x20] sm:$0xf]
        %v6207 = vld [vmem:[%s6197 + $0x24] sm:$0xf]
        %v6208 = vld [vmem:[%s6197 + $0x28] sm:$0xf]
        %v6209 = vld [vmem:[%s6197 + $0x2c] sm:$0xf]
        %v6210 = vld [vmem:[%s6197 + $0x30] sm:$0xf]
        %v6211 = vld [vmem:[%s6197 + $0x34] sm:$0xf]
        %v6212 = vld [vmem:[%s6197 + $0x38] sm:$0xf]
        %v6213 = vld [vmem:[%s6197 + $0x3c] sm:$0xf]
        %v6230 = vunpack.c.l.b16 %v6181
        %v6231 = vunpack.c.l.b16 %v6182
        %v6232 = vunpack.c.l.b16 %v6183
        %v6233 = vunpack.c.l.b16 %v6184
        %v6234 = vunpack.c.l.b16 %v6185
        %v6235 = vunpack.c.l.b16 %v6186
        %v6236 = vunpack.c.l.b16 %v6187
        %v6237 = vunpack.c.l.b16 %v6188
        %v6238 = vunpack.c.l.b16 %v6189
        %v6239 = vunpack.c.l.b16 %v6190
        %v6240 = vunpack.c.l.b16 %v6191
        %v6241 = vunpack.c.l.b16 %v6192
        %v6242 = vunpack.c.l.b16 %v6193
        %v6243 = vunpack.c.l.b16 %v6194
        %v6244 = vunpack.c.l.b16 %v6195
        %v6245 = vunpack.c.l.b16 %v6196
        %v6246 = vpack.c.b16 %v6231, %v6230
        %v6247 = vpack.c.b16 %v6233, %v6232
        %v6248 = vpack.c.b16 %v6235, %v6234
        %v6249 = vpack.c.b16 %v6237, %v6236
        %v6250 = vpack.c.b16 %v6239, %v6238
        %v6251 = vpack.c.b16 %v6241, %v6240
        %v6252 = vpack.c.b16 %v6243, %v6242
        %v6253 = vpack.c.b16 %v6245, %v6244
        %v6278 = vunpack.c.l.b16 %v6198
        %v6279 = vunpack.c.l.b16 %v6199
        %v6280 = vunpack.c.l.b16 %v6200
        %v6281 = vunpack.c.l.b16 %v6201
        %v6282 = vunpack.c.l.b16 %v6202
        %v6283 = vunpack.c.l.b16 %v6203
        %v6284 = vunpack.c.l.b16 %v6204
        %v6285 = vunpack.c.l.b16 %v6205
        %v6286 = vunpack.c.l.b16 %v6206
        %v6287 = vunpack.c.l.b16 %v6207
        %v6288 = vunpack.c.l.b16 %v6208
        %v6289 = vunpack.c.l.b16 %v6209
        %v6290 = vunpack.c.l.b16 %v6210
        %v6291 = vunpack.c.l.b16 %v6211
        %v6292 = vunpack.c.l.b16 %v6212
        %v6293 = vunpack.c.l.b16 %v6213
        %v6294 = vpack.c.b16 %v6279, %v6278
        %v6295 = vpack.c.b16 %v6281, %v6280
        %v6296 = vpack.c.b16 %v6283, %v6282
        %v6297 = vpack.c.b16 %v6285, %v6284
        %v6298 = vpack.c.b16 %v6287, %v6286
        %v6299 = vpack.c.b16 %v6289, %v6288
        %v6300 = vpack.c.b16 %v6291, %v6290
        %v6301 = vpack.c.b16 %v6293, %v6292
        %6310 = vmatprep.subr.bf16.mxu0 0
        %6311 = vmatpush1.bf16.msra.mxu0 %v6301
        %6312 = vmatprep.subr.bf16.mxu0 0
        %6313 = vmatpush1.bf16.msra.mxu0 %v6300
        %6314 = vmatprep.subr.bf16.mxu0 0
        %6315 = vmatpush1.bf16.msra.mxu0 %v6299
        %6316 = vmatprep.subr.bf16.mxu0 0
        %6317 = vmatpush1.bf16.msra.mxu0 %v6298
        %6318 = vmatprep.subr.bf16.mxu0 0
        %6319 = vmatpush1.bf16.msra.mxu0 %v6297
        %6320 = vmatprep.subr.bf16.mxu0 0
        %6321 = vmatpush1.bf16.msra.mxu0 %v6296
        %6322 = vmatprep.subr.bf16.mxu0 0
        %6323 = vmatpush1.bf16.msra.mxu0 %v6295
        %6324 = vmatprep.subr.bf16.mxu0 0
        %6325 = vmatpush1.bf16.msra.mxu0 %v6294
        %6326 = vmatprep.subr.bf16.mxu0 0
        %6327 = vmatpush2.bf16.msra.mxu0 0
        %6328 = vmatprep.subr.bf16.mxu0 0
        %6329 = vmatpush2.bf16.msra.mxu0 0
        %6330 = vmatprep.subr.bf16.mxu0 0
        %6331 = vmatpush2.bf16.msra.mxu0 0
        %6332 = vmatprep.subr.bf16.mxu0 0
        %6333 = vmatpush2.bf16.msra.mxu0 0
        %6334 = vmatprep.subr.bf16.mxu0 0
        %6335 = vmatpush2.bf16.msra.mxu0 0
        %6336 = vmatprep.subr.bf16.mxu0 0
        %6337 = vmatpush2.bf16.msra.mxu0 0
        %6338 = vmatprep.subr.bf16.mxu0 0
        %6339 = vmatpush2.bf16.msra.mxu0 0
        %6340 = vmatprep.subr.bf16.mxu0 0
        %6341 = vmatpush2.bf16.msra.mxu0 0
        %6342 = vmatprep.mubr.bf16.mxu0 0
        %6343 = vmatmul.mubr.bf16.gmra.mxu0 %v6246
        %v6344 = vpop.f32.mrf.mxu0
        %v6345 = vadd.f32 0.0, %v6344
        %v6346 = vpop.f32.mrf.mxu0
        %v6347 = vpop.f32.mrf.mxu0
        %v6348 = vadd.f32 0.0, %v6347
        %v6349 = vpop.f32.mrf.mxu0
        %6350 = vmatprep.mubr.bf16.mxu0 0
        %6351 = vmatmul.mubr.bf16.gmra.mxu0 %v6247
        %v6352 = vpop.f32.mrf.mxu0
        %v6353 = vadd.f32 0.0, %v6352
        %v6354 = vpop.f32.mrf.mxu0
        %v6355 = vpop.f32.mrf.mxu0
        %v6356 = vadd.f32 0.0, %v6355
        %v6357 = vpop.f32.mrf.mxu0
        %6358 = vmatprep.mubr.bf16.mxu0 0
        %6359 = vmatmul.mubr.bf16.gmra.mxu0 %v6248
        %v6360 = vpop.f32.mrf.mxu0
        %v6361 = vadd.f32 0.0, %v6360
        %v6362 = vpop.f32.mrf.mxu0
        %v6363 = vpop.f32.mrf.mxu0
        %v6364 = vadd.f32 0.0, %v6363
        %v6365 = vpop.f32.mrf.mxu0
        %6366 = vmatprep.mubr.bf16.mxu0 0
        %6367 = vmatmul.mubr.bf16.gmra.mxu0 %v6249
        %v6368 = vpop.f32.mrf.mxu0
        %v6369 = vadd.f32 0.0, %v6368
        %v6370 = vpop.f32.mrf.mxu0
        %v6371 = vpop.f32.mrf.mxu0
        %v6372 = vadd.f32 0.0, %v6371
        %v6373 = vpop.f32.mrf.mxu0
        %6374 = vmatprep.mubr.bf16.mxu0 0
        %6375 = vmatmul.mubr.bf16.gmra.mxu0 %v6250
        %v6376 = vpop.f32.mrf.mxu0
        %v6377 = vadd.f32 0.0, %v6376
        %v6378 = vpop.f32.mrf.mxu0
        %v6379 = vpop.f32.mrf.mxu0
        %v6380 = vadd.f32 0.0, %v6379
        %v6381 = vpop.f32.mrf.mxu0
        %6382 = vmatprep.mubr.bf16.mxu0 0
        %6383 = vmatmul.mubr.bf16.gmra.mxu0 %v6251
        %v6384 = vpop.f32.mrf.mxu0
        %v6385 = vadd.f32 0.0, %v6384
        %v6386 = vpop.f32.mrf.mxu0
        %v6387 = vpop.f32.mrf.mxu0
        %v6388 = vadd.f32 0.0, %v6387
        %v6389 = vpop.f32.mrf.mxu0
        %6390 = vmatprep.mubr.bf16.mxu0 0
        %6391 = vmatmul.mubr.bf16.gmra.mxu0 %v6252
        %v6392 = vpop.f32.mrf.mxu0
        %v6393 = vadd.f32 0.0, %v6392
        %v6394 = vpop.f32.mrf.mxu0
        %v6395 = vpop.f32.mrf.mxu0
        %v6396 = vadd.f32 0.0, %v6395
        %v6397 = vpop.f32.mrf.mxu0
        %6398 = vmatprep.mubr.bf16.mxu0 0
        %6399 = vmatmul.mubr.bf16.gmra.mxu0 %v6253
        %v6400 = vpop.f32.mrf.mxu0
        %v6401 = vadd.f32 0.0, %v6400
        %v6402 = vpop.f32.mrf.mxu0
        %v6403 = vpop.f32.mrf.mxu0
        %v6404 = vadd.f32 0.0, %v6403
        %v6405 = vpop.f32.mrf.mxu0
        %6406 = vdwg.mxu0
        %v6407 = vrot.slane %v6345, 7
        %v6408 = vrot.slane %v6348, 7
        %v6409 = vrot.slane %v6353, 7
        %v6410 = vrot.slane %v6356, 7
        %v6411 = vrot.slane %v6361, 7
        %v6412 = vrot.slane %v6364, 7
        %v6413 = vrot.slane %v6369, 7
        %v6414 = vrot.slane %v6372, 7
        %v6415 = vrot.slane %v6377, 7
        %v6416 = vrot.slane %v6380, 7
        %v6417 = vrot.slane %v6385, 7
        %v6418 = vrot.slane %v6388, 7
        %v6419 = vrot.slane %v6393, 7
        %v6420 = vrot.slane %v6396, 7
        %v6421 = vrot.slane %v6401, 7
        %v6422 = vrot.slane %v6404, 7
        %v6423 = vsel %vm649, %v6421, %v6422
        %v6424 = vsel %vm649, %v6420, %v6421
        %v6425 = vsel %vm649, %v6419, %v6420
        %v6426 = vsel %vm649, %v6418, %v6419
        %v6427 = vsel %vm649, %v6417, %v6418
        %v6428 = vsel %vm649, %v6416, %v6417
        %v6429 = vsel %vm649, %v6415, %v6416
        %v6430 = vsel %vm649, %v6414, %v6415
        %v6431 = vsel %vm649, %v6413, %v6414
        %v6432 = vsel %vm649, %v6412, %v6413
        %v6433 = vsel %vm649, %v6411, %v6412
        %v6434 = vsel %vm649, %v6410, %v6411
        %v6435 = vsel %vm649, %v6409, %v6410
        %v6436 = vsel %vm649, %v6408, %v6409
        %v6437 = vsel %vm649, %v6407, %v6408
        %v6438 = vsel %vm649, %v6422, %v6407
        %v6439 = vsel %vm397, 0.0, %v6438
        %v6440 = vsel %vm398, 0.0, %v6437
        %v6441 = vsel %vm397, 0.0, %v6436
        %v6442 = vsel %vm398, 0.0, %v6435
        %v6443 = vsel %vm397, 0.0, %v6434
        %v6444 = vsel %vm398, 0.0, %v6433
        %v6445 = vsel %vm397, 0.0, %v6432
        %v6446 = vsel %vm398, 0.0, %v6431
        %v6447 = vsel %vm397, 0.0, %v6430
        %v6448 = vsel %vm398, 0.0, %v6429
        %v6449 = vsel %vm397, 0.0, %v6428
        %v6450 = vsel %vm398, 0.0, %v6427
        %v6451 = vsel %vm397, 0.0, %v6426
        %v6452 = vsel %vm398, 0.0, %v6425
        %v6453 = vsel %vm397, 0.0, %v6424
        %v6454 = vsel %vm398, 0.0, %v6423
        %v6455 = vadd.f32 %v6164, %v6439
        %v6456 = vadd.f32 %v6165, %v6440
        %v6457 = vadd.f32 %v6166, %v6441
        %v6458 = vadd.f32 %v6167, %v6442
        %v6459 = vadd.f32 %v6168, %v6443
        %v6460 = vadd.f32 %v6169, %v6444
        %v6461 = vadd.f32 %v6170, %v6445
        %v6462 = vadd.f32 %v6171, %v6446
        %v6463 = vadd.f32 %v6172, %v6447
        %v6464 = vadd.f32 %v6173, %v6448
        %v6465 = vadd.f32 %v6174, %v6449
        %v6466 = vadd.f32 %v6175, %v6450
        %v6467 = vadd.f32 %v6176, %v6451
        %v6468 = vadd.f32 %v6177, %v6452
        %v6469 = vadd.f32 %v6178, %v6453
        %v6470 = vadd.f32 %v6179, %v6454
        %s6471 = scalar_lea.vmem [#allocation9], 448
        %v6472 = vld [vmem:[%s6471] sm:$0xf]
        %v6473 = vld [vmem:[%s6471 + $0x4] sm:$0xf]
        %v6474 = vld [vmem:[%s6471 + $0x8] sm:$0xf]
        %v6475 = vld [vmem:[%s6471 + $0xc] sm:$0xf]
        %v6476 = vld [vmem:[%s6471 + $0x10] sm:$0xf]
        %v6477 = vld [vmem:[%s6471 + $0x14] sm:$0xf]
        %v6478 = vld [vmem:[%s6471 + $0x18] sm:$0xf]
        %v6479 = vld [vmem:[%s6471 + $0x1c] sm:$0xf]
        %v6480 = vld [vmem:[%s6471 + $0x20] sm:$0xf]
        %v6481 = vld [vmem:[%s6471 + $0x24] sm:$0xf]
        %v6482 = vld [vmem:[%s6471 + $0x28] sm:$0xf]
        %v6483 = vld [vmem:[%s6471 + $0x2c] sm:$0xf]
        %v6484 = vld [vmem:[%s6471 + $0x30] sm:$0xf]
        %v6485 = vld [vmem:[%s6471 + $0x34] sm:$0xf]
        %v6486 = vld [vmem:[%s6471 + $0x38] sm:$0xf]
        %v6487 = vld [vmem:[%s6471 + $0x3c] sm:$0xf]
        %v6504 = vunpack.c.l.b16 %v6472
        %v6505 = vunpack.c.l.b16 %v6473
        %v6506 = vunpack.c.l.b16 %v6474
        %v6507 = vunpack.c.l.b16 %v6475
        %v6508 = vunpack.c.l.b16 %v6476
        %v6509 = vunpack.c.l.b16 %v6477
        %v6510 = vunpack.c.l.b16 %v6478
        %v6511 = vunpack.c.l.b16 %v6479
        %v6512 = vunpack.c.l.b16 %v6480
        %v6513 = vunpack.c.l.b16 %v6481
        %v6514 = vunpack.c.l.b16 %v6482
        %v6515 = vunpack.c.l.b16 %v6483
        %v6516 = vunpack.c.l.b16 %v6484
        %v6517 = vunpack.c.l.b16 %v6485
        %v6518 = vunpack.c.l.b16 %v6486
        %v6519 = vunpack.c.l.b16 %v6487
        %v6520 = vpack.c.b16 %v6505, %v6504
        %v6521 = vpack.c.b16 %v6507, %v6506
        %v6522 = vpack.c.b16 %v6509, %v6508
        %v6523 = vpack.c.b16 %v6511, %v6510
        %v6524 = vpack.c.b16 %v6513, %v6512
        %v6525 = vpack.c.b16 %v6515, %v6514
        %v6526 = vpack.c.b16 %v6517, %v6516
        %v6527 = vpack.c.b16 %v6519, %v6518
        %6536 = vmatprep.subr.bf16.mxu0 0
        %6537 = vmatpush1.bf16.msra.mxu0 %v6527
        %6538 = vmatprep.subr.bf16.mxu0 0
        %6539 = vmatpush1.bf16.msra.mxu0 %v6526
        %6540 = vmatprep.subr.bf16.mxu0 0
        %6541 = vmatpush1.bf16.msra.mxu0 %v6525
        %6542 = vmatprep.subr.bf16.mxu0 0
        %6543 = vmatpush1.bf16.msra.mxu0 %v6524
        %6544 = vmatprep.subr.bf16.mxu0 0
        %6545 = vmatpush1.bf16.msra.mxu0 %v6523
        %6546 = vmatprep.subr.bf16.mxu0 0
        %6547 = vmatpush1.bf16.msra.mxu0 %v6522
        %6548 = vmatprep.subr.bf16.mxu0 0
        %6549 = vmatpush1.bf16.msra.mxu0 %v6521
        %6550 = vmatprep.subr.bf16.mxu0 0
        %6551 = vmatpush1.bf16.msra.mxu0 %v6520
        %6552 = vmatprep.subr.bf16.mxu0 0
        %6553 = vmatpush2.bf16.msra.mxu0 0
        %6554 = vmatprep.subr.bf16.mxu0 0
        %6555 = vmatpush2.bf16.msra.mxu0 0
        %6556 = vmatprep.subr.bf16.mxu0 0
        %6557 = vmatpush2.bf16.msra.mxu0 0
        %6558 = vmatprep.subr.bf16.mxu0 0
        %6559 = vmatpush2.bf16.msra.mxu0 0
        %6560 = vmatprep.subr.bf16.mxu0 0
        %6561 = vmatpush2.bf16.msra.mxu0 0
        %6562 = vmatprep.subr.bf16.mxu0 0
        %6563 = vmatpush2.bf16.msra.mxu0 0
        %6564 = vmatprep.subr.bf16.mxu0 0
        %6565 = vmatpush2.bf16.msra.mxu0 0
        %6566 = vmatprep.subr.bf16.mxu0 0
        %6567 = vmatpush2.bf16.msra.mxu0 0
        %6568 = vmatprep.mubr.bf16.mxu0 0
        %6569 = vmatmul.mubr.bf16.gmra.mxu0 %v6246
        %v6570 = vpop.f32.mrf.mxu0
        %v6571 = vadd.f32 0.0, %v6570
        %v6572 = vpop.f32.mrf.mxu0
        %v6573 = vpop.f32.mrf.mxu0
        %v6574 = vadd.f32 0.0, %v6573
        %v6575 = vpop.f32.mrf.mxu0
        %6576 = vmatprep.mubr.bf16.mxu0 0
        %6577 = vmatmul.mubr.bf16.gmra.mxu0 %v6247
        %v6578 = vpop.f32.mrf.mxu0
        %v6579 = vadd.f32 0.0, %v6578
        %v6580 = vpop.f32.mrf.mxu0
        %v6581 = vpop.f32.mrf.mxu0
        %v6582 = vadd.f32 0.0, %v6581
        %v6583 = vpop.f32.mrf.mxu0
        %6584 = vmatprep.mubr.bf16.mxu0 0
        %6585 = vmatmul.mubr.bf16.gmra.mxu0 %v6248
        %v6586 = vpop.f32.mrf.mxu0
        %v6587 = vadd.f32 0.0, %v6586
        %v6588 = vpop.f32.mrf.mxu0
        %v6589 = vpop.f32.mrf.mxu0
        %v6590 = vadd.f32 0.0, %v6589
        %v6591 = vpop.f32.mrf.mxu0
        %6592 = vmatprep.mubr.bf16.mxu0 0
        %6593 = vmatmul.mubr.bf16.gmra.mxu0 %v6249
        %v6594 = vpop.f32.mrf.mxu0
        %v6595 = vadd.f32 0.0, %v6594
        %v6596 = vpop.f32.mrf.mxu0
        %v6597 = vpop.f32.mrf.mxu0
        %v6598 = vadd.f32 0.0, %v6597
        %v6599 = vpop.f32.mrf.mxu0
        %6600 = vmatprep.mubr.bf16.mxu0 0
        %6601 = vmatmul.mubr.bf16.gmra.mxu0 %v6250
        %v6602 = vpop.f32.mrf.mxu0
        %v6603 = vadd.f32 0.0, %v6602
        %v6604 = vpop.f32.mrf.mxu0
        %v6605 = vpop.f32.mrf.mxu0
        %v6606 = vadd.f32 0.0, %v6605
        %v6607 = vpop.f32.mrf.mxu0
        %6608 = vmatprep.mubr.bf16.mxu0 0
        %6609 = vmatmul.mubr.bf16.gmra.mxu0 %v6251
        %v6610 = vpop.f32.mrf.mxu0
        %v6611 = vadd.f32 0.0, %v6610
        %v6612 = vpop.f32.mrf.mxu0
        %v6613 = vpop.f32.mrf.mxu0
        %v6614 = vadd.f32 0.0, %v6613
        %v6615 = vpop.f32.mrf.mxu0
        %6616 = vmatprep.mubr.bf16.mxu0 0
        %6617 = vmatmul.mubr.bf16.gmra.mxu0 %v6252
        %v6618 = vpop.f32.mrf.mxu0
        %v6619 = vadd.f32 0.0, %v6618
        %v6620 = vpop.f32.mrf.mxu0
        %v6621 = vpop.f32.mrf.mxu0
        %v6622 = vadd.f32 0.0, %v6621
        %v6623 = vpop.f32.mrf.mxu0
        %6624 = vmatprep.mubr.bf16.mxu0 0
        %6625 = vmatmul.mubr.bf16.gmra.mxu0 %v6253
        %v6626 = vpop.f32.mrf.mxu0
        %v6627 = vadd.f32 0.0, %v6626
        %v6628 = vpop.f32.mrf.mxu0
        %v6629 = vpop.f32.mrf.mxu0
        %v6630 = vadd.f32 0.0, %v6629
        %v6631 = vpop.f32.mrf.mxu0
        %6632 = vdwg.mxu0
        %v6633 = vadd.f32 %v6455, %v6571
        %v6634 = vadd.f32 %v6456, %v6574
        %v6635 = vadd.f32 %v6457, %v6579
        %v6636 = vadd.f32 %v6458, %v6582
        %v6637 = vadd.f32 %v6459, %v6587
        %v6638 = vadd.f32 %v6460, %v6590
        %v6639 = vadd.f32 %v6461, %v6595
        %v6640 = vadd.f32 %v6462, %v6598
        %v6641 = vadd.f32 %v6463, %v6603
        %v6642 = vadd.f32 %v6464, %v6606
        %v6643 = vadd.f32 %v6465, %v6611
        %v6644 = vadd.f32 %v6466, %v6614
        %v6645 = vadd.f32 %v6467, %v6619
        %v6646 = vadd.f32 %v6468, %v6622
        %v6647 = vadd.f32 %v6469, %v6627
        %v6648 = vadd.f32 %v6470, %v6630
        %s6649 = scalar_lea.vmem [#allocation9], 512
        %v6650 = vld [vmem:[%s6649] sm:$0xf]
        %v6651 = vld [vmem:[%s6649 + $0x4] sm:$0xf]
        %v6652 = vld [vmem:[%s6649 + $0x8] sm:$0xf]
        %v6653 = vld [vmem:[%s6649 + $0xc] sm:$0xf]
        %v6654 = vld [vmem:[%s6649 + $0x10] sm:$0xf]
        %v6655 = vld [vmem:[%s6649 + $0x14] sm:$0xf]
        %v6656 = vld [vmem:[%s6649 + $0x18] sm:$0xf]
        %v6657 = vld [vmem:[%s6649 + $0x1c] sm:$0xf]
        %v6658 = vld [vmem:[%s6649 + $0x20] sm:$0xf]
        %v6659 = vld [vmem:[%s6649 + $0x24] sm:$0xf]
        %v6660 = vld [vmem:[%s6649 + $0x28] sm:$0xf]
        %v6661 = vld [vmem:[%s6649 + $0x2c] sm:$0xf]
        %v6662 = vld [vmem:[%s6649 + $0x30] sm:$0xf]
        %v6663 = vld [vmem:[%s6649 + $0x34] sm:$0xf]
        %v6664 = vld [vmem:[%s6649 + $0x38] sm:$0xf]
        %v6665 = vld [vmem:[%s6649 + $0x3c] sm:$0xf]
        %v6682 = vunpack.c.l.b16 %v6650
        %v6683 = vunpack.c.l.b16 %v6651
        %v6684 = vunpack.c.l.b16 %v6652
        %v6685 = vunpack.c.l.b16 %v6653
        %v6686 = vunpack.c.l.b16 %v6654
        %v6687 = vunpack.c.l.b16 %v6655
        %v6688 = vunpack.c.l.b16 %v6656
        %v6689 = vunpack.c.l.b16 %v6657
        %v6690 = vunpack.c.l.b16 %v6658
        %v6691 = vunpack.c.l.b16 %v6659
        %v6692 = vunpack.c.l.b16 %v6660
        %v6693 = vunpack.c.l.b16 %v6661
        %v6694 = vunpack.c.l.b16 %v6662
        %v6695 = vunpack.c.l.b16 %v6663
        %v6696 = vunpack.c.l.b16 %v6664
        %v6697 = vunpack.c.l.b16 %v6665
        %v6698 = vpack.c.b16 %v6683, %v6682
        %v6699 = vpack.c.b16 %v6685, %v6684
        %v6700 = vpack.c.b16 %v6687, %v6686
        %v6701 = vpack.c.b16 %v6689, %v6688
        %v6702 = vpack.c.b16 %v6691, %v6690
        %v6703 = vpack.c.b16 %v6693, %v6692
        %v6704 = vpack.c.b16 %v6695, %v6694
        %v6705 = vpack.c.b16 %v6697, %v6696
        %6714 = vmatprep.subr.bf16.mxu0 0
        %6715 = vmatpush1.bf16.msra.mxu0 %v6705
        %6716 = vmatprep.subr.bf16.mxu0 0
        %6717 = vmatpush1.bf16.msra.mxu0 %v6704
        %6718 = vmatprep.subr.bf16.mxu0 0
        %6719 = vmatpush1.bf16.msra.mxu0 %v6703
        %6720 = vmatprep.subr.bf16.mxu0 0
        %6721 = vmatpush1.bf16.msra.mxu0 %v6702
        %6722 = vmatprep.subr.bf16.mxu0 0
        %6723 = vmatpush1.bf16.msra.mxu0 %v6701
        %6724 = vmatprep.subr.bf16.mxu0 0
        %6725 = vmatpush1.bf16.msra.mxu0 %v6700
        %6726 = vmatprep.subr.bf16.mxu0 0
        %6727 = vmatpush1.bf16.msra.mxu0 %v6699
        %6728 = vmatprep.subr.bf16.mxu0 0
        %6729 = vmatpush1.bf16.msra.mxu0 %v6698
        %6730 = vmatprep.subr.bf16.mxu0 0
        %6731 = vmatpush2.bf16.msra.mxu0 0
        %6732 = vmatprep.subr.bf16.mxu0 0
        %6733 = vmatpush2.bf16.msra.mxu0 0
        %6734 = vmatprep.subr.bf16.mxu0 0
        %6735 = vmatpush2.bf16.msra.mxu0 0
        %6736 = vmatprep.subr.bf16.mxu0 0
        %6737 = vmatpush2.bf16.msra.mxu0 0
        %6738 = vmatprep.subr.bf16.mxu0 0
        %6739 = vmatpush2.bf16.msra.mxu0 0
        %6740 = vmatprep.subr.bf16.mxu0 0
        %6741 = vmatpush2.bf16.msra.mxu0 0
        %6742 = vmatprep.subr.bf16.mxu0 0
        %6743 = vmatpush2.bf16.msra.mxu0 0
        %6744 = vmatprep.subr.bf16.mxu0 0
        %6745 = vmatpush2.bf16.msra.mxu0 0
        %6746 = vmatprep.mubr.bf16.mxu0 0
        %6747 = vmatmul.mubr.bf16.gmra.mxu0 %v6246
        %v6748 = vpop.f32.mrf.mxu0
        %v6749 = vadd.f32 0.0, %v6748
        %v6750 = vpop.f32.mrf.mxu0
        %v6751 = vpop.f32.mrf.mxu0
        %v6752 = vadd.f32 0.0, %v6751
        %v6753 = vpop.f32.mrf.mxu0
        %6754 = vmatprep.mubr.bf16.mxu0 0
        %6755 = vmatmul.mubr.bf16.gmra.mxu0 %v6247
        %v6756 = vpop.f32.mrf.mxu0
        %v6757 = vadd.f32 0.0, %v6756
        %v6758 = vpop.f32.mrf.mxu0
        %v6759 = vpop.f32.mrf.mxu0
        %v6760 = vadd.f32 0.0, %v6759
        %v6761 = vpop.f32.mrf.mxu0
        %6762 = vmatprep.mubr.bf16.mxu0 0
        %6763 = vmatmul.mubr.bf16.gmra.mxu0 %v6248
        %v6764 = vpop.f32.mrf.mxu0
        %v6765 = vadd.f32 0.0, %v6764
        %v6766 = vpop.f32.mrf.mxu0
        %v6767 = vpop.f32.mrf.mxu0
        %v6768 = vadd.f32 0.0, %v6767
        %v6769 = vpop.f32.mrf.mxu0
        %6770 = vmatprep.mubr.bf16.mxu0 0
        %6771 = vmatmul.mubr.bf16.gmra.mxu0 %v6249
        %v6772 = vpop.f32.mrf.mxu0
        %v6773 = vadd.f32 0.0, %v6772
        %v6774 = vpop.f32.mrf.mxu0
        %v6775 = vpop.f32.mrf.mxu0
        %v6776 = vadd.f32 0.0, %v6775
        %v6777 = vpop.f32.mrf.mxu0
        %6778 = vmatprep.mubr.bf16.mxu0 0
        %6779 = vmatmul.mubr.bf16.gmra.mxu0 %v6250
        %v6780 = vpop.f32.mrf.mxu0
        %v6781 = vadd.f32 0.0, %v6780
        %v6782 = vpop.f32.mrf.mxu0
        %v6783 = vpop.f32.mrf.mxu0
        %v6784 = vadd.f32 0.0, %v6783
        %v6785 = vpop.f32.mrf.mxu0
        %6786 = vmatprep.mubr.bf16.mxu0 0
        %6787 = vmatmul.mubr.bf16.gmra.mxu0 %v6251
        %v6788 = vpop.f32.mrf.mxu0
        %v6789 = vadd.f32 0.0, %v6788
        %v6790 = vpop.f32.mrf.mxu0
        %v6791 = vpop.f32.mrf.mxu0
        %v6792 = vadd.f32 0.0, %v6791
        %v6793 = vpop.f32.mrf.mxu0
        %6794 = vmatprep.mubr.bf16.mxu0 0
        %6795 = vmatmul.mubr.bf16.gmra.mxu0 %v6252
        %v6796 = vpop.f32.mrf.mxu0
        %v6797 = vadd.f32 0.0, %v6796
        %v6798 = vpop.f32.mrf.mxu0
        %v6799 = vpop.f32.mrf.mxu0
        %v6800 = vadd.f32 0.0, %v6799
        %v6801 = vpop.f32.mrf.mxu0
        %6802 = vmatprep.mubr.bf16.mxu0 0
        %6803 = vmatmul.mubr.bf16.gmra.mxu0 %v6253
        %v6804 = vpop.f32.mrf.mxu0
        %v6805 = vadd.f32 0.0, %v6804
        %v6806 = vpop.f32.mrf.mxu0
        %v6807 = vpop.f32.mrf.mxu0
        %v6808 = vadd.f32 0.0, %v6807
        %v6809 = vpop.f32.mrf.mxu0
        %6810 = vdwg.mxu0
        %v6811 = vrot.slane %v6749, 1
        %v6812 = vrot.slane %v6752, 1
        %v6813 = vrot.slane %v6757, 1
        %v6814 = vrot.slane %v6760, 1
        %v6815 = vrot.slane %v6765, 1
        %v6816 = vrot.slane %v6768, 1
        %v6817 = vrot.slane %v6773, 1
        %v6818 = vrot.slane %v6776, 1
        %v6819 = vrot.slane %v6781, 1
        %v6820 = vrot.slane %v6784, 1
        %v6821 = vrot.slane %v6789, 1
        %v6822 = vrot.slane %v6792, 1
        %v6823 = vrot.slane %v6797, 1
        %v6824 = vrot.slane %v6800, 1
        %v6825 = vrot.slane %v6805, 1
        %v6826 = vrot.slane %v6808, 1
        %v6827 = vsel %vm1038, %v6825, %v6826
        %v6828 = vsel %vm1038, %v6824, %v6825
        %v6829 = vsel %vm1038, %v6823, %v6824
        %v6830 = vsel %vm1038, %v6822, %v6823
        %v6831 = vsel %vm1038, %v6821, %v6822
        %v6832 = vsel %vm1038, %v6820, %v6821
        %v6833 = vsel %vm1038, %v6819, %v6820
        %v6834 = vsel %vm1038, %v6818, %v6819
        %v6835 = vsel %vm1038, %v6817, %v6818
        %v6836 = vsel %vm1038, %v6816, %v6817
        %v6837 = vsel %vm1038, %v6815, %v6816
        %v6838 = vsel %vm1038, %v6814, %v6815
        %v6839 = vsel %vm1038, %v6813, %v6814
        %v6840 = vsel %vm1038, %v6812, %v6813
        %v6841 = vsel %vm1038, %v6811, %v6812
        %v6842 = vsel %vm1038, %v6826, %v6811
        %v6843 = vsel %vm399, 0.0, %v6841
        %v6844 = vsel %vm400, 0.0, %v6840
        %v6845 = vsel %vm399, 0.0, %v6839
        %v6846 = vsel %vm400, 0.0, %v6838
        %v6847 = vsel %vm399, 0.0, %v6837
        %v6848 = vsel %vm400, 0.0, %v6836
        %v6849 = vsel %vm399, 0.0, %v6835
        %v6850 = vsel %vm400, 0.0, %v6834
        %v6851 = vsel %vm399, 0.0, %v6833
        %v6852 = vsel %vm400, 0.0, %v6832
        %v6853 = vsel %vm399, 0.0, %v6831
        %v6854 = vsel %vm400, 0.0, %v6830
        %v6855 = vsel %vm399, 0.0, %v6829
        %v6856 = vsel %vm400, 0.0, %v6828
        %v6857 = vsel %vm399, 0.0, %v6827
        %v6858 = vsel %vm400, 0.0, %v6842
        %v6859 = vadd.f32 %v6633, %v6843
        %v6860 = vadd.f32 %v6634, %v6844
        %v6861 = vadd.f32 %v6635, %v6845
        %v6862 = vadd.f32 %v6636, %v6846
        %v6863 = vadd.f32 %v6637, %v6847
        %v6864 = vadd.f32 %v6638, %v6848
        %v6865 = vadd.f32 %v6639, %v6849
        %v6866 = vadd.f32 %v6640, %v6850
        %v6867 = vadd.f32 %v6641, %v6851
        %v6868 = vadd.f32 %v6642, %v6852
        %v6869 = vadd.f32 %v6643, %v6853
        %v6870 = vadd.f32 %v6644, %v6854
        %v6871 = vadd.f32 %v6645, %v6855
        %v6872 = vadd.f32 %v6646, %v6856
        %v6873 = vadd.f32 %v6647, %v6857
        %v6874 = vadd.f32 %v6648, %v6858
        %v6876 = vlaneseq
        %v6877 = vshrl.u32 %v6876, 7
        %v6878 = vsub.s32 0, %v6877
        %v6879 = vrot.slane %v4807, %v6878
        %v6881 = vmul.f32 %v6859, %v6879
        %v6882 = vmul.f32 %v6860, %v6879
        %v6883 = vmul.f32 %v6861, %v6879
        %v6884 = vmul.f32 %v6862, %v6879
        %v6885 = vmul.f32 %v6863, %v6879
        %v6886 = vmul.f32 %v6864, %v6879
        %v6887 = vmul.f32 %v6865, %v6879
        %v6888 = vmul.f32 %v6866, %v6879
        %v6889 = vmul.f32 %v6867, %v6879
        %v6890 = vmul.f32 %v6868, %v6879
        %v6891 = vmul.f32 %v6869, %v6879
        %v6892 = vmul.f32 %v6870, %v6879
        %v6893 = vmul.f32 %v6871, %v6879
        %v6894 = vmul.f32 %v6872, %v6879
        %v6895 = vmul.f32 %v6873, %v6879
        %v6896 = vmul.f32 %v6874, %v6879
        %v6898 = vlaneseq
        %v6899 = vshrl.u32 %v6898, 7
        %v6900 = vsub.s32 0, %v6899
        %v6901 = vrot.slane %v4808, %v6900
        %v6903 = vadd.f32 %v6881, %v6901
        %v6904 = vadd.f32 %v6882, %v6901
        %v6905 = vadd.f32 %v6883, %v6901
        %v6906 = vadd.f32 %v6884, %v6901
        %v6907 = vadd.f32 %v6885, %v6901
        %v6908 = vadd.f32 %v6886, %v6901
        %v6909 = vadd.f32 %v6887, %v6901
        %v6910 = vadd.f32 %v6888, %v6901
        %v6911 = vadd.f32 %v6889, %v6901
        %v6912 = vadd.f32 %v6890, %v6901
        %v6913 = vadd.f32 %v6891, %v6901
        %v6914 = vadd.f32 %v6892, %v6901
        %v6915 = vadd.f32 %v6893, %v6901
        %v6916 = vadd.f32 %v6894, %v6901
        %v6917 = vadd.f32 %v6895, %v6901
        %v6918 = vadd.f32 %v6896, %v6901
        %v6919 = vld [vmem:[%s347] sm:$0xff]
        %v6920 = vld [vmem:[%s347 + $0x8] sm:$0xff]
        %v6921 = vld [vmem:[%s347 + $0x10] sm:$0xff]
        %v6922 = vld [vmem:[%s347 + $0x18] sm:$0xff]
        %v6923 = vld [vmem:[%s347 + $0x20] sm:$0xff]
        %v6924 = vld [vmem:[%s347 + $0x28] sm:$0xff]
        %v6925 = vld [vmem:[%s347 + $0x30] sm:$0xff]
        %v6926 = vld [vmem:[%s347 + $0x38] sm:$0xff]
        %v6927 = vld [vmem:[%s347 + $0x40] sm:$0xff]
        %v6928 = vld [vmem:[%s347 + $0x48] sm:$0xff]
        %v6929 = vld [vmem:[%s347 + $0x50] sm:$0xff]
        %v6930 = vld [vmem:[%s347 + $0x58] sm:$0xff]
        %v6931 = vld [vmem:[%s347 + $0x60] sm:$0xff]
        %v6932 = vld [vmem:[%s347 + $0x68] sm:$0xff]
        %v6933 = vld [vmem:[%s347 + $0x70] sm:$0xff]
        %v6934 = vld [vmem:[%s347 + $0x78] sm:$0xff]
        %v6935 = vadd.f32 %v6903, %v6919
        %v6936 = vadd.f32 %v6904, %v6920
        %v6937 = vadd.f32 %v6905, %v6921
        %v6938 = vadd.f32 %v6906, %v6922
        %v6939 = vadd.f32 %v6907, %v6923
        %v6940 = vadd.f32 %v6908, %v6924
        %v6941 = vadd.f32 %v6909, %v6925
        %v6942 = vadd.f32 %v6910, %v6926
        %v6943 = vadd.f32 %v6911, %v6927
        %v6944 = vadd.f32 %v6912, %v6928
        %v6945 = vadd.f32 %v6913, %v6929
        %v6946 = vadd.f32 %v6914, %v6930
        %v6947 = vadd.f32 %v6915, %v6931
        %v6948 = vadd.f32 %v6916, %v6932
        %v6949 = vadd.f32 %v6917, %v6933
        %v6950 = vadd.f32 %v6918, %v6934
        %v6951 = vmax.f32 %v6935, 0.0
        %v6952 = vmax.f32 %v6936, 0.0
        %v6953 = vmax.f32 %v6937, 0.0
        %v6954 = vmax.f32 %v6938, 0.0
        %v6955 = vmax.f32 %v6939, 0.0
        %v6956 = vmax.f32 %v6940, 0.0
        %v6957 = vmax.f32 %v6941, 0.0
        %v6958 = vmax.f32 %v6942, 0.0
        %v6959 = vmax.f32 %v6943, 0.0
        %v6960 = vmax.f32 %v6944, 0.0
        %v6961 = vmax.f32 %v6945, 0.0
        %v6962 = vmax.f32 %v6946, 0.0
        %v6963 = vmax.f32 %v6947, 0.0
        %v6964 = vmax.f32 %v6948, 0.0
        %v6965 = vmax.f32 %v6949, 0.0
        %v6966 = vmax.f32 %v6950, 0.0
        %6967 = vst [vmem:[%s392] sm:$0xff] %v6951
        %6968 = vst [vmem:[%s392 + $0x8] sm:$0xff] %v6952
        %6969 = vst [vmem:[%s392 + $0x10] sm:$0xff] %v6953
        %6970 = vst [vmem:[%s392 + $0x18] sm:$0xff] %v6954
        %6971 = vst [vmem:[%s392 + $0x20] sm:$0xff] %v6955
        %6972 = vst [vmem:[%s392 + $0x28] sm:$0xff] %v6956
        %6973 = vst [vmem:[%s392 + $0x30] sm:$0xff] %v6957
        %6974 = vst [vmem:[%s392 + $0x38] sm:$0xff] %v6958
        %6975 = vst [vmem:[%s392 + $0x40] sm:$0xff] %v6959
        %6976 = vst [vmem:[%s392 + $0x48] sm:$0xff] %v6960
        %6977 = vst [vmem:[%s392 + $0x50] sm:$0xff] %v6961
        %6978 = vst [vmem:[%s392 + $0x58] sm:$0xff] %v6962
        %6979 = vst [vmem:[%s392 + $0x60] sm:$0xff] %v6963
        %6980 = vst [vmem:[%s392 + $0x68] sm:$0xff] %v6964
        %6981 = vst [vmem:[%s392 + $0x70] sm:$0xff] %v6965
        %6982 = vst [vmem:[%s392 + $0x78] sm:$0xff] %v6966
        %s6983 = scalar_lea.vmem [#allocation2], 64
        %v6984 = vld [vmem:[%s6983] sm:$0xf]
        %v6985 = vld [vmem:[%s6983 + $0x4] sm:$0xf]
        %v6986 = vld [vmem:[%s6983 + $0x8] sm:$0xf]
        %v6987 = vld [vmem:[%s6983 + $0xc] sm:$0xf]
        %v6988 = vld [vmem:[%s6983 + $0x10] sm:$0xf]
        %v6989 = vld [vmem:[%s6983 + $0x14] sm:$0xf]
        %v6990 = vld [vmem:[%s6983 + $0x18] sm:$0xf]
        %v6991 = vld [vmem:[%s6983 + $0x1c] sm:$0xf]
        %v6992 = vld [vmem:[%s6983 + $0x20] sm:$0xf]
        %v6993 = vld [vmem:[%s6983 + $0x24] sm:$0xf]
        %v6994 = vld [vmem:[%s6983 + $0x28] sm:$0xf]
        %v6995 = vld [vmem:[%s6983 + $0x2c] sm:$0xf]
        %v6996 = vld [vmem:[%s6983 + $0x30] sm:$0xf]
        %v6997 = vld [vmem:[%s6983 + $0x34] sm:$0xf]
        %v6998 = vld [vmem:[%s6983 + $0x38] sm:$0xf]
        %v6999 = vld [vmem:[%s6983 + $0x3c] sm:$0xf]
        %v7000 = vld [vmem:[#allocation9] sm:$0xf]
        %v7001 = vld [vmem:[#allocation9 + $0x4] sm:$0xf]
        %v7002 = vld [vmem:[#allocation9 + $0x8] sm:$0xf]
        %v7003 = vld [vmem:[#allocation9 + $0xc] sm:$0xf]
        %v7004 = vld [vmem:[#allocation9 + $0x10] sm:$0xf]
        %v7005 = vld [vmem:[#allocation9 + $0x14] sm:$0xf]
        %v7006 = vld [vmem:[#allocation9 + $0x18] sm:$0xf]
        %v7007 = vld [vmem:[#allocation9 + $0x1c] sm:$0xf]
        %v7008 = vld [vmem:[#allocation9 + $0x20] sm:$0xf]
        %v7009 = vld [vmem:[#allocation9 + $0x24] sm:$0xf]
        %v7010 = vld [vmem:[#allocation9 + $0x28] sm:$0xf]
        %v7011 = vld [vmem:[#allocation9 + $0x2c] sm:$0xf]
        %v7012 = vld [vmem:[#allocation9 + $0x30] sm:$0xf]
        %v7013 = vld [vmem:[#allocation9 + $0x34] sm:$0xf]
        %v7014 = vld [vmem:[#allocation9 + $0x38] sm:$0xf]
        %v7015 = vld [vmem:[#allocation9 + $0x3c] sm:$0xf]
        %v7032 = vunpack.c.l.b16 %v6984
        %v7033 = vunpack.c.l.b16 %v6985
        %v7034 = vunpack.c.l.b16 %v6986
        %v7035 = vunpack.c.l.b16 %v6987
        %v7036 = vunpack.c.l.b16 %v6988
        %v7037 = vunpack.c.l.b16 %v6989
        %v7038 = vunpack.c.l.b16 %v6990
        %v7039 = vunpack.c.l.b16 %v6991
        %v7040 = vunpack.c.l.b16 %v6992
        %v7041 = vunpack.c.l.b16 %v6993
        %v7042 = vunpack.c.l.b16 %v6994
        %v7043 = vunpack.c.l.b16 %v6995
        %v7044 = vunpack.c.l.b16 %v6996
        %v7045 = vunpack.c.l.b16 %v6997
        %v7046 = vunpack.c.l.b16 %v6998
        %v7047 = vunpack.c.l.b16 %v6999
        %v7048 = vpack.c.b16 %v7033, %v7032
        %v7049 = vpack.c.b16 %v7035, %v7034
        %v7050 = vpack.c.b16 %v7037, %v7036
        %v7051 = vpack.c.b16 %v7039, %v7038
        %v7052 = vpack.c.b16 %v7041, %v7040
        %v7053 = vpack.c.b16 %v7043, %v7042
        %v7054 = vpack.c.b16 %v7045, %v7044
        %v7055 = vpack.c.b16 %v7047, %v7046
        %v7080 = vunpack.c.l.b16 %v7000
        %v7081 = vunpack.c.l.b16 %v7001
        %v7082 = vunpack.c.l.b16 %v7002
        %v7083 = vunpack.c.l.b16 %v7003
        %v7084 = vunpack.c.l.b16 %v7004
        %v7085 = vunpack.c.l.b16 %v7005
        %v7086 = vunpack.c.l.b16 %v7006
        %v7087 = vunpack.c.l.b16 %v7007
        %v7088 = vunpack.c.l.b16 %v7008
        %v7089 = vunpack.c.l.b16 %v7009
        %v7090 = vunpack.c.l.b16 %v7010
        %v7091 = vunpack.c.l.b16 %v7011
        %v7092 = vunpack.c.l.b16 %v7012
        %v7093 = vunpack.c.l.b16 %v7013
        %v7094 = vunpack.c.l.b16 %v7014
        %v7095 = vunpack.c.l.b16 %v7015
        %v7096 = vpack.c.b16 %v7081, %v7080
        %v7097 = vpack.c.b16 %v7083, %v7082
        %v7098 = vpack.c.b16 %v7085, %v7084
        %v7099 = vpack.c.b16 %v7087, %v7086
        %v7100 = vpack.c.b16 %v7089, %v7088
        %v7101 = vpack.c.b16 %v7091, %v7090
        %v7102 = vpack.c.b16 %v7093, %v7092
        %v7103 = vpack.c.b16 %v7095, %v7094
        %7112 = vmatprep.subr.bf16.mxu0 0
        %7113 = vmatpush1.bf16.msra.mxu0 %v7103
        %7114 = vmatprep.subr.bf16.mxu0 0
        %7115 = vmatpush1.bf16.msra.mxu0 %v7102
        %7116 = vmatprep.subr.bf16.mxu0 0
        %7117 = vmatpush1.bf16.msra.mxu0 %v7101
        %7118 = vmatprep.subr.bf16.mxu0 0
        %7119 = vmatpush1.bf16.msra.mxu0 %v7100
        %7120 = vmatprep.subr.bf16.mxu0 0
        %7121 = vmatpush1.bf16.msra.mxu0 %v7099
        %7122 = vmatprep.subr.bf16.mxu0 0
        %7123 = vmatpush1.bf16.msra.mxu0 %v7098
        %7124 = vmatprep.subr.bf16.mxu0 0
        %7125 = vmatpush1.bf16.msra.mxu0 %v7097
        %7126 = vmatprep.subr.bf16.mxu0 0
        %7127 = vmatpush1.bf16.msra.mxu0 %v7096
        %7128 = vmatprep.subr.bf16.mxu0 0
        %7129 = vmatpush2.bf16.msra.mxu0 0
        %7130 = vmatprep.subr.bf16.mxu0 0
        %7131 = vmatpush2.bf16.msra.mxu0 0
        %7132 = vmatprep.subr.bf16.mxu0 0
        %7133 = vmatpush2.bf16.msra.mxu0 0
        %7134 = vmatprep.subr.bf16.mxu0 0
        %7135 = vmatpush2.bf16.msra.mxu0 0
        %7136 = vmatprep.subr.bf16.mxu0 0
        %7137 = vmatpush2.bf16.msra.mxu0 0
        %7138 = vmatprep.subr.bf16.mxu0 0
        %7139 = vmatpush2.bf16.msra.mxu0 0
        %7140 = vmatprep.subr.bf16.mxu0 0
        %7141 = vmatpush2.bf16.msra.mxu0 0
        %7142 = vmatprep.subr.bf16.mxu0 0
        %7143 = vmatpush2.bf16.msra.mxu0 0
        %7144 = vmatprep.mubr.bf16.mxu0 0
        %7145 = vmatmul.mubr.bf16.gmra.mxu0 %v7048
        %v7146 = vpop.f32.mrf.mxu0
        %v7147 = vadd.f32 0.0, %v7146
        %v7148 = vpop.f32.mrf.mxu0
        %v7149 = vpop.f32.mrf.mxu0
        %v7150 = vadd.f32 0.0, %v7149
        %v7151 = vpop.f32.mrf.mxu0
        %7152 = vmatprep.mubr.bf16.mxu0 0
        %7153 = vmatmul.mubr.bf16.gmra.mxu0 %v7049
        %v7154 = vpop.f32.mrf.mxu0
        %v7155 = vadd.f32 0.0, %v7154
        %v7156 = vpop.f32.mrf.mxu0
        %v7157 = vpop.f32.mrf.mxu0
        %v7158 = vadd.f32 0.0, %v7157
        %v7159 = vpop.f32.mrf.mxu0
        %7160 = vmatprep.mubr.bf16.mxu0 0
        %7161 = vmatmul.mubr.bf16.gmra.mxu0 %v7050
        %v7162 = vpop.f32.mrf.mxu0
        %v7163 = vadd.f32 0.0, %v7162
        %v7164 = vpop.f32.mrf.mxu0
        %v7165 = vpop.f32.mrf.mxu0
        %v7166 = vadd.f32 0.0, %v7165
        %v7167 = vpop.f32.mrf.mxu0
        %7168 = vmatprep.mubr.bf16.mxu0 0
        %7169 = vmatmul.mubr.bf16.gmra.mxu0 %v7051
        %v7170 = vpop.f32.mrf.mxu0
        %v7171 = vadd.f32 0.0, %v7170
        %v7172 = vpop.f32.mrf.mxu0
        %v7173 = vpop.f32.mrf.mxu0
        %v7174 = vadd.f32 0.0, %v7173
        %v7175 = vpop.f32.mrf.mxu0
        %7176 = vmatprep.mubr.bf16.mxu0 0
        %7177 = vmatmul.mubr.bf16.gmra.mxu0 %v7052
        %v7178 = vpop.f32.mrf.mxu0
        %v7179 = vadd.f32 0.0, %v7178
        %v7180 = vpop.f32.mrf.mxu0
        %v7181 = vpop.f32.mrf.mxu0
        %v7182 = vadd.f32 0.0, %v7181
        %v7183 = vpop.f32.mrf.mxu0
        %7184 = vmatprep.mubr.bf16.mxu0 0
        %7185 = vmatmul.mubr.bf16.gmra.mxu0 %v7053
        %v7186 = vpop.f32.mrf.mxu0
        %v7187 = vadd.f32 0.0, %v7186
        %v7188 = vpop.f32.mrf.mxu0
        %v7189 = vpop.f32.mrf.mxu0
        %v7190 = vadd.f32 0.0, %v7189
        %v7191 = vpop.f32.mrf.mxu0
        %7192 = vmatprep.mubr.bf16.mxu0 0
        %7193 = vmatmul.mubr.bf16.gmra.mxu0 %v7054
        %v7194 = vpop.f32.mrf.mxu0
        %v7195 = vadd.f32 0.0, %v7194
        %v7196 = vpop.f32.mrf.mxu0
        %v7197 = vpop.f32.mrf.mxu0
        %v7198 = vadd.f32 0.0, %v7197
        %v7199 = vpop.f32.mrf.mxu0
        %7200 = vmatprep.mubr.bf16.mxu0 0
        %7201 = vmatmul.mubr.bf16.gmra.mxu0 %v7055
        %v7202 = vpop.f32.mrf.mxu0
        %v7203 = vadd.f32 0.0, %v7202
        %v7204 = vpop.f32.mrf.mxu0
        %v7205 = vpop.f32.mrf.mxu0
        %v7206 = vadd.f32 0.0, %v7205
        %v7207 = vpop.f32.mrf.mxu0
        %7208 = vdwg.mxu0
        %v7209 = vrot.slane %v7147, 7
        %v7210 = vrot.slane %v7150, 7
        %v7211 = vrot.slane %v7155, 7
        %v7212 = vrot.slane %v7158, 7
        %v7213 = vrot.slane %v7163, 7
        %v7214 = vrot.slane %v7166, 7
        %v7215 = vrot.slane %v7171, 7
        %v7216 = vrot.slane %v7174, 7
        %v7217 = vrot.slane %v7179, 7
        %v7218 = vrot.slane %v7182, 7
        %v7219 = vrot.slane %v7187, 7
        %v7220 = vrot.slane %v7190, 7
        %v7221 = vrot.slane %v7195, 7
        %v7222 = vrot.slane %v7198, 7
        %v7223 = vrot.slane %v7203, 7
        %v7224 = vrot.slane %v7206, 7
        %v7225 = vsel %vm649, %v7223, %v7224
        %v7226 = vsel %vm649, %v7222, %v7223
        %v7227 = vsel %vm649, %v7221, %v7222
        %v7228 = vsel %vm649, %v7220, %v7221
        %v7229 = vsel %vm649, %v7219, %v7220
        %v7230 = vsel %vm649, %v7218, %v7219
        %v7231 = vsel %vm649, %v7217, %v7218
        %v7232 = vsel %vm649, %v7216, %v7217
        %v7233 = vsel %vm649, %v7215, %v7216
        %v7234 = vsel %vm649, %v7214, %v7215
        %v7235 = vsel %vm649, %v7213, %v7214
        %v7236 = vsel %vm649, %v7212, %v7213
        %v7237 = vsel %vm649, %v7211, %v7212
        %v7238 = vsel %vm649, %v7210, %v7211
        %v7239 = vsel %vm649, %v7209, %v7210
        %v7240 = vsel %vm649, %v7224, %v7209
        %v7241 = vsel %vm397, 0.0, %v7240
        %v7242 = vsel %vm398, 0.0, %v7239
        %v7243 = vsel %vm397, 0.0, %v7238
        %v7244 = vsel %vm398, 0.0, %v7237
        %v7245 = vsel %vm397, 0.0, %v7236
        %v7246 = vsel %vm398, 0.0, %v7235
        %v7247 = vsel %vm397, 0.0, %v7234
        %v7248 = vsel %vm398, 0.0, %v7233
        %v7249 = vsel %vm397, 0.0, %v7232
        %v7250 = vsel %vm398, 0.0, %v7231
        %v7251 = vsel %vm397, 0.0, %v7230
        %v7252 = vsel %vm398, 0.0, %v7229
        %v7253 = vsel %vm397, 0.0, %v7228
        %v7254 = vsel %vm398, 0.0, %v7227
        %v7255 = vsel %vm397, 0.0, %v7226
        %v7256 = vsel %vm398, 0.0, %v7225
        %v7257 = vld [vmem:[%s5082] sm:$0xf]
        %v7258 = vld [vmem:[%s5082 + $0x4] sm:$0xf]
        %v7259 = vld [vmem:[%s5082 + $0x8] sm:$0xf]
        %v7260 = vld [vmem:[%s5082 + $0xc] sm:$0xf]
        %v7261 = vld [vmem:[%s5082 + $0x10] sm:$0xf]
        %v7262 = vld [vmem:[%s5082 + $0x14] sm:$0xf]
        %v7263 = vld [vmem:[%s5082 + $0x18] sm:$0xf]
        %v7264 = vld [vmem:[%s5082 + $0x1c] sm:$0xf]
        %v7265 = vld [vmem:[%s5082 + $0x20] sm:$0xf]
        %v7266 = vld [vmem:[%s5082 + $0x24] sm:$0xf]
        %v7267 = vld [vmem:[%s5082 + $0x28] sm:$0xf]
        %v7268 = vld [vmem:[%s5082 + $0x2c] sm:$0xf]
        %v7269 = vld [vmem:[%s5082 + $0x30] sm:$0xf]
        %v7270 = vld [vmem:[%s5082 + $0x34] sm:$0xf]
        %v7271 = vld [vmem:[%s5082 + $0x38] sm:$0xf]
        %v7272 = vld [vmem:[%s5082 + $0x3c] sm:$0xf]
        %v7289 = vunpack.c.l.b16 %v7257
        %v7290 = vunpack.c.l.b16 %v7258
        %v7291 = vunpack.c.l.b16 %v7259
        %v7292 = vunpack.c.l.b16 %v7260
        %v7293 = vunpack.c.l.b16 %v7261
        %v7294 = vunpack.c.l.b16 %v7262
        %v7295 = vunpack.c.l.b16 %v7263
        %v7296 = vunpack.c.l.b16 %v7264
        %v7297 = vunpack.c.l.b16 %v7265
        %v7298 = vunpack.c.l.b16 %v7266
        %v7299 = vunpack.c.l.b16 %v7267
        %v7300 = vunpack.c.l.b16 %v7268
        %v7301 = vunpack.c.l.b16 %v7269
        %v7302 = vunpack.c.l.b16 %v7270
        %v7303 = vunpack.c.l.b16 %v7271
        %v7304 = vunpack.c.l.b16 %v7272
        %v7305 = vpack.c.b16 %v7290, %v7289
        %v7306 = vpack.c.b16 %v7292, %v7291
        %v7307 = vpack.c.b16 %v7294, %v7293
        %v7308 = vpack.c.b16 %v7296, %v7295
        %v7309 = vpack.c.b16 %v7298, %v7297
        %v7310 = vpack.c.b16 %v7300, %v7299
        %v7311 = vpack.c.b16 %v7302, %v7301
        %v7312 = vpack.c.b16 %v7304, %v7303
        %7321 = vmatprep.subr.bf16.mxu0 0
        %7322 = vmatpush1.bf16.msra.mxu0 %v7312
        %7323 = vmatprep.subr.bf16.mxu0 0
        %7324 = vmatpush1.bf16.msra.mxu0 %v7311
        %7325 = vmatprep.subr.bf16.mxu0 0
        %7326 = vmatpush1.bf16.msra.mxu0 %v7310
        %7327 = vmatprep.subr.bf16.mxu0 0
        %7328 = vmatpush1.bf16.msra.mxu0 %v7309
        %7329 = vmatprep.subr.bf16.mxu0 0
        %7330 = vmatpush1.bf16.msra.mxu0 %v7308
        %7331 = vmatprep.subr.bf16.mxu0 0
        %7332 = vmatpush1.bf16.msra.mxu0 %v7307
        %7333 = vmatprep.subr.bf16.mxu0 0
        %7334 = vmatpush1.bf16.msra.mxu0 %v7306
        %7335 = vmatprep.subr.bf16.mxu0 0
        %7336 = vmatpush1.bf16.msra.mxu0 %v7305
        %7337 = vmatprep.subr.bf16.mxu0 0
        %7338 = vmatpush2.bf16.msra.mxu0 0
        %7339 = vmatprep.subr.bf16.mxu0 0
        %7340 = vmatpush2.bf16.msra.mxu0 0
        %7341 = vmatprep.subr.bf16.mxu0 0
        %7342 = vmatpush2.bf16.msra.mxu0 0
        %7343 = vmatprep.subr.bf16.mxu0 0
        %7344 = vmatpush2.bf16.msra.mxu0 0
        %7345 = vmatprep.subr.bf16.mxu0 0
        %7346 = vmatpush2.bf16.msra.mxu0 0
        %7347 = vmatprep.subr.bf16.mxu0 0
        %7348 = vmatpush2.bf16.msra.mxu0 0
        %7349 = vmatprep.subr.bf16.mxu0 0
        %7350 = vmatpush2.bf16.msra.mxu0 0
        %7351 = vmatprep.subr.bf16.mxu0 0
        %7352 = vmatpush2.bf16.msra.mxu0 0
        %7353 = vmatprep.mubr.bf16.mxu0 0
        %7354 = vmatmul.mubr.bf16.gmra.mxu0 %v7048
        %v7355 = vpop.f32.mrf.mxu0
        %v7356 = vadd.f32 0.0, %v7355
        %v7357 = vpop.f32.mrf.mxu0
        %v7358 = vpop.f32.mrf.mxu0
        %v7359 = vadd.f32 0.0, %v7358
        %v7360 = vpop.f32.mrf.mxu0
        %7361 = vmatprep.mubr.bf16.mxu0 0
        %7362 = vmatmul.mubr.bf16.gmra.mxu0 %v7049
        %v7363 = vpop.f32.mrf.mxu0
        %v7364 = vadd.f32 0.0, %v7363
        %v7365 = vpop.f32.mrf.mxu0
        %v7366 = vpop.f32.mrf.mxu0
        %v7367 = vadd.f32 0.0, %v7366
        %v7368 = vpop.f32.mrf.mxu0
        %7369 = vmatprep.mubr.bf16.mxu0 0
        %7370 = vmatmul.mubr.bf16.gmra.mxu0 %v7050
        %v7371 = vpop.f32.mrf.mxu0
        %v7372 = vadd.f32 0.0, %v7371
        %v7373 = vpop.f32.mrf.mxu0
        %v7374 = vpop.f32.mrf.mxu0
        %v7375 = vadd.f32 0.0, %v7374
        %v7376 = vpop.f32.mrf.mxu0
        %7377 = vmatprep.mubr.bf16.mxu0 0
        %7378 = vmatmul.mubr.bf16.gmra.mxu0 %v7051
        %v7379 = vpop.f32.mrf.mxu0
        %v7380 = vadd.f32 0.0, %v7379
        %v7381 = vpop.f32.mrf.mxu0
        %v7382 = vpop.f32.mrf.mxu0
        %v7383 = vadd.f32 0.0, %v7382
        %v7384 = vpop.f32.mrf.mxu0
        %7385 = vmatprep.mubr.bf16.mxu0 0
        %7386 = vmatmul.mubr.bf16.gmra.mxu0 %v7052
        %v7387 = vpop.f32.mrf.mxu0
        %v7388 = vadd.f32 0.0, %v7387
        %v7389 = vpop.f32.mrf.mxu0
        %v7390 = vpop.f32.mrf.mxu0
        %v7391 = vadd.f32 0.0, %v7390
        %v7392 = vpop.f32.mrf.mxu0
        %7393 = vmatprep.mubr.bf16.mxu0 0
        %7394 = vmatmul.mubr.bf16.gmra.mxu0 %v7053
        %v7395 = vpop.f32.mrf.mxu0
        %v7396 = vadd.f32 0.0, %v7395
        %v7397 = vpop.f32.mrf.mxu0
        %v7398 = vpop.f32.mrf.mxu0
        %v7399 = vadd.f32 0.0, %v7398
        %v7400 = vpop.f32.mrf.mxu0
        %7401 = vmatprep.mubr.bf16.mxu0 0
        %7402 = vmatmul.mubr.bf16.gmra.mxu0 %v7054
        %v7403 = vpop.f32.mrf.mxu0
        %v7404 = vadd.f32 0.0, %v7403
        %v7405 = vpop.f32.mrf.mxu0
        %v7406 = vpop.f32.mrf.mxu0
        %v7407 = vadd.f32 0.0, %v7406
        %v7408 = vpop.f32.mrf.mxu0
        %7409 = vmatprep.mubr.bf16.mxu0 0
        %7410 = vmatmul.mubr.bf16.gmra.mxu0 %v7055
        %v7411 = vpop.f32.mrf.mxu0
        %v7412 = vadd.f32 0.0, %v7411
        %v7413 = vpop.f32.mrf.mxu0
        %v7414 = vpop.f32.mrf.mxu0
        %v7415 = vadd.f32 0.0, %v7414
        %v7416 = vpop.f32.mrf.mxu0
        %7417 = vdwg.mxu0
        %v7418 = vadd.f32 %v7241, %v7356
        %v7419 = vadd.f32 %v7242, %v7359
        %v7420 = vadd.f32 %v7243, %v7364
        %v7421 = vadd.f32 %v7244, %v7367
        %v7422 = vadd.f32 %v7245, %v7372
        %v7423 = vadd.f32 %v7246, %v7375
        %v7424 = vadd.f32 %v7247, %v7380
        %v7425 = vadd.f32 %v7248, %v7383
        %v7426 = vadd.f32 %v7249, %v7388
        %v7427 = vadd.f32 %v7250, %v7391
        %v7428 = vadd.f32 %v7251, %v7396
        %v7429 = vadd.f32 %v7252, %v7399
        %v7430 = vadd.f32 %v7253, %v7404
        %v7431 = vadd.f32 %v7254, %v7407
        %v7432 = vadd.f32 %v7255, %v7412
        %v7433 = vadd.f32 %v7256, %v7415
        %v7434 = vld [vmem:[%s5260] sm:$0xf]
        %v7435 = vld [vmem:[%s5260 + $0x4] sm:$0xf]
        %v7436 = vld [vmem:[%s5260 + $0x8] sm:$0xf]
        %v7437 = vld [vmem:[%s5260 + $0xc] sm:$0xf]
        %v7438 = vld [vmem:[%s5260 + $0x10] sm:$0xf]
        %v7439 = vld [vmem:[%s5260 + $0x14] sm:$0xf]
        %v7440 = vld [vmem:[%s5260 + $0x18] sm:$0xf]
        %v7441 = vld [vmem:[%s5260 + $0x1c] sm:$0xf]
        %v7442 = vld [vmem:[%s5260 + $0x20] sm:$0xf]
        %v7443 = vld [vmem:[%s5260 + $0x24] sm:$0xf]
        %v7444 = vld [vmem:[%s5260 + $0x28] sm:$0xf]
        %v7445 = vld [vmem:[%s5260 + $0x2c] sm:$0xf]
        %v7446 = vld [vmem:[%s5260 + $0x30] sm:$0xf]
        %v7447 = vld [vmem:[%s5260 + $0x34] sm:$0xf]
        %v7448 = vld [vmem:[%s5260 + $0x38] sm:$0xf]
        %v7449 = vld [vmem:[%s5260 + $0x3c] sm:$0xf]
        %v7466 = vunpack.c.l.b16 %v7434
        %v7467 = vunpack.c.l.b16 %v7435
        %v7468 = vunpack.c.l.b16 %v7436
        %v7469 = vunpack.c.l.b16 %v7437
        %v7470 = vunpack.c.l.b16 %v7438
        %v7471 = vunpack.c.l.b16 %v7439
        %v7472 = vunpack.c.l.b16 %v7440
        %v7473 = vunpack.c.l.b16 %v7441
        %v7474 = vunpack.c.l.b16 %v7442
        %v7475 = vunpack.c.l.b16 %v7443
        %v7476 = vunpack.c.l.b16 %v7444
        %v7477 = vunpack.c.l.b16 %v7445
        %v7478 = vunpack.c.l.b16 %v7446
        %v7479 = vunpack.c.l.b16 %v7447
        %v7480 = vunpack.c.l.b16 %v7448
        %v7481 = vunpack.c.l.b16 %v7449
        %v7482 = vpack.c.b16 %v7467, %v7466
        %v7483 = vpack.c.b16 %v7469, %v7468
        %v7484 = vpack.c.b16 %v7471, %v7470
        %v7485 = vpack.c.b16 %v7473, %v7472
        %v7486 = vpack.c.b16 %v7475, %v7474
        %v7487 = vpack.c.b16 %v7477, %v7476
        %v7488 = vpack.c.b16 %v7479, %v7478
        %v7489 = vpack.c.b16 %v7481, %v7480
        %7498 = vmatprep.subr.bf16.mxu0 0
        %7499 = vmatpush1.bf16.msra.mxu0 %v7489
        %7500 = vmatprep.subr.bf16.mxu0 0
        %7501 = vmatpush1.bf16.msra.mxu0 %v7488
        %7502 = vmatprep.subr.bf16.mxu0 0
        %7503 = vmatpush1.bf16.msra.mxu0 %v7487
        %7504 = vmatprep.subr.bf16.mxu0 0
        %7505 = vmatpush1.bf16.msra.mxu0 %v7486
        %7506 = vmatprep.subr.bf16.mxu0 0
        %7507 = vmatpush1.bf16.msra.mxu0 %v7485
        %7508 = vmatprep.subr.bf16.mxu0 0
        %7509 = vmatpush1.bf16.msra.mxu0 %v7484
        %7510 = vmatprep.subr.bf16.mxu0 0
        %7511 = vmatpush1.bf16.msra.mxu0 %v7483
        %7512 = vmatprep.subr.bf16.mxu0 0
        %7513 = vmatpush1.bf16.msra.mxu0 %v7482
        %7514 = vmatprep.subr.bf16.mxu0 0
        %7515 = vmatpush2.bf16.msra.mxu0 0
        %7516 = vmatprep.subr.bf16.mxu0 0
        %7517 = vmatpush2.bf16.msra.mxu0 0
        %7518 = vmatprep.subr.bf16.mxu0 0
        %7519 = vmatpush2.bf16.msra.mxu0 0
        %7520 = vmatprep.subr.bf16.mxu0 0
        %7521 = vmatpush2.bf16.msra.mxu0 0
        %7522 = vmatprep.subr.bf16.mxu0 0
        %7523 = vmatpush2.bf16.msra.mxu0 0
        %7524 = vmatprep.subr.bf16.mxu0 0
        %7525 = vmatpush2.bf16.msra.mxu0 0
        %7526 = vmatprep.subr.bf16.mxu0 0
        %7527 = vmatpush2.bf16.msra.mxu0 0
        %7528 = vmatprep.subr.bf16.mxu0 0
        %7529 = vmatpush2.bf16.msra.mxu0 0
        %7530 = vmatprep.mubr.bf16.mxu0 0
        %7531 = vmatmul.mubr.bf16.gmra.mxu0 %v7048
        %v7532 = vpop.f32.mrf.mxu0
        %v7533 = vadd.f32 0.0, %v7532
        %v7534 = vpop.f32.mrf.mxu0
        %v7535 = vpop.f32.mrf.mxu0
        %v7536 = vadd.f32 0.0, %v7535
        %v7537 = vpop.f32.mrf.mxu0
        %7538 = vmatprep.mubr.bf16.mxu0 0
        %7539 = vmatmul.mubr.bf16.gmra.mxu0 %v7049
        %v7540 = vpop.f32.mrf.mxu0
        %v7541 = vadd.f32 0.0, %v7540
        %v7542 = vpop.f32.mrf.mxu0
        %v7543 = vpop.f32.mrf.mxu0
        %v7544 = vadd.f32 0.0, %v7543
        %v7545 = vpop.f32.mrf.mxu0
        %7546 = vmatprep.mubr.bf16.mxu0 0
        %7547 = vmatmul.mubr.bf16.gmra.mxu0 %v7050
        %v7548 = vpop.f32.mrf.mxu0
        %v7549 = vadd.f32 0.0, %v7548
        %v7550 = vpop.f32.mrf.mxu0
        %v7551 = vpop.f32.mrf.mxu0
        %v7552 = vadd.f32 0.0, %v7551
        %v7553 = vpop.f32.mrf.mxu0
        %7554 = vmatprep.mubr.bf16.mxu0 0
        %7555 = vmatmul.mubr.bf16.gmra.mxu0 %v7051
        %v7556 = vpop.f32.mrf.mxu0
        %v7557 = vadd.f32 0.0, %v7556
        %v7558 = vpop.f32.mrf.mxu0
        %v7559 = vpop.f32.mrf.mxu0
        %v7560 = vadd.f32 0.0, %v7559
        %v7561 = vpop.f32.mrf.mxu0
        %7562 = vmatprep.mubr.bf16.mxu0 0
        %7563 = vmatmul.mubr.bf16.gmra.mxu0 %v7052
        %v7564 = vpop.f32.mrf.mxu0
        %v7565 = vadd.f32 0.0, %v7564
        %v7566 = vpop.f32.mrf.mxu0
        %v7567 = vpop.f32.mrf.mxu0
        %v7568 = vadd.f32 0.0, %v7567
        %v7569 = vpop.f32.mrf.mxu0
        %7570 = vmatprep.mubr.bf16.mxu0 0
        %7571 = vmatmul.mubr.bf16.gmra.mxu0 %v7053
        %v7572 = vpop.f32.mrf.mxu0
        %v7573 = vadd.f32 0.0, %v7572
        %v7574 = vpop.f32.mrf.mxu0
        %v7575 = vpop.f32.mrf.mxu0
        %v7576 = vadd.f32 0.0, %v7575
        %v7577 = vpop.f32.mrf.mxu0
        %7578 = vmatprep.mubr.bf16.mxu0 0
        %7579 = vmatmul.mubr.bf16.gmra.mxu0 %v7054
        %v7580 = vpop.f32.mrf.mxu0
        %v7581 = vadd.f32 0.0, %v7580
        %v7582 = vpop.f32.mrf.mxu0
        %v7583 = vpop.f32.mrf.mxu0
        %v7584 = vadd.f32 0.0, %v7583
        %v7585 = vpop.f32.mrf.mxu0
        %7586 = vmatprep.mubr.bf16.mxu0 0
        %7587 = vmatmul.mubr.bf16.gmra.mxu0 %v7055
        %v7588 = vpop.f32.mrf.mxu0
        %v7589 = vadd.f32 0.0, %v7588
        %v7590 = vpop.f32.mrf.mxu0
        %v7591 = vpop.f32.mrf.mxu0
        %v7592 = vadd.f32 0.0, %v7591
        %v7593 = vpop.f32.mrf.mxu0
        %7594 = vdwg.mxu0
        %v7595 = vrot.slane %v7533, 1
        %v7596 = vrot.slane %v7536, 1
        %v7597 = vrot.slane %v7541, 1
        %v7598 = vrot.slane %v7544, 1
        %v7599 = vrot.slane %v7549, 1
        %v7600 = vrot.slane %v7552, 1
        %v7601 = vrot.slane %v7557, 1
        %v7602 = vrot.slane %v7560, 1
        %v7603 = vrot.slane %v7565, 1
        %v7604 = vrot.slane %v7568, 1
        %v7605 = vrot.slane %v7573, 1
        %v7606 = vrot.slane %v7576, 1
        %v7607 = vrot.slane %v7581, 1
        %v7608 = vrot.slane %v7584, 1
        %v7609 = vrot.slane %v7589, 1
        %v7610 = vrot.slane %v7592, 1
        %v7611 = vsel %vm1038, %v7609, %v7610
        %v7612 = vsel %vm1038, %v7608, %v7609
        %v7613 = vsel %vm1038, %v7607, %v7608
        %v7614 = vsel %vm1038, %v7606, %v7607
        %v7615 = vsel %vm1038, %v7605, %v7606
        %v7616 = vsel %vm1038, %v7604, %v7605
        %v7617 = vsel %vm1038, %v7603, %v7604
        %v7618 = vsel %vm1038, %v7602, %v7603
        %v7619 = vsel %vm1038, %v7601, %v7602
        %v7620 = vsel %vm1038, %v7600, %v7601
        %v7621 = vsel %vm1038, %v7599, %v7600
        %v7622 = vsel %vm1038, %v7598, %v7599
        %v7623 = vsel %vm1038, %v7597, %v7598
        %v7624 = vsel %vm1038, %v7596, %v7597
        %v7625 = vsel %vm1038, %v7595, %v7596
        %v7626 = vsel %vm1038, %v7610, %v7595
        %v7627 = vsel %vm399, 0.0, %v7625
        %v7628 = vsel %vm400, 0.0, %v7624
        %v7629 = vsel %vm399, 0.0, %v7623
        %v7630 = vsel %vm400, 0.0, %v7622
        %v7631 = vsel %vm399, 0.0, %v7621
        %v7632 = vsel %vm400, 0.0, %v7620
        %v7633 = vsel %vm399, 0.0, %v7619
        %v7634 = vsel %vm400, 0.0, %v7618
        %v7635 = vsel %vm399, 0.0, %v7617
        %v7636 = vsel %vm400, 0.0, %v7616
        %v7637 = vsel %vm399, 0.0, %v7615
        %v7638 = vsel %vm400, 0.0, %v7614
        %v7639 = vsel %vm399, 0.0, %v7613
        %v7640 = vsel %vm400, 0.0, %v7612
        %v7641 = vsel %vm399, 0.0, %v7611
        %v7642 = vsel %vm400, 0.0, %v7626
        %v7643 = vadd.f32 %v7418, %v7627
        %v7644 = vadd.f32 %v7419, %v7628
        %v7645 = vadd.f32 %v7420, %v7629
        %v7646 = vadd.f32 %v7421, %v7630
        %v7647 = vadd.f32 %v7422, %v7631
        %v7648 = vadd.f32 %v7423, %v7632
        %v7649 = vadd.f32 %v7424, %v7633
        %v7650 = vadd.f32 %v7425, %v7634
        %v7651 = vadd.f32 %v7426, %v7635
        %v7652 = vadd.f32 %v7427, %v7636
        %v7653 = vadd.f32 %v7428, %v7637
        %v7654 = vadd.f32 %v7429, %v7638
        %v7655 = vadd.f32 %v7430, %v7639
        %v7656 = vadd.f32 %v7431, %v7640
        %v7657 = vadd.f32 %v7432, %v7641
        %v7658 = vadd.f32 %v7433, %v7642
        %v7659 = vld [vmem:[%s4790] sm:$0xf]
        %v7660 = vld [vmem:[%s4790 + $0x4] sm:$0xf]
        %v7661 = vld [vmem:[%s4790 + $0x8] sm:$0xf]
        %v7662 = vld [vmem:[%s4790 + $0xc] sm:$0xf]
        %v7663 = vld [vmem:[%s4790 + $0x10] sm:$0xf]
        %v7664 = vld [vmem:[%s4790 + $0x14] sm:$0xf]
        %v7665 = vld [vmem:[%s4790 + $0x18] sm:$0xf]
        %v7666 = vld [vmem:[%s4790 + $0x1c] sm:$0xf]
        %v7667 = vld [vmem:[%s4790 + $0x20] sm:$0xf]
        %v7668 = vld [vmem:[%s4790 + $0x24] sm:$0xf]
        %v7669 = vld [vmem:[%s4790 + $0x28] sm:$0xf]
        %v7670 = vld [vmem:[%s4790 + $0x2c] sm:$0xf]
        %v7671 = vld [vmem:[%s4790 + $0x30] sm:$0xf]
        %v7672 = vld [vmem:[%s4790 + $0x34] sm:$0xf]
        %v7673 = vld [vmem:[%s4790 + $0x38] sm:$0xf]
        %v7674 = vld [vmem:[%s4790 + $0x3c] sm:$0xf]
        %v7675 = vld [vmem:[%s5502] sm:$0xf]
        %v7676 = vld [vmem:[%s5502 + $0x4] sm:$0xf]
        %v7677 = vld [vmem:[%s5502 + $0x8] sm:$0xf]
        %v7678 = vld [vmem:[%s5502 + $0xc] sm:$0xf]
        %v7679 = vld [vmem:[%s5502 + $0x10] sm:$0xf]
        %v7680 = vld [vmem:[%s5502 + $0x14] sm:$0xf]
        %v7681 = vld [vmem:[%s5502 + $0x18] sm:$0xf]
        %v7682 = vld [vmem:[%s5502 + $0x1c] sm:$0xf]
        %v7683 = vld [vmem:[%s5502 + $0x20] sm:$0xf]
        %v7684 = vld [vmem:[%s5502 + $0x24] sm:$0xf]
        %v7685 = vld [vmem:[%s5502 + $0x28] sm:$0xf]
        %v7686 = vld [vmem:[%s5502 + $0x2c] sm:$0xf]
        %v7687 = vld [vmem:[%s5502 + $0x30] sm:$0xf]
        %v7688 = vld [vmem:[%s5502 + $0x34] sm:$0xf]
        %v7689 = vld [vmem:[%s5502 + $0x38] sm:$0xf]
        %v7690 = vld [vmem:[%s5502 + $0x3c] sm:$0xf]
        %v7707 = vunpack.c.l.b16 %v7659
        %v7708 = vunpack.c.l.b16 %v7660
        %v7709 = vunpack.c.l.b16 %v7661
        %v7710 = vunpack.c.l.b16 %v7662
        %v7711 = vunpack.c.l.b16 %v7663
        %v7712 = vunpack.c.l.b16 %v7664
        %v7713 = vunpack.c.l.b16 %v7665
        %v7714 = vunpack.c.l.b16 %v7666
        %v7715 = vunpack.c.l.b16 %v7667
        %v7716 = vunpack.c.l.b16 %v7668
        %v7717 = vunpack.c.l.b16 %v7669
        %v7718 = vunpack.c.l.b16 %v7670
        %v7719 = vunpack.c.l.b16 %v7671
        %v7720 = vunpack.c.l.b16 %v7672
        %v7721 = vunpack.c.l.b16 %v7673
        %v7722 = vunpack.c.l.b16 %v7674
        %v7723 = vpack.c.b16 %v7708, %v7707
        %v7724 = vpack.c.b16 %v7710, %v7709
        %v7725 = vpack.c.b16 %v7712, %v7711
        %v7726 = vpack.c.b16 %v7714, %v7713
        %v7727 = vpack.c.b16 %v7716, %v7715
        %v7728 = vpack.c.b16 %v7718, %v7717
        %v7729 = vpack.c.b16 %v7720, %v7719
        %v7730 = vpack.c.b16 %v7722, %v7721
        %v7755 = vunpack.c.l.b16 %v7675
        %v7756 = vunpack.c.l.b16 %v7676
        %v7757 = vunpack.c.l.b16 %v7677
        %v7758 = vunpack.c.l.b16 %v7678
        %v7759 = vunpack.c.l.b16 %v7679
        %v7760 = vunpack.c.l.b16 %v7680
        %v7761 = vunpack.c.l.b16 %v7681
        %v7762 = vunpack.c.l.b16 %v7682
        %v7763 = vunpack.c.l.b16 %v7683
        %v7764 = vunpack.c.l.b16 %v7684
        %v7765 = vunpack.c.l.b16 %v7685
        %v7766 = vunpack.c.l.b16 %v7686
        %v7767 = vunpack.c.l.b16 %v7687
        %v7768 = vunpack.c.l.b16 %v7688
        %v7769 = vunpack.c.l.b16 %v7689
        %v7770 = vunpack.c.l.b16 %v7690
        %v7771 = vpack.c.b16 %v7756, %v7755
        %v7772 = vpack.c.b16 %v7758, %v7757
        %v7773 = vpack.c.b16 %v7760, %v7759
        %v7774 = vpack.c.b16 %v7762, %v7761
        %v7775 = vpack.c.b16 %v7764, %v7763
        %v7776 = vpack.c.b16 %v7766, %v7765
        %v7777 = vpack.c.b16 %v7768, %v7767
        %v7778 = vpack.c.b16 %v7770, %v7769
        %7787 = vmatprep.subr.bf16.mxu0 0
        %7788 = vmatpush1.bf16.msra.mxu0 %v7778
        %7789 = vmatprep.subr.bf16.mxu0 0
        %7790 = vmatpush1.bf16.msra.mxu0 %v7777
        %7791 = vmatprep.subr.bf16.mxu0 0
        %7792 = vmatpush1.bf16.msra.mxu0 %v7776
        %7793 = vmatprep.subr.bf16.mxu0 0
        %7794 = vmatpush1.bf16.msra.mxu0 %v7775
        %7795 = vmatprep.subr.bf16.mxu0 0
        %7796 = vmatpush1.bf16.msra.mxu0 %v7774
        %7797 = vmatprep.subr.bf16.mxu0 0
        %7798 = vmatpush1.bf16.msra.mxu0 %v7773
        %7799 = vmatprep.subr.bf16.mxu0 0
        %7800 = vmatpush1.bf16.msra.mxu0 %v7772
        %7801 = vmatprep.subr.bf16.mxu0 0
        %7802 = vmatpush1.bf16.msra.mxu0 %v7771
        %7803 = vmatprep.subr.bf16.mxu0 0
        %7804 = vmatpush2.bf16.msra.mxu0 0
        %7805 = vmatprep.subr.bf16.mxu0 0
        %7806 = vmatpush2.bf16.msra.mxu0 0
        %7807 = vmatprep.subr.bf16.mxu0 0
        %7808 = vmatpush2.bf16.msra.mxu0 0
        %7809 = vmatprep.subr.bf16.mxu0 0
        %7810 = vmatpush2.bf16.msra.mxu0 0
        %7811 = vmatprep.subr.bf16.mxu0 0
        %7812 = vmatpush2.bf16.msra.mxu0 0
        %7813 = vmatprep.subr.bf16.mxu0 0
        %7814 = vmatpush2.bf16.msra.mxu0 0
        %7815 = vmatprep.subr.bf16.mxu0 0
        %7816 = vmatpush2.bf16.msra.mxu0 0
        %7817 = vmatprep.subr.bf16.mxu0 0
        %7818 = vmatpush2.bf16.msra.mxu0 0
        %7819 = vmatprep.mubr.bf16.mxu0 0
        %7820 = vmatmul.mubr.bf16.gmra.mxu0 %v7723
        %v7821 = vpop.f32.mrf.mxu0
        %v7822 = vadd.f32 0.0, %v7821
        %v7823 = vpop.f32.mrf.mxu0
        %v7824 = vpop.f32.mrf.mxu0
        %v7825 = vadd.f32 0.0, %v7824
        %v7826 = vpop.f32.mrf.mxu0
        %7827 = vmatprep.mubr.bf16.mxu0 0
        %7828 = vmatmul.mubr.bf16.gmra.mxu0 %v7724
        %v7829 = vpop.f32.mrf.mxu0
        %v7830 = vadd.f32 0.0, %v7829
        %v7831 = vpop.f32.mrf.mxu0
        %v7832 = vpop.f32.mrf.mxu0
        %v7833 = vadd.f32 0.0, %v7832
        %v7834 = vpop.f32.mrf.mxu0
        %7835 = vmatprep.mubr.bf16.mxu0 0
        %7836 = vmatmul.mubr.bf16.gmra.mxu0 %v7725
        %v7837 = vpop.f32.mrf.mxu0
        %v7838 = vadd.f32 0.0, %v7837
        %v7839 = vpop.f32.mrf.mxu0
        %v7840 = vpop.f32.mrf.mxu0
        %v7841 = vadd.f32 0.0, %v7840
        %v7842 = vpop.f32.mrf.mxu0
        %7843 = vmatprep.mubr.bf16.mxu0 0
        %7844 = vmatmul.mubr.bf16.gmra.mxu0 %v7726
        %v7845 = vpop.f32.mrf.mxu0
        %v7846 = vadd.f32 0.0, %v7845
        %v7847 = vpop.f32.mrf.mxu0
        %v7848 = vpop.f32.mrf.mxu0
        %v7849 = vadd.f32 0.0, %v7848
        %v7850 = vpop.f32.mrf.mxu0
        %7851 = vmatprep.mubr.bf16.mxu0 0
        %7852 = vmatmul.mubr.bf16.gmra.mxu0 %v7727
        %v7853 = vpop.f32.mrf.mxu0
        %v7854 = vadd.f32 0.0, %v7853
        %v7855 = vpop.f32.mrf.mxu0
        %v7856 = vpop.f32.mrf.mxu0
        %v7857 = vadd.f32 0.0, %v7856
        %v7858 = vpop.f32.mrf.mxu0
        %7859 = vmatprep.mubr.bf16.mxu0 0
        %7860 = vmatmul.mubr.bf16.gmra.mxu0 %v7728
        %v7861 = vpop.f32.mrf.mxu0
        %v7862 = vadd.f32 0.0, %v7861
        %v7863 = vpop.f32.mrf.mxu0
        %v7864 = vpop.f32.mrf.mxu0
        %v7865 = vadd.f32 0.0, %v7864
        %v7866 = vpop.f32.mrf.mxu0
        %7867 = vmatprep.mubr.bf16.mxu0 0
        %7868 = vmatmul.mubr.bf16.gmra.mxu0 %v7729
        %v7869 = vpop.f32.mrf.mxu0
        %v7870 = vadd.f32 0.0, %v7869
        %v7871 = vpop.f32.mrf.mxu0
        %v7872 = vpop.f32.mrf.mxu0
        %v7873 = vadd.f32 0.0, %v7872
        %v7874 = vpop.f32.mrf.mxu0
        %7875 = vmatprep.mubr.bf16.mxu0 0
        %7876 = vmatmul.mubr.bf16.gmra.mxu0 %v7730
        %v7877 = vpop.f32.mrf.mxu0
        %v7878 = vadd.f32 0.0, %v7877
        %v7879 = vpop.f32.mrf.mxu0
        %v7880 = vpop.f32.mrf.mxu0
        %v7881 = vadd.f32 0.0, %v7880
        %v7882 = vpop.f32.mrf.mxu0
        %7883 = vdwg.mxu0
        %v7884 = vrot.slane %v7822, 7
        %v7885 = vrot.slane %v7825, 7
        %v7886 = vrot.slane %v7830, 7
        %v7887 = vrot.slane %v7833, 7
        %v7888 = vrot.slane %v7838, 7
        %v7889 = vrot.slane %v7841, 7
        %v7890 = vrot.slane %v7846, 7
        %v7891 = vrot.slane %v7849, 7
        %v7892 = vrot.slane %v7854, 7
        %v7893 = vrot.slane %v7857, 7
        %v7894 = vrot.slane %v7862, 7
        %v7895 = vrot.slane %v7865, 7
        %v7896 = vrot.slane %v7870, 7
        %v7897 = vrot.slane %v7873, 7
        %v7898 = vrot.slane %v7878, 7
        %v7899 = vrot.slane %v7881, 7
        %v7900 = vsel %vm649, %v7898, %v7899
        %v7901 = vsel %vm649, %v7897, %v7898
        %v7902 = vsel %vm649, %v7896, %v7897
        %v7903 = vsel %vm649, %v7895, %v7896
        %v7904 = vsel %vm649, %v7894, %v7895
        %v7905 = vsel %vm649, %v7893, %v7894
        %v7906 = vsel %vm649, %v7892, %v7893
        %v7907 = vsel %vm649, %v7891, %v7892
        %v7908 = vsel %vm649, %v7890, %v7891
        %v7909 = vsel %vm649, %v7889, %v7890
        %v7910 = vsel %vm649, %v7888, %v7889
        %v7911 = vsel %vm649, %v7887, %v7888
        %v7912 = vsel %vm649, %v7886, %v7887
        %v7913 = vsel %vm649, %v7885, %v7886
        %v7914 = vsel %vm649, %v7884, %v7885
        %v7915 = vsel %vm649, %v7899, %v7884
        %v7916 = vsel %vm397, 0.0, %v7915
        %v7917 = vsel %vm398, 0.0, %v7914
        %v7918 = vsel %vm397, 0.0, %v7913
        %v7919 = vsel %vm398, 0.0, %v7912
        %v7920 = vsel %vm397, 0.0, %v7911
        %v7921 = vsel %vm398, 0.0, %v7910
        %v7922 = vsel %vm397, 0.0, %v7909
        %v7923 = vsel %vm398, 0.0, %v7908
        %v7924 = vsel %vm397, 0.0, %v7907
        %v7925 = vsel %vm398, 0.0, %v7906
        %v7926 = vsel %vm397, 0.0, %v7905
        %v7927 = vsel %vm398, 0.0, %v7904
        %v7928 = vsel %vm397, 0.0, %v7903
        %v7929 = vsel %vm398, 0.0, %v7902
        %v7930 = vsel %vm397, 0.0, %v7901
        %v7931 = vsel %vm398, 0.0, %v7900
        %v7932 = vadd.f32 %v7643, %v7916
        %v7933 = vadd.f32 %v7644, %v7917
        %v7934 = vadd.f32 %v7645, %v7918
        %v7935 = vadd.f32 %v7646, %v7919
        %v7936 = vadd.f32 %v7647, %v7920
        %v7937 = vadd.f32 %v7648, %v7921
        %v7938 = vadd.f32 %v7649, %v7922
        %v7939 = vadd.f32 %v7650, %v7923
        %v7940 = vadd.f32 %v7651, %v7924
        %v7941 = vadd.f32 %v7652, %v7925
        %v7942 = vadd.f32 %v7653, %v7926
        %v7943 = vadd.f32 %v7654, %v7927
        %v7944 = vadd.f32 %v7655, %v7928
        %v7945 = vadd.f32 %v7656, %v7929
        %v7946 = vadd.f32 %v7657, %v7930
        %v7947 = vadd.f32 %v7658, %v7931
        %v7948 = vld [vmem:[%s5776] sm:$0xf]
        %v7949 = vld [vmem:[%s5776 + $0x4] sm:$0xf]
        %v7950 = vld [vmem:[%s5776 + $0x8] sm:$0xf]
        %v7951 = vld [vmem:[%s5776 + $0xc] sm:$0xf]
        %v7952 = vld [vmem:[%s5776 + $0x10] sm:$0xf]
        %v7953 = vld [vmem:[%s5776 + $0x14] sm:$0xf]
        %v7954 = vld [vmem:[%s5776 + $0x18] sm:$0xf]
        %v7955 = vld [vmem:[%s5776 + $0x1c] sm:$0xf]
        %v7956 = vld [vmem:[%s5776 + $0x20] sm:$0xf]
        %v7957 = vld [vmem:[%s5776 + $0x24] sm:$0xf]
        %v7958 = vld [vmem:[%s5776 + $0x28] sm:$0xf]
        %v7959 = vld [vmem:[%s5776 + $0x2c] sm:$0xf]
        %v7960 = vld [vmem:[%s5776 + $0x30] sm:$0xf]
        %v7961 = vld [vmem:[%s5776 + $0x34] sm:$0xf]
        %v7962 = vld [vmem:[%s5776 + $0x38] sm:$0xf]
        %v7963 = vld [vmem:[%s5776 + $0x3c] sm:$0xf]
        %v7980 = vunpack.c.l.b16 %v7948
        %v7981 = vunpack.c.l.b16 %v7949
        %v7982 = vunpack.c.l.b16 %v7950
        %v7983 = vunpack.c.l.b16 %v7951
        %v7984 = vunpack.c.l.b16 %v7952
        %v7985 = vunpack.c.l.b16 %v7953
        %v7986 = vunpack.c.l.b16 %v7954
        %v7987 = vunpack.c.l.b16 %v7955
        %v7988 = vunpack.c.l.b16 %v7956
        %v7989 = vunpack.c.l.b16 %v7957
        %v7990 = vunpack.c.l.b16 %v7958
        %v7991 = vunpack.c.l.b16 %v7959
        %v7992 = vunpack.c.l.b16 %v7960
        %v7993 = vunpack.c.l.b16 %v7961
        %v7994 = vunpack.c.l.b16 %v7962
        %v7995 = vunpack.c.l.b16 %v7963
        %v7996 = vpack.c.b16 %v7981, %v7980
        %v7997 = vpack.c.b16 %v7983, %v7982
        %v7998 = vpack.c.b16 %v7985, %v7984
        %v7999 = vpack.c.b16 %v7987, %v7986
        %v8000 = vpack.c.b16 %v7989, %v7988
        %v8001 = vpack.c.b16 %v7991, %v7990
        %v8002 = vpack.c.b16 %v7993, %v7992
        %v8003 = vpack.c.b16 %v7995, %v7994
        %8012 = vmatprep.subr.bf16.mxu0 0
        %8013 = vmatpush1.bf16.msra.mxu0 %v8003
        %8014 = vmatprep.subr.bf16.mxu0 0
        %8015 = vmatpush1.bf16.msra.mxu0 %v8002
        %8016 = vmatprep.subr.bf16.mxu0 0
        %8017 = vmatpush1.bf16.msra.mxu0 %v8001
        %8018 = vmatprep.subr.bf16.mxu0 0
        %8019 = vmatpush1.bf16.msra.mxu0 %v8000
        %8020 = vmatprep.subr.bf16.mxu0 0
        %8021 = vmatpush1.bf16.msra.mxu0 %v7999
        %8022 = vmatprep.subr.bf16.mxu0 0
        %8023 = vmatpush1.bf16.msra.mxu0 %v7998
        %8024 = vmatprep.subr.bf16.mxu0 0
        %8025 = vmatpush1.bf16.msra.mxu0 %v7997
        %8026 = vmatprep.subr.bf16.mxu0 0
        %8027 = vmatpush1.bf16.msra.mxu0 %v7996
        %8028 = vmatprep.subr.bf16.mxu0 0
        %8029 = vmatpush2.bf16.msra.mxu0 0
        %8030 = vmatprep.subr.bf16.mxu0 0
        %8031 = vmatpush2.bf16.msra.mxu0 0
        %8032 = vmatprep.subr.bf16.mxu0 0
        %8033 = vmatpush2.bf16.msra.mxu0 0
        %8034 = vmatprep.subr.bf16.mxu0 0
        %8035 = vmatpush2.bf16.msra.mxu0 0
        %8036 = vmatprep.subr.bf16.mxu0 0
        %8037 = vmatpush2.bf16.msra.mxu0 0
        %8038 = vmatprep.subr.bf16.mxu0 0
        %8039 = vmatpush2.bf16.msra.mxu0 0
        %8040 = vmatprep.subr.bf16.mxu0 0
        %8041 = vmatpush2.bf16.msra.mxu0 0
        %8042 = vmatprep.subr.bf16.mxu0 0
        %8043 = vmatpush2.bf16.msra.mxu0 0
        %8044 = vmatprep.mubr.bf16.mxu0 0
        %8045 = vmatmul.mubr.bf16.gmra.mxu0 %v7723
        %v8046 = vpop.f32.mrf.mxu0
        %v8047 = vadd.f32 0.0, %v8046
        %v8048 = vpop.f32.mrf.mxu0
        %v8049 = vpop.f32.mrf.mxu0
        %v8050 = vadd.f32 0.0, %v8049
        %v8051 = vpop.f32.mrf.mxu0
        %8052 = vmatprep.mubr.bf16.mxu0 0
        %8053 = vmatmul.mubr.bf16.gmra.mxu0 %v7724
        %v8054 = vpop.f32.mrf.mxu0
        %v8055 = vadd.f32 0.0, %v8054
        %v8056 = vpop.f32.mrf.mxu0
        %v8057 = vpop.f32.mrf.mxu0
        %v8058 = vadd.f32 0.0, %v8057
        %v8059 = vpop.f32.mrf.mxu0
        %8060 = vmatprep.mubr.bf16.mxu0 0
        %8061 = vmatmul.mubr.bf16.gmra.mxu0 %v7725
        %v8062 = vpop.f32.mrf.mxu0
        %v8063 = vadd.f32 0.0, %v8062
        %v8064 = vpop.f32.mrf.mxu0
        %v8065 = vpop.f32.mrf.mxu0
        %v8066 = vadd.f32 0.0, %v8065
        %v8067 = vpop.f32.mrf.mxu0
        %8068 = vmatprep.mubr.bf16.mxu0 0
        %8069 = vmatmul.mubr.bf16.gmra.mxu0 %v7726
        %v8070 = vpop.f32.mrf.mxu0
        %v8071 = vadd.f32 0.0, %v8070
        %v8072 = vpop.f32.mrf.mxu0
        %v8073 = vpop.f32.mrf.mxu0
        %v8074 = vadd.f32 0.0, %v8073
        %v8075 = vpop.f32.mrf.mxu0
        %8076 = vmatprep.mubr.bf16.mxu0 0
        %8077 = vmatmul.mubr.bf16.gmra.mxu0 %v7727
        %v8078 = vpop.f32.mrf.mxu0
        %v8079 = vadd.f32 0.0, %v8078
        %v8080 = vpop.f32.mrf.mxu0
        %v8081 = vpop.f32.mrf.mxu0
        %v8082 = vadd.f32 0.0, %v8081
        %v8083 = vpop.f32.mrf.mxu0
        %8084 = vmatprep.mubr.bf16.mxu0 0
        %8085 = vmatmul.mubr.bf16.gmra.mxu0 %v7728
        %v8086 = vpop.f32.mrf.mxu0
        %v8087 = vadd.f32 0.0, %v8086
        %v8088 = vpop.f32.mrf.mxu0
        %v8089 = vpop.f32.mrf.mxu0
        %v8090 = vadd.f32 0.0, %v8089
        %v8091 = vpop.f32.mrf.mxu0
        %8092 = vmatprep.mubr.bf16.mxu0 0
        %8093 = vmatmul.mubr.bf16.gmra.mxu0 %v7729
        %v8094 = vpop.f32.mrf.mxu0
        %v8095 = vadd.f32 0.0, %v8094
        %v8096 = vpop.f32.mrf.mxu0
        %v8097 = vpop.f32.mrf.mxu0
        %v8098 = vadd.f32 0.0, %v8097
        %v8099 = vpop.f32.mrf.mxu0
        %8100 = vmatprep.mubr.bf16.mxu0 0
        %8101 = vmatmul.mubr.bf16.gmra.mxu0 %v7730
        %v8102 = vpop.f32.mrf.mxu0
        %v8103 = vadd.f32 0.0, %v8102
        %v8104 = vpop.f32.mrf.mxu0
        %v8105 = vpop.f32.mrf.mxu0
        %v8106 = vadd.f32 0.0, %v8105
        %v8107 = vpop.f32.mrf.mxu0
        %8108 = vdwg.mxu0
        %v8109 = vadd.f32 %v7932, %v8047
        %v8110 = vadd.f32 %v7933, %v8050
        %v8111 = vadd.f32 %v7934, %v8055
        %v8112 = vadd.f32 %v7935, %v8058
        %v8113 = vadd.f32 %v7936, %v8063
        %v8114 = vadd.f32 %v7937, %v8066
        %v8115 = vadd.f32 %v7938, %v8071
        %v8116 = vadd.f32 %v7939, %v8074
        %v8117 = vadd.f32 %v7940, %v8079
        %v8118 = vadd.f32 %v7941, %v8082
        %v8119 = vadd.f32 %v7942, %v8087
        %v8120 = vadd.f32 %v7943, %v8090
        %v8121 = vadd.f32 %v7944, %v8095
        %v8122 = vadd.f32 %v7945, %v8098
        %v8123 = vadd.f32 %v7946, %v8103
        %v8124 = vadd.f32 %v7947, %v8106
        %v8125 = vld [vmem:[%s5954] sm:$0xf]
        %v8126 = vld [vmem:[%s5954 + $0x4] sm:$0xf]
        %v8127 = vld [vmem:[%s5954 + $0x8] sm:$0xf]
        %v8128 = vld [vmem:[%s5954 + $0xc] sm:$0xf]
        %v8129 = vld [vmem:[%s5954 + $0x10] sm:$0xf]
        %v8130 = vld [vmem:[%s5954 + $0x14] sm:$0xf]
        %v8131 = vld [vmem:[%s5954 + $0x18] sm:$0xf]
        %v8132 = vld [vmem:[%s5954 + $0x1c] sm:$0xf]
        %v8133 = vld [vmem:[%s5954 + $0x20] sm:$0xf]
        %v8134 = vld [vmem:[%s5954 + $0x24] sm:$0xf]
        %v8135 = vld [vmem:[%s5954 + $0x28] sm:$0xf]
        %v8136 = vld [vmem:[%s5954 + $0x2c] sm:$0xf]
        %v8137 = vld [vmem:[%s5954 + $0x30] sm:$0xf]
        %v8138 = vld [vmem:[%s5954 + $0x34] sm:$0xf]
        %v8139 = vld [vmem:[%s5954 + $0x38] sm:$0xf]
        %v8140 = vld [vmem:[%s5954 + $0x3c] sm:$0xf]
        %v8157 = vunpack.c.l.b16 %v8125
        %v8158 = vunpack.c.l.b16 %v8126
        %v8159 = vunpack.c.l.b16 %v8127
        %v8160 = vunpack.c.l.b16 %v8128
        %v8161 = vunpack.c.l.b16 %v8129
        %v8162 = vunpack.c.l.b16 %v8130
        %v8163 = vunpack.c.l.b16 %v8131
        %v8164 = vunpack.c.l.b16 %v8132
        %v8165 = vunpack.c.l.b16 %v8133
        %v8166 = vunpack.c.l.b16 %v8134
        %v8167 = vunpack.c.l.b16 %v8135
        %v8168 = vunpack.c.l.b16 %v8136
        %v8169 = vunpack.c.l.b16 %v8137
        %v8170 = vunpack.c.l.b16 %v8138
        %v8171 = vunpack.c.l.b16 %v8139
        %v8172 = vunpack.c.l.b16 %v8140
        %v8173 = vpack.c.b16 %v8158, %v8157
        %v8174 = vpack.c.b16 %v8160, %v8159
        %v8175 = vpack.c.b16 %v8162, %v8161
        %v8176 = vpack.c.b16 %v8164, %v8163
        %v8177 = vpack.c.b16 %v8166, %v8165
        %v8178 = vpack.c.b16 %v8168, %v8167
        %v8179 = vpack.c.b16 %v8170, %v8169
        %v8180 = vpack.c.b16 %v8172, %v8171
        %8189 = vmatprep.subr.bf16.mxu0 0
        %8190 = vmatpush1.bf16.msra.mxu0 %v8180
        %8191 = vmatprep.subr.bf16.mxu0 0
        %8192 = vmatpush1.bf16.msra.mxu0 %v8179
        %8193 = vmatprep.subr.bf16.mxu0 0
        %8194 = vmatpush1.bf16.msra.mxu0 %v8178
        %8195 = vmatprep.subr.bf16.mxu0 0
        %8196 = vmatpush1.bf16.msra.mxu0 %v8177
        %8197 = vmatprep.subr.bf16.mxu0 0
        %8198 = vmatpush1.bf16.msra.mxu0 %v8176
        %8199 = vmatprep.subr.bf16.mxu0 0
        %8200 = vmatpush1.bf16.msra.mxu0 %v8175
        %8201 = vmatprep.subr.bf16.mxu0 0
        %8202 = vmatpush1.bf16.msra.mxu0 %v8174
        %8203 = vmatprep.subr.bf16.mxu0 0
        %8204 = vmatpush1.bf16.msra.mxu0 %v8173
        %8205 = vmatprep.subr.bf16.mxu0 0
        %8206 = vmatpush2.bf16.msra.mxu0 0
        %8207 = vmatprep.subr.bf16.mxu0 0
        %8208 = vmatpush2.bf16.msra.mxu0 0
        %8209 = vmatprep.subr.bf16.mxu0 0
        %8210 = vmatpush2.bf16.msra.mxu0 0
        %8211 = vmatprep.subr.bf16.mxu0 0
        %8212 = vmatpush2.bf16.msra.mxu0 0
        %8213 = vmatprep.subr.bf16.mxu0 0
        %8214 = vmatpush2.bf16.msra.mxu0 0
        %8215 = vmatprep.subr.bf16.mxu0 0
        %8216 = vmatpush2.bf16.msra.mxu0 0
        %8217 = vmatprep.subr.bf16.mxu0 0
        %8218 = vmatpush2.bf16.msra.mxu0 0
        %8219 = vmatprep.subr.bf16.mxu0 0
        %8220 = vmatpush2.bf16.msra.mxu0 0
        %8221 = vmatprep.mubr.bf16.mxu0 0
        %8222 = vmatmul.mubr.bf16.gmra.mxu0 %v7723
        %v8223 = vpop.f32.mrf.mxu0
        %v8224 = vadd.f32 0.0, %v8223
        %v8225 = vpop.f32.mrf.mxu0
        %v8226 = vpop.f32.mrf.mxu0
        %v8227 = vadd.f32 0.0, %v8226
        %v8228 = vpop.f32.mrf.mxu0
        %8229 = vmatprep.mubr.bf16.mxu0 0
        %8230 = vmatmul.mubr.bf16.gmra.mxu0 %v7724
        %v8231 = vpop.f32.mrf.mxu0
        %v8232 = vadd.f32 0.0, %v8231
        %v8233 = vpop.f32.mrf.mxu0
        %v8234 = vpop.f32.mrf.mxu0
        %v8235 = vadd.f32 0.0, %v8234
        %v8236 = vpop.f32.mrf.mxu0
        %8237 = vmatprep.mubr.bf16.mxu0 0
        %8238 = vmatmul.mubr.bf16.gmra.mxu0 %v7725
        %v8239 = vpop.f32.mrf.mxu0
        %v8240 = vadd.f32 0.0, %v8239
        %v8241 = vpop.f32.mrf.mxu0
        %v8242 = vpop.f32.mrf.mxu0
        %v8243 = vadd.f32 0.0, %v8242
        %v8244 = vpop.f32.mrf.mxu0
        %8245 = vmatprep.mubr.bf16.mxu0 0
        %8246 = vmatmul.mubr.bf16.gmra.mxu0 %v7726
        %v8247 = vpop.f32.mrf.mxu0
        %v8248 = vadd.f32 0.0, %v8247
        %v8249 = vpop.f32.mrf.mxu0
        %v8250 = vpop.f32.mrf.mxu0
        %v8251 = vadd.f32 0.0, %v8250
        %v8252 = vpop.f32.mrf.mxu0
        %8253 = vmatprep.mubr.bf16.mxu0 0
        %8254 = vmatmul.mubr.bf16.gmra.mxu0 %v7727
        %v8255 = vpop.f32.mrf.mxu0
        %v8256 = vadd.f32 0.0, %v8255
        %v8257 = vpop.f32.mrf.mxu0
        %v8258 = vpop.f32.mrf.mxu0
        %v8259 = vadd.f32 0.0, %v8258
        %v8260 = vpop.f32.mrf.mxu0
        %8261 = vmatprep.mubr.bf16.mxu0 0
        %8262 = vmatmul.mubr.bf16.gmra.mxu0 %v7728
        %v8263 = vpop.f32.mrf.mxu0
        %v8264 = vadd.f32 0.0, %v8263
        %v8265 = vpop.f32.mrf.mxu0
        %v8266 = vpop.f32.mrf.mxu0
        %v8267 = vadd.f32 0.0, %v8266
        %v8268 = vpop.f32.mrf.mxu0
        %8269 = vmatprep.mubr.bf16.mxu0 0
        %8270 = vmatmul.mubr.bf16.gmra.mxu0 %v7729
        %v8271 = vpop.f32.mrf.mxu0
        %v8272 = vadd.f32 0.0, %v8271
        %v8273 = vpop.f32.mrf.mxu0
        %v8274 = vpop.f32.mrf.mxu0
        %v8275 = vadd.f32 0.0, %v8274
        %v8276 = vpop.f32.mrf.mxu0
        %8277 = vmatprep.mubr.bf16.mxu0 0
        %8278 = vmatmul.mubr.bf16.gmra.mxu0 %v7730
        %v8279 = vpop.f32.mrf.mxu0
        %v8280 = vadd.f32 0.0, %v8279
        %v8281 = vpop.f32.mrf.mxu0
        %v8282 = vpop.f32.mrf.mxu0
        %v8283 = vadd.f32 0.0, %v8282
        %v8284 = vpop.f32.mrf.mxu0
        %8285 = vdwg.mxu0
        %v8286 = vrot.slane %v8224, 1
        %v8287 = vrot.slane %v8227, 1
        %v8288 = vrot.slane %v8232, 1
        %v8289 = vrot.slane %v8235, 1
        %v8290 = vrot.slane %v8240, 1
        %v8291 = vrot.slane %v8243, 1
        %v8292 = vrot.slane %v8248, 1
        %v8293 = vrot.slane %v8251, 1
        %v8294 = vrot.slane %v8256, 1
        %v8295 = vrot.slane %v8259, 1
        %v8296 = vrot.slane %v8264, 1
        %v8297 = vrot.slane %v8267, 1
        %v8298 = vrot.slane %v8272, 1
        %v8299 = vrot.slane %v8275, 1
        %v8300 = vrot.slane %v8280, 1
        %v8301 = vrot.slane %v8283, 1
        %v8302 = vsel %vm1038, %v8300, %v8301
        %v8303 = vsel %vm1038, %v8299, %v8300
        %v8304 = vsel %vm1038, %v8298, %v8299
        %v8305 = vsel %vm1038, %v8297, %v8298
        %v8306 = vsel %vm1038, %v8296, %v8297
        %v8307 = vsel %vm1038, %v8295, %v8296
        %v8308 = vsel %vm1038, %v8294, %v8295
        %v8309 = vsel %vm1038, %v8293, %v8294
        %v8310 = vsel %vm1038, %v8292, %v8293
        %v8311 = vsel %vm1038, %v8291, %v8292
        %v8312 = vsel %vm1038, %v8290, %v8291
        %v8313 = vsel %vm1038, %v8289, %v8290
        %v8314 = vsel %vm1038, %v8288, %v8289
        %v8315 = vsel %vm1038, %v8287, %v8288
        %v8316 = vsel %vm1038, %v8286, %v8287
        %v8317 = vsel %vm1038, %v8301, %v8286
        %v8318 = vsel %vm399, 0.0, %v8316
        %v8319 = vsel %vm400, 0.0, %v8315
        %v8320 = vsel %vm399, 0.0, %v8314
        %v8321 = vsel %vm400, 0.0, %v8313
        %v8322 = vsel %vm399, 0.0, %v8312
        %v8323 = vsel %vm400, 0.0, %v8311
        %v8324 = vsel %vm399, 0.0, %v8310
        %v8325 = vsel %vm400, 0.0, %v8309
        %v8326 = vsel %vm399, 0.0, %v8308
        %v8327 = vsel %vm400, 0.0, %v8307
        %v8328 = vsel %vm399, 0.0, %v8306
        %v8329 = vsel %vm400, 0.0, %v8305
        %v8330 = vsel %vm399, 0.0, %v8304
        %v8331 = vsel %vm400, 0.0, %v8303
        %v8332 = vsel %vm399, 0.0, %v8302
        %v8333 = vsel %vm400, 0.0, %v8317
        %v8334 = vadd.f32 %v8109, %v8318
        %v8335 = vadd.f32 %v8110, %v8319
        %v8336 = vadd.f32 %v8111, %v8320
        %v8337 = vadd.f32 %v8112, %v8321
        %v8338 = vadd.f32 %v8113, %v8322
        %v8339 = vadd.f32 %v8114, %v8323
        %v8340 = vadd.f32 %v8115, %v8324
        %v8341 = vadd.f32 %v8116, %v8325
        %v8342 = vadd.f32 %v8117, %v8326
        %v8343 = vadd.f32 %v8118, %v8327
        %v8344 = vadd.f32 %v8119, %v8328
        %v8345 = vadd.f32 %v8120, %v8329
        %v8346 = vadd.f32 %v8121, %v8330
        %v8347 = vadd.f32 %v8122, %v8331
        %v8348 = vadd.f32 %v8123, %v8332
        %v8349 = vadd.f32 %v8124, %v8333
        %s8350 = scalar_lea.vmem [#allocation2], 80
        %v8351 = vld [vmem:[%s8350] sm:$0xf]
        %v8352 = vld [vmem:[%s8350 + $0x4] sm:$0xf]
        %v8353 = vld [vmem:[%s8350 + $0x8] sm:$0xf]
        %v8354 = vld [vmem:[%s8350 + $0xc] sm:$0xf]
        %v8355 = vld [vmem:[%s8350 + $0x10] sm:$0xf]
        %v8356 = vld [vmem:[%s8350 + $0x14] sm:$0xf]
        %v8357 = vld [vmem:[%s8350 + $0x18] sm:$0xf]
        %v8358 = vld [vmem:[%s8350 + $0x1c] sm:$0xf]
        %v8359 = vld [vmem:[%s8350 + $0x20] sm:$0xf]
        %v8360 = vld [vmem:[%s8350 + $0x24] sm:$0xf]
        %v8361 = vld [vmem:[%s8350 + $0x28] sm:$0xf]
        %v8362 = vld [vmem:[%s8350 + $0x2c] sm:$0xf]
        %v8363 = vld [vmem:[%s8350 + $0x30] sm:$0xf]
        %v8364 = vld [vmem:[%s8350 + $0x34] sm:$0xf]
        %v8365 = vld [vmem:[%s8350 + $0x38] sm:$0xf]
        %v8366 = vld [vmem:[%s8350 + $0x3c] sm:$0xf]
        %v8367 = vld [vmem:[%s6197] sm:$0xf]
        %v8368 = vld [vmem:[%s6197 + $0x4] sm:$0xf]
        %v8369 = vld [vmem:[%s6197 + $0x8] sm:$0xf]
        %v8370 = vld [vmem:[%s6197 + $0xc] sm:$0xf]
        %v8371 = vld [vmem:[%s6197 + $0x10] sm:$0xf]
        %v8372 = vld [vmem:[%s6197 + $0x14] sm:$0xf]
        %v8373 = vld [vmem:[%s6197 + $0x18] sm:$0xf]
        %v8374 = vld [vmem:[%s6197 + $0x1c] sm:$0xf]
        %v8375 = vld [vmem:[%s6197 + $0x20] sm:$0xf]
        %v8376 = vld [vmem:[%s6197 + $0x24] sm:$0xf]
        %v8377 = vld [vmem:[%s6197 + $0x28] sm:$0xf]
        %v8378 = vld [vmem:[%s6197 + $0x2c] sm:$0xf]
        %v8379 = vld [vmem:[%s6197 + $0x30] sm:$0xf]
        %v8380 = vld [vmem:[%s6197 + $0x34] sm:$0xf]
        %v8381 = vld [vmem:[%s6197 + $0x38] sm:$0xf]
        %v8382 = vld [vmem:[%s6197 + $0x3c] sm:$0xf]
        %v8399 = vunpack.c.l.b16 %v8351
        %v8400 = vunpack.c.l.b16 %v8352
        %v8401 = vunpack.c.l.b16 %v8353
        %v8402 = vunpack.c.l.b16 %v8354
        %v8403 = vunpack.c.l.b16 %v8355
        %v8404 = vunpack.c.l.b16 %v8356
        %v8405 = vunpack.c.l.b16 %v8357
        %v8406 = vunpack.c.l.b16 %v8358
        %v8407 = vunpack.c.l.b16 %v8359
        %v8408 = vunpack.c.l.b16 %v8360
        %v8409 = vunpack.c.l.b16 %v8361
        %v8410 = vunpack.c.l.b16 %v8362
        %v8411 = vunpack.c.l.b16 %v8363
        %v8412 = vunpack.c.l.b16 %v8364
        %v8413 = vunpack.c.l.b16 %v8365
        %v8414 = vunpack.c.l.b16 %v8366
        %v8415 = vpack.c.b16 %v8400, %v8399
        %v8416 = vpack.c.b16 %v8402, %v8401
        %v8417 = vpack.c.b16 %v8404, %v8403
        %v8418 = vpack.c.b16 %v8406, %v8405
        %v8419 = vpack.c.b16 %v8408, %v8407
        %v8420 = vpack.c.b16 %v8410, %v8409
        %v8421 = vpack.c.b16 %v8412, %v8411
        %v8422 = vpack.c.b16 %v8414, %v8413
        %v8447 = vunpack.c.l.b16 %v8367
        %v8448 = vunpack.c.l.b16 %v8368
        %v8449 = vunpack.c.l.b16 %v8369
        %v8450 = vunpack.c.l.b16 %v8370
        %v8451 = vunpack.c.l.b16 %v8371
        %v8452 = vunpack.c.l.b16 %v8372
        %v8453 = vunpack.c.l.b16 %v8373
        %v8454 = vunpack.c.l.b16 %v8374
        %v8455 = vunpack.c.l.b16 %v8375
        %v8456 = vunpack.c.l.b16 %v8376
        %v8457 = vunpack.c.l.b16 %v8377
        %v8458 = vunpack.c.l.b16 %v8378
        %v8459 = vunpack.c.l.b16 %v8379
        %v8460 = vunpack.c.l.b16 %v8380
        %v8461 = vunpack.c.l.b16 %v8381
        %v8462 = vunpack.c.l.b16 %v8382
        %v8463 = vpack.c.b16 %v8448, %v8447
        %v8464 = vpack.c.b16 %v8450, %v8449
        %v8465 = vpack.c.b16 %v8452, %v8451
        %v8466 = vpack.c.b16 %v8454, %v8453
        %v8467 = vpack.c.b16 %v8456, %v8455
        %v8468 = vpack.c.b16 %v8458, %v8457
        %v8469 = vpack.c.b16 %v8460, %v8459
        %v8470 = vpack.c.b16 %v8462, %v8461
        %8479 = vmatprep.subr.bf16.mxu0 0
        %8480 = vmatpush1.bf16.msra.mxu0 %v8470
        %8481 = vmatprep.subr.bf16.mxu0 0
        %8482 = vmatpush1.bf16.msra.mxu0 %v8469
        %8483 = vmatprep.subr.bf16.mxu0 0
        %8484 = vmatpush1.bf16.msra.mxu0 %v8468
        %8485 = vmatprep.subr.bf16.mxu0 0
        %8486 = vmatpush1.bf16.msra.mxu0 %v8467
        %8487 = vmatprep.subr.bf16.mxu0 0
        %8488 = vmatpush1.bf16.msra.mxu0 %v8466
        %8489 = vmatprep.subr.bf16.mxu0 0
        %8490 = vmatpush1.bf16.msra.mxu0 %v8465
        %8491 = vmatprep.subr.bf16.mxu0 0
        %8492 = vmatpush1.bf16.msra.mxu0 %v8464
        %8493 = vmatprep.subr.bf16.mxu0 0
        %8494 = vmatpush1.bf16.msra.mxu0 %v8463
        %8495 = vmatprep.subr.bf16.mxu0 0
        %8496 = vmatpush2.bf16.msra.mxu0 0
        %8497 = vmatprep.subr.bf16.mxu0 0
        %8498 = vmatpush2.bf16.msra.mxu0 0
        %8499 = vmatprep.subr.bf16.mxu0 0
        %8500 = vmatpush2.bf16.msra.mxu0 0
        %8501 = vmatprep.subr.bf16.mxu0 0
        %8502 = vmatpush2.bf16.msra.mxu0 0
        %8503 = vmatprep.subr.bf16.mxu0 0
        %8504 = vmatpush2.bf16.msra.mxu0 0
        %8505 = vmatprep.subr.bf16.mxu0 0
        %8506 = vmatpush2.bf16.msra.mxu0 0
        %8507 = vmatprep.subr.bf16.mxu0 0
        %8508 = vmatpush2.bf16.msra.mxu0 0
        %8509 = vmatprep.subr.bf16.mxu0 0
        %8510 = vmatpush2.bf16.msra.mxu0 0
        %8511 = vmatprep.mubr.bf16.mxu0 0
        %8512 = vmatmul.mubr.bf16.gmra.mxu0 %v8415
        %v8513 = vpop.f32.mrf.mxu0
        %v8514 = vadd.f32 0.0, %v8513
        %v8515 = vpop.f32.mrf.mxu0
        %v8516 = vpop.f32.mrf.mxu0
        %v8517 = vadd.f32 0.0, %v8516
        %v8518 = vpop.f32.mrf.mxu0
        %8519 = vmatprep.mubr.bf16.mxu0 0
        %8520 = vmatmul.mubr.bf16.gmra.mxu0 %v8416
        %v8521 = vpop.f32.mrf.mxu0
        %v8522 = vadd.f32 0.0, %v8521
        %v8523 = vpop.f32.mrf.mxu0
        %v8524 = vpop.f32.mrf.mxu0
        %v8525 = vadd.f32 0.0, %v8524
        %v8526 = vpop.f32.mrf.mxu0
        %8527 = vmatprep.mubr.bf16.mxu0 0
        %8528 = vmatmul.mubr.bf16.gmra.mxu0 %v8417
        %v8529 = vpop.f32.mrf.mxu0
        %v8530 = vadd.f32 0.0, %v8529
        %v8531 = vpop.f32.mrf.mxu0
        %v8532 = vpop.f32.mrf.mxu0
        %v8533 = vadd.f32 0.0, %v8532
        %v8534 = vpop.f32.mrf.mxu0
        %8535 = vmatprep.mubr.bf16.mxu0 0
        %8536 = vmatmul.mubr.bf16.gmra.mxu0 %v8418
        %v8537 = vpop.f32.mrf.mxu0
        %v8538 = vadd.f32 0.0, %v8537
        %v8539 = vpop.f32.mrf.mxu0
        %v8540 = vpop.f32.mrf.mxu0
        %v8541 = vadd.f32 0.0, %v8540
        %v8542 = vpop.f32.mrf.mxu0
        %8543 = vmatprep.mubr.bf16.mxu0 0
        %8544 = vmatmul.mubr.bf16.gmra.mxu0 %v8419
        %v8545 = vpop.f32.mrf.mxu0
        %v8546 = vadd.f32 0.0, %v8545
        %v8547 = vpop.f32.mrf.mxu0
        %v8548 = vpop.f32.mrf.mxu0
        %v8549 = vadd.f32 0.0, %v8548
        %v8550 = vpop.f32.mrf.mxu0
        %8551 = vmatprep.mubr.bf16.mxu0 0
        %8552 = vmatmul.mubr.bf16.gmra.mxu0 %v8420
        %v8553 = vpop.f32.mrf.mxu0
        %v8554 = vadd.f32 0.0, %v8553
        %v8555 = vpop.f32.mrf.mxu0
        %v8556 = vpop.f32.mrf.mxu0
        %v8557 = vadd.f32 0.0, %v8556
        %v8558 = vpop.f32.mrf.mxu0
        %8559 = vmatprep.mubr.bf16.mxu0 0
        %8560 = vmatmul.mubr.bf16.gmra.mxu0 %v8421
        %v8561 = vpop.f32.mrf.mxu0
        %v8562 = vadd.f32 0.0, %v8561
        %v8563 = vpop.f32.mrf.mxu0
        %v8564 = vpop.f32.mrf.mxu0
        %v8565 = vadd.f32 0.0, %v8564
        %v8566 = vpop.f32.mrf.mxu0
        %8567 = vmatprep.mubr.bf16.mxu0 0
        %8568 = vmatmul.mubr.bf16.gmra.mxu0 %v8422
        %v8569 = vpop.f32.mrf.mxu0
        %v8570 = vadd.f32 0.0, %v8569
        %v8571 = vpop.f32.mrf.mxu0
        %v8572 = vpop.f32.mrf.mxu0
        %v8573 = vadd.f32 0.0, %v8572
        %v8574 = vpop.f32.mrf.mxu0
        %8575 = vdwg.mxu0
        %v8576 = vrot.slane %v8514, 7
        %v8577 = vrot.slane %v8517, 7
        %v8578 = vrot.slane %v8522, 7
        %v8579 = vrot.slane %v8525, 7
        %v8580 = vrot.slane %v8530, 7
        %v8581 = vrot.slane %v8533, 7
        %v8582 = vrot.slane %v8538, 7
        %v8583 = vrot.slane %v8541, 7
        %v8584 = vrot.slane %v8546, 7
        %v8585 = vrot.slane %v8549, 7
        %v8586 = vrot.slane %v8554, 7
        %v8587 = vrot.slane %v8557, 7
        %v8588 = vrot.slane %v8562, 7
        %v8589 = vrot.slane %v8565, 7
        %v8590 = vrot.slane %v8570, 7
        %v8591 = vrot.slane %v8573, 7
        %v8592 = vsel %vm649, %v8590, %v8591
        %v8593 = vsel %vm649, %v8589, %v8590
        %v8594 = vsel %vm649, %v8588, %v8589
        %v8595 = vsel %vm649, %v8587, %v8588
        %v8596 = vsel %vm649, %v8586, %v8587
        %v8597 = vsel %vm649, %v8585, %v8586
        %v8598 = vsel %vm649, %v8584, %v8585
        %v8599 = vsel %vm649, %v8583, %v8584
        %v8600 = vsel %vm649, %v8582, %v8583
        %v8601 = vsel %vm649, %v8581, %v8582
        %v8602 = vsel %vm649, %v8580, %v8581
        %v8603 = vsel %vm649, %v8579, %v8580
        %v8604 = vsel %vm649, %v8578, %v8579
        %v8605 = vsel %vm649, %v8577, %v8578
        %v8606 = vsel %vm649, %v8576, %v8577
        %v8607 = vsel %vm649, %v8591, %v8576
        %v8608 = vsel %vm397, 0.0, %v8607
        %v8609 = vsel %vm398, 0.0, %v8606
        %v8610 = vsel %vm397, 0.0, %v8605
        %v8611 = vsel %vm398, 0.0, %v8604
        %v8612 = vsel %vm397, 0.0, %v8603
        %v8613 = vsel %vm398, 0.0, %v8602
        %v8614 = vsel %vm397, 0.0, %v8601
        %v8615 = vsel %vm398, 0.0, %v8600
        %v8616 = vsel %vm397, 0.0, %v8599
        %v8617 = vsel %vm398, 0.0, %v8598
        %v8618 = vsel %vm397, 0.0, %v8597
        %v8619 = vsel %vm398, 0.0, %v8596
        %v8620 = vsel %vm397, 0.0, %v8595
        %v8621 = vsel %vm398, 0.0, %v8594
        %v8622 = vsel %vm397, 0.0, %v8593
        %v8623 = vsel %vm398, 0.0, %v8592
        %v8624 = vadd.f32 %v8334, %v8608
        %v8625 = vadd.f32 %v8335, %v8609
        %v8626 = vadd.f32 %v8336, %v8610
        %v8627 = vadd.f32 %v8337, %v8611
        %v8628 = vadd.f32 %v8338, %v8612
        %v8629 = vadd.f32 %v8339, %v8613
        %v8630 = vadd.f32 %v8340, %v8614
        %v8631 = vadd.f32 %v8341, %v8615
        %v8632 = vadd.f32 %v8342, %v8616
        %v8633 = vadd.f32 %v8343, %v8617
        %v8634 = vadd.f32 %v8344, %v8618
        %v8635 = vadd.f32 %v8345, %v8619
        %v8636 = vadd.f32 %v8346, %v8620
        %v8637 = vadd.f32 %v8347, %v8621
        %v8638 = vadd.f32 %v8348, %v8622
        %v8639 = vadd.f32 %v8349, %v8623
        %v8640 = vld [vmem:[%s6471] sm:$0xf]
        %v8641 = vld [vmem:[%s6471 + $0x4] sm:$0xf]
        %v8642 = vld [vmem:[%s6471 + $0x8] sm:$0xf]
        %v8643 = vld [vmem:[%s6471 + $0xc] sm:$0xf]
        %v8644 = vld [vmem:[%s6471 + $0x10] sm:$0xf]
        %v8645 = vld [vmem:[%s6471 + $0x14] sm:$0xf]
        %v8646 = vld [vmem:[%s6471 + $0x18] sm:$0xf]
        %v8647 = vld [vmem:[%s6471 + $0x1c] sm:$0xf]
        %v8648 = vld [vmem:[%s6471 + $0x20] sm:$0xf]
        %v8649 = vld [vmem:[%s6471 + $0x24] sm:$0xf]
        %v8650 = vld [vmem:[%s6471 + $0x28] sm:$0xf]
        %v8651 = vld [vmem:[%s6471 + $0x2c] sm:$0xf]
        %v8652 = vld [vmem:[%s6471 + $0x30] sm:$0xf]
        %v8653 = vld [vmem:[%s6471 + $0x34] sm:$0xf]
        %v8654 = vld [vmem:[%s6471 + $0x38] sm:$0xf]
        %v8655 = vld [vmem:[%s6471 + $0x3c] sm:$0xf]
        %v8672 = vunpack.c.l.b16 %v8640
        %v8673 = vunpack.c.l.b16 %v8641
        %v8674 = vunpack.c.l.b16 %v8642
        %v8675 = vunpack.c.l.b16 %v8643
        %v8676 = vunpack.c.l.b16 %v8644
        %v8677 = vunpack.c.l.b16 %v8645
        %v8678 = vunpack.c.l.b16 %v8646
        %v8679 = vunpack.c.l.b16 %v8647
        %v8680 = vunpack.c.l.b16 %v8648
        %v8681 = vunpack.c.l.b16 %v8649
        %v8682 = vunpack.c.l.b16 %v8650
        %v8683 = vunpack.c.l.b16 %v8651
        %v8684 = vunpack.c.l.b16 %v8652
        %v8685 = vunpack.c.l.b16 %v8653
        %v8686 = vunpack.c.l.b16 %v8654
        %v8687 = vunpack.c.l.b16 %v8655
        %v8688 = vpack.c.b16 %v8673, %v8672
        %v8689 = vpack.c.b16 %v8675, %v8674
        %v8690 = vpack.c.b16 %v8677, %v8676
        %v8691 = vpack.c.b16 %v8679, %v8678
        %v8692 = vpack.c.b16 %v8681, %v8680
        %v8693 = vpack.c.b16 %v8683, %v8682
        %v8694 = vpack.c.b16 %v8685, %v8684
        %v8695 = vpack.c.b16 %v8687, %v8686
        %8704 = vmatprep.subr.bf16.mxu0 0
        %8705 = vmatpush1.bf16.msra.mxu0 %v8695
        %8706 = vmatprep.subr.bf16.mxu0 0
        %8707 = vmatpush1.bf16.msra.mxu0 %v8694
        %8708 = vmatprep.subr.bf16.mxu0 0
        %8709 = vmatpush1.bf16.msra.mxu0 %v8693
        %8710 = vmatprep.subr.bf16.mxu0 0
        %8711 = vmatpush1.bf16.msra.mxu0 %v8692
        %8712 = vmatprep.subr.bf16.mxu0 0
        %8713 = vmatpush1.bf16.msra.mxu0 %v8691
        %8714 = vmatprep.subr.bf16.mxu0 0
        %8715 = vmatpush1.bf16.msra.mxu0 %v8690
        %8716 = vmatprep.subr.bf16.mxu0 0
        %8717 = vmatpush1.bf16.msra.mxu0 %v8689
        %8718 = vmatprep.subr.bf16.mxu0 0
        %8719 = vmatpush1.bf16.msra.mxu0 %v8688
        %8720 = vmatprep.subr.bf16.mxu0 0
        %8721 = vmatpush2.bf16.msra.mxu0 0
        %8722 = vmatprep.subr.bf16.mxu0 0
        %8723 = vmatpush2.bf16.msra.mxu0 0
        %8724 = vmatprep.subr.bf16.mxu0 0
        %8725 = vmatpush2.bf16.msra.mxu0 0
        %8726 = vmatprep.subr.bf16.mxu0 0
        %8727 = vmatpush2.bf16.msra.mxu0 0
        %8728 = vmatprep.subr.bf16.mxu0 0
        %8729 = vmatpush2.bf16.msra.mxu0 0
        %8730 = vmatprep.subr.bf16.mxu0 0
        %8731 = vmatpush2.bf16.msra.mxu0 0
        %8732 = vmatprep.subr.bf16.mxu0 0
        %8733 = vmatpush2.bf16.msra.mxu0 0
        %8734 = vmatprep.subr.bf16.mxu0 0
        %8735 = vmatpush2.bf16.msra.mxu0 0
        %8736 = vmatprep.mubr.bf16.mxu0 0
        %8737 = vmatmul.mubr.bf16.gmra.mxu0 %v8415
        %v8738 = vpop.f32.mrf.mxu0
        %v8739 = vadd.f32 0.0, %v8738
        %v8740 = vpop.f32.mrf.mxu0
        %v8741 = vpop.f32.mrf.mxu0
        %v8742 = vadd.f32 0.0, %v8741
        %v8743 = vpop.f32.mrf.mxu0
        %8744 = vmatprep.mubr.bf16.mxu0 0
        %8745 = vmatmul.mubr.bf16.gmra.mxu0 %v8416
        %v8746 = vpop.f32.mrf.mxu0
        %v8747 = vadd.f32 0.0, %v8746
        %v8748 = vpop.f32.mrf.mxu0
        %v8749 = vpop.f32.mrf.mxu0
        %v8750 = vadd.f32 0.0, %v8749
        %v8751 = vpop.f32.mrf.mxu0
        %8752 = vmatprep.mubr.bf16.mxu0 0
        %8753 = vmatmul.mubr.bf16.gmra.mxu0 %v8417
        %v8754 = vpop.f32.mrf.mxu0
        %v8755 = vadd.f32 0.0, %v8754
        %v8756 = vpop.f32.mrf.mxu0
        %v8757 = vpop.f32.mrf.mxu0
        %v8758 = vadd.f32 0.0, %v8757
        %v8759 = vpop.f32.mrf.mxu0
        %8760 = vmatprep.mubr.bf16.mxu0 0
        %8761 = vmatmul.mubr.bf16.gmra.mxu0 %v8418
        %v8762 = vpop.f32.mrf.mxu0
        %v8763 = vadd.f32 0.0, %v8762
        %v8764 = vpop.f32.mrf.mxu0
        %v8765 = vpop.f32.mrf.mxu0
        %v8766 = vadd.f32 0.0, %v8765
        %v8767 = vpop.f32.mrf.mxu0
        %8768 = vmatprep.mubr.bf16.mxu0 0
        %8769 = vmatmul.mubr.bf16.gmra.mxu0 %v8419
        %v8770 = vpop.f32.mrf.mxu0
        %v8771 = vadd.f32 0.0, %v8770
        %v8772 = vpop.f32.mrf.mxu0
        %v8773 = vpop.f32.mrf.mxu0
        %v8774 = vadd.f32 0.0, %v8773
        %v8775 = vpop.f32.mrf.mxu0
        %8776 = vmatprep.mubr.bf16.mxu0 0
        %8777 = vmatmul.mubr.bf16.gmra.mxu0 %v8420
        %v8778 = vpop.f32.mrf.mxu0
        %v8779 = vadd.f32 0.0, %v8778
        %v8780 = vpop.f32.mrf.mxu0
        %v8781 = vpop.f32.mrf.mxu0
        %v8782 = vadd.f32 0.0, %v8781
        %v8783 = vpop.f32.mrf.mxu0
        %8784 = vmatprep.mubr.bf16.mxu0 0
        %8785 = vmatmul.mubr.bf16.gmra.mxu0 %v8421
        %v8786 = vpop.f32.mrf.mxu0
        %v8787 = vadd.f32 0.0, %v8786
        %v8788 = vpop.f32.mrf.mxu0
        %v8789 = vpop.f32.mrf.mxu0
        %v8790 = vadd.f32 0.0, %v8789
        %v8791 = vpop.f32.mrf.mxu0
        %8792 = vmatprep.mubr.bf16.mxu0 0
        %8793 = vmatmul.mubr.bf16.gmra.mxu0 %v8422
        %v8794 = vpop.f32.mrf.mxu0
        %v8795 = vadd.f32 0.0, %v8794
        %v8796 = vpop.f32.mrf.mxu0
        %v8797 = vpop.f32.mrf.mxu0
        %v8798 = vadd.f32 0.0, %v8797
        %v8799 = vpop.f32.mrf.mxu0
        %8800 = vdwg.mxu0
        %v8801 = vadd.f32 %v8624, %v8739
        %v8802 = vadd.f32 %v8625, %v8742
        %v8803 = vadd.f32 %v8626, %v8747
        %v8804 = vadd.f32 %v8627, %v8750
        %v8805 = vadd.f32 %v8628, %v8755
        %v8806 = vadd.f32 %v8629, %v8758
        %v8807 = vadd.f32 %v8630, %v8763
        %v8808 = vadd.f32 %v8631, %v8766
        %v8809 = vadd.f32 %v8632, %v8771
        %v8810 = vadd.f32 %v8633, %v8774
        %v8811 = vadd.f32 %v8634, %v8779
        %v8812 = vadd.f32 %v8635, %v8782
        %v8813 = vadd.f32 %v8636, %v8787
        %v8814 = vadd.f32 %v8637, %v8790
        %v8815 = vadd.f32 %v8638, %v8795
        %v8816 = vadd.f32 %v8639, %v8798
        %v8817 = vld [vmem:[%s6649] sm:$0xf]
        %v8818 = vld [vmem:[%s6649 + $0x4] sm:$0xf]
        %v8819 = vld [vmem:[%s6649 + $0x8] sm:$0xf]
        %v8820 = vld [vmem:[%s6649 + $0xc] sm:$0xf]
        %v8821 = vld [vmem:[%s6649 + $0x10] sm:$0xf]
        %v8822 = vld [vmem:[%s6649 + $0x14] sm:$0xf]
        %v8823 = vld [vmem:[%s6649 + $0x18] sm:$0xf]
        %v8824 = vld [vmem:[%s6649 + $0x1c] sm:$0xf]
        %v8825 = vld [vmem:[%s6649 + $0x20] sm:$0xf]
        %v8826 = vld [vmem:[%s6649 + $0x24] sm:$0xf]
        %v8827 = vld [vmem:[%s6649 + $0x28] sm:$0xf]
        %v8828 = vld [vmem:[%s6649 + $0x2c] sm:$0xf]
        %v8829 = vld [vmem:[%s6649 + $0x30] sm:$0xf]
        %v8830 = vld [vmem:[%s6649 + $0x34] sm:$0xf]
        %v8831 = vld [vmem:[%s6649 + $0x38] sm:$0xf]
        %v8832 = vld [vmem:[%s6649 + $0x3c] sm:$0xf]
        %v8849 = vunpack.c.l.b16 %v8817
        %v8850 = vunpack.c.l.b16 %v8818
        %v8851 = vunpack.c.l.b16 %v8819
        %v8852 = vunpack.c.l.b16 %v8820
        %v8853 = vunpack.c.l.b16 %v8821
        %v8854 = vunpack.c.l.b16 %v8822
        %v8855 = vunpack.c.l.b16 %v8823
        %v8856 = vunpack.c.l.b16 %v8824
        %v8857 = vunpack.c.l.b16 %v8825
        %v8858 = vunpack.c.l.b16 %v8826
        %v8859 = vunpack.c.l.b16 %v8827
        %v8860 = vunpack.c.l.b16 %v8828
        %v8861 = vunpack.c.l.b16 %v8829
        %v8862 = vunpack.c.l.b16 %v8830
        %v8863 = vunpack.c.l.b16 %v8831
        %v8864 = vunpack.c.l.b16 %v8832
        %v8865 = vpack.c.b16 %v8850, %v8849
        %v8866 = vpack.c.b16 %v8852, %v8851
        %v8867 = vpack.c.b16 %v8854, %v8853
        %v8868 = vpack.c.b16 %v8856, %v8855
        %v8869 = vpack.c.b16 %v8858, %v8857
        %v8870 = vpack.c.b16 %v8860, %v8859
        %v8871 = vpack.c.b16 %v8862, %v8861
        %v8872 = vpack.c.b16 %v8864, %v8863
        %8881 = vmatprep.subr.bf16.mxu0 0
        %8882 = vmatpush1.bf16.msra.mxu0 %v8872
        %8883 = vmatprep.subr.bf16.mxu0 0
        %8884 = vmatpush1.bf16.msra.mxu0 %v8871
        %8885 = vmatprep.subr.bf16.mxu0 0
        %8886 = vmatpush1.bf16.msra.mxu0 %v8870
        %8887 = vmatprep.subr.bf16.mxu0 0
        %8888 = vmatpush1.bf16.msra.mxu0 %v8869
        %8889 = vmatprep.subr.bf16.mxu0 0
        %8890 = vmatpush1.bf16.msra.mxu0 %v8868
        %8891 = vmatprep.subr.bf16.mxu0 0
        %8892 = vmatpush1.bf16.msra.mxu0 %v8867
        %8893 = vmatprep.subr.bf16.mxu0 0
        %8894 = vmatpush1.bf16.msra.mxu0 %v8866
        %8895 = vmatprep.subr.bf16.mxu0 0
        %8896 = vmatpush1.bf16.msra.mxu0 %v8865
        %8897 = vmatprep.subr.bf16.mxu0 0
        %8898 = vmatpush2.bf16.msra.mxu0 0
        %8899 = vmatprep.subr.bf16.mxu0 0
        %8900 = vmatpush2.bf16.msra.mxu0 0
        %8901 = vmatprep.subr.bf16.mxu0 0
        %8902 = vmatpush2.bf16.msra.mxu0 0
        %8903 = vmatprep.subr.bf16.mxu0 0
        %8904 = vmatpush2.bf16.msra.mxu0 0
        %8905 = vmatprep.subr.bf16.mxu0 0
        %8906 = vmatpush2.bf16.msra.mxu0 0
        %8907 = vmatprep.subr.bf16.mxu0 0
        %8908 = vmatpush2.bf16.msra.mxu0 0
        %8909 = vmatprep.subr.bf16.mxu0 0
        %8910 = vmatpush2.bf16.msra.mxu0 0
        %8911 = vmatprep.subr.bf16.mxu0 0
        %8912 = vmatpush2.bf16.msra.mxu0 0
        %8913 = vmatprep.mubr.bf16.mxu0 0
        %8914 = vmatmul.mubr.bf16.gmra.mxu0 %v8415
        %v8915 = vpop.f32.mrf.mxu0
        %v8916 = vadd.f32 0.0, %v8915
        %v8917 = vpop.f32.mrf.mxu0
        %v8918 = vpop.f32.mrf.mxu0
        %v8919 = vadd.f32 0.0, %v8918
        %v8920 = vpop.f32.mrf.mxu0
        %8921 = vmatprep.mubr.bf16.mxu0 0
        %8922 = vmatmul.mubr.bf16.gmra.mxu0 %v8416
        %v8923 = vpop.f32.mrf.mxu0
        %v8924 = vadd.f32 0.0, %v8923
        %v8925 = vpop.f32.mrf.mxu0
        %v8926 = vpop.f32.mrf.mxu0
        %v8927 = vadd.f32 0.0, %v8926
        %v8928 = vpop.f32.mrf.mxu0
        %8929 = vmatprep.mubr.bf16.mxu0 0
        %8930 = vmatmul.mubr.bf16.gmra.mxu0 %v8417
        %v8931 = vpop.f32.mrf.mxu0
        %v8932 = vadd.f32 0.0, %v8931
        %v8933 = vpop.f32.mrf.mxu0
        %v8934 = vpop.f32.mrf.mxu0
        %v8935 = vadd.f32 0.0, %v8934
        %v8936 = vpop.f32.mrf.mxu0
        %8937 = vmatprep.mubr.bf16.mxu0 0
        %8938 = vmatmul.mubr.bf16.gmra.mxu0 %v8418
        %v8939 = vpop.f32.mrf.mxu0
        %v8940 = vadd.f32 0.0, %v8939
        %v8941 = vpop.f32.mrf.mxu0
        %v8942 = vpop.f32.mrf.mxu0
        %v8943 = vadd.f32 0.0, %v8942
        %v8944 = vpop.f32.mrf.mxu0
        %8945 = vmatprep.mubr.bf16.mxu0 0
        %8946 = vmatmul.mubr.bf16.gmra.mxu0 %v8419
        %v8947 = vpop.f32.mrf.mxu0
        %v8948 = vadd.f32 0.0, %v8947
        %v8949 = vpop.f32.mrf.mxu0
        %v8950 = vpop.f32.mrf.mxu0
        %v8951 = vadd.f32 0.0, %v8950
        %v8952 = vpop.f32.mrf.mxu0
        %8953 = vmatprep.mubr.bf16.mxu0 0
        %8954 = vmatmul.mubr.bf16.gmra.mxu0 %v8420
        %v8955 = vpop.f32.mrf.mxu0
        %v8956 = vadd.f32 0.0, %v8955
        %v8957 = vpop.f32.mrf.mxu0
        %v8958 = vpop.f32.mrf.mxu0
        %v8959 = vadd.f32 0.0, %v8958
        %v8960 = vpop.f32.mrf.mxu0
        %8961 = vmatprep.mubr.bf16.mxu0 0
        %8962 = vmatmul.mubr.bf16.gmra.mxu0 %v8421
        %v8963 = vpop.f32.mrf.mxu0
        %v8964 = vadd.f32 0.0, %v8963
        %v8965 = vpop.f32.mrf.mxu0
        %v8966 = vpop.f32.mrf.mxu0
        %v8967 = vadd.f32 0.0, %v8966
        %v8968 = vpop.f32.mrf.mxu0
        %8969 = vmatprep.mubr.bf16.mxu0 0
        %8970 = vmatmul.mubr.bf16.gmra.mxu0 %v8422
        %v8971 = vpop.f32.mrf.mxu0
        %v8972 = vadd.f32 0.0, %v8971
        %v8973 = vpop.f32.mrf.mxu0
        %v8974 = vpop.f32.mrf.mxu0
        %v8975 = vadd.f32 0.0, %v8974
        %v8976 = vpop.f32.mrf.mxu0
        %8977 = vdwg.mxu0
        %v8978 = vrot.slane %v8916, 1
        %v8979 = vrot.slane %v8919, 1
        %v8980 = vrot.slane %v8924, 1
        %v8981 = vrot.slane %v8927, 1
        %v8982 = vrot.slane %v8932, 1
        %v8983 = vrot.slane %v8935, 1
        %v8984 = vrot.slane %v8940, 1
        %v8985 = vrot.slane %v8943, 1
        %v8986 = vrot.slane %v8948, 1
        %v8987 = vrot.slane %v8951, 1
        %v8988 = vrot.slane %v8956, 1
        %v8989 = vrot.slane %v8959, 1
        %v8990 = vrot.slane %v8964, 1
        %v8991 = vrot.slane %v8967, 1
        %v8992 = vrot.slane %v8972, 1
        %v8993 = vrot.slane %v8975, 1
        %v8994 = vsel %vm1038, %v8992, %v8993
        %v8995 = vsel %vm1038, %v8991, %v8992
        %v8996 = vsel %vm1038, %v8990, %v8991
        %v8997 = vsel %vm1038, %v8989, %v8990
        %v8998 = vsel %vm1038, %v8988, %v8989
        %v8999 = vsel %vm1038, %v8987, %v8988
        %v9000 = vsel %vm1038, %v8986, %v8987
        %v9001 = vsel %vm1038, %v8985, %v8986
        %v9002 = vsel %vm1038, %v8984, %v8985
        %v9003 = vsel %vm1038, %v8983, %v8984
        %v9004 = vsel %vm1038, %v8982, %v8983
        %v9005 = vsel %vm1038, %v8981, %v8982
        %v9006 = vsel %vm1038, %v8980, %v8981
        %v9007 = vsel %vm1038, %v8979, %v8980
        %v9008 = vsel %vm1038, %v8978, %v8979
        %v9009 = vsel %vm1038, %v8993, %v8978
        %v9010 = vsel %vm399, 0.0, %v9008
        %v9011 = vsel %vm400, 0.0, %v9007
        %v9012 = vsel %vm399, 0.0, %v9006
        %v9013 = vsel %vm400, 0.0, %v9005
        %v9014 = vsel %vm399, 0.0, %v9004
        %v9015 = vsel %vm400, 0.0, %v9003
        %v9016 = vsel %vm399, 0.0, %v9002
        %v9017 = vsel %vm400, 0.0, %v9001
        %v9018 = vsel %vm399, 0.0, %v9000
        %v9019 = vsel %vm400, 0.0, %v8999
        %v9020 = vsel %vm399, 0.0, %v8998
        %v9021 = vsel %vm400, 0.0, %v8997
        %v9022 = vsel %vm399, 0.0, %v8996
        %v9023 = vsel %vm400, 0.0, %v8995
        %v9024 = vsel %vm399, 0.0, %v8994
        %v9025 = vsel %vm400, 0.0, %v9009
        %v9026 = vadd.f32 %v8801, %v9010
        %v9027 = vadd.f32 %v8802, %v9011
        %v9028 = vadd.f32 %v8803, %v9012
        %v9029 = vadd.f32 %v8804, %v9013
        %v9030 = vadd.f32 %v8805, %v9014
        %v9031 = vadd.f32 %v8806, %v9015
        %v9032 = vadd.f32 %v8807, %v9016
        %v9033 = vadd.f32 %v8808, %v9017
        %v9034 = vadd.f32 %v8809, %v9018
        %v9035 = vadd.f32 %v8810, %v9019
        %v9036 = vadd.f32 %v8811, %v9020
        %v9037 = vadd.f32 %v8812, %v9021
        %v9038 = vadd.f32 %v8813, %v9022
        %v9039 = vadd.f32 %v8814, %v9023
        %v9040 = vadd.f32 %v8815, %v9024
        %v9041 = vadd.f32 %v8816, %v9025
        %v9042 = vmul.f32 %v9026, %v6879
        %v9043 = vmul.f32 %v9027, %v6879
        %v9044 = vmul.f32 %v9028, %v6879
        %v9045 = vmul.f32 %v9029, %v6879
        %v9046 = vmul.f32 %v9030, %v6879
        %v9047 = vmul.f32 %v9031, %v6879
        %v9048 = vmul.f32 %v9032, %v6879
        %v9049 = vmul.f32 %v9033, %v6879
        %v9050 = vmul.f32 %v9034, %v6879
        %v9051 = vmul.f32 %v9035, %v6879
        %v9052 = vmul.f32 %v9036, %v6879
        %v9053 = vmul.f32 %v9037, %v6879
        %v9054 = vmul.f32 %v9038, %v6879
        %v9055 = vmul.f32 %v9039, %v6879
        %v9056 = vmul.f32 %v9040, %v6879
        %v9057 = vmul.f32 %v9041, %v6879
        %v9058 = vadd.f32 %v9042, %v6901
        %v9059 = vadd.f32 %v9043, %v6901
        %v9060 = vadd.f32 %v9044, %v6901
        %v9061 = vadd.f32 %v9045, %v6901
        %v9062 = vadd.f32 %v9046, %v6901
        %v9063 = vadd.f32 %v9047, %v6901
        %v9064 = vadd.f32 %v9048, %v6901
        %v9065 = vadd.f32 %v9049, %v6901
        %v9066 = vadd.f32 %v9050, %v6901
        %v9067 = vadd.f32 %v9051, %v6901
        %v9068 = vadd.f32 %v9052, %v6901
        %v9069 = vadd.f32 %v9053, %v6901
        %v9070 = vadd.f32 %v9054, %v6901
        %v9071 = vadd.f32 %v9055, %v6901
        %v9072 = vadd.f32 %v9056, %v6901
        %v9073 = vadd.f32 %v9057, %v6901
        %s9074 = scalar_lea.vmem %s347, 128 [#allocation6]
        %v9075 = vld [vmem:[%s9074] sm:$0xff]
        %v9076 = vld [vmem:[%s9074 + $0x8] sm:$0xff]
        %v9077 = vld [vmem:[%s9074 + $0x10] sm:$0xff]
        %v9078 = vld [vmem:[%s9074 + $0x18] sm:$0xff]
        %v9079 = vld [vmem:[%s9074 + $0x20] sm:$0xff]
        %v9080 = vld [vmem:[%s9074 + $0x28] sm:$0xff]
        %v9081 = vld [vmem:[%s9074 + $0x30] sm:$0xff]
        %v9082 = vld [vmem:[%s9074 + $0x38] sm:$0xff]
        %v9083 = vld [vmem:[%s9074 + $0x40] sm:$0xff]
        %v9084 = vld [vmem:[%s9074 + $0x48] sm:$0xff]
        %v9085 = vld [vmem:[%s9074 + $0x50] sm:$0xff]
        %v9086 = vld [vmem:[%s9074 + $0x58] sm:$0xff]
        %v9087 = vld [vmem:[%s9074 + $0x60] sm:$0xff]
        %v9088 = vld [vmem:[%s9074 + $0x68] sm:$0xff]
        %v9089 = vld [vmem:[%s9074 + $0x70] sm:$0xff]
        %v9090 = vld [vmem:[%s9074 + $0x78] sm:$0xff]
        %v9091 = vadd.f32 %v9058, %v9075
        %v9092 = vadd.f32 %v9059, %v9076
        %v9093 = vadd.f32 %v9060, %v9077
        %v9094 = vadd.f32 %v9061, %v9078
        %v9095 = vadd.f32 %v9062, %v9079
        %v9096 = vadd.f32 %v9063, %v9080
        %v9097 = vadd.f32 %v9064, %v9081
        %v9098 = vadd.f32 %v9065, %v9082
        %v9099 = vadd.f32 %v9066, %v9083
        %v9100 = vadd.f32 %v9067, %v9084
        %v9101 = vadd.f32 %v9068, %v9085
        %v9102 = vadd.f32 %v9069, %v9086
        %v9103 = vadd.f32 %v9070, %v9087
        %v9104 = vadd.f32 %v9071, %v9088
        %v9105 = vadd.f32 %v9072, %v9089
        %v9106 = vadd.f32 %v9073, %v9090
        %v9107 = vmax.f32 %v9091, 0.0
        %v9108 = vmax.f32 %v9092, 0.0
        %v9109 = vmax.f32 %v9093, 0.0
        %v9110 = vmax.f32 %v9094, 0.0
        %v9111 = vmax.f32 %v9095, 0.0
        %v9112 = vmax.f32 %v9096, 0.0
        %v9113 = vmax.f32 %v9097, 0.0
        %v9114 = vmax.f32 %v9098, 0.0
        %v9115 = vmax.f32 %v9099, 0.0
        %v9116 = vmax.f32 %v9100, 0.0
        %v9117 = vmax.f32 %v9101, 0.0
        %v9118 = vmax.f32 %v9102, 0.0
        %v9119 = vmax.f32 %v9103, 0.0
        %v9120 = vmax.f32 %v9104, 0.0
        %v9121 = vmax.f32 %v9105, 0.0
        %v9122 = vmax.f32 %v9106, 0.0
        %s9123 = scalar_lea.vmem %s392, 128 [#allocation11]
        %9124 = vst [vmem:[%s9123] sm:$0xff] %v9107
        %9125 = vst [vmem:[%s9123 + $0x8] sm:$0xff] %v9108
        %9126 = vst [vmem:[%s9123 + $0x10] sm:$0xff] %v9109
        %9127 = vst [vmem:[%s9123 + $0x18] sm:$0xff] %v9110
        %9128 = vst [vmem:[%s9123 + $0x20] sm:$0xff] %v9111
        %9129 = vst [vmem:[%s9123 + $0x28] sm:$0xff] %v9112
        %9130 = vst [vmem:[%s9123 + $0x30] sm:$0xff] %v9113
        %9131 = vst [vmem:[%s9123 + $0x38] sm:$0xff] %v9114
        %9132 = vst [vmem:[%s9123 + $0x40] sm:$0xff] %v9115
        %9133 = vst [vmem:[%s9123 + $0x48] sm:$0xff] %v9116
        %9134 = vst [vmem:[%s9123 + $0x50] sm:$0xff] %v9117
        %9135 = vst [vmem:[%s9123 + $0x58] sm:$0xff] %v9118
        %9136 = vst [vmem:[%s9123 + $0x60] sm:$0xff] %v9119
        %9137 = vst [vmem:[%s9123 + $0x68] sm:$0xff] %v9120
        %9138 = vst [vmem:[%s9123 + $0x70] sm:$0xff] %v9121
        %9139 = vst [vmem:[%s9123 + $0x78] sm:$0xff] %v9122
        %s9140 = sand.u32 %s215, 1
        %s9141 = scalar_lea.sflag [#allocation5], %s9140
        %s9142 = sand.u32 %s215, 1
        %s9143 = smul.addr %s9142, 256
        %s9144 = scalar_lea.vmem [#allocation11], %s9143
        // Predicated region
        $region69: #{tpu_custom_call.1} parent=51 // pred_check
          %p9145 = pneg %p225
        $region70: #{tpu_custom_call.1} parent=51 // pred_check_branch
          %9147 = sbr.rel (%p9145) target = $region72
        $region71: #{tpu_custom_call.1} parent=51 // pred_region
          %s9149 = ssub.s32 4096, 4096
          %9150 = vsyncadd %s9141, %s9149
          %s9151 = smul.addr %s29, 32
          %s9152 = smul.addr %s9151, 128
          %s9153 = scalar_lea.hbm %s8, %s9152
          %s9154 = sshll.u32 %s9144, 4
          %s9155 = int_to_ptr.vmem [resolvable:$true] %s9154
          %9160 = dma.vmem_to_hbm [thread:$0]  %s9155, 4096, %s9153, %s9141, 128, 128, 8
        $region72: #{tpu_custom_call.1} parent=51 // pred_fallthru
          _
      $region52: #{tpu_custom_call.1} parent=5 // pred_fallthru
        _
      %p9161 = scmp.le.s32.totalorder 2, %s24
      // Predicated region
      $region73: #{tpu_custom_call.1} parent=5 // pred_check
        %p9162 = pneg %p9161
      $region74: #{tpu_custom_call.1} parent=5 // pred_check_branch
        %9164 = sbr.rel (%p9162) target = $region76
      $region75: #{tpu_custom_call.1} parent=5 // pred_region
        %s9165 = ssub.s32 %s24, 2
        // Predicated region
        $region77: #{tpu_custom_call.1} parent=75 // pred_check
          %p9166 = pneg %p231
        $region78: #{tpu_custom_call.1} parent=75 // pred_check_branch
          %9168 = sbr.rel (%p9166) target = $region80
        $region79: #{tpu_custom_call.1} parent=75 // pred_region
          %s9169 = sand.u32 %s216, 1
          %s9170 = scalar_lea.sflag [#allocation5], %s9169
          %s9171 = sand.u32 %s216, 1
          %s9172 = smul.addr %s9171, 256
          %s9173 = scalar_lea.vmem [#allocation11], %s9172
          %9174 = dma.done %s9170, 4096
        $region80: #{tpu_custom_call.1} parent=75 // pred_fallthru
          _
      $region76: #{tpu_custom_call.1} parent=5 // pred_fallthru
        _
    $region6: #{tpu_custom_call.1} parent=1 // loop_footer
      %s28 = sadd.s32 1, %s24
    $region7: #{tpu_custom_call.1} parent=1 // loop_footer_branch
      %23 = sbr.rel target = $region3
    $region8: #{tpu_custom_call.1} parent=1 // loop_exit
      _
    %9175 = vsyncpa [#allocation4], 1
    %s9176 = scalar_lea.sflag [#allocation4], 1
    %9177 = vsyncpa %s9176, 1
    %9178 = vsyncpa [#allocation7], 1
    %s9179 = scalar_lea.sflag [#allocation7], 1
    %9180 = vsyncpa %s9179, 1
    %9181 = vsyncpa [#allocation10], 1
    %9182 = vsyncpa [#allocation5], 1
    %s9183 = scalar_lea.sflag [#allocation5], 1
    %9184 = vsyncpa %s9183, 1

</llo_original>
